<compile_context>
chip_gen: v7x
topology: tpu7x:2x2x1
jax: 0.10.0
libtpu: 0.0.40
codegen_flags: <defaults>
</compile_context>

<pallas_src>
import functools

import jax
import jax.numpy as jnp
from jax.experimental import pallas as pl
from jax.experimental.pallas import tpu as pltpu

_TM = 256                      # GEMM row tile
_TBN = 1024                    # BatchNorm-apply row tile
_VMEM_SOFT_BUDGET = 40 << 20   # shrink TM if the per-call footprint exceeds this


def _round_up(x, m):
    return ((x + m - 1) // m) * m


def _compiler_params(need_bytes, semantics):
    vlim = int(min(max(need_bytes + (8 << 20), 32 << 20), 64 << 20))
    return pltpu.CompilerParams(dimension_semantics=semantics,
                                vmem_limit_bytes=vlim)


# ------------------------------------------------------------------
# Pallas kernels
# ------------------------------------------------------------------
def _gemm_kernel(*refs, n_a, out_act, collect_stats, m_total, tile_m):
    """Grouped GEMM:  out[g] = act(sum_i A_i[g] @ B_i[g] + bias), grid = (G, M/TM).

    B_i index maps are constant across the M axis -> weights stay resident in VMEM.
    Optionally emits per-M-tile per-channel sum / sum-of-squares partials (BN stats),
    with stale tail rows of a partial last tile masked out."""
    a_refs = refs[:n_a]
    b_refs = refs[n_a:2 * n_a]
    bias_ref = refs[2 * n_a]
    o_ref = refs[2 * n_a + 1]

    acc = jnp.dot(a_refs[0][...], b_refs[0][...],
                  preferred_element_type=jnp.float32)
    for i in range(1, n_a):
        acc += jnp.dot(a_refs[i][...], b_refs[i][...],
                       preferred_element_type=jnp.float32)
    r = acc + bias_ref[...]
    if out_act == "relu":
        r = jnp.maximum(r, 0.0)
    elif out_act == "leaky":
        r = jnp.where(r > 0, r, 0.2 * r)
    elif out_act == "tanh":
        r = jnp.tanh(r)
    o_ref[...] = r.astype(o_ref.dtype)

    if collect_stats:
        sum_ref, sq_ref = refs[2 * n_a + 2], refs[2 * n_a + 3]
        row = tile_m * pl.program_id(1) + jax.lax.broadcasted_iota(
            jnp.int32, r.shape, 0)
        rm = jnp.where(row < m_total, r, 0.0)
        sum_ref[...] = jnp.sum(rm, axis=0, keepdims=True)[None]
        sq_ref[...] = jnp.sum(rm * rm, axis=0, keepdims=True)[None]


def _bn_apply_kernel(x_ref, scale_ref, shift_ref, o_ref, *, act):
    """Fused BatchNorm scale/shift + optional LeakyReLU(0.2)/ReLU, bf16 in/out."""
    r = x_ref[...].astype(jnp.float32) * scale_ref[...] + shift_ref[...]
    if act == "relu":
        r = jnp.maximum(r, 0.0)
    elif act == "leaky":
        r = jnp.where(r > 0, r, 0.2 * r)
    o_ref[...] = r.astype(o_ref.dtype)


# ------------------------------------------------------------------
# Pallas wrappers
# ------------------------------------------------------------------
def pallas_gemm(a_list, b_list, bias, *, out_act="none",
                out_dtype=jnp.bfloat16, collect_stats=False):
    """a_list[i]:(G,M,Ki) bf16, b_list[i]:(G,Ki,N) bf16, bias:(1,1,N) f32.

    Returns (G,M,N) out_dtype  [, sum partials (G,MT,1,N) f32, sq partials (G,MT,1,N) f32].
    """
    if collect_stats:
        assert out_act == "none"
    g, m, _ = a_list[0].shape
    np_ = b_list[0].shape[-1]

    def _need(tm_):
        n = 0
        for a in a_list:
            n += 2 * tm_ * a.shape[-1] * 2          # double-buffered bf16 A tile
        for b in b_list:
            n += 2 * b.shape[1] * np_ * 2           # resident (double-buffered) bf16 B
        n += 2 * tm_ * np_ * jnp.dtype(out_dtype).itemsize
        return n

    tm = min(_TM, _round_up(m, 8))
    while tm > 64 and _need(tm) > _VMEM_SOFT_BUDGET:
        tm = _round_up(max(tm // 2, 64), 8)
    mt = pl.cdiv(m, tm)

    in_specs = []
    for a in a_list:
        in_specs.append(pl.BlockSpec((None, tm, a.shape[-1]),
                                     lambda gi, mi: (gi, mi, 0)))
    for b in b_list:
        in_specs.append(pl.BlockSpec((None, b.shape[1], np_),
                                     lambda gi, mi: (gi, 0, 0)))
    in_specs.append(pl.BlockSpec((None, 1, np_), lambda gi, mi: (0, 0, 0)))

    out_spec = pl.BlockSpec((None, tm, np_), lambda gi, mi: (gi, mi, 0))
    if collect_stats:
        stat_spec = pl.BlockSpec((None, 1, 1, np_),
                                 lambda gi, mi: (gi, mi, 0, 0))
        out_shape = (jax.ShapeDtypeStruct((g, m, np_), out_dtype),
                     jax.ShapeDtypeStruct((g, mt, 1, np_), jnp.float32),
                     jax.ShapeDtypeStruct((g, mt, 1, np_), jnp.float32))
        out_specs = (out_spec, stat_spec, stat_spec)
    else:
        out_shape = jax.ShapeDtypeStruct((g, m, np_), out_dtype)
        out_specs = out_spec

    kern = functools.partial(_gemm_kernel, n_a=len(a_list), out_act=out_act,
                             collect_stats=collect_stats, m_total=m, tile_m=tm)
    return pl.pallas_call(
        kern,
        out_shape=out_shape,
        grid=(g, mt),
        in_specs=in_specs,
        out_specs=out_specs,
        compiler_params=_compiler_params(_need(tm), ("parallel", "parallel")),
    )(*a_list, *b_list, bias)


def pallas_bn_apply(x2, scale, shift, *, act="none", out_dtype=jnp.bfloat16):
    """y = act(x * scale + shift), tiled over rows; bf16 in/out."""
    m, c = x2.shape
    tbn = min(_TBN, _round_up(m, 8))
    mt = pl.cdiv(m, tbn)
    need = 2 * tbn * c * (x2.dtype.itemsize + jnp.dtype(out_dtype).itemsize)
    return pl.pallas_call(
        functools.partial(_bn_apply_kernel, act=act),
        out_shape=jax.ShapeDtypeStruct((m, c), out_dtype),
        grid=(mt,),
        in_specs=[pl.BlockSpec((tbn, c), lambda i: (i, 0)),
                  pl.BlockSpec((1, c), lambda i: (0, 0)),
                  pl.BlockSpec((1, c), lambda i: (0, 0))],
        out_specs=pl.BlockSpec((tbn, c), lambda i: (i, 0)),
        compiler_params=_compiler_params(need, ("parallel",)),
    )(x2, scale, shift)


def _bn_finish(sum_p, sq_p, count, gamma, beta, eps=1e-5):
    """Reduce per-tile partials to per-channel scale/shift (train-mode batch stats)."""
    s = jnp.sum(sum_p, axis=(0, 1, 2))
    q = jnp.sum(sq_p, axis=(0, 1, 2))
    mean = s / count
    var = jnp.maximum(q / count - mean * mean, 0.0)       # biased variance (train mode)
    inv = jax.lax.rsqrt(var + eps)
    scale = gamma * inv
    shift = beta - mean * scale
    c = scale.shape[0]
    return (scale.reshape(1, c).astype(jnp.float32),
            shift.reshape(1, c).astype(jnp.float32))


# ------------------------------------------------------------------
# im2col / weight preparation (JAX glue; all heavy compute is in the kernels)
# ------------------------------------------------------------------
def _im2col_down(x):
    """x:(N,H,W,C) bf16 -> (N*OH*OW, 16*C) with (kh, kw, c) column order; k=4, s=2, p=1."""
    n, h, w, c = x.shape
    xp = jnp.pad(x, ((0, 0), (1, 1), (1, 1), (0, 0)))
    oh, ow = h // 2, w // 2
    cols = []
    for di in range(4):
        for dj in range(4):
            cols.append(xp[:, di:di + 2 * (oh - 1) + 1:2,
                           dj:dj + 2 * (ow - 1) + 1:2, :])
    a = jnp.stack(cols, axis=3).reshape(n * oh * ow, 16 * c)
    return a, (n, oh, ow)


def _im2col_up_phases(x):
    """x:(N,H,W,C) bf16 -> (4, N*H*W, 4*C); phases ordered (ph, pw), taps (dh, dw, c).

    ConvTranspose2d(4,2,1) output position (2p+ph, 2q+pw) depends only on the 2x2 input
    window starting at (p-1+ph, q-1+pw)."""
    n, h, w, c = x.shape
    xp = jnp.pad(x, ((0, 0), (1, 1), (1, 1), (0, 0)))
    phases = []
    for ph in range(2):
        for pw in range(2):
            cols = []
            for dh in range(2):
                for dw in range(2):
                    cols.append(xp[:, ph + dh:ph + dh + h, pw + dw:pw + dw + w, :])
            phases.append(jnp.stack(cols, axis=3).reshape(n * h * w, 4 * c))
    return jnp.stack(phases, axis=0), (n, h, w)


def _depth_to_space(out4, n, h, w, c):
    """(4, N*H*W, C), phase = ph*2+pw  ->  (N, 2H, 2W, C)."""
    out = out4.reshape(2, 2, n, h, w, c)
    return jnp.transpose(out, (2, 3, 0, 4, 1, 5)).reshape(n, 2 * h, 2 * w, c)


def _prep_down_w(w, b):
    """Conv2d weight (Cout,Cin,4,4), bias -> GEMM weight (1,16*Cin,Cout) bf16, bias (1,1,Cout) f32."""
    cout, cin, kh, kw = w.shape
    wg = jnp.transpose(w, (2, 3, 1, 0)).reshape(kh * kw * cin, cout)
    return wg.astype(jnp.bfloat16)[None], b.reshape(1, 1, cout).astype(jnp.float32)


_PHASE_TAPS = ((3, 1), (2, 0))  # output parity 0/1 -> kernel tap for window offset d=0,1


def _prep_up_w(w):
    """ConvTranspose2d weight (Cin,Cout,4,4) -> 4-phase 2x2 GEMM weights (4,4*Cin,Cout) bf16."""
    cin, cout, _, _ = w.shape
    mats = []
    for ph in range(2):
        for pw in range(2):
            taps = jnp.stack(
                [jnp.stack([w[:, :, _PHASE_TAPS[ph][dh], _PHASE_TAPS[pw][dw]]
                            for dw in range(2)], axis=0)
                 for dh in range(2)], axis=0)             # (2, 2, Cin, Cout)
            mats.append(taps.reshape(4 * cin, cout))
    return jnp.stack(mats, axis=0).astype(jnp.bfloat16)   # (4, 4*Cin, Cout)


# ------------------------------------------------------------------
# Conv building blocks
# ------------------------------------------------------------------
def conv_down(x, wg, bias, n_out, *, out_act="none", bn=None, bn_act="none",
              out_dtype=jnp.bfloat16):
    """Conv2d(4,2,1) via im2col GEMM; optional fused BN (+activation)."""
    a, (n, oh, ow) = _im2col_down(x.astype(jnp.bfloat16))
    if bn is None:
        out = pallas_gemm([a[None]], [wg], bias, out_act=out_act,
                          out_dtype=out_dtype)
        return out[0].reshape(n, oh, ow, n_out)
    out, s, q = pallas_gemm([a[None]], [wg], bias, out_act="none",
                            out_dtype=jnp.bfloat16, collect_stats=True)
    gamma, beta = bn
    scale, shift = _bn_finish(s, q, n * oh * ow, gamma, beta)
    y = pallas_bn_apply(out.reshape(n * oh * ow, n_out), scale, shift, act=bn_act)
    return y.reshape(n, oh, ow, n_out)


def conv_up(x, wgs, bias, n_out, *, out_act="none", bn=None, bn_act="none",
            out_dtype=jnp.bfloat16):
    """ConvTranspose2d(4,2,1) via 4 phase GEMMs; `x` is a tensor or a (skip, h) pair
    (the skip concat is never materialized: two A operands over disjoint K ranges)."""
    xs = x if isinstance(x, (tuple, list)) else (x,)
    assert len(xs) == len(wgs)
    a_list, shp = [], None
    for t in xs:
        a, shp = _im2col_up_phases(t.astype(jnp.bfloat16))
        a_list.append(a)
    n, h, w = shp
    m = n * h * w
    if bn is None:
        out = pallas_gemm(a_list, wgs, bias, out_act=out_act, out_dtype=out_dtype)
    else:
        out, s, q = pallas_gemm(a_list, wgs, bias, out_act="none",
                                out_dtype=jnp.bfloat16, collect_stats=True)
        gamma, beta = bn
        scale, shift = _bn_finish(s, q, 4 * m, gamma, beta)
        out = pallas_bn_apply(out.reshape(4 * m, n_out), scale, shift,
                              act=bn_act).reshape(4, m, n_out)
    return _depth_to_space(out, n, h, w, n_out)


# ------------------------------------------------------------------
# UnetSkipConnectionBlock / UnetGenerator
# ------------------------------------------------------------------
def _init_block_params(key, cfg):
    outer_nc, inner_nc = cfg["outer_nc"], cfg["inner_nc"]
    input_nc = cfg["input_nc"] if cfg["input_nc"] is not None else outer_nc
    outermost, innermost = cfg["outermost"], cfg["innermost"]
    k1, k2, k3 = jax.random.split(key, 3)
    scale = 0.05
    # downconv: Conv2d(input_nc, inner_nc, 4, 2, 1, bias=False)   (BatchNorm -> no bias)
    down_w = scale * jax.random.normal(k1, (inner_nc, input_nc, 4, 4), jnp.float32)
    down_b = jnp.zeros((inner_nc,), jnp.float32)
    up_in = inner_nc if innermost else inner_nc * 2
    # upconv: ConvTranspose2d(up_in, outer_nc, 4, 2, 1)   (bias only on outermost)
    up_w = scale * jax.random.normal(k2, (up_in, outer_nc, 4, 4), jnp.float32)
    up_b = (scale * jax.random.normal(k3, (outer_nc,), jnp.float32)
            if outermost else jnp.zeros((outer_nc,), jnp.float32))
    p = {}
    p["down_wg"], p["down_bias"] = _prep_down_w(down_w, down_b)
    if innermost:
        p["up_wgs"] = [_prep_up_w(up_w)]
    else:  # split along Cin: rows [0:inner_nc) act on the skip, [inner_nc:) on the up path
        p["up_wgs"] = [_prep_up_w(up_w[:inner_nc]), _prep_up_w(up_w[inner_nc:])]
    p["up_bias"] = up_b.reshape(1, 1, outer_nc).astype(jnp.float32)
    if not outermost and not innermost:
        p["downnorm_g"] = jnp.ones((inner_nc,), jnp.float32)
        p["downnorm_b"] = jnp.zeros((inner_nc,), jnp.float32)
    if not outermost:
        p["upnorm_g"] = jnp.ones((outer_nc,), jnp.float32)
        p["upnorm_b"] = jnp.zeros((outer_nc,), jnp.float32)
    return p


def _block_forward(p, cfg, x, sub_fn):
    """Restructured (but mathematically identical) UnetSkipConnectionBlock.forward.

    Convention: non-outermost blocks receive their input already LeakyReLU(0.2)-activated
    (fused into the producing GEMM/BN epilogue), and return the pair
    (ReLU(skip), ReLU(up-path)) -- i.e. the parent's uprelu is pre-applied, exploiting
    relu(cat([x, h])) == cat([relu(leaky(x)), relu(h)])."""
    inner_nc, outer_nc = cfg["inner_nc"], cfg["outer_nc"]
    if cfg["outermost"]:
        # down = [downconv]; the child's LeakyReLU is fused into the GEMM epilogue.
        h = conv_down(x, p["down_wg"], p["down_bias"], inner_nc, out_act="leaky")
        z = sub_fn(h)                                   # (skip, up) pair, both ReLU'd
        return conv_up(z, p["up_wgs"], p["up_bias"], outer_nc,
                       out_act="tanh", out_dtype=jnp.float32)
    if cfg["innermost"]:
        # x is pre-LeakyReLU'd; uprelu is fused into the downconv GEMM epilogue.
        h = conv_down(x, p["down_wg"], p["down_bias"], inner_nc, out_act="relu")
        h = conv_up(h, p["up_wgs"], p["up_bias"], outer_nc,
                    bn=(p["upnorm_g"], p["upnorm_b"]), bn_act="relu")
        return (jnp.maximum(x, 0), h)
    # middle block
    h = conv_down(x, p["down_wg"], p["down_bias"], inner_nc,
                  bn=(p["downnorm_g"], p["downnorm_b"]), bn_act="leaky")
    z = sub_fn(h)
    h2 = conv_up(z, p["up_wgs"], p["up_bias"], outer_nc,
                 bn=(p["upnorm_g"], p["upnorm_b"]), bn_act="relu")
    return (jnp.maximum(x, 0), h2)


def build_unet_generator(key, input_nc, output_nc, num_downs, ngf=64):
    """Mirrors UnetGenerator.__init__ (norm_layer=BatchNorm2d, use_dropout=False)."""
    configs = [dict(outer_nc=ngf * 8, inner_nc=ngf * 8, input_nc=None,
                    outermost=False, innermost=True)]
    for _ in range(num_downs - 5):
        configs.append(dict(outer_nc=ngf * 8, inner_nc=ngf * 8, input_nc=None,
                            outermost=False, innermost=False))
    configs.append(dict(outer_nc=ngf * 4, inner_nc=ngf * 8, input_nc=None,
                        outermost=False, innermost=False))
    configs.append(dict(outer_nc=ngf * 2, inner_nc=ngf * 4, input_nc=None,
                        outermost=False, innermost=False))
    configs.append(dict(outer_nc=ngf, inner_nc=ngf * 2, input_nc=None,
                        outermost=False, innermost=False))
    configs.append(dict(outer_nc=output_nc, inner_nc=ngf, input_nc=input_nc,
                        outermost=True, innermost=False))
    keys = jax.random.split(key, len(configs))
    params = [_init_block_params(k, c) for k, c in zip(keys, configs)]
    return params, configs


def unet_forward(params, configs, x_nchw):
    x = jnp.transpose(x_nchw, (0, 2, 3, 1)).astype(jnp.float32)   # NCHW -> NHWC

    def make_fn(idx):
        if idx < 0:
            return None
        sub = make_fn(idx - 1)
        p, c = params[idx], configs[idx]

        def fn(h, p=p, c=c, sub=sub):
            return _block_forward(p, c, h, sub)
        return fn

    out = make_fn(len(params) - 1)(x)
    return jnp.transpose(out, (0, 3, 1, 2))                       # NHWC -> NCHW


# ------------------------------------------------------------------
if __name__ == "__main__":
    # Small config: input 2x4x32x32, num_downs=5 (32 -> 1 at the bottleneck), ngf=8.
    key = jax.random.PRNGKey(0)
    kp, kx = jax.random.split(key)
    input_nc, output_nc, num_downs, ngf = 4, 3, 5, 8
    params, configs = build_unet_generator(kp, input_nc, output_nc, num_downs, ngf)

    x = jax.random.normal(kx, (2, input_nc, 32, 32), jnp.float32)

    fwd = jax.jit(lambda p, inp: unet_forward(p, configs, inp))
    out = jax.block_until_ready(fwd(params, x))

    assert out.shape == (2, output_nc, 32, 32), out.shape
    assert bool(jnp.all(jnp.isfinite(out)))
    assert bool(jnp.all(jnp.abs(out) <= 1.0 + 1e-6))  # final Tanh

    print("KERNEL_OK")
</pallas_src>

<mosaic_0001>
module attributes {stable_mosaic.version = 11 : i64} {
  func.func @_gemm_kernel(%arg0: i32, %arg1: i32, %arg2: memref<1x256x64xbf16, #tpu.memory_space<vmem>>, %arg3: memref<1x64x8xbf16, #tpu.memory_space<vmem>>, %arg4: memref<1x1x8xf32, #tpu.memory_space<vmem>>, %arg5: memref<1x256x8xbf16, #tpu.memory_space<vmem>>) attributes {dimension_semantics = [#tpu.dimension_semantics<parallel>, #tpu.dimension_semantics<parallel>], iteration_bounds = array<i64: 1, 2>, scalar_prefetch = 0 : i64, scratch_operands = 0 : i64, tpu.core_type = #tpu.core_type<tc>, window_params = [{transform_indices = @transform_0, window_bounds = array<i64: 1, 256, 64>}, {transform_indices = @transform_1, window_bounds = array<i64: 1, 64, 8>}, {pipeline_mode = #tpu.pipeline_mode<synchronous>, transform_indices = @transform_2, window_bounds = array<i64: 1, 1, 8>}, {transform_indices = @transform_3, window_bounds = array<i64: 1, 256, 8>}]} {
    %c0 = arith.constant 0 : index
    %c0_0 = arith.constant 0 : index
    %c0_1 = arith.constant 0 : index
    %0 = vector.load %arg2[%c0, %c0_0, %c0_1] : memref<1x256x64xbf16, #tpu.memory_space<vmem>>, vector<1x256x64xbf16>
    %1 = vector.shape_cast %0 : vector<1x256x64xbf16> to vector<256x64xbf16>
    %c0_2 = arith.constant 0 : index
    %c0_3 = arith.constant 0 : index
    %c0_4 = arith.constant 0 : index
    %2 = vector.load %arg3[%c0_2, %c0_3, %c0_4] : memref<1x64x8xbf16, #tpu.memory_space<vmem>>, vector<1x64x8xbf16>
    %3 = vector.shape_cast %2 : vector<1x64x8xbf16> to vector<64x8xbf16>
    %cst = arith.constant dense<0.000000e+00> : vector<256x8xf32>
    %4 = tpu.matmul %1, %3, %cst {dimension_numbers = #tpu.dot_dimension_numbers<[1], [0], [0], [1], [0, 0, 1, 1], [], []>} : vector<256x64xbf16>, vector<64x8xbf16>, vector<256x8xf32> -> vector<256x8xf32>
    %c0_5 = arith.constant 0 : index
    %c0_6 = arith.constant 0 : index
    %c0_7 = arith.constant 0 : index
    %5 = vector.load %arg4[%c0_5, %c0_6, %c0_7] : memref<1x1x8xf32, #tpu.memory_space<vmem>>, vector<1x1x8xf32>
    %6 = vector.shape_cast %5 : vector<1x1x8xf32> to vector<1x8xf32>
    %7 = vector.broadcast %6 : vector<1x8xf32> to vector<256x8xf32>
    %8 = arith.addf %4, %7 : vector<256x8xf32>
    %cst_8 = arith.constant 0.000000e+00 : f32
    %9 = vector.broadcast %cst_8 : f32 to vector<256x8xf32>
    %10 = arith.cmpf ogt, %8, %9 : vector<256x8xf32>
    %cst_9 = arith.constant 2.000000e-01 : f32
    %11 = vector.broadcast %cst_9 : f32 to vector<256x8xf32>
    %12 = arith.mulf %11, %8 : vector<256x8xf32>
    %13 = arith.select %10, %8, %12 : vector<256x8xi1>, vector<256x8xf32>
    %14 = arith.truncf %13 : vector<256x8xf32> to vector<256x8xbf16>
    %c0_10 = arith.constant 0 : index
    %c0_11 = arith.constant 0 : index
    %c0_12 = arith.constant 0 : index
    %15 = vector.load %arg5[%c0_10, %c0_11, %c0_12] : memref<1x256x8xbf16, #tpu.memory_space<vmem>>, vector<1x256x8xbf16>
    %16 = vector.shape_cast %15 : vector<1x256x8xbf16> to vector<256x8xbf16>
    %17 = vector.shape_cast %14 : vector<256x8xbf16> to vector<1x256x8xbf16>
    tpu.vector_store %arg5[%c0_10, %c0_11, %c0_12], %17 {strides = array<i32>} : memref<1x256x8xbf16, #tpu.memory_space<vmem>>, vector<1x256x8xbf16>,
    return
  }
  func.func @transform_0(%arg0: i32, %arg1: i32) -> (i32, i32, i32) {
    %c0_i32 = arith.constant 0 : i32
    %c0_i32_0 = arith.constant 0 : i32
    return %arg0, %arg1, %c0_i32 : i32, i32, i32
  }
  func.func @transform_1(%arg0: i32, %arg1: i32) -> (i32, i32, i32) {
    %c0_i32 = arith.constant 0 : i32
    %c0_i32_0 = arith.constant 0 : i32
    %c0_i32_1 = arith.constant 0 : i32
    return %arg0, %c0_i32, %c0_i32_0 : i32, i32, i32
  }
  func.func @transform_2(%arg0: i32, %arg1: i32) -> (i32, i32, i32) {
    %c0_i32 = arith.constant 0 : i32
    %c0_i32_0 = arith.constant 0 : i32
    %c0_i32_1 = arith.constant 0 : i32
    %c0_i32_2 = arith.constant 0 : i32
    return %c0_i32, %c0_i32_0, %c0_i32_1 : i32, i32, i32
  }
  func.func @transform_3(%arg0: i32, %arg1: i32) -> (i32, i32, i32) {
    %c0_i32 = arith.constant 0 : i32
    %c0_i32_0 = arith.constant 0 : i32
    return %arg0, %arg1, %c0_i32 : i32, i32, i32
  }
}

module attributes {stable_mosaic.version = 11 : i64} {
  func.func @_gemm_kernel(%arg0: i32, %arg1: i32, %arg2: memref<1x128x128xbf16, #tpu.memory_space<vmem>>, %arg3: memref<1x128x16xbf16, #tpu.memory_space<vmem>>, %arg4: memref<1x1x16xf32, #tpu.memory_space<vmem>>, %arg5: memref<1x128x16xbf16, #tpu.memory_space<vmem>>, %arg6: memref<1x1x1x16xf32, #tpu.memory_space<vmem>>, %arg7: memref<1x1x1x16xf32, #tpu.memory_space<vmem>>) attributes {dimension_semantics = [#tpu.dimension_semantics<parallel>, #tpu.dimension_semantics<parallel>], iteration_bounds = array<i64: 1, 1>, scalar_prefetch = 0 : i64, scratch_operands = 0 : i64, tpu.core_type = #tpu.core_type<tc>, window_params = [{transform_indices = @transform_0, window_bounds = array<i64: 1, 128, 128>}, {transform_indices = @transform_1, window_bounds = array<i64: 1, 128, 16>}, {pipeline_mode = #tpu.pipeline_mode<synchronous>, transform_indices = @transform_2, window_bounds = array<i64: 1, 1, 16>}, {transform_indices = @transform_3, window_bounds = array<i64: 1, 128, 16>}, {transform_indices = @transform_4, window_bounds = array<i64: 1, 1, 1, 16>}, {transform_indices = @transform_5, window_bounds = array<i64: 1, 1, 1, 16>}]} {
    %c0 = arith.constant 0 : index
    %c0_0 = arith.constant 0 : index
    %c0_1 = arith.constant 0 : index
    %0 = vector.load %arg2[%c0, %c0_0, %c0_1] : memref<1x128x128xbf16, #tpu.memory_space<vmem>>, vector<1x128x128xbf16>
    %1 = vector.shape_cast %0 : vector<1x128x128xbf16> to vector<128x128xbf16>
    %c0_2 = arith.constant 0 : index
    %c0_3 = arith.constant 0 : index
    %c0_4 = arith.constant 0 : index
    %2 = vector.load %arg3[%c0_2, %c0_3, %c0_4] : memref<1x128x16xbf16, #tpu.memory_space<vmem>>, vector<1x128x16xbf16>
    %3 = vector.shape_cast %2 : vector<1x128x16xbf16> to vector<128x16xbf16>
    %cst = arith.constant dense<0.000000e+00> : vector<128x16xf32>
    %4 = tpu.matmul %1, %3, %cst {dimension_numbers = #tpu.dot_dimension_numbers<[1], [0], [0], [1], [0, 0, 1, 1], [], []>} : vector<128x128xbf16>, vector<128x16xbf16>, vector<128x16xf32> -> vector<128x16xf32>
    %c0_5 = arith.constant 0 : index
    %c0_6 = arith.constant 0 : index
    %c0_7 = arith.constant 0 : index
    %5 = vector.load %arg4[%c0_5, %c0_6, %c0_7] : memref<1x1x16xf32, #tpu.memory_space<vmem>>, vector<1x1x16xf32>
    %6 = vector.shape_cast %5 : vector<1x1x16xf32> to vector<1x16xf32>
    %7 = vector.broadcast %6 : vector<1x16xf32> to vector<128x16xf32>
    %8 = arith.addf %4, %7 : vector<128x16xf32>
    %9 = arith.truncf %8 : vector<128x16xf32> to vector<128x16xbf16>
    %c0_8 = arith.constant 0 : index
    %c0_9 = arith.constant 0 : index
    %c0_10 = arith.constant 0 : index
    %10 = vector.load %arg5[%c0_8, %c0_9, %c0_10] : memref<1x128x16xbf16, #tpu.memory_space<vmem>>, vector<1x128x16xbf16>
    %11 = vector.shape_cast %10 : vector<1x128x16xbf16> to vector<128x16xbf16>
    %12 = vector.shape_cast %9 : vector<128x16xbf16> to vector<1x128x16xbf16>
    tpu.vector_store %arg5[%c0_8, %c0_9, %c0_10], %12 {strides = array<i32>} : memref<1x128x16xbf16, #tpu.memory_space<vmem>>, vector<1x128x16xbf16>,
    %c128_i32 = arith.constant 128 : i32
    %13 = arith.muli %c128_i32, %arg1 : i32
    %14 = tpu.iota {dimensions = array<i32: 0>} : vector<128x16xi32>
    %15 = vector.broadcast %13 : i32 to vector<128x16xi32>
    %16 = arith.addi %15, %14 : vector<128x16xi32>
    %c128_i32_11 = arith.constant 128 : i32
    %17 = vector.broadcast %c128_i32_11 : i32 to vector<128x16xi32>
    %18 = arith.cmpi slt, %16, %17 : vector<128x16xi32>
    %cst_12 = arith.constant 0.000000e+00 : f32
    %19 = vector.broadcast %cst_12 : f32 to vector<128x16xf32>
    %20 = arith.select %18, %8, %19 : vector<128x16xi1>, vector<128x16xf32>
    %cst_13 = arith.constant dense<0.000000e+00> : vector<16xf32>
    %21 = vector.multi_reduction <add>, %20, %cst_13 [0] : vector<128x16xf32> to vector<16xf32>
    %22 = vector.shape_cast %21 : vector<16xf32> to vector<1x16xf32>
    %23 = vector.shape_cast %22 : vector<1x16xf32> to vector<1x1x16xf32>
    %c0_14 = arith.constant 0 : index
    %c0_15 = arith.constant 0 : index
    %c0_16 = arith.constant 0 : index
    %c0_17 = arith.constant 0 : index
    %24 = vector.load %arg6[%c0_14, %c0_15, %c0_16, %c0_17] : memref<1x1x1x16xf32, #tpu.memory_space<vmem>>, vector<1x1x1x16xf32>
    %25 = vector.shape_cast %24 : vector<1x1x1x16xf32> to vector<1x1x16xf32>
    %26 = vector.shape_cast %23 : vector<1x1x16xf32> to vector<1x1x1x16xf32>
    tpu.vector_store %arg6[%c0_14, %c0_15, %c0_16, %c0_17], %26 {strides = array<i32>} : memref<1x1x1x16xf32, #tpu.memory_space<vmem>>, vector<1x1x1x16xf32>,
    %27 = arith.mulf %20, %20 : vector<128x16xf32>
    %cst_18 = arith.constant dense<0.000000e+00> : vector<16xf32>
    %28 = vector.multi_reduction <add>, %27, %cst_18 [0] : vector<128x16xf32> to vector<16xf32>
    %29 = vector.shape_cast %28 : vector<16xf32> to vector<1x16xf32>
    %30 = vector.shape_cast %29 : vector<1x16xf32> to vector<1x1x16xf32>
    %c0_19 = arith.constant 0 : index
    %c0_20 = arith.constant 0 : index
    %c0_21 = arith.constant 0 : index
    %c0_22 = arith.constant 0 : index
    %31 = vector.load %arg7[%c0_19, %c0_20, %c0_21, %c0_22] : memref<1x1x1x16xf32, #tpu.memory_space<vmem>>, vector<1x1x1x16xf32>
    %32 = vector.shape_cast %31 : vector<1x1x1x16xf32> to vector<1x1x16xf32>
    %33 = vector.shape_cast %30 : vector<1x1x16xf32> to vector<1x1x1x16xf32>
    tpu.vector_store %arg7[%c0_19, %c0_20, %c0_21, %c0_22], %33 {strides = array<i32>} : memref<1x1x1x16xf32, #tpu.memory_space<vmem>>, vector<1x1x1x16xf32>,
    return
  }
  func.func @transform_0(%arg0: i32, %arg1: i32) -> (i32, i32, i32) {
    %c0_i32 = arith.constant 0 : i32
    %c0_i32_0 = arith.constant 0 : i32
    return %arg0, %arg1, %c0_i32 : i32, i32, i32
  }
  func.func @transform_1(%arg0: i32, %arg1: i32) -> (i32, i32, i32) {
    %c0_i32 = arith.constant 0 : i32
    %c0_i32_0 = arith.constant 0 : i32
    %c0_i32_1 = arith.constant 0 : i32
    return %arg0, %c0_i32, %c0_i32_0 : i32, i32, i32
  }
  func.func @transform_2(%arg0: i32, %arg1: i32) -> (i32, i32, i32) {
    %c0_i32 = arith.constant 0 : i32
    %c0_i32_0 = arith.constant 0 : i32
    %c0_i32_1 = arith.constant 0 : i32
    %c0_i32_2 = arith.constant 0 : i32
    return %c0_i32, %c0_i32_0, %c0_i32_1 : i32, i32, i32
  }
  func.func @transform_3(%arg0: i32, %arg1: i32) -> (i32, i32, i32) {
    %c0_i32 = arith.constant 0 : i32
    %c0_i32_0 = arith.constant 0 : i32
    return %arg0, %arg1, %c0_i32 : i32, i32, i32
  }
  func.func @transform_4(%arg0: i32, %arg1: i32) -> (i32, i32, i32, i32) {
    %c0_i32 = arith.constant 0 : i32
    %c0_i32_0 = arith.constant 0 : i32
    %c0_i32_1 = arith.constant 0 : i32
    return %arg0, %arg1, %c0_i32, %c0_i32_0 : i32, i32, i32, i32
  }
  func.func @transform_5(%arg0: i32, %arg1: i32) -> (i32, i32, i32, i32) {
    %c0_i32 = arith.constant 0 : i32
    %c0_i32_0 = arith.constant 0 : i32
    %c0_i32_1 = arith.constant 0 : i32
    return %arg0, %arg1, %c0_i32, %c0_i32_0 : i32, i32, i32, i32
  }
}

module attributes {stable_mosaic.version = 11 : i64} {
  func.func @_bn_apply_kernel(%arg0: i32, %arg1: memref<128x16xbf16, #tpu.memory_space<vmem>>, %arg2: memref<1x16xf32, #tpu.memory_space<vmem>>, %arg3: memref<1x16xf32, #tpu.memory_space<vmem>>, %arg4: memref<128x16xbf16, #tpu.memory_space<vmem>>) attributes {dimension_semantics = [#tpu.dimension_semantics<parallel>], iteration_bounds = array<i64: 1>, scalar_prefetch = 0 : i64, scratch_operands = 0 : i64, tpu.core_type = #tpu.core_type<tc>, window_params = [{transform_indices = @transform_0, window_bounds = array<i64: 128, 16>}, {pipeline_mode = #tpu.pipeline_mode<synchronous>, transform_indices = @transform_1, window_bounds = array<i64: 1, 16>}, {pipeline_mode = #tpu.pipeline_mode<synchronous>, transform_indices = @transform_2, window_bounds = array<i64: 1, 16>}, {transform_indices = @transform_3, window_bounds = array<i64: 128, 16>}]} {
    %c0 = arith.constant 0 : index
    %c0_0 = arith.constant 0 : index
    %0 = vector.load %arg1[%c0, %c0_0] : memref<128x16xbf16, #tpu.memory_space<vmem>>, vector<128x16xbf16>
    %1 = arith.extf %0 : vector<128x16xbf16> to vector<128x16xf32>
    %c0_1 = arith.constant 0 : index
    %c0_2 = arith.constant 0 : index
    %2 = vector.load %arg2[%c0_1, %c0_2] : memref<1x16xf32, #tpu.memory_space<vmem>>, vector<1x16xf32>
    %3 = vector.broadcast %2 : vector<1x16xf32> to vector<128x16xf32>
    %4 = arith.mulf %1, %3 : vector<128x16xf32>
    %c0_3 = arith.constant 0 : index
    %c0_4 = arith.constant 0 : index
    %5 = vector.load %arg3[%c0_3, %c0_4] : memref<1x16xf32, #tpu.memory_space<vmem>>, vector<1x16xf32>
    %6 = vector.broadcast %5 : vector<1x16xf32> to vector<128x16xf32>
    %7 = arith.addf %4, %6 : vector<128x16xf32>
    %cst = arith.constant 0.000000e+00 : f32
    %8 = vector.broadcast %cst : f32 to vector<128x16xf32>
    %9 = arith.cmpf ogt, %7, %8 : vector<128x16xf32>
    %cst_5 = arith.constant 2.000000e-01 : f32
    %10 = vector.broadcast %cst_5 : f32 to vector<128x16xf32>
    %11 = arith.mulf %10, %7 : vector<128x16xf32>
    %12 = arith.select %9, %7, %11 : vector<128x16xi1>, vector<128x16xf32>
    %13 = arith.truncf %12 : vector<128x16xf32> to vector<128x16xbf16>
    %c0_6 = arith.constant 0 : index
    %c0_7 = arith.constant 0 : index
    %14 = vector.load %arg4[%c0_6, %c0_7] : memref<128x16xbf16, #tpu.memory_space<vmem>>, vector<128x16xbf16>
    tpu.vector_store %arg4[%c0_6, %c0_7], %13 {strides = array<i32>} : memref<128x16xbf16, #tpu.memory_space<vmem>>, vector<128x16xbf16>,
    return
  }
  func.func @transform_0(%arg0: i32) -> (i32, i32) {
    %c0_i32 = arith.constant 0 : i32
    %c0_i32_0 = arith.constant 0 : i32
    return %arg0, %c0_i32 : i32, i32
  }
  func.func @transform_1(%arg0: i32) -> (i32, i32) {
    %c0_i32 = arith.constant 0 : i32
    %c0_i32_0 = arith.constant 0 : i32
    %c0_i32_1 = arith.constant 0 : i32
    return %c0_i32, %c0_i32_0 : i32, i32
  }
  func.func @transform_2(%arg0: i32) -> (i32, i32) {
    %c0_i32 = arith.constant 0 : i32
    %c0_i32_0 = arith.constant 0 : i32
    %c0_i32_1 = arith.constant 0 : i32
    return %c0_i32, %c0_i32_0 : i32, i32
  }
  func.func @transform_3(%arg0: i32) -> (i32, i32) {
    %c0_i32 = arith.constant 0 : i32
    %c0_i32_0 = arith.constant 0 : i32
    return %arg0, %c0_i32 : i32, i32
  }
}

module attributes {stable_mosaic.version = 11 : i64} {
  func.func @_bn_apply_kernel(%arg0: i32, %arg1: memref<32x32xbf16, #tpu.memory_space<vmem>>, %arg2: memref<1x32xf32, #tpu.memory_space<vmem>>, %arg3: memref<1x32xf32, #tpu.memory_space<vmem>>, %arg4: memref<32x32xbf16, #tpu.memory_space<vmem>>) attributes {dimension_semantics = [#tpu.dimension_semantics<parallel>], iteration_bounds = array<i64: 1>, scalar_prefetch = 0 : i64, scratch_operands = 0 : i64, tpu.core_type = #tpu.core_type<tc>, window_params = [{transform_indices = @transform_0, window_bounds = array<i64: 32, 32>}, {pipeline_mode = #tpu.pipeline_mode<synchronous>, transform_indices = @transform_1, window_bounds = array<i64: 1, 32>}, {pipeline_mode = #tpu.pipeline_mode<synchronous>, transform_indices = @transform_2, window_bounds = array<i64: 1, 32>}, {transform_indices = @transform_3, window_bounds = array<i64: 32, 32>}]} {
    %c0 = arith.constant 0 : index
    %c0_0 = arith.constant 0 : index
    %0 = vector.load %arg1[%c0, %c0_0] : memref<32x32xbf16, #tpu.memory_space<vmem>>, vector<32x32xbf16>
    %1 = arith.extf %0 : vector<32x32xbf16> to vector<32x32xf32>
    %c0_1 = arith.constant 0 : index
    %c0_2 = arith.constant 0 : index
    %2 = vector.load %arg2[%c0_1, %c0_2] : memref<1x32xf32, #tpu.memory_space<vmem>>, vector<1x32xf32>
    %3 = vector.broadcast %2 : vector<1x32xf32> to vector<32x32xf32>
    %4 = arith.mulf %1, %3 : vector<32x32xf32>
    %c0_3 = arith.constant 0 : index
    %c0_4 = arith.constant 0 : index
    %5 = vector.load %arg3[%c0_3, %c0_4] : memref<1x32xf32, #tpu.memory_space<vmem>>, vector<1x32xf32>
    %6 = vector.broadcast %5 : vector<1x32xf32> to vector<32x32xf32>
    %7 = arith.addf %4, %6 : vector<32x32xf32>
    %cst = arith.constant 0.000000e+00 : f32
    %8 = vector.broadcast %cst : f32 to vector<32x32xf32>
    %9 = arith.cmpf ogt, %7, %8 : vector<32x32xf32>
    %cst_5 = arith.constant 2.000000e-01 : f32
    %10 = vector.broadcast %cst_5 : f32 to vector<32x32xf32>
    %11 = arith.mulf %10, %7 : vector<32x32xf32>
    %12 = arith.select %9, %7, %11 : vector<32x32xi1>, vector<32x32xf32>
    %13 = arith.truncf %12 : vector<32x32xf32> to vector<32x32xbf16>
    %c0_6 = arith.constant 0 : index
    %c0_7 = arith.constant 0 : index
    %14 = vector.load %arg4[%c0_6, %c0_7] : memref<32x32xbf16, #tpu.memory_space<vmem>>, vector<32x32xbf16>
    tpu.vector_store %arg4[%c0_6, %c0_7], %13 {strides = array<i32>} : memref<32x32xbf16, #tpu.memory_space<vmem>>, vector<32x32xbf16>,
    return
  }
  func.func @transform_0(%arg0: i32) -> (i32, i32) {
    %c0_i32 = arith.constant 0 : i32
    %c0_i32_0 = arith.constant 0 : i32
    return %arg0, %c0_i32 : i32, i32
  }
  func.func @transform_1(%arg0: i32) -> (i32, i32) {
    %c0_i32 = arith.constant 0 : i32
    %c0_i32_0 = arith.constant 0 : i32
    %c0_i32_1 = arith.constant 0 : i32
    return %c0_i32, %c0_i32_0 : i32, i32
  }
  func.func @transform_2(%arg0: i32) -> (i32, i32) {
    %c0_i32 = arith.constant 0 : i32
    %c0_i32_0 = arith.constant 0 : i32
    %c0_i32_1 = arith.constant 0 : i32
    return %c0_i32, %c0_i32_0 : i32, i32
  }
  func.func @transform_3(%arg0: i32) -> (i32, i32) {
    %c0_i32 = arith.constant 0 : i32
    %c0_i32_0 = arith.constant 0 : i32
    return %arg0, %c0_i32 : i32, i32
  }
}

module attributes {stable_mosaic.version = 11 : i64} {
  func.func @_gemm_kernel(%arg0: i32, %arg1: i32, %arg2: memref<1x32x256xbf16, #tpu.memory_space<vmem>>, %arg3: memref<1x256x32xbf16, #tpu.memory_space<vmem>>, %arg4: memref<1x1x32xf32, #tpu.memory_space<vmem>>, %arg5: memref<1x32x32xbf16, #tpu.memory_space<vmem>>, %arg6: memref<1x1x1x32xf32, #tpu.memory_space<vmem>>, %arg7: memref<1x1x1x32xf32, #tpu.memory_space<vmem>>) attributes {dimension_semantics = [#tpu.dimension_semantics<parallel>, #tpu.dimension_semantics<parallel>], iteration_bounds = array<i64: 1, 1>, scalar_prefetch = 0 : i64, scratch_operands = 0 : i64, tpu.core_type = #tpu.core_type<tc>, window_params = [{transform_indices = @transform_0, window_bounds = array<i64: 1, 32, 256>}, {transform_indices = @transform_1, window_bounds = array<i64: 1, 256, 32>}, {pipeline_mode = #tpu.pipeline_mode<synchronous>, transform_indices = @transform_2, window_bounds = array<i64: 1, 1, 32>}, {transform_indices = @transform_3, window_bounds = array<i64: 1, 32, 32>}, {transform_indices = @transform_4, window_bounds = array<i64: 1, 1, 1, 32>}, {transform_indices = @transform_5, window_bounds = array<i64: 1, 1, 1, 32>}]} {
    %c0 = arith.constant 0 : index
    %c0_0 = arith.constant 0 : index
    %c0_1 = arith.constant 0 : index
    %0 = vector.load %arg2[%c0, %c0_0, %c0_1] : memref<1x32x256xbf16, #tpu.memory_space<vmem>>, vector<1x32x256xbf16>
    %1 = vector.shape_cast %0 : vector<1x32x256xbf16> to vector<32x256xbf16>
    %c0_2 = arith.constant 0 : index
    %c0_3 = arith.constant 0 : index
    %c0_4 = arith.constant 0 : index
    %2 = vector.load %arg3[%c0_2, %c0_3, %c0_4] : memref<1x256x32xbf16, #tpu.memory_space<vmem>>, vector<1x256x32xbf16>
    %3 = vector.shape_cast %2 : vector<1x256x32xbf16> to vector<256x32xbf16>
    %cst = arith.constant dense<0.000000e+00> : vector<32x32xf32>
    %4 = tpu.matmul %1, %3, %cst {dimension_numbers = #tpu.dot_dimension_numbers<[1], [0], [0], [1], [0, 0, 1, 1], [], []>} : vector<32x256xbf16>, vector<256x32xbf16>, vector<32x32xf32> -> vector<32x32xf32>
    %c0_5 = arith.constant 0 : index
    %c0_6 = arith.constant 0 : index
    %c0_7 = arith.constant 0 : index
    %5 = vector.load %arg4[%c0_5, %c0_6, %c0_7] : memref<1x1x32xf32, #tpu.memory_space<vmem>>, vector<1x1x32xf32>
    %6 = vector.shape_cast %5 : vector<1x1x32xf32> to vector<1x32xf32>
    %7 = vector.broadcast %6 : vector<1x32xf32> to vector<32x32xf32>
    %8 = arith.addf %4, %7 : vector<32x32xf32>
    %9 = arith.truncf %8 : vector<32x32xf32> to vector<32x32xbf16>
    %c0_8 = arith.constant 0 : index
    %c0_9 = arith.constant 0 : index
    %c0_10 = arith.constant 0 : index
    %10 = vector.load %arg5[%c0_8, %c0_9, %c0_10] : memref<1x32x32xbf16, #tpu.memory_space<vmem>>, vector<1x32x32xbf16>
    %11 = vector.shape_cast %10 : vector<1x32x32xbf16> to vector<32x32xbf16>
    %12 = vector.shape_cast %9 : vector<32x32xbf16> to vector<1x32x32xbf16>
    tpu.vector_store %arg5[%c0_8, %c0_9, %c0_10], %12 {strides = array<i32>} : memref<1x32x32xbf16, #tpu.memory_space<vmem>>, vector<1x32x32xbf16>,
    %c32_i32 = arith.constant 32 : i32
    %13 = arith.muli %c32_i32, %arg1 : i32
    %14 = tpu.iota {dimensions = array<i32: 0>} : vector<32x32xi32>
    %15 = vector.broadcast %13 : i32 to vector<32x32xi32>
    %16 = arith.addi %15, %14 : vector<32x32xi32>
    %c32_i32_11 = arith.constant 32 : i32
    %17 = vector.broadcast %c32_i32_11 : i32 to vector<32x32xi32>
    %18 = arith.cmpi slt, %16, %17 : vector<32x32xi32>
    %cst_12 = arith.constant 0.000000e+00 : f32
    %19 = vector.broadcast %cst_12 : f32 to vector<32x32xf32>
    %20 = arith.select %18, %8, %19 : vector<32x32xi1>, vector<32x32xf32>
    %cst_13 = arith.constant dense<0.000000e+00> : vector<32xf32>
    %21 = vector.multi_reduction <add>, %20, %cst_13 [0] : vector<32x32xf32> to vector<32xf32>
    %22 = vector.shape_cast %21 : vector<32xf32> to vector<1x32xf32>
    %23 = vector.shape_cast %22 : vector<1x32xf32> to vector<1x1x32xf32>
    %c0_14 = arith.constant 0 : index
    %c0_15 = arith.constant 0 : index
    %c0_16 = arith.constant 0 : index
    %c0_17 = arith.constant 0 : index
    %24 = vector.load %arg6[%c0_14, %c0_15, %c0_16, %c0_17] : memref<1x1x1x32xf32, #tpu.memory_space<vmem>>, vector<1x1x1x32xf32>
    %25 = vector.shape_cast %24 : vector<1x1x1x32xf32> to vector<1x1x32xf32>
    %26 = vector.shape_cast %23 : vector<1x1x32xf32> to vector<1x1x1x32xf32>
    tpu.vector_store %arg6[%c0_14, %c0_15, %c0_16, %c0_17], %26 {strides = array<i32>} : memref<1x1x1x32xf32, #tpu.memory_space<vmem>>, vector<1x1x1x32xf32>,
    %27 = arith.mulf %20, %20 : vector<32x32xf32>
    %cst_18 = arith.constant dense<0.000000e+00> : vector<32xf32>
    %28 = vector.multi_reduction <add>, %27, %cst_18 [0] : vector<32x32xf32> to vector<32xf32>
    %29 = vector.shape_cast %28 : vector<32xf32> to vector<1x32xf32>
    %30 = vector.shape_cast %29 : vector<1x32xf32> to vector<1x1x32xf32>
    %c0_19 = arith.constant 0 : index
    %c0_20 = arith.constant 0 : index
    %c0_21 = arith.constant 0 : index
    %c0_22 = arith.constant 0 : index
    %31 = vector.load %arg7[%c0_19, %c0_20, %c0_21, %c0_22] : memref<1x1x1x32xf32, #tpu.memory_space<vmem>>, vector<1x1x1x32xf32>
    %32 = vector.shape_cast %31 : vector<1x1x1x32xf32> to vector<1x1x32xf32>
    %33 = vector.shape_cast %30 : vector<1x1x32xf32> to vector<1x1x1x32xf32>
    tpu.vector_store %arg7[%c0_19, %c0_20, %c0_21, %c0_22], %33 {strides = array<i32>} : memref<1x1x1x32xf32, #tpu.memory_space<vmem>>, vector<1x1x1x32xf32>,
    return
  }
  func.func @transform_0(%arg0: i32, %arg1: i32) -> (i32, i32, i32) {
    %c0_i32 = arith.constant 0 : i32
    %c0_i32_0 = arith.constant 0 : i32
    return %arg0, %arg1, %c0_i32 : i32, i32, i32
  }
  func.func @transform_1(%arg0: i32, %arg1: i32) -> (i32, i32, i32) {
    %c0_i32 = arith.constant 0 : i32
    %c0_i32_0 = arith.constant 0 : i32
    %c0_i32_1 = arith.constant 0 : i32
    return %arg0, %c0_i32, %c0_i32_0 : i32, i32, i32
  }
  func.func @transform_2(%arg0: i32, %arg1: i32) -> (i32, i32, i32) {
    %c0_i32 = arith.constant 0 : i32
    %c0_i32_0 = arith.constant 0 : i32
    %c0_i32_1 = arith.constant 0 : i32
    %c0_i32_2 = arith.constant 0 : i32
    return %c0_i32, %c0_i32_0, %c0_i32_1 : i32, i32, i32
  }
  func.func @transform_3(%arg0: i32, %arg1: i32) -> (i32, i32, i32) {
    %c0_i32 = arith.constant 0 : i32
    %c0_i32_0 = arith.constant 0 : i32
    return %arg0, %arg1, %c0_i32 : i32, i32, i32
  }
  func.func @transform_4(%arg0: i32, %arg1: i32) -> (i32, i32, i32, i32) {
    %c0_i32 = arith.constant 0 : i32
    %c0_i32_0 = arith.constant 0 : i32
    %c0_i32_1 = arith.constant 0 : i32
    return %arg0, %arg1, %c0_i32, %c0_i32_0 : i32, i32, i32, i32
  }
  func.func @transform_5(%arg0: i32, %arg1: i32) -> (i32, i32, i32, i32) {
    %c0_i32 = arith.constant 0 : i32
    %c0_i32_0 = arith.constant 0 : i32
    %c0_i32_1 = arith.constant 0 : i32
    return %arg0, %arg1, %c0_i32, %c0_i32_0 : i32, i32, i32, i32
  }
}

module attributes {stable_mosaic.version = 11 : i64} {
  func.func @_bn_apply_kernel(%arg0: i32, %arg1: memref<8x64xbf16, #tpu.memory_space<vmem>>, %arg2: memref<1x64xf32, #tpu.memory_space<vmem>>, %arg3: memref<1x64xf32, #tpu.memory_space<vmem>>, %arg4: memref<8x64xbf16, #tpu.memory_space<vmem>>) attributes {dimension_semantics = [#tpu.dimension_semantics<parallel>], iteration_bounds = array<i64: 1>, scalar_prefetch = 0 : i64, scratch_operands = 0 : i64, tpu.core_type = #tpu.core_type<tc>, window_params = [{transform_indices = @transform_0, window_bounds = array<i64: 8, 64>}, {pipeline_mode = #tpu.pipeline_mode<synchronous>, transform_indices = @transform_1, window_bounds = array<i64: 1, 64>}, {pipeline_mode = #tpu.pipeline_mode<synchronous>, transform_indices = @transform_2, window_bounds = array<i64: 1, 64>}, {transform_indices = @transform_3, window_bounds = array<i64: 8, 64>}]} {
    %c0 = arith.constant 0 : index
    %c0_0 = arith.constant 0 : index
    %0 = vector.load %arg1[%c0, %c0_0] : memref<8x64xbf16, #tpu.memory_space<vmem>>, vector<8x64xbf16>
    %1 = arith.extf %0 : vector<8x64xbf16> to vector<8x64xf32>
    %c0_1 = arith.constant 0 : index
    %c0_2 = arith.constant 0 : index
    %2 = vector.load %arg2[%c0_1, %c0_2] : memref<1x64xf32, #tpu.memory_space<vmem>>, vector<1x64xf32>
    %3 = vector.broadcast %2 : vector<1x64xf32> to vector<8x64xf32>
    %4 = arith.mulf %1, %3 : vector<8x64xf32>
    %c0_3 = arith.constant 0 : index
    %c0_4 = arith.constant 0 : index
    %5 = vector.load %arg3[%c0_3, %c0_4] : memref<1x64xf32, #tpu.memory_space<vmem>>, vector<1x64xf32>
    %6 = vector.broadcast %5 : vector<1x64xf32> to vector<8x64xf32>
    %7 = arith.addf %4, %6 : vector<8x64xf32>
    %cst = arith.constant 0.000000e+00 : f32
    %8 = vector.broadcast %cst : f32 to vector<8x64xf32>
    %9 = arith.cmpf ogt, %7, %8 : vector<8x64xf32>
    %cst_5 = arith.constant 2.000000e-01 : f32
    %10 = vector.broadcast %cst_5 : f32 to vector<8x64xf32>
    %11 = arith.mulf %10, %7 : vector<8x64xf32>
    %12 = arith.select %9, %7, %11 : vector<8x64xi1>, vector<8x64xf32>
    %13 = arith.truncf %12 : vector<8x64xf32> to vector<8x64xbf16>
    %c0_6 = arith.constant 0 : index
    %c0_7 = arith.constant 0 : index
    %14 = vector.load %arg4[%c0_6, %c0_7] : memref<8x64xbf16, #tpu.memory_space<vmem>>, vector<8x64xbf16>
    tpu.vector_store %arg4[%c0_6, %c0_7], %13 {strides = array<i32>} : memref<8x64xbf16, #tpu.memory_space<vmem>>, vector<8x64xbf16>,
    return
  }
  func.func @transform_0(%arg0: i32) -> (i32, i32) {
    %c0_i32 = arith.constant 0 : i32
    %c0_i32_0 = arith.constant 0 : i32
    return %arg0, %c0_i32 : i32, i32
  }
  func.func @transform_1(%arg0: i32) -> (i32, i32) {
    %c0_i32 = arith.constant 0 : i32
    %c0_i32_0 = arith.constant 0 : i32
    %c0_i32_1 = arith.constant 0 : i32
    return %c0_i32, %c0_i32_0 : i32, i32
  }
  func.func @transform_2(%arg0: i32) -> (i32, i32) {
    %c0_i32 = arith.constant 0 : i32
    %c0_i32_0 = arith.constant 0 : i32
    %c0_i32_1 = arith.constant 0 : i32
    return %c0_i32, %c0_i32_0 : i32, i32
  }
  func.func @transform_3(%arg0: i32) -> (i32, i32) {
    %c0_i32 = arith.constant 0 : i32
    %c0_i32_0 = arith.constant 0 : i32
    return %arg0, %c0_i32 : i32, i32
  }
}

module attributes {stable_mosaic.version = 11 : i64} {
  func.func @_gemm_kernel(%arg0: i32, %arg1: i32, %arg2: memref<1x8x512xbf16, #tpu.memory_space<vmem>>, %arg3: memref<1x512x64xbf16, #tpu.memory_space<vmem>>, %arg4: memref<1x1x64xf32, #tpu.memory_space<vmem>>, %arg5: memref<1x8x64xbf16, #tpu.memory_space<vmem>>, %arg6: memref<1x1x1x64xf32, #tpu.memory_space<vmem>>, %arg7: memref<1x1x1x64xf32, #tpu.memory_space<vmem>>) attributes {dimension_semantics = [#tpu.dimension_semantics<parallel>, #tpu.dimension_semantics<parallel>], iteration_bounds = array<i64: 1, 1>, scalar_prefetch = 0 : i64, scratch_operands = 0 : i64, tpu.core_type = #tpu.core_type<tc>, window_params = [{transform_indices = @transform_0, window_bounds = array<i64: 1, 8, 512>}, {transform_indices = @transform_1, window_bounds = array<i64: 1, 512, 64>}, {pipeline_mode = #tpu.pipeline_mode<synchronous>, transform_indices = @transform_2, window_bounds = array<i64: 1, 1, 64>}, {transform_indices = @transform_3, window_bounds = array<i64: 1, 8, 64>}, {transform_indices = @transform_4, window_bounds = array<i64: 1, 1, 1, 64>}, {transform_indices = @transform_5, window_bounds = array<i64: 1, 1, 1, 64>}]} {
    %c0 = arith.constant 0 : index
    %c0_0 = arith.constant 0 : index
    %c0_1 = arith.constant 0 : index
    %0 = vector.load %arg2[%c0, %c0_0, %c0_1] : memref<1x8x512xbf16, #tpu.memory_space<vmem>>, vector<1x8x512xbf16>
    %1 = vector.shape_cast %0 : vector<1x8x512xbf16> to vector<8x512xbf16>
    %c0_2 = arith.constant 0 : index
    %c0_3 = arith.constant 0 : index
    %c0_4 = arith.constant 0 : index
    %2 = vector.load %arg3[%c0_2, %c0_3, %c0_4] : memref<1x512x64xbf16, #tpu.memory_space<vmem>>, vector<1x512x64xbf16>
    %3 = vector.shape_cast %2 : vector<1x512x64xbf16> to vector<512x64xbf16>
    %cst = arith.constant dense<0.000000e+00> : vector<8x64xf32>
    %4 = tpu.matmul %1, %3, %cst {dimension_numbers = #tpu.dot_dimension_numbers<[1], [0], [0], [1], [0, 0, 1, 1], [], []>} : vector<8x512xbf16>, vector<512x64xbf16>, vector<8x64xf32> -> vector<8x64xf32>
    %c0_5 = arith.constant 0 : index
    %c0_6 = arith.constant 0 : index
    %c0_7 = arith.constant 0 : index
    %5 = vector.load %arg4[%c0_5, %c0_6, %c0_7] : memref<1x1x64xf32, #tpu.memory_space<vmem>>, vector<1x1x64xf32>
    %6 = vector.shape_cast %5 : vector<1x1x64xf32> to vector<1x64xf32>
    %7 = vector.broadcast %6 : vector<1x64xf32> to vector<8x64xf32>
    %8 = arith.addf %4, %7 : vector<8x64xf32>
    %9 = arith.truncf %8 : vector<8x64xf32> to vector<8x64xbf16>
    %c0_8 = arith.constant 0 : index
    %c0_9 = arith.constant 0 : index
    %c0_10 = arith.constant 0 : index
    %10 = vector.load %arg5[%c0_8, %c0_9, %c0_10] : memref<1x8x64xbf16, #tpu.memory_space<vmem>>, vector<1x8x64xbf16>
    %11 = vector.shape_cast %10 : vector<1x8x64xbf16> to vector<8x64xbf16>
    %12 = vector.shape_cast %9 : vector<8x64xbf16> to vector<1x8x64xbf16>
    tpu.vector_store %arg5[%c0_8, %c0_9, %c0_10], %12 {strides = array<i32>} : memref<1x8x64xbf16, #tpu.memory_space<vmem>>, vector<1x8x64xbf16>,
    %c8_i32 = arith.constant 8 : i32
    %13 = arith.muli %c8_i32, %arg1 : i32
    %14 = tpu.iota {dimensions = array<i32: 0>} : vector<8x64xi32>
    %15 = vector.broadcast %13 : i32 to vector<8x64xi32>
    %16 = arith.addi %15, %14 : vector<8x64xi32>
    %c8_i32_11 = arith.constant 8 : i32
    %17 = vector.broadcast %c8_i32_11 : i32 to vector<8x64xi32>
    %18 = arith.cmpi slt, %16, %17 : vector<8x64xi32>
    %cst_12 = arith.constant 0.000000e+00 : f32
    %19 = vector.broadcast %cst_12 : f32 to vector<8x64xf32>
    %20 = arith.select %18, %8, %19 : vector<8x64xi1>, vector<8x64xf32>
    %cst_13 = arith.constant dense<0.000000e+00> : vector<64xf32>
    %21 = vector.multi_reduction <add>, %20, %cst_13 [0] : vector<8x64xf32> to vector<64xf32>
    %22 = vector.shape_cast %21 : vector<64xf32> to vector<1x64xf32>
    %23 = vector.shape_cast %22 : vector<1x64xf32> to vector<1x1x64xf32>
    %c0_14 = arith.constant 0 : index
    %c0_15 = arith.constant 0 : index
    %c0_16 = arith.constant 0 : index
    %c0_17 = arith.constant 0 : index
    %24 = vector.load %arg6[%c0_14, %c0_15, %c0_16, %c0_17] : memref<1x1x1x64xf32, #tpu.memory_space<vmem>>, vector<1x1x1x64xf32>
    %25 = vector.shape_cast %24 : vector<1x1x1x64xf32> to vector<1x1x64xf32>
    %26 = vector.shape_cast %23 : vector<1x1x64xf32> to vector<1x1x1x64xf32>
    tpu.vector_store %arg6[%c0_14, %c0_15, %c0_16, %c0_17], %26 {strides = array<i32>} : memref<1x1x1x64xf32, #tpu.memory_space<vmem>>, vector<1x1x1x64xf32>,
    %27 = arith.mulf %20, %20 : vector<8x64xf32>
    %cst_18 = arith.constant dense<0.000000e+00> : vector<64xf32>
    %28 = vector.multi_reduction <add>, %27, %cst_18 [0] : vector<8x64xf32> to vector<64xf32>
    %29 = vector.shape_cast %28 : vector<64xf32> to vector<1x64xf32>
    %30 = vector.shape_cast %29 : vector<1x64xf32> to vector<1x1x64xf32>
    %c0_19 = arith.constant 0 : index
    %c0_20 = arith.constant 0 : index
    %c0_21 = arith.constant 0 : index
    %c0_22 = arith.constant 0 : index
    %31 = vector.load %arg7[%c0_19, %c0_20, %c0_21, %c0_22] : memref<1x1x1x64xf32, #tpu.memory_space<vmem>>, vector<1x1x1x64xf32>
    %32 = vector.shape_cast %31 : vector<1x1x1x64xf32> to vector<1x1x64xf32>
    %33 = vector.shape_cast %30 : vector<1x1x64xf32> to vector<1x1x1x64xf32>
    tpu.vector_store %arg7[%c0_19, %c0_20, %c0_21, %c0_22], %33 {strides = array<i32>} : memref<1x1x1x64xf32, #tpu.memory_space<vmem>>, vector<1x1x1x64xf32>,
    return
  }
  func.func @transform_0(%arg0: i32, %arg1: i32) -> (i32, i32, i32) {
    %c0_i32 = arith.constant 0 : i32
    %c0_i32_0 = arith.constant 0 : i32
    return %arg0, %arg1, %c0_i32 : i32, i32, i32
  }
  func.func @transform_1(%arg0: i32, %arg1: i32) -> (i32, i32, i32) {
    %c0_i32 = arith.constant 0 : i32
    %c0_i32_0 = arith.constant 0 : i32
    %c0_i32_1 = arith.constant 0 : i32
    return %arg0, %c0_i32, %c0_i32_0 : i32, i32, i32
  }
  func.func @transform_2(%arg0: i32, %arg1: i32) -> (i32, i32, i32) {
    %c0_i32 = arith.constant 0 : i32
    %c0_i32_0 = arith.constant 0 : i32
    %c0_i32_1 = arith.constant 0 : i32
    %c0_i32_2 = arith.constant 0 : i32
    return %c0_i32, %c0_i32_0, %c0_i32_1 : i32, i32, i32
  }
  func.func @transform_3(%arg0: i32, %arg1: i32) -> (i32, i32, i32) {
    %c0_i32 = arith.constant 0 : i32
    %c0_i32_0 = arith.constant 0 : i32
    return %arg0, %arg1, %c0_i32 : i32, i32, i32
  }
  func.func @transform_4(%arg0: i32, %arg1: i32) -> (i32, i32, i32, i32) {
    %c0_i32 = arith.constant 0 : i32
    %c0_i32_0 = arith.constant 0 : i32
    %c0_i32_1 = arith.constant 0 : i32
    return %arg0, %arg1, %c0_i32, %c0_i32_0 : i32, i32, i32, i32
  }
  func.func @transform_5(%arg0: i32, %arg1: i32) -> (i32, i32, i32, i32) {
    %c0_i32 = arith.constant 0 : i32
    %c0_i32_0 = arith.constant 0 : i32
    %c0_i32_1 = arith.constant 0 : i32
    return %arg0, %arg1, %c0_i32, %c0_i32_0 : i32, i32, i32, i32
  }
}

module attributes {stable_mosaic.version = 11 : i64} {
  func.func @_gemm_kernel(%arg0: i32, %arg1: i32, %arg2: memref<1x8x1024xbf16, #tpu.memory_space<vmem>>, %arg3: memref<1x1024x64xbf16, #tpu.memory_space<vmem>>, %arg4: memref<1x1x64xf32, #tpu.memory_space<vmem>>, %arg5: memref<1x8x64xbf16, #tpu.memory_space<vmem>>) attributes {dimension_semantics = [#tpu.dimension_semantics<parallel>, #tpu.dimension_semantics<parallel>], iteration_bounds = array<i64: 1, 1>, scalar_prefetch = 0 : i64, scratch_operands = 0 : i64, tpu.core_type = #tpu.core_type<tc>, window_params = [{transform_indices = @transform_0, window_bounds = array<i64: 1, 8, 1024>}, {transform_indices = @transform_1, window_bounds = array<i64: 1, 1024, 64>}, {pipeline_mode = #tpu.pipeline_mode<synchronous>, transform_indices = @transform_2, window_bounds = array<i64: 1, 1, 64>}, {transform_indices = @transform_3, window_bounds = array<i64: 1, 8, 64>}]} {
    %c0 = arith.constant 0 : index
    %c0_0 = arith.constant 0 : index
    %c0_1 = arith.constant 0 : index
    %0 = vector.load %arg2[%c0, %c0_0, %c0_1] : memref<1x8x1024xbf16, #tpu.memory_space<vmem>>, vector<1x8x1024xbf16>
    %1 = vector.shape_cast %0 : vector<1x8x1024xbf16> to vector<8x1024xbf16>
    %c0_2 = arith.constant 0 : index
    %c0_3 = arith.constant 0 : index
    %c0_4 = arith.constant 0 : index
    %2 = vector.load %arg3[%c0_2, %c0_3, %c0_4] : memref<1x1024x64xbf16, #tpu.memory_space<vmem>>, vector<1x1024x64xbf16>
    %3 = vector.shape_cast %2 : vector<1x1024x64xbf16> to vector<1024x64xbf16>
    %cst = arith.constant dense<0.000000e+00> : vector<8x64xf32>
    %4 = tpu.matmul %1, %3, %cst {dimension_numbers = #tpu.dot_dimension_numbers<[1], [0], [0], [1], [0, 0, 1, 1], [], []>} : vector<8x1024xbf16>, vector<1024x64xbf16>, vector<8x64xf32> -> vector<8x64xf32>
    %c0_5 = arith.constant 0 : index
    %c0_6 = arith.constant 0 : index
    %c0_7 = arith.constant 0 : index
    %5 = vector.load %arg4[%c0_5, %c0_6, %c0_7] : memref<1x1x64xf32, #tpu.memory_space<vmem>>, vector<1x1x64xf32>
    %6 = vector.shape_cast %5 : vector<1x1x64xf32> to vector<1x64xf32>
    %7 = vector.broadcast %6 : vector<1x64xf32> to vector<8x64xf32>
    %8 = arith.addf %4, %7 : vector<8x64xf32>
    %cst_8 = arith.constant 0.000000e+00 : f32
    %9 = vector.broadcast %cst_8 : f32 to vector<8x64xf32>
    %10 = arith.maximumf %8, %9 : vector<8x64xf32>
    %11 = arith.truncf %10 : vector<8x64xf32> to vector<8x64xbf16>
    %c0_9 = arith.constant 0 : index
    %c0_10 = arith.constant 0 : index
    %c0_11 = arith.constant 0 : index
    %12 = vector.load %arg5[%c0_9, %c0_10, %c0_11] : memref<1x8x64xbf16, #tpu.memory_space<vmem>>, vector<1x8x64xbf16>
    %13 = vector.shape_cast %12 : vector<1x8x64xbf16> to vector<8x64xbf16>
    %14 = vector.shape_cast %11 : vector<8x64xbf16> to vector<1x8x64xbf16>
    tpu.vector_store %arg5[%c0_9, %c0_10, %c0_11], %14 {strides = array<i32>} : memref<1x8x64xbf16, #tpu.memory_space<vmem>>, vector<1x8x64xbf16>,
    return
  }
  func.func @transform_0(%arg0: i32, %arg1: i32) -> (i32, i32, i32) {
    %c0_i32 = arith.constant 0 : i32
    %c0_i32_0 = arith.constant 0 : i32
    return %arg0, %arg1, %c0_i32 : i32, i32, i32
  }
  func.func @transform_1(%arg0: i32, %arg1: i32) -> (i32, i32, i32) {
    %c0_i32 = arith.constant 0 : i32
    %c0_i32_0 = arith.constant 0 : i32
    %c0_i32_1 = arith.constant 0 : i32
    return %arg0, %c0_i32, %c0_i32_0 : i32, i32, i32
  }
  func.func @transform_2(%arg0: i32, %arg1: i32) -> (i32, i32, i32) {
    %c0_i32 = arith.constant 0 : i32
    %c0_i32_0 = arith.constant 0 : i32
    %c0_i32_1 = arith.constant 0 : i32
    %c0_i32_2 = arith.constant 0 : i32
    return %c0_i32, %c0_i32_0, %c0_i32_1 : i32, i32, i32
  }
  func.func @transform_3(%arg0: i32, %arg1: i32) -> (i32, i32, i32) {
    %c0_i32 = arith.constant 0 : i32
    %c0_i32_0 = arith.constant 0 : i32
    return %arg0, %arg1, %c0_i32 : i32, i32, i32
  }
}

module attributes {stable_mosaic.version = 11 : i64} {
  func.func @_gemm_kernel(%arg0: i32, %arg1: i32, %arg2: memref<1x8x256xbf16, #tpu.memory_space<vmem>>, %arg3: memref<1x256x64xbf16, #tpu.memory_space<vmem>>, %arg4: memref<1x1x64xf32, #tpu.memory_space<vmem>>, %arg5: memref<1x8x64xbf16, #tpu.memory_space<vmem>>, %arg6: memref<1x1x1x64xf32, #tpu.memory_space<vmem>>, %arg7: memref<1x1x1x64xf32, #tpu.memory_space<vmem>>) attributes {dimension_semantics = [#tpu.dimension_semantics<parallel>, #tpu.dimension_semantics<parallel>], iteration_bounds = array<i64: 4, 1>, scalar_prefetch = 0 : i64, scratch_operands = 0 : i64, tpu.core_type = #tpu.core_type<tc>, window_params = [{transform_indices = @transform_0, window_bounds = array<i64: 1, 8, 256>}, {transform_indices = @transform_1, window_bounds = array<i64: 1, 256, 64>}, {pipeline_mode = #tpu.pipeline_mode<synchronous>, transform_indices = @transform_2, window_bounds = array<i64: 1, 1, 64>}, {transform_indices = @transform_3, window_bounds = array<i64: 1, 8, 64>}, {transform_indices = @transform_4, window_bounds = array<i64: 1, 1, 1, 64>}, {transform_indices = @transform_5, window_bounds = array<i64: 1, 1, 1, 64>}]} {
    %c0 = arith.constant 0 : index
    %c0_0 = arith.constant 0 : index
    %c0_1 = arith.constant 0 : index
    %0 = vector.load %arg2[%c0, %c0_0, %c0_1] : memref<1x8x256xbf16, #tpu.memory_space<vmem>>, vector<1x8x256xbf16>
    %1 = vector.shape_cast %0 : vector<1x8x256xbf16> to vector<8x256xbf16>
    %c0_2 = arith.constant 0 : index
    %c0_3 = arith.constant 0 : index
    %c0_4 = arith.constant 0 : index
    %2 = vector.load %arg3[%c0_2, %c0_3, %c0_4] : memref<1x256x64xbf16, #tpu.memory_space<vmem>>, vector<1x256x64xbf16>
    %3 = vector.shape_cast %2 : vector<1x256x64xbf16> to vector<256x64xbf16>
    %cst = arith.constant dense<0.000000e+00> : vector<8x64xf32>
    %4 = tpu.matmul %1, %3, %cst {dimension_numbers = #tpu.dot_dimension_numbers<[1], [0], [0], [1], [0, 0, 1, 1], [], []>} : vector<8x256xbf16>, vector<256x64xbf16>, vector<8x64xf32> -> vector<8x64xf32>
    %c0_5 = arith.constant 0 : index
    %c0_6 = arith.constant 0 : index
    %c0_7 = arith.constant 0 : index
    %5 = vector.load %arg4[%c0_5, %c0_6, %c0_7] : memref<1x1x64xf32, #tpu.memory_space<vmem>>, vector<1x1x64xf32>
    %6 = vector.shape_cast %5 : vector<1x1x64xf32> to vector<1x64xf32>
    %7 = vector.broadcast %6 : vector<1x64xf32> to vector<8x64xf32>
    %8 = arith.addf %4, %7 : vector<8x64xf32>
    %9 = arith.truncf %8 : vector<8x64xf32> to vector<8x64xbf16>
    %c0_8 = arith.constant 0 : index
    %c0_9 = arith.constant 0 : index
    %c0_10 = arith.constant 0 : index
    %10 = vector.load %arg5[%c0_8, %c0_9, %c0_10] : memref<1x8x64xbf16, #tpu.memory_space<vmem>>, vector<1x8x64xbf16>
    %11 = vector.shape_cast %10 : vector<1x8x64xbf16> to vector<8x64xbf16>
    %12 = vector.shape_cast %9 : vector<8x64xbf16> to vector<1x8x64xbf16>
    tpu.vector_store %arg5[%c0_8, %c0_9, %c0_10], %12 {strides = array<i32>} : memref<1x8x64xbf16, #tpu.memory_space<vmem>>, vector<1x8x64xbf16>,
    %c8_i32 = arith.constant 8 : i32
    %13 = arith.muli %c8_i32, %arg1 : i32
    %14 = tpu.iota {dimensions = array<i32: 0>} : vector<8x64xi32>
    %15 = vector.broadcast %13 : i32 to vector<8x64xi32>
    %16 = arith.addi %15, %14 : vector<8x64xi32>
    %c2_i32 = arith.constant 2 : i32
    %17 = vector.broadcast %c2_i32 : i32 to vector<8x64xi32>
    %18 = arith.cmpi slt, %16, %17 : vector<8x64xi32>
    %cst_11 = arith.constant 0.000000e+00 : f32
    %19 = vector.broadcast %cst_11 : f32 to vector<8x64xf32>
    %20 = arith.select %18, %8, %19 : vector<8x64xi1>, vector<8x64xf32>
    %cst_12 = arith.constant dense<0.000000e+00> : vector<64xf32>
    %21 = vector.multi_reduction <add>, %20, %cst_12 [0] : vector<8x64xf32> to vector<64xf32>
    %22 = vector.shape_cast %21 : vector<64xf32> to vector<1x64xf32>
    %23 = vector.shape_cast %22 : vector<1x64xf32> to vector<1x1x64xf32>
    %c0_13 = arith.constant 0 : index
    %c0_14 = arith.constant 0 : index
    %c0_15 = arith.constant 0 : index
    %c0_16 = arith.constant 0 : index
    %24 = vector.load %arg6[%c0_13, %c0_14, %c0_15, %c0_16] : memref<1x1x1x64xf32, #tpu.memory_space<vmem>>, vector<1x1x1x64xf32>
    %25 = vector.shape_cast %24 : vector<1x1x1x64xf32> to vector<1x1x64xf32>
    %26 = vector.shape_cast %23 : vector<1x1x64xf32> to vector<1x1x1x64xf32>
    tpu.vector_store %arg6[%c0_13, %c0_14, %c0_15, %c0_16], %26 {strides = array<i32>} : memref<1x1x1x64xf32, #tpu.memory_space<vmem>>, vector<1x1x1x64xf32>,
    %27 = arith.mulf %20, %20 : vector<8x64xf32>
    %cst_17 = arith.constant dense<0.000000e+00> : vector<64xf32>
    %28 = vector.multi_reduction <add>, %27, %cst_17 [0] : vector<8x64xf32> to vector<64xf32>
    %29 = vector.shape_cast %28 : vector<64xf32> to vector<1x64xf32>
    %30 = vector.shape_cast %29 : vector<1x64xf32> to vector<1x1x64xf32>
    %c0_18 = arith.constant 0 : index
    %c0_19 = arith.constant 0 : index
    %c0_20 = arith.constant 0 : index
    %c0_21 = arith.constant 0 : index
    %31 = vector.load %arg7[%c0_18, %c0_19, %c0_20, %c0_21] : memref<1x1x1x64xf32, #tpu.memory_space<vmem>>, vector<1x1x1x64xf32>
    %32 = vector.shape_cast %31 : vector<1x1x1x64xf32> to vector<1x1x64xf32>
    %33 = vector.shape_cast %30 : vector<1x1x64xf32> to vector<1x1x1x64xf32>
    tpu.vector_store %arg7[%c0_18, %c0_19, %c0_20, %c0_21], %33 {strides = array<i32>} : memref<1x1x1x64xf32, #tpu.memory_space<vmem>>, vector<1x1x1x64xf32>,
    return
  }
  func.func @transform_0(%arg0: i32, %arg1: i32) -> (i32, i32, i32) {
    %c0_i32 = arith.constant 0 : i32
    %c0_i32_0 = arith.constant 0 : i32
    return %arg0, %arg1, %c0_i32 : i32, i32, i32
  }
  func.func @transform_1(%arg0: i32, %arg1: i32) -> (i32, i32, i32) {
    %c0_i32 = arith.constant 0 : i32
    %c0_i32_0 = arith.constant 0 : i32
    %c0_i32_1 = arith.constant 0 : i32
    return %arg0, %c0_i32, %c0_i32_0 : i32, i32, i32
  }
  func.func @transform_2(%arg0: i32, %arg1: i32) -> (i32, i32, i32) {
    %c0_i32 = arith.constant 0 : i32
    %c0_i32_0 = arith.constant 0 : i32
    %c0_i32_1 = arith.constant 0 : i32
    %c0_i32_2 = arith.constant 0 : i32
    return %c0_i32, %c0_i32_0, %c0_i32_1 : i32, i32, i32
  }
  func.func @transform_3(%arg0: i32, %arg1: i32) -> (i32, i32, i32) {
    %c0_i32 = arith.constant 0 : i32
    %c0_i32_0 = arith.constant 0 : i32
    return %arg0, %arg1, %c0_i32 : i32, i32, i32
  }
  func.func @transform_4(%arg0: i32, %arg1: i32) -> (i32, i32, i32, i32) {
    %c0_i32 = arith.constant 0 : i32
    %c0_i32_0 = arith.constant 0 : i32
    %c0_i32_1 = arith.constant 0 : i32
    return %arg0, %arg1, %c0_i32, %c0_i32_0 : i32, i32, i32, i32
  }
  func.func @transform_5(%arg0: i32, %arg1: i32) -> (i32, i32, i32, i32) {
    %c0_i32 = arith.constant 0 : i32
    %c0_i32_0 = arith.constant 0 : i32
    %c0_i32_1 = arith.constant 0 : i32
    return %arg0, %arg1, %c0_i32, %c0_i32_0 : i32, i32, i32, i32
  }
}

module attributes {stable_mosaic.version = 11 : i64} {
  func.func @_bn_apply_kernel(%arg0: i32, %arg1: memref<8x64xbf16, #tpu.memory_space<vmem>>, %arg2: memref<1x64xf32, #tpu.memory_space<vmem>>, %arg3: memref<1x64xf32, #tpu.memory_space<vmem>>, %arg4: memref<8x64xbf16, #tpu.memory_space<vmem>>) attributes {dimension_semantics = [#tpu.dimension_semantics<parallel>], iteration_bounds = array<i64: 1>, scalar_prefetch = 0 : i64, scratch_operands = 0 : i64, tpu.core_type = #tpu.core_type<tc>, window_params = [{transform_indices = @transform_0, window_bounds = array<i64: 8, 64>}, {pipeline_mode = #tpu.pipeline_mode<synchronous>, transform_indices = @transform_1, window_bounds = array<i64: 1, 64>}, {pipeline_mode = #tpu.pipeline_mode<synchronous>, transform_indices = @transform_2, window_bounds = array<i64: 1, 64>}, {transform_indices = @transform_3, window_bounds = array<i64: 8, 64>}]} {
    %c0 = arith.constant 0 : index
    %c0_0 = arith.constant 0 : index
    %0 = vector.load %arg1[%c0, %c0_0] : memref<8x64xbf16, #tpu.memory_space<vmem>>, vector<8x64xbf16>
    %1 = arith.extf %0 : vector<8x64xbf16> to vector<8x64xf32>
    %c0_1 = arith.constant 0 : index
    %c0_2 = arith.constant 0 : index
    %2 = vector.load %arg2[%c0_1, %c0_2] : memref<1x64xf32, #tpu.memory_space<vmem>>, vector<1x64xf32>
    %3 = vector.broadcast %2 : vector<1x64xf32> to vector<8x64xf32>
    %4 = arith.mulf %1, %3 : vector<8x64xf32>
    %c0_3 = arith.constant 0 : index
    %c0_4 = arith.constant 0 : index
    %5 = vector.load %arg3[%c0_3, %c0_4] : memref<1x64xf32, #tpu.memory_space<vmem>>, vector<1x64xf32>
    %6 = vector.broadcast %5 : vector<1x64xf32> to vector<8x64xf32>
    %7 = arith.addf %4, %6 : vector<8x64xf32>
    %cst = arith.constant 0.000000e+00 : f32
    %8 = vector.broadcast %cst : f32 to vector<8x64xf32>
    %9 = arith.maximumf %7, %8 : vector<8x64xf32>
    %10 = arith.truncf %9 : vector<8x64xf32> to vector<8x64xbf16>
    %c0_5 = arith.constant 0 : index
    %c0_6 = arith.constant 0 : index
    %11 = vector.load %arg4[%c0_5, %c0_6] : memref<8x64xbf16, #tpu.memory_space<vmem>>, vector<8x64xbf16>
    tpu.vector_store %arg4[%c0_5, %c0_6], %10 {strides = array<i32>} : memref<8x64xbf16, #tpu.memory_space<vmem>>, vector<8x64xbf16>,
    return
  }
  func.func @transform_0(%arg0: i32) -> (i32, i32) {
    %c0_i32 = arith.constant 0 : i32
    %c0_i32_0 = arith.constant 0 : i32
    return %arg0, %c0_i32 : i32, i32
  }
  func.func @transform_1(%arg0: i32) -> (i32, i32) {
    %c0_i32 = arith.constant 0 : i32
    %c0_i32_0 = arith.constant 0 : i32
    %c0_i32_1 = arith.constant 0 : i32
    return %c0_i32, %c0_i32_0 : i32, i32
  }
  func.func @transform_2(%arg0: i32) -> (i32, i32) {
    %c0_i32 = arith.constant 0 : i32
    %c0_i32_0 = arith.constant 0 : i32
    %c0_i32_1 = arith.constant 0 : i32
    return %c0_i32, %c0_i32_0 : i32, i32
  }
  func.func @transform_3(%arg0: i32) -> (i32, i32) {
    %c0_i32 = arith.constant 0 : i32
    %c0_i32_0 = arith.constant 0 : i32
    return %arg0, %c0_i32 : i32, i32
  }
}

module attributes {stable_mosaic.version = 11 : i64} {
  func.func @_gemm_kernel(%arg0: i32, %arg1: i32, %arg2: memref<1x8x256xbf16, #tpu.memory_space<vmem>>, %arg3: memref<1x8x256xbf16, #tpu.memory_space<vmem>>, %arg4: memref<1x256x32xbf16, #tpu.memory_space<vmem>>, %arg5: memref<1x256x32xbf16, #tpu.memory_space<vmem>>, %arg6: memref<1x1x32xf32, #tpu.memory_space<vmem>>, %arg7: memref<1x8x32xbf16, #tpu.memory_space<vmem>>, %arg8: memref<1x1x1x32xf32, #tpu.memory_space<vmem>>, %arg9: memref<1x1x1x32xf32, #tpu.memory_space<vmem>>) attributes {dimension_semantics = [#tpu.dimension_semantics<parallel>, #tpu.dimension_semantics<parallel>], iteration_bounds = array<i64: 4, 1>, scalar_prefetch = 0 : i64, scratch_operands = 0 : i64, tpu.core_type = #tpu.core_type<tc>, window_params = [{transform_indices = @transform_0, window_bounds = array<i64: 1, 8, 256>}, {transform_indices = @transform_1, window_bounds = array<i64: 1, 8, 256>}, {transform_indices = @transform_2, window_bounds = array<i64: 1, 256, 32>}, {transform_indices = @transform_3, window_bounds = array<i64: 1, 256, 32>}, {pipeline_mode = #tpu.pipeline_mode<synchronous>, transform_indices = @transform_4, window_bounds = array<i64: 1, 1, 32>}, {transform_indices = @transform_5, window_bounds = array<i64: 1, 8, 32>}, {transform_indices = @transform_6, window_bounds = array<i64: 1, 1, 1, 32>}, {transform_indices = @transform_7, window_bounds = array<i64: 1, 1, 1, 32>}]} {
    %c0 = arith.constant 0 : index
    %c0_0 = arith.constant 0 : index
    %c0_1 = arith.constant 0 : index
    %0 = vector.load %arg2[%c0, %c0_0, %c0_1] : memref<1x8x256xbf16, #tpu.memory_space<vmem>>, vector<1x8x256xbf16>
    %1 = vector.shape_cast %0 : vector<1x8x256xbf16> to vector<8x256xbf16>
    %c0_2 = arith.constant 0 : index
    %c0_3 = arith.constant 0 : index
    %c0_4 = arith.constant 0 : index
    %2 = vector.load %arg4[%c0_2, %c0_3, %c0_4] : memref<1x256x32xbf16, #tpu.memory_space<vmem>>, vector<1x256x32xbf16>
    %3 = vector.shape_cast %2 : vector<1x256x32xbf16> to vector<256x32xbf16>
    %cst = arith.constant dense<0.000000e+00> : vector<8x32xf32>
    %4 = tpu.matmul %1, %3, %cst {dimension_numbers = #tpu.dot_dimension_numbers<[1], [0], [0], [1], [0, 0, 1, 1], [], []>} : vector<8x256xbf16>, vector<256x32xbf16>, vector<8x32xf32> -> vector<8x32xf32>
    %c0_5 = arith.constant 0 : index
    %c0_6 = arith.constant 0 : index
    %c0_7 = arith.constant 0 : index
    %5 = vector.load %arg3[%c0_5, %c0_6, %c0_7] : memref<1x8x256xbf16, #tpu.memory_space<vmem>>, vector<1x8x256xbf16>
    %6 = vector.shape_cast %5 : vector<1x8x256xbf16> to vector<8x256xbf16>
    %c0_8 = arith.constant 0 : index
    %c0_9 = arith.constant 0 : index
    %c0_10 = arith.constant 0 : index
    %7 = vector.load %arg5[%c0_8, %c0_9, %c0_10] : memref<1x256x32xbf16, #tpu.memory_space<vmem>>, vector<1x256x32xbf16>
    %8 = vector.shape_cast %7 : vector<1x256x32xbf16> to vector<256x32xbf16>
    %cst_11 = arith.constant dense<0.000000e+00> : vector<8x32xf32>
    %9 = tpu.matmul %6, %8, %cst_11 {dimension_numbers = #tpu.dot_dimension_numbers<[1], [0], [0], [1], [0, 0, 1, 1], [], []>} : vector<8x256xbf16>, vector<256x32xbf16>, vector<8x32xf32> -> vector<8x32xf32>
    %10 = arith.addf %4, %9 : vector<8x32xf32>
    %c0_12 = arith.constant 0 : index
    %c0_13 = arith.constant 0 : index
    %c0_14 = arith.constant 0 : index
    %11 = vector.load %arg6[%c0_12, %c0_13, %c0_14] : memref<1x1x32xf32, #tpu.memory_space<vmem>>, vector<1x1x32xf32>
    %12 = vector.shape_cast %11 : vector<1x1x32xf32> to vector<1x32xf32>
    %13 = vector.broadcast %12 : vector<1x32xf32> to vector<8x32xf32>
    %14 = arith.addf %10, %13 : vector<8x32xf32>
    %15 = arith.truncf %14 : vector<8x32xf32> to vector<8x32xbf16>
    %c0_15 = arith.constant 0 : index
    %c0_16 = arith.constant 0 : index
    %c0_17 = arith.constant 0 : index
    %16 = vector.load %arg7[%c0_15, %c0_16, %c0_17] : memref<1x8x32xbf16, #tpu.memory_space<vmem>>, vector<1x8x32xbf16>
    %17 = vector.shape_cast %16 : vector<1x8x32xbf16> to vector<8x32xbf16>
    %18 = vector.shape_cast %15 : vector<8x32xbf16> to vector<1x8x32xbf16>
    tpu.vector_store %arg7[%c0_15, %c0_16, %c0_17], %18 {strides = array<i32>} : memref<1x8x32xbf16, #tpu.memory_space<vmem>>, vector<1x8x32xbf16>,
    %c8_i32 = arith.constant 8 : i32
    %19 = arith.muli %c8_i32, %arg1 : i32
    %20 = tpu.iota {dimensions = array<i32: 0>} : vector<8x32xi32>
    %21 = vector.broadcast %19 : i32 to vector<8x32xi32>
    %22 = arith.addi %21, %20 : vector<8x32xi32>
    %c8_i32_18 = arith.constant 8 : i32
    %23 = vector.broadcast %c8_i32_18 : i32 to vector<8x32xi32>
    %24 = arith.cmpi slt, %22, %23 : vector<8x32xi32>
    %cst_19 = arith.constant 0.000000e+00 : f32
    %25 = vector.broadcast %cst_19 : f32 to vector<8x32xf32>
    %26 = arith.select %24, %14, %25 : vector<8x32xi1>, vector<8x32xf32>
    %cst_20 = arith.constant dense<0.000000e+00> : vector<32xf32>
    %27 = vector.multi_reduction <add>, %26, %cst_20 [0] : vector<8x32xf32> to vector<32xf32>
    %28 = vector.shape_cast %27 : vector<32xf32> to vector<1x32xf32>
    %29 = vector.shape_cast %28 : vector<1x32xf32> to vector<1x1x32xf32>
    %c0_21 = arith.constant 0 : index
    %c0_22 = arith.constant 0 : index
    %c0_23 = arith.constant 0 : index
    %c0_24 = arith.constant 0 : index
    %30 = vector.load %arg8[%c0_21, %c0_22, %c0_23, %c0_24] : memref<1x1x1x32xf32, #tpu.memory_space<vmem>>, vector<1x1x1x32xf32>
    %31 = vector.shape_cast %30 : vector<1x1x1x32xf32> to vector<1x1x32xf32>
    %32 = vector.shape_cast %29 : vector<1x1x32xf32> to vector<1x1x1x32xf32>
    tpu.vector_store %arg8[%c0_21, %c0_22, %c0_23, %c0_24], %32 {strides = array<i32>} : memref<1x1x1x32xf32, #tpu.memory_space<vmem>>, vector<1x1x1x32xf32>,
    %33 = arith.mulf %26, %26 : vector<8x32xf32>
    %cst_25 = arith.constant dense<0.000000e+00> : vector<32xf32>
    %34 = vector.multi_reduction <add>, %33, %cst_25 [0] : vector<8x32xf32> to vector<32xf32>
    %35 = vector.shape_cast %34 : vector<32xf32> to vector<1x32xf32>
    %36 = vector.shape_cast %35 : vector<1x32xf32> to vector<1x1x32xf32>
    %c0_26 = arith.constant 0 : index
    %c0_27 = arith.constant 0 : index
    %c0_28 = arith.constant 0 : index
    %c0_29 = arith.constant 0 : index
    %37 = vector.load %arg9[%c0_26, %c0_27, %c0_28, %c0_29] : memref<1x1x1x32xf32, #tpu.memory_space<vmem>>, vector<1x1x1x32xf32>
    %38 = vector.shape_cast %37 : vector<1x1x1x32xf32> to vector<1x1x32xf32>
    %39 = vector.shape_cast %36 : vector<1x1x32xf32> to vector<1x1x1x32xf32>
    tpu.vector_store %arg9[%c0_26, %c0_27, %c0_28, %c0_29], %39 {strides = array<i32>} : memref<1x1x1x32xf32, #tpu.memory_space<vmem>>, vector<1x1x1x32xf32>,
    return
  }
  func.func @transform_0(%arg0: i32, %arg1: i32) -> (i32, i32, i32) {
    %c0_i32 = arith.constant 0 : i32
    %c0_i32_0 = arith.constant 0 : i32
    return %arg0, %arg1, %c0_i32 : i32, i32, i32
  }
  func.func @transform_1(%arg0: i32, %arg1: i32) -> (i32, i32, i32) {
    %c0_i32 = arith.constant 0 : i32
    %c0_i32_0 = arith.constant 0 : i32
    return %arg0, %arg1, %c0_i32 : i32, i32, i32
  }
  func.func @transform_2(%arg0: i32, %arg1: i32) -> (i32, i32, i32) {
    %c0_i32 = arith.constant 0 : i32
    %c0_i32_0 = arith.constant 0 : i32
    %c0_i32_1 = arith.constant 0 : i32
    return %arg0, %c0_i32, %c0_i32_0 : i32, i32, i32
  }
  func.func @transform_3(%arg0: i32, %arg1: i32) -> (i32, i32, i32) {
    %c0_i32 = arith.constant 0 : i32
    %c0_i32_0 = arith.constant 0 : i32
    %c0_i32_1 = arith.constant 0 : i32
    return %arg0, %c0_i32, %c0_i32_0 : i32, i32, i32
  }
  func.func @transform_4(%arg0: i32, %arg1: i32) -> (i32, i32, i32) {
    %c0_i32 = arith.constant 0 : i32
    %c0_i32_0 = arith.constant 0 : i32
    %c0_i32_1 = arith.constant 0 : i32
    %c0_i32_2 = arith.constant 0 : i32
    return %c0_i32, %c0_i32_0, %c0_i32_1 : i32, i32, i32
  }
  func.func @transform_5(%arg0: i32, %arg1: i32) -> (i32, i32, i32) {
    %c0_i32 = arith.constant 0 : i32
    %c0_i32_0 = arith.constant 0 : i32
    return %arg0, %arg1, %c0_i32 : i32, i32, i32
  }
  func.func @transform_6(%arg0: i32, %arg1: i32) -> (i32, i32, i32, i32) {
    %c0_i32 = arith.constant 0 : i32
    %c0_i32_0 = arith.constant 0 : i32
    %c0_i32_1 = arith.constant 0 : i32
    return %arg0, %arg1, %c0_i32, %c0_i32_0 : i32, i32, i32, i32
  }
  func.func @transform_7(%arg0: i32, %arg1: i32) -> (i32, i32, i32, i32) {
    %c0_i32 = arith.constant 0 : i32
    %c0_i32_0 = arith.constant 0 : i32
    %c0_i32_1 = arith.constant 0 : i32
    return %arg0, %arg1, %c0_i32, %c0_i32_0 : i32, i32, i32, i32
  }
}

module attributes {stable_mosaic.version = 11 : i64} {
  func.func @_bn_apply_kernel(%arg0: i32, %arg1: memref<32x32xbf16, #tpu.memory_space<vmem>>, %arg2: memref<1x32xf32, #tpu.memory_space<vmem>>, %arg3: memref<1x32xf32, #tpu.memory_space<vmem>>, %arg4: memref<32x32xbf16, #tpu.memory_space<vmem>>) attributes {dimension_semantics = [#tpu.dimension_semantics<parallel>], iteration_bounds = array<i64: 1>, scalar_prefetch = 0 : i64, scratch_operands = 0 : i64, tpu.core_type = #tpu.core_type<tc>, window_params = [{transform_indices = @transform_0, window_bounds = array<i64: 32, 32>}, {pipeline_mode = #tpu.pipeline_mode<synchronous>, transform_indices = @transform_1, window_bounds = array<i64: 1, 32>}, {pipeline_mode = #tpu.pipeline_mode<synchronous>, transform_indices = @transform_2, window_bounds = array<i64: 1, 32>}, {transform_indices = @transform_3, window_bounds = array<i64: 32, 32>}]} {
    %c0 = arith.constant 0 : index
    %c0_0 = arith.constant 0 : index
    %0 = vector.load %arg1[%c0, %c0_0] : memref<32x32xbf16, #tpu.memory_space<vmem>>, vector<32x32xbf16>
    %1 = arith.extf %0 : vector<32x32xbf16> to vector<32x32xf32>
    %c0_1 = arith.constant 0 : index
    %c0_2 = arith.constant 0 : index
    %2 = vector.load %arg2[%c0_1, %c0_2] : memref<1x32xf32, #tpu.memory_space<vmem>>, vector<1x32xf32>
    %3 = vector.broadcast %2 : vector<1x32xf32> to vector<32x32xf32>
    %4 = arith.mulf %1, %3 : vector<32x32xf32>
    %c0_3 = arith.constant 0 : index
    %c0_4 = arith.constant 0 : index
    %5 = vector.load %arg3[%c0_3, %c0_4] : memref<1x32xf32, #tpu.memory_space<vmem>>, vector<1x32xf32>
    %6 = vector.broadcast %5 : vector<1x32xf32> to vector<32x32xf32>
    %7 = arith.addf %4, %6 : vector<32x32xf32>
    %cst = arith.constant 0.000000e+00 : f32
    %8 = vector.broadcast %cst : f32 to vector<32x32xf32>
    %9 = arith.maximumf %7, %8 : vector<32x32xf32>
    %10 = arith.truncf %9 : vector<32x32xf32> to vector<32x32xbf16>
    %c0_5 = arith.constant 0 : index
    %c0_6 = arith.constant 0 : index
    %11 = vector.load %arg4[%c0_5, %c0_6] : memref<32x32xbf16, #tpu.memory_space<vmem>>, vector<32x32xbf16>
    tpu.vector_store %arg4[%c0_5, %c0_6], %10 {strides = array<i32>} : memref<32x32xbf16, #tpu.memory_space<vmem>>, vector<32x32xbf16>,
    return
  }
  func.func @transform_0(%arg0: i32) -> (i32, i32) {
    %c0_i32 = arith.constant 0 : i32
    %c0_i32_0 = arith.constant 0 : i32
    return %arg0, %c0_i32 : i32, i32
  }
  func.func @transform_1(%arg0: i32) -> (i32, i32) {
    %c0_i32 = arith.constant 0 : i32
    %c0_i32_0 = arith.constant 0 : i32
    %c0_i32_1 = arith.constant 0 : i32
    return %c0_i32, %c0_i32_0 : i32, i32
  }
  func.func @transform_2(%arg0: i32) -> (i32, i32) {
    %c0_i32 = arith.constant 0 : i32
    %c0_i32_0 = arith.constant 0 : i32
    %c0_i32_1 = arith.constant 0 : i32
    return %c0_i32, %c0_i32_0 : i32, i32
  }
  func.func @transform_3(%arg0: i32) -> (i32, i32) {
    %c0_i32 = arith.constant 0 : i32
    %c0_i32_0 = arith.constant 0 : i32
    return %arg0, %c0_i32 : i32, i32
  }
}

module attributes {stable_mosaic.version = 11 : i64} {
  func.func @_bn_apply_kernel(%arg0: i32, %arg1: memref<128x16xbf16, #tpu.memory_space<vmem>>, %arg2: memref<1x16xf32, #tpu.memory_space<vmem>>, %arg3: memref<1x16xf32, #tpu.memory_space<vmem>>, %arg4: memref<128x16xbf16, #tpu.memory_space<vmem>>) attributes {dimension_semantics = [#tpu.dimension_semantics<parallel>], iteration_bounds = array<i64: 1>, scalar_prefetch = 0 : i64, scratch_operands = 0 : i64, tpu.core_type = #tpu.core_type<tc>, window_params = [{transform_indices = @transform_0, window_bounds = array<i64: 128, 16>}, {pipeline_mode = #tpu.pipeline_mode<synchronous>, transform_indices = @transform_1, window_bounds = array<i64: 1, 16>}, {pipeline_mode = #tpu.pipeline_mode<synchronous>, transform_indices = @transform_2, window_bounds = array<i64: 1, 16>}, {transform_indices = @transform_3, window_bounds = array<i64: 128, 16>}]} {
    %c0 = arith.constant 0 : index
    %c0_0 = arith.constant 0 : index
    %0 = vector.load %arg1[%c0, %c0_0] : memref<128x16xbf16, #tpu.memory_space<vmem>>, vector<128x16xbf16>
    %1 = arith.extf %0 : vector<128x16xbf16> to vector<128x16xf32>
    %c0_1 = arith.constant 0 : index
    %c0_2 = arith.constant 0 : index
    %2 = vector.load %arg2[%c0_1, %c0_2] : memref<1x16xf32, #tpu.memory_space<vmem>>, vector<1x16xf32>
    %3 = vector.broadcast %2 : vector<1x16xf32> to vector<128x16xf32>
    %4 = arith.mulf %1, %3 : vector<128x16xf32>
    %c0_3 = arith.constant 0 : index
    %c0_4 = arith.constant 0 : index
    %5 = vector.load %arg3[%c0_3, %c0_4] : memref<1x16xf32, #tpu.memory_space<vmem>>, vector<1x16xf32>
    %6 = vector.broadcast %5 : vector<1x16xf32> to vector<128x16xf32>
    %7 = arith.addf %4, %6 : vector<128x16xf32>
    %cst = arith.constant 0.000000e+00 : f32
    %8 = vector.broadcast %cst : f32 to vector<128x16xf32>
    %9 = arith.maximumf %7, %8 : vector<128x16xf32>
    %10 = arith.truncf %9 : vector<128x16xf32> to vector<128x16xbf16>
    %c0_5 = arith.constant 0 : index
    %c0_6 = arith.constant 0 : index
    %11 = vector.load %arg4[%c0_5, %c0_6] : memref<128x16xbf16, #tpu.memory_space<vmem>>, vector<128x16xbf16>
    tpu.vector_store %arg4[%c0_5, %c0_6], %10 {strides = array<i32>} : memref<128x16xbf16, #tpu.memory_space<vmem>>, vector<128x16xbf16>,
    return
  }
  func.func @transform_0(%arg0: i32) -> (i32, i32) {
    %c0_i32 = arith.constant 0 : i32
    %c0_i32_0 = arith.constant 0 : i32
    return %arg0, %c0_i32 : i32, i32
  }
  func.func @transform_1(%arg0: i32) -> (i32, i32) {
    %c0_i32 = arith.constant 0 : i32
    %c0_i32_0 = arith.constant 0 : i32
    %c0_i32_1 = arith.constant 0 : i32
    return %c0_i32, %c0_i32_0 : i32, i32
  }
  func.func @transform_2(%arg0: i32) -> (i32, i32) {
    %c0_i32 = arith.constant 0 : i32
    %c0_i32_0 = arith.constant 0 : i32
    %c0_i32_1 = arith.constant 0 : i32
    return %c0_i32, %c0_i32_0 : i32, i32
  }
  func.func @transform_3(%arg0: i32) -> (i32, i32) {
    %c0_i32 = arith.constant 0 : i32
    %c0_i32_0 = arith.constant 0 : i32
    return %arg0, %c0_i32 : i32, i32
  }
}

module attributes {stable_mosaic.version = 11 : i64} {
  func.func @_gemm_kernel(%arg0: i32, %arg1: i32, %arg2: memref<1x32x128xbf16, #tpu.memory_space<vmem>>, %arg3: memref<1x32x128xbf16, #tpu.memory_space<vmem>>, %arg4: memref<1x128x16xbf16, #tpu.memory_space<vmem>>, %arg5: memref<1x128x16xbf16, #tpu.memory_space<vmem>>, %arg6: memref<1x1x16xf32, #tpu.memory_space<vmem>>, %arg7: memref<1x32x16xbf16, #tpu.memory_space<vmem>>, %arg8: memref<1x1x1x16xf32, #tpu.memory_space<vmem>>, %arg9: memref<1x1x1x16xf32, #tpu.memory_space<vmem>>) attributes {dimension_semantics = [#tpu.dimension_semantics<parallel>, #tpu.dimension_semantics<parallel>], iteration_bounds = array<i64: 4, 1>, scalar_prefetch = 0 : i64, scratch_operands = 0 : i64, tpu.core_type = #tpu.core_type<tc>, window_params = [{transform_indices = @transform_0, window_bounds = array<i64: 1, 32, 128>}, {transform_indices = @transform_1, window_bounds = array<i64: 1, 32, 128>}, {transform_indices = @transform_2, window_bounds = array<i64: 1, 128, 16>}, {transform_indices = @transform_3, window_bounds = array<i64: 1, 128, 16>}, {pipeline_mode = #tpu.pipeline_mode<synchronous>, transform_indices = @transform_4, window_bounds = array<i64: 1, 1, 16>}, {transform_indices = @transform_5, window_bounds = array<i64: 1, 32, 16>}, {transform_indices = @transform_6, window_bounds = array<i64: 1, 1, 1, 16>}, {transform_indices = @transform_7, window_bounds = array<i64: 1, 1, 1, 16>}]} {
    %c0 = arith.constant 0 : index
    %c0_0 = arith.constant 0 : index
    %c0_1 = arith.constant 0 : index
    %0 = vector.load %arg2[%c0, %c0_0, %c0_1] : memref<1x32x128xbf16, #tpu.memory_space<vmem>>, vector<1x32x128xbf16>
    %1 = vector.shape_cast %0 : vector<1x32x128xbf16> to vector<32x128xbf16>
    %c0_2 = arith.constant 0 : index
    %c0_3 = arith.constant 0 : index
    %c0_4 = arith.constant 0 : index
    %2 = vector.load %arg4[%c0_2, %c0_3, %c0_4] : memref<1x128x16xbf16, #tpu.memory_space<vmem>>, vector<1x128x16xbf16>
    %3 = vector.shape_cast %2 : vector<1x128x16xbf16> to vector<128x16xbf16>
    %cst = arith.constant dense<0.000000e+00> : vector<32x16xf32>
    %4 = tpu.matmul %1, %3, %cst {dimension_numbers = #tpu.dot_dimension_numbers<[1], [0], [0], [1], [0, 0, 1, 1], [], []>} : vector<32x128xbf16>, vector<128x16xbf16>, vector<32x16xf32> -> vector<32x16xf32>
    %c0_5 = arith.constant 0 : index
    %c0_6 = arith.constant 0 : index
    %c0_7 = arith.constant 0 : index
    %5 = vector.load %arg3[%c0_5, %c0_6, %c0_7] : memref<1x32x128xbf16, #tpu.memory_space<vmem>>, vector<1x32x128xbf16>
    %6 = vector.shape_cast %5 : vector<1x32x128xbf16> to vector<32x128xbf16>
    %c0_8 = arith.constant 0 : index
    %c0_9 = arith.constant 0 : index
    %c0_10 = arith.constant 0 : index
    %7 = vector.load %arg5[%c0_8, %c0_9, %c0_10] : memref<1x128x16xbf16, #tpu.memory_space<vmem>>, vector<1x128x16xbf16>
    %8 = vector.shape_cast %7 : vector<1x128x16xbf16> to vector<128x16xbf16>
    %cst_11 = arith.constant dense<0.000000e+00> : vector<32x16xf32>
    %9 = tpu.matmul %6, %8, %cst_11 {dimension_numbers = #tpu.dot_dimension_numbers<[1], [0], [0], [1], [0, 0, 1, 1], [], []>} : vector<32x128xbf16>, vector<128x16xbf16>, vector<32x16xf32> -> vector<32x16xf32>
    %10 = arith.addf %4, %9 : vector<32x16xf32>
    %c0_12 = arith.constant 0 : index
    %c0_13 = arith.constant 0 : index
    %c0_14 = arith.constant 0 : index
    %11 = vector.load %arg6[%c0_12, %c0_13, %c0_14] : memref<1x1x16xf32, #tpu.memory_space<vmem>>, vector<1x1x16xf32>
    %12 = vector.shape_cast %11 : vector<1x1x16xf32> to vector<1x16xf32>
    %13 = vector.broadcast %12 : vector<1x16xf32> to vector<32x16xf32>
    %14 = arith.addf %10, %13 : vector<32x16xf32>
    %15 = arith.truncf %14 : vector<32x16xf32> to vector<32x16xbf16>
    %c0_15 = arith.constant 0 : index
    %c0_16 = arith.constant 0 : index
    %c0_17 = arith.constant 0 : index
    %16 = vector.load %arg7[%c0_15, %c0_16, %c0_17] : memref<1x32x16xbf16, #tpu.memory_space<vmem>>, vector<1x32x16xbf16>
    %17 = vector.shape_cast %16 : vector<1x32x16xbf16> to vector<32x16xbf16>
    %18 = vector.shape_cast %15 : vector<32x16xbf16> to vector<1x32x16xbf16>
    tpu.vector_store %arg7[%c0_15, %c0_16, %c0_17], %18 {strides = array<i32>} : memref<1x32x16xbf16, #tpu.memory_space<vmem>>, vector<1x32x16xbf16>,
    %c32_i32 = arith.constant 32 : i32
    %19 = arith.muli %c32_i32, %arg1 : i32
    %20 = tpu.iota {dimensions = array<i32: 0>} : vector<32x16xi32>
    %21 = vector.broadcast %19 : i32 to vector<32x16xi32>
    %22 = arith.addi %21, %20 : vector<32x16xi32>
    %c32_i32_18 = arith.constant 32 : i32
    %23 = vector.broadcast %c32_i32_18 : i32 to vector<32x16xi32>
    %24 = arith.cmpi slt, %22, %23 : vector<32x16xi32>
    %cst_19 = arith.constant 0.000000e+00 : f32
    %25 = vector.broadcast %cst_19 : f32 to vector<32x16xf32>
    %26 = arith.select %24, %14, %25 : vector<32x16xi1>, vector<32x16xf32>
    %cst_20 = arith.constant dense<0.000000e+00> : vector<16xf32>
    %27 = vector.multi_reduction <add>, %26, %cst_20 [0] : vector<32x16xf32> to vector<16xf32>
    %28 = vector.shape_cast %27 : vector<16xf32> to vector<1x16xf32>
    %29 = vector.shape_cast %28 : vector<1x16xf32> to vector<1x1x16xf32>
    %c0_21 = arith.constant 0 : index
    %c0_22 = arith.constant 0 : index
    %c0_23 = arith.constant 0 : index
    %c0_24 = arith.constant 0 : index
    %30 = vector.load %arg8[%c0_21, %c0_22, %c0_23, %c0_24] : memref<1x1x1x16xf32, #tpu.memory_space<vmem>>, vector<1x1x1x16xf32>
    %31 = vector.shape_cast %30 : vector<1x1x1x16xf32> to vector<1x1x16xf32>
    %32 = vector.shape_cast %29 : vector<1x1x16xf32> to vector<1x1x1x16xf32>
    tpu.vector_store %arg8[%c0_21, %c0_22, %c0_23, %c0_24], %32 {strides = array<i32>} : memref<1x1x1x16xf32, #tpu.memory_space<vmem>>, vector<1x1x1x16xf32>,
    %33 = arith.mulf %26, %26 : vector<32x16xf32>
    %cst_25 = arith.constant dense<0.000000e+00> : vector<16xf32>
    %34 = vector.multi_reduction <add>, %33, %cst_25 [0] : vector<32x16xf32> to vector<16xf32>
    %35 = vector.shape_cast %34 : vector<16xf32> to vector<1x16xf32>
    %36 = vector.shape_cast %35 : vector<1x16xf32> to vector<1x1x16xf32>
    %c0_26 = arith.constant 0 : index
    %c0_27 = arith.constant 0 : index
    %c0_28 = arith.constant 0 : index
    %c0_29 = arith.constant 0 : index
    %37 = vector.load %arg9[%c0_26, %c0_27, %c0_28, %c0_29] : memref<1x1x1x16xf32, #tpu.memory_space<vmem>>, vector<1x1x1x16xf32>
    %38 = vector.shape_cast %37 : vector<1x1x1x16xf32> to vector<1x1x16xf32>
    %39 = vector.shape_cast %36 : vector<1x1x16xf32> to vector<1x1x1x16xf32>
    tpu.vector_store %arg9[%c0_26, %c0_27, %c0_28, %c0_29], %39 {strides = array<i32>} : memref<1x1x1x16xf32, #tpu.memory_space<vmem>>, vector<1x1x1x16xf32>,
    return
  }
  func.func @transform_0(%arg0: i32, %arg1: i32) -> (i32, i32, i32) {
    %c0_i32 = arith.constant 0 : i32
    %c0_i32_0 = arith.constant 0 : i32
    return %arg0, %arg1, %c0_i32 : i32, i32, i32
  }
  func.func @transform_1(%arg0: i32, %arg1: i32) -> (i32, i32, i32) {
    %c0_i32 = arith.constant 0 : i32
    %c0_i32_0 = arith.constant 0 : i32
    return %arg0, %arg1, %c0_i32 : i32, i32, i32
  }
  func.func @transform_2(%arg0: i32, %arg1: i32) -> (i32, i32, i32) {
    %c0_i32 = arith.constant 0 : i32
    %c0_i32_0 = arith.constant 0 : i32
    %c0_i32_1 = arith.constant 0 : i32
    return %arg0, %c0_i32, %c0_i32_0 : i32, i32, i32
  }
  func.func @transform_3(%arg0: i32, %arg1: i32) -> (i32, i32, i32) {
    %c0_i32 = arith.constant 0 : i32
    %c0_i32_0 = arith.constant 0 : i32
    %c0_i32_1 = arith.constant 0 : i32
    return %arg0, %c0_i32, %c0_i32_0 : i32, i32, i32
  }
  func.func @transform_4(%arg0: i32, %arg1: i32) -> (i32, i32, i32) {
    %c0_i32 = arith.constant 0 : i32
    %c0_i32_0 = arith.constant 0 : i32
    %c0_i32_1 = arith.constant 0 : i32
    %c0_i32_2 = arith.constant 0 : i32
    return %c0_i32, %c0_i32_0, %c0_i32_1 : i32, i32, i32
  }
  func.func @transform_5(%arg0: i32, %arg1: i32) -> (i32, i32, i32) {
    %c0_i32 = arith.constant 0 : i32
    %c0_i32_0 = arith.constant 0 : i32
    return %arg0, %arg1, %c0_i32 : i32, i32, i32
  }
  func.func @transform_6(%arg0: i32, %arg1: i32) -> (i32, i32, i32, i32) {
    %c0_i32 = arith.constant 0 : i32
    %c0_i32_0 = arith.constant 0 : i32
    %c0_i32_1 = arith.constant 0 : i32
    return %arg0, %arg1, %c0_i32, %c0_i32_0 : i32, i32, i32, i32
  }
  func.func @transform_7(%arg0: i32, %arg1: i32) -> (i32, i32, i32, i32) {
    %c0_i32 = arith.constant 0 : i32
    %c0_i32_0 = arith.constant 0 : i32
    %c0_i32_1 = arith.constant 0 : i32
    return %arg0, %arg1, %c0_i32, %c0_i32_0 : i32, i32, i32, i32
  }
}

module attributes {stable_mosaic.version = 11 : i64} {
  func.func @_bn_apply_kernel(%arg0: i32, %arg1: memref<512x8xbf16, #tpu.memory_space<vmem>>, %arg2: memref<1x8xf32, #tpu.memory_space<vmem>>, %arg3: memref<1x8xf32, #tpu.memory_space<vmem>>, %arg4: memref<512x8xbf16, #tpu.memory_space<vmem>>) attributes {dimension_semantics = [#tpu.dimension_semantics<parallel>], iteration_bounds = array<i64: 1>, scalar_prefetch = 0 : i64, scratch_operands = 0 : i64, tpu.core_type = #tpu.core_type<tc>, window_params = [{transform_indices = @transform_0, window_bounds = array<i64: 512, 8>}, {pipeline_mode = #tpu.pipeline_mode<synchronous>, transform_indices = @transform_1, window_bounds = array<i64: 1, 8>}, {pipeline_mode = #tpu.pipeline_mode<synchronous>, transform_indices = @transform_2, window_bounds = array<i64: 1, 8>}, {transform_indices = @transform_3, window_bounds = array<i64: 512, 8>}]} {
    %c0 = arith.constant 0 : index
    %c0_0 = arith.constant 0 : index
    %0 = vector.load %arg1[%c0, %c0_0] : memref<512x8xbf16, #tpu.memory_space<vmem>>, vector<512x8xbf16>
    %1 = arith.extf %0 : vector<512x8xbf16> to vector<512x8xf32>
    %c0_1 = arith.constant 0 : index
    %c0_2 = arith.constant 0 : index
    %2 = vector.load %arg2[%c0_1, %c0_2] : memref<1x8xf32, #tpu.memory_space<vmem>>, vector<1x8xf32>
    %3 = vector.broadcast %2 : vector<1x8xf32> to vector<512x8xf32>
    %4 = arith.mulf %1, %3 : vector<512x8xf32>
    %c0_3 = arith.constant 0 : index
    %c0_4 = arith.constant 0 : index
    %5 = vector.load %arg3[%c0_3, %c0_4] : memref<1x8xf32, #tpu.memory_space<vmem>>, vector<1x8xf32>
    %6 = vector.broadcast %5 : vector<1x8xf32> to vector<512x8xf32>
    %7 = arith.addf %4, %6 : vector<512x8xf32>
    %cst = arith.constant 0.000000e+00 : f32
    %8 = vector.broadcast %cst : f32 to vector<512x8xf32>
    %9 = arith.maximumf %7, %8 : vector<512x8xf32>
    %10 = arith.truncf %9 : vector<512x8xf32> to vector<512x8xbf16>
    %c0_5 = arith.constant 0 : index
    %c0_6 = arith.constant 0 : index
    %11 = vector.load %arg4[%c0_5, %c0_6] : memref<512x8xbf16, #tpu.memory_space<vmem>>, vector<512x8xbf16>
    tpu.vector_store %arg4[%c0_5, %c0_6], %10 {strides = array<i32>} : memref<512x8xbf16, #tpu.memory_space<vmem>>, vector<512x8xbf16>,
    return
  }
  func.func @transform_0(%arg0: i32) -> (i32, i32) {
    %c0_i32 = arith.constant 0 : i32
    %c0_i32_0 = arith.constant 0 : i32
    return %arg0, %c0_i32 : i32, i32
  }
  func.func @transform_1(%arg0: i32) -> (i32, i32) {
    %c0_i32 = arith.constant 0 : i32
    %c0_i32_0 = arith.constant 0 : i32
    %c0_i32_1 = arith.constant 0 : i32
    return %c0_i32, %c0_i32_0 : i32, i32
  }
  func.func @transform_2(%arg0: i32) -> (i32, i32) {
    %c0_i32 = arith.constant 0 : i32
    %c0_i32_0 = arith.constant 0 : i32
    %c0_i32_1 = arith.constant 0 : i32
    return %c0_i32, %c0_i32_0 : i32, i32
  }
  func.func @transform_3(%arg0: i32) -> (i32, i32) {
    %c0_i32 = arith.constant 0 : i32
    %c0_i32_0 = arith.constant 0 : i32
    return %arg0, %c0_i32 : i32, i32
  }
}

module attributes {stable_mosaic.version = 11 : i64} {
  func.func @_gemm_kernel(%arg0: i32, %arg1: i32, %arg2: memref<1x128x64xbf16, #tpu.memory_space<vmem>>, %arg3: memref<1x128x64xbf16, #tpu.memory_space<vmem>>, %arg4: memref<1x64x8xbf16, #tpu.memory_space<vmem>>, %arg5: memref<1x64x8xbf16, #tpu.memory_space<vmem>>, %arg6: memref<1x1x8xf32, #tpu.memory_space<vmem>>, %arg7: memref<1x128x8xbf16, #tpu.memory_space<vmem>>, %arg8: memref<1x1x1x8xf32, #tpu.memory_space<vmem>>, %arg9: memref<1x1x1x8xf32, #tpu.memory_space<vmem>>) attributes {dimension_semantics = [#tpu.dimension_semantics<parallel>, #tpu.dimension_semantics<parallel>], iteration_bounds = array<i64: 4, 1>, scalar_prefetch = 0 : i64, scratch_operands = 0 : i64, tpu.core_type = #tpu.core_type<tc>, window_params = [{transform_indices = @transform_0, window_bounds = array<i64: 1, 128, 64>}, {transform_indices = @transform_1, window_bounds = array<i64: 1, 128, 64>}, {transform_indices = @transform_2, window_bounds = array<i64: 1, 64, 8>}, {transform_indices = @transform_3, window_bounds = array<i64: 1, 64, 8>}, {pipeline_mode = #tpu.pipeline_mode<synchronous>, transform_indices = @transform_4, window_bounds = array<i64: 1, 1, 8>}, {transform_indices = @transform_5, window_bounds = array<i64: 1, 128, 8>}, {transform_indices = @transform_6, window_bounds = array<i64: 1, 1, 1, 8>}, {transform_indices = @transform_7, window_bounds = array<i64: 1, 1, 1, 8>}]} {
    %c0 = arith.constant 0 : index
    %c0_0 = arith.constant 0 : index
    %c0_1 = arith.constant 0 : index
    %0 = vector.load %arg2[%c0, %c0_0, %c0_1] : memref<1x128x64xbf16, #tpu.memory_space<vmem>>, vector<1x128x64xbf16>
    %1 = vector.shape_cast %0 : vector<1x128x64xbf16> to vector<128x64xbf16>
    %c0_2 = arith.constant 0 : index
    %c0_3 = arith.constant 0 : index
    %c0_4 = arith.constant 0 : index
    %2 = vector.load %arg4[%c0_2, %c0_3, %c0_4] : memref<1x64x8xbf16, #tpu.memory_space<vmem>>, vector<1x64x8xbf16>
    %3 = vector.shape_cast %2 : vector<1x64x8xbf16> to vector<64x8xbf16>
    %cst = arith.constant dense<0.000000e+00> : vector<128x8xf32>
    %4 = tpu.matmul %1, %3, %cst {dimension_numbers = #tpu.dot_dimension_numbers<[1], [0], [0], [1], [0, 0, 1, 1], [], []>} : vector<128x64xbf16>, vector<64x8xbf16>, vector<128x8xf32> -> vector<128x8xf32>
    %c0_5 = arith.constant 0 : index
    %c0_6 = arith.constant 0 : index
    %c0_7 = arith.constant 0 : index
    %5 = vector.load %arg3[%c0_5, %c0_6, %c0_7] : memref<1x128x64xbf16, #tpu.memory_space<vmem>>, vector<1x128x64xbf16>
    %6 = vector.shape_cast %5 : vector<1x128x64xbf16> to vector<128x64xbf16>
    %c0_8 = arith.constant 0 : index
    %c0_9 = arith.constant 0 : index
    %c0_10 = arith.constant 0 : index
    %7 = vector.load %arg5[%c0_8, %c0_9, %c0_10] : memref<1x64x8xbf16, #tpu.memory_space<vmem>>, vector<1x64x8xbf16>
    %8 = vector.shape_cast %7 : vector<1x64x8xbf16> to vector<64x8xbf16>
    %cst_11 = arith.constant dense<0.000000e+00> : vector<128x8xf32>
    %9 = tpu.matmul %6, %8, %cst_11 {dimension_numbers = #tpu.dot_dimension_numbers<[1], [0], [0], [1], [0, 0, 1, 1], [], []>} : vector<128x64xbf16>, vector<64x8xbf16>, vector<128x8xf32> -> vector<128x8xf32>
    %10 = arith.addf %4, %9 : vector<128x8xf32>
    %c0_12 = arith.constant 0 : index
    %c0_13 = arith.constant 0 : index
    %c0_14 = arith.constant 0 : index
    %11 = vector.load %arg6[%c0_12, %c0_13, %c0_14] : memref<1x1x8xf32, #tpu.memory_space<vmem>>, vector<1x1x8xf32>
    %12 = vector.shape_cast %11 : vector<1x1x8xf32> to vector<1x8xf32>
    %13 = vector.broadcast %12 : vector<1x8xf32> to vector<128x8xf32>
    %14 = arith.addf %10, %13 : vector<128x8xf32>
    %15 = arith.truncf %14 : vector<128x8xf32> to vector<128x8xbf16>
    %c0_15 = arith.constant 0 : index
    %c0_16 = arith.constant 0 : index
    %c0_17 = arith.constant 0 : index
    %16 = vector.load %arg7[%c0_15, %c0_16, %c0_17] : memref<1x128x8xbf16, #tpu.memory_space<vmem>>, vector<1x128x8xbf16>
    %17 = vector.shape_cast %16 : vector<1x128x8xbf16> to vector<128x8xbf16>
    %18 = vector.shape_cast %15 : vector<128x8xbf16> to vector<1x128x8xbf16>
    tpu.vector_store %arg7[%c0_15, %c0_16, %c0_17], %18 {strides = array<i32>} : memref<1x128x8xbf16, #tpu.memory_space<vmem>>, vector<1x128x8xbf16>,
    %c128_i32 = arith.constant 128 : i32
    %19 = arith.muli %c128_i32, %arg1 : i32
    %20 = tpu.iota {dimensions = array<i32: 0>} : vector<128x8xi32>
    %21 = vector.broadcast %19 : i32 to vector<128x8xi32>
    %22 = arith.addi %21, %20 : vector<128x8xi32>
    %c128_i32_18 = arith.constant 128 : i32
    %23 = vector.broadcast %c128_i32_18 : i32 to vector<128x8xi32>
    %24 = arith.cmpi slt, %22, %23 : vector<128x8xi32>
    %cst_19 = arith.constant 0.000000e+00 : f32
    %25 = vector.broadcast %cst_19 : f32 to vector<128x8xf32>
    %26 = arith.select %24, %14, %25 : vector<128x8xi1>, vector<128x8xf32>
    %cst_20 = arith.constant dense<0.000000e+00> : vector<8xf32>
    %27 = vector.multi_reduction <add>, %26, %cst_20 [0] : vector<128x8xf32> to vector<8xf32>
    %28 = vector.shape_cast %27 : vector<8xf32> to vector<1x8xf32>
    %29 = vector.shape_cast %28 : vector<1x8xf32> to vector<1x1x8xf32>
    %c0_21 = arith.constant 0 : index
    %c0_22 = arith.constant 0 : index
    %c0_23 = arith.constant 0 : index
    %c0_24 = arith.constant 0 : index
    %30 = vector.load %arg8[%c0_21, %c0_22, %c0_23, %c0_24] : memref<1x1x1x8xf32, #tpu.memory_space<vmem>>, vector<1x1x1x8xf32>
    %31 = vector.shape_cast %30 : vector<1x1x1x8xf32> to vector<1x1x8xf32>
    %32 = vector.shape_cast %29 : vector<1x1x8xf32> to vector<1x1x1x8xf32>
    tpu.vector_store %arg8[%c0_21, %c0_22, %c0_23, %c0_24], %32 {strides = array<i32>} : memref<1x1x1x8xf32, #tpu.memory_space<vmem>>, vector<1x1x1x8xf32>,
    %33 = arith.mulf %26, %26 : vector<128x8xf32>
    %cst_25 = arith.constant dense<0.000000e+00> : vector<8xf32>
    %34 = vector.multi_reduction <add>, %33, %cst_25 [0] : vector<128x8xf32> to vector<8xf32>
    %35 = vector.shape_cast %34 : vector<8xf32> to vector<1x8xf32>
    %36 = vector.shape_cast %35 : vector<1x8xf32> to vector<1x1x8xf32>
    %c0_26 = arith.constant 0 : index
    %c0_27 = arith.constant 0 : index
    %c0_28 = arith.constant 0 : index
    %c0_29 = arith.constant 0 : index
    %37 = vector.load %arg9[%c0_26, %c0_27, %c0_28, %c0_29] : memref<1x1x1x8xf32, #tpu.memory_space<vmem>>, vector<1x1x1x8xf32>
    %38 = vector.shape_cast %37 : vector<1x1x1x8xf32> to vector<1x1x8xf32>
    %39 = vector.shape_cast %36 : vector<1x1x8xf32> to vector<1x1x1x8xf32>
    tpu.vector_store %arg9[%c0_26, %c0_27, %c0_28, %c0_29], %39 {strides = array<i32>} : memref<1x1x1x8xf32, #tpu.memory_space<vmem>>, vector<1x1x1x8xf32>,
    return
  }
  func.func @transform_0(%arg0: i32, %arg1: i32) -> (i32, i32, i32) {
    %c0_i32 = arith.constant 0 : i32
    %c0_i32_0 = arith.constant 0 : i32
    return %arg0, %arg1, %c0_i32 : i32, i32, i32
  }
  func.func @transform_1(%arg0: i32, %arg1: i32) -> (i32, i32, i32) {
    %c0_i32 = arith.constant 0 : i32
    %c0_i32_0 = arith.constant 0 : i32
    return %arg0, %arg1, %c0_i32 : i32, i32, i32
  }
  func.func @transform_2(%arg0: i32, %arg1: i32) -> (i32, i32, i32) {
    %c0_i32 = arith.constant 0 : i32
    %c0_i32_0 = arith.constant 0 : i32
    %c0_i32_1 = arith.constant 0 : i32
    return %arg0, %c0_i32, %c0_i32_0 : i32, i32, i32
  }
  func.func @transform_3(%arg0: i32, %arg1: i32) -> (i32, i32, i32) {
    %c0_i32 = arith.constant 0 : i32
    %c0_i32_0 = arith.constant 0 : i32
    %c0_i32_1 = arith.constant 0 : i32
    return %arg0, %c0_i32, %c0_i32_0 : i32, i32, i32
  }
  func.func @transform_4(%arg0: i32, %arg1: i32) -> (i32, i32, i32) {
    %c0_i32 = arith.constant 0 : i32
    %c0_i32_0 = arith.constant 0 : i32
    %c0_i32_1 = arith.constant 0 : i32
    %c0_i32_2 = arith.constant 0 : i32
    return %c0_i32, %c0_i32_0, %c0_i32_1 : i32, i32, i32
  }
  func.func @transform_5(%arg0: i32, %arg1: i32) -> (i32, i32, i32) {
    %c0_i32 = arith.constant 0 : i32
    %c0_i32_0 = arith.constant 0 : i32
    return %arg0, %arg1, %c0_i32 : i32, i32, i32
  }
  func.func @transform_6(%arg0: i32, %arg1: i32) -> (i32, i32, i32, i32) {
    %c0_i32 = arith.constant 0 : i32
    %c0_i32_0 = arith.constant 0 : i32
    %c0_i32_1 = arith.constant 0 : i32
    return %arg0, %arg1, %c0_i32, %c0_i32_0 : i32, i32, i32, i32
  }
  func.func @transform_7(%arg0: i32, %arg1: i32) -> (i32, i32, i32, i32) {
    %c0_i32 = arith.constant 0 : i32
    %c0_i32_0 = arith.constant 0 : i32
    %c0_i32_1 = arith.constant 0 : i32
    return %arg0, %arg1, %c0_i32, %c0_i32_0 : i32, i32, i32, i32
  }
}

module attributes {stable_mosaic.version = 11 : i64} {
  func.func @_gemm_kernel(%arg0: i32, %arg1: i32, %arg2: memref<1x256x32xbf16, #tpu.memory_space<vmem>>, %arg3: memref<1x256x32xbf16, #tpu.memory_space<vmem>>, %arg4: memref<1x32x3xbf16, #tpu.memory_space<vmem>>, %arg5: memref<1x32x3xbf16, #tpu.memory_space<vmem>>, %arg6: memref<1x1x3xf32, #tpu.memory_space<vmem>>, %arg7: memref<1x256x3xf32, #tpu.memory_space<vmem>>) attributes {dimension_semantics = [#tpu.dimension_semantics<parallel>, #tpu.dimension_semantics<parallel>], iteration_bounds = array<i64: 4, 2>, scalar_prefetch = 0 : i64, scratch_operands = 0 : i64, tpu.core_type = #tpu.core_type<tc>, window_params = [{transform_indices = @transform_0, window_bounds = array<i64: 1, 256, 32>}, {transform_indices = @transform_1, window_bounds = array<i64: 1, 256, 32>}, {transform_indices = @transform_2, window_bounds = array<i64: 1, 32, 3>}, {transform_indices = @transform_3, window_bounds = array<i64: 1, 32, 3>}, {pipeline_mode = #tpu.pipeline_mode<synchronous>, transform_indices = @transform_4, window_bounds = array<i64: 1, 1, 3>}, {transform_indices = @transform_5, window_bounds = array<i64: 1, 256, 3>}]} {
    %c0 = arith.constant 0 : index
    %c0_0 = arith.constant 0 : index
    %c0_1 = arith.constant 0 : index
    %0 = vector.load %arg2[%c0, %c0_0, %c0_1] : memref<1x256x32xbf16, #tpu.memory_space<vmem>>, vector<1x256x32xbf16>
    %1 = vector.shape_cast %0 : vector<1x256x32xbf16> to vector<256x32xbf16>
    %c0_2 = arith.constant 0 : index
    %c0_3 = arith.constant 0 : index
    %c0_4 = arith.constant 0 : index
    %2 = vector.load %arg4[%c0_2, %c0_3, %c0_4] : memref<1x32x3xbf16, #tpu.memory_space<vmem>>, vector<1x32x3xbf16>
    %3 = vector.shape_cast %2 : vector<1x32x3xbf16> to vector<32x3xbf16>
    %cst = arith.constant dense<0.000000e+00> : vector<256x3xf32>
    %4 = tpu.matmul %1, %3, %cst {dimension_numbers = #tpu.dot_dimension_numbers<[1], [0], [0], [1], [0, 0, 1, 1], [], []>} : vector<256x32xbf16>, vector<32x3xbf16>, vector<256x3xf32> -> vector<256x3xf32>
    %c0_5 = arith.constant 0 : index
    %c0_6 = arith.constant 0 : index
    %c0_7 = arith.constant 0 : index
    %5 = vector.load %arg3[%c0_5, %c0_6, %c0_7] : memref<1x256x32xbf16, #tpu.memory_space<vmem>>, vector<1x256x32xbf16>
    %6 = vector.shape_cast %5 : vector<1x256x32xbf16> to vector<256x32xbf16>
    %c0_8 = arith.constant 0 : index
    %c0_9 = arith.constant 0 : index
    %c0_10 = arith.constant 0 : index
    %7 = vector.load %arg5[%c0_8, %c0_9, %c0_10] : memref<1x32x3xbf16, #tpu.memory_space<vmem>>, vector<1x32x3xbf16>
    %8 = vector.shape_cast %7 : vector<1x32x3xbf16> to vector<32x3xbf16>
    %cst_11 = arith.constant dense<0.000000e+00> : vector<256x3xf32>
    %9 = tpu.matmul %6, %8, %cst_11 {dimension_numbers = #tpu.dot_dimension_numbers<[1], [0], [0], [1], [0, 0, 1, 1], [], []>} : vector<256x32xbf16>, vector<32x3xbf16>, vector<256x3xf32> -> vector<256x3xf32>
    %10 = arith.addf %4, %9 : vector<256x3xf32>
    %c0_12 = arith.constant 0 : index
    %c0_13 = arith.constant 0 : index
    %c0_14 = arith.constant 0 : index
    %11 = vector.load %arg6[%c0_12, %c0_13, %c0_14] : memref<1x1x3xf32, #tpu.memory_space<vmem>>, vector<1x1x3xf32>
    %12 = vector.shape_cast %11 : vector<1x1x3xf32> to vector<1x3xf32>
    %13 = vector.broadcast %12 : vector<1x3xf32> to vector<256x3xf32>
    %14 = arith.addf %10, %13 : vector<256x3xf32>
    %15 = math.tanh %14 : vector<256x3xf32>
    %c0_15 = arith.constant 0 : index
    %c0_16 = arith.constant 0 : index
    %c0_17 = arith.constant 0 : index
    %16 = vector.load %arg7[%c0_15, %c0_16, %c0_17] : memref<1x256x3xf32, #tpu.memory_space<vmem>>, vector<1x256x3xf32>
    %17 = vector.shape_cast %16 : vector<1x256x3xf32> to vector<256x3xf32>
    %18 = vector.shape_cast %15 : vector<256x3xf32> to vector<1x256x3xf32>
    tpu.vector_store %arg7[%c0_15, %c0_16, %c0_17], %18 {strides = array<i32>} : memref<1x256x3xf32, #tpu.memory_space<vmem>>, vector<1x256x3xf32>,
    return
  }
  func.func @transform_0(%arg0: i32, %arg1: i32) -> (i32, i32, i32) {
    %c0_i32 = arith.constant 0 : i32
    %c0_i32_0 = arith.constant 0 : i32
    return %arg0, %arg1, %c0_i32 : i32, i32, i32
  }
  func.func @transform_1(%arg0: i32, %arg1: i32) -> (i32, i32, i32) {
    %c0_i32 = arith.constant 0 : i32
    %c0_i32_0 = arith.constant 0 : i32
    return %arg0, %arg1, %c0_i32 : i32, i32, i32
  }
  func.func @transform_2(%arg0: i32, %arg1: i32) -> (i32, i32, i32) {
    %c0_i32 = arith.constant 0 : i32
    %c0_i32_0 = arith.constant 0 : i32
    %c0_i32_1 = arith.constant 0 : i32
    return %arg0, %c0_i32, %c0_i32_0 : i32, i32, i32
  }
  func.func @transform_3(%arg0: i32, %arg1: i32) -> (i32, i32, i32) {
    %c0_i32 = arith.constant 0 : i32
    %c0_i32_0 = arith.constant 0 : i32
    %c0_i32_1 = arith.constant 0 : i32
    return %arg0, %c0_i32, %c0_i32_0 : i32, i32, i32
  }
  func.func @transform_4(%arg0: i32, %arg1: i32) -> (i32, i32, i32) {
    %c0_i32 = arith.constant 0 : i32
    %c0_i32_0 = arith.constant 0 : i32
    %c0_i32_1 = arith.constant 0 : i32
    %c0_i32_2 = arith.constant 0 : i32
    return %c0_i32, %c0_i32_0, %c0_i32_1 : i32, i32, i32
  }
  func.func @transform_5(%arg0: i32, %arg1: i32) -> (i32, i32, i32) {
    %c0_i32 = arith.constant 0 : i32
    %c0_i32_0 = arith.constant 0 : i32
    return %arg0, %arg1, %c0_i32 : i32, i32, i32
  }
}

</mosaic_0001>

<llo_original>
// kernel: _lambda_.17
$region0: #{_lambda_.17}
  #allocation0 [shape = 'u32[]', space=smem, size = 0x4, offset = 0x4, fixed_abs, tag = 'smem constant byte address 0x4 - core index']
  #allocation1 [shape = 'u32[144,128]{1,0:T(1,128)}', space=vmem, size = 0x12000, scoped, tag = 'internal scratch']
  %s0 = inlined_call_operand.vmem [shape: bf16[1,512,64], index: 0, kind: input, shape index: {}]
  %s1 = inlined_call_operand.vmem [shape: bf16[1,64,8], index: 1, kind: input, shape index: {}]
  %s2 = inlined_call_operand.vmem [shape: f32[1,1,8], index: 2, kind: input, shape index: {}]
  %s3 = inlined_call_operand.vmem [shape: bf16[1,512,8], index: 3, kind: output, shape index: {}]
  %s4 = sld [smem:[#allocation0]]
  $region45: #{_lambda_.17} parent=0
    _
  %s6 = ssub.s32 1, %s4
  %s7 = scalar_select 0, %s6, %s4
  loop: start=0, step=1, limit=4
  $region2: #{_lambda_.17} parent=0 // loop_pre_header
    _
  $region3: #{_lambda_.17} parent=0 // loop_header
    %s9 = sphi 0, %s13
    %p10 = scmp.ge.s32.totalorder %s9, 4
    %s16 = sphi 0, %s28
    %s17 = sphi 0, %s24
    %s18 = sphi 0, %s16
    %s19 = sphi 0, %s17
    %s20 = sphi 0, %s18
    %s21 = sphi 0, %s19
    %s33 = sphi 0, %s35
    %s36 = sphi 0, %s33
    %s37 = sphi 0, %s36
    %s53 = sphi 0, %s37
    %s59 = sphi 0, %s61
    %s62 = sphi 0, %s59
    %s63 = sphi 0, %s62
    %s79 = sphi 0, %s63
    %s83 = sphi 0, %s83
    %s85 = sphi 0, %s83
    %s86 = sphi 0, %s85
    %s100 = sphi 0, %s86
    %s108 = sphi 0, %s110
    %s111 = sphi 0, %s108
    %s112 = sphi 0, %s111
    %s128 = sphi 0, %s112
  $region4: #{_lambda_.17} parent=0 // loop_header_branch
    %12 = sbr.rel (%p10) target = $region8
  $region5: #{_lambda_.17} parent=0 // loop_body
    %s14 = ssub.s32 %s9, 1
    %s15 = ssub.s32 %s9, 2
    %s22 = sadd.s32 1, %s17
    %p23 = scmp.ge.s32.totalorder %s22, 2
    %s24 = scalar_select %p23, 0, %s22
    %s25 = sadd.s32 1, %s16
    %s26 = scalar_select %p23, %s25, %s16
    %p27 = scmp.ge.s32.totalorder %s26, 1
    %s28 = scalar_select %p27, 0, %s26
    %s29 = ssub.s32 %s16, %s28
    %s30 = ssub.s32 %s17, %s24
    %s31 = sor.u32 %s29, %s30
    %p32 = scmp.eq.s32.totalorder %s31, 0
    %s34 = sadd.s32 %s33, 1
    %s35 = scalar_select %p32, %s33, %s34
    %p38 = pneg %p32
    %p39 = scmp.eq.s32.totalorder %s9, 1
    %p40 = por %p38, %p39
    %p41 = scmp.ne.s32.totalorder %s33, %s36
    %p42 = scmp.eq.s32.totalorder %s9, 0
    %p43 = por %p41, %p42
    %p44 = scmp.ne.s32.totalorder %s33, %s36
    %p45 = scmp.eq.s32.totalorder %s14, 1
    %p46 = por %p44, %p45
    %p47 = scmp.ne.s32.totalorder %s36, %s37
    %p48 = scmp.eq.s32.totalorder %s14, 0
    %p49 = por %p47, %p48
    %p50 = scmp.ne.s32.totalorder %s36, %s37
    %p51 = scmp.eq.s32.totalorder %s15, 1
    %p52 = por %p50, %p51
    %p54 = scmp.ne.s32.totalorder %s37, %s53
    %p55 = scmp.eq.s32.totalorder %s15, 0
    %p56 = por %p54, %p55
    %s57 = ssub.s32 %s16, %s28
    %p58 = scmp.eq.s32.totalorder %s57, 0
    %s60 = sadd.s32 %s59, 1
    %s61 = scalar_select %p58, %s59, %s60
    %p64 = pneg %p58
    %p65 = scmp.eq.s32.totalorder %s9, 1
    %p66 = por %p64, %p65
    %p67 = scmp.ne.s32.totalorder %s59, %s62
    %p68 = scmp.eq.s32.totalorder %s9, 0
    %p69 = por %p67, %p68
    %p70 = scmp.ne.s32.totalorder %s59, %s62
    %p71 = scmp.eq.s32.totalorder %s14, 1
    %p72 = por %p70, %p71
    %p73 = scmp.ne.s32.totalorder %s62, %s63
    %p74 = scmp.eq.s32.totalorder %s14, 0
    %p75 = por %p73, %p74
    %p76 = scmp.ne.s32.totalorder %s62, %s63
    %p77 = scmp.eq.s32.totalorder %s15, 1
    %p78 = por %p76, %p77
    %p80 = scmp.ne.s32.totalorder %s63, %s79
    %p81 = scmp.eq.s32.totalorder %s15, 0
    %p82 = por %p80, %p81
    %s84 = sadd.s32 %s83, 1
    %p87 = scmp.eq.s32.totalorder %s9, 1
    %p88 = scmp.ne.s32.totalorder %s83, %s85
    %p89 = scmp.eq.s32.totalorder %s9, 0
    %p90 = por %p88, %p89
    %p91 = scmp.ne.s32.totalorder %s83, %s85
    %p92 = scmp.eq.s32.totalorder %s14, 1
    %p93 = por %p91, %p92
    %p94 = scmp.ne.s32.totalorder %s85, %s86
    %p95 = scmp.eq.s32.totalorder %s14, 0
    %p96 = por %p94, %p95
    %p97 = scmp.ne.s32.totalorder %s85, %s86
    %p98 = scmp.eq.s32.totalorder %s15, 1
    %p99 = por %p97, %p98
    %p101 = scmp.ne.s32.totalorder %s86, %s100
    %p102 = scmp.eq.s32.totalorder %s15, 0
    %p103 = por %p101, %p102
    %s104 = ssub.s32 %s16, %s28
    %s105 = ssub.s32 %s17, %s24
    %s106 = sor.u32 %s104, %s105
    %p107 = scmp.eq.s32.totalorder %s106, 0
    %s109 = sadd.s32 %s108, 1
    %s110 = scalar_select %p107, %s108, %s109
    %p113 = pneg %p107
    %p114 = scmp.eq.s32.totalorder %s9, 1
    %p115 = por %p113, %p114
    %p116 = scmp.ne.s32.totalorder %s108, %s111
    %p117 = scmp.eq.s32.totalorder %s9, 0
    %p118 = por %p116, %p117
    %p119 = scmp.ne.s32.totalorder %s108, %s111
    %p120 = scmp.eq.s32.totalorder %s14, 1
    %p121 = por %p119, %p120
    %p122 = scmp.ne.s32.totalorder %s111, %s112
    %p123 = scmp.eq.s32.totalorder %s14, 0
    %p124 = por %p122, %p123
    %p125 = scmp.ne.s32.totalorder %s111, %s112
    %p126 = scmp.eq.s32.totalorder %s15, 1
    %p127 = por %p125, %p126
    %p129 = scmp.ne.s32.totalorder %s112, %s128
    %p130 = scmp.eq.s32.totalorder %s15, 0
    %p131 = por %p129, %p130
    %p132 = scmp.le.s32.totalorder 1, %s9
    %p133 = scmp.lt.s32.totalorder %s9, 3
    %p134 = pnand %p132, %p133
    %p135 = pneg %p134
    // Predicated region
    $region9: #{_lambda_.17} parent=5 // pred_check
      _
    $region10: #{_lambda_.17} parent=5 // pred_check_branch
      %137 = sbr.rel (%p134) target = $region12
    $region11: #{_lambda_.17} parent=5 // pred_region
      %s138 = ssub.s32 %s9, 1
      // Predicated region
      $region13: #{_lambda_.17} parent=11 // pred_check
        %p139 = pneg %p75
      $region14: #{_lambda_.17} parent=11 // pred_check_branch
        %141 = sbr.rel (%p139) target = $region16
      $region15: #{_lambda_.17} parent=11 // pred_region
        %p142 = scmp.lt.s32.totalorder %s18, 0
        %s143 = scalar_select %p142, %s18, 0
        %s144 = smul.addr %s143, 8
        %s145 = smul.addr %s144, 4
        %s146 = scalar_lea.vmem %s1, %s145
      $region16: #{_lambda_.17} parent=11 // pred_fallthru
        _
      // Predicated region
      $region17: #{_lambda_.17} parent=11 // pred_check
        %p147 = pneg %p96
      $region18: #{_lambda_.17} parent=11 // pred_check_branch
        %149 = sbr.rel (%p147) target = $region20
      $region19: #{_lambda_.17} parent=11 // pred_region
        _
      $region20: #{_lambda_.17} parent=11 // pred_fallthru
        _
    $region12: #{_lambda_.17} parent=5 // pred_fallthru
      _
    %p150 = scmp.lt.s32.totalorder %s9, 2
    // Predicated region
    $region21: #{_lambda_.17} parent=5 // pred_check
      %p151 = pneg %p150
    $region22: #{_lambda_.17} parent=5 // pred_check_branch
      %153 = sbr.rel (%p151) target = $region24
    $region23: #{_lambda_.17} parent=5 // pred_region
      // Predicated region
      $region25: #{_lambda_.17} parent=23 // pred_check
        %p154 = pneg %p43
      $region26: #{_lambda_.17} parent=23 // pred_check_branch
        %156 = sbr.rel (%p154) target = $region28
      $region27: #{_lambda_.17} parent=23 // pred_region
        %s157 = smul.u32 32, %s17
        %p158 = scmp.lt.s32.totalorder %s16, 0
        %s159 = scalar_select %p158, %s16, 0
        %p160 = scmp.lt.s32.totalorder %s157, 63
        %s161 = scalar_select %p160, %s157, 63
        %s162 = smul.addr %s159, 64
        %s163 = sadd.s32 %s161, %s162
        %s164 = smul.addr %s163, 4
        %s165 = scalar_lea.vmem %s0, %s164
        %s166 = smul.u32 32, %s17
      $region28: #{_lambda_.17} parent=23 // pred_fallthru
        _
    $region24: #{_lambda_.17} parent=5 // pred_fallthru
      _
    %p167 = scmp.le.s32.totalorder 1, %s9
    %p168 = scmp.lt.s32.totalorder %s9, 3
    %p169 = pnand %p167, %p168
    %p170 = pneg %p169
    // Predicated region
    $region29: #{_lambda_.17} parent=5 // pred_check
      _
    $region30: #{_lambda_.17} parent=5 // pred_check_branch
      %172 = sbr.rel (%p169) target = $region32
    $region31: #{_lambda_.17} parent=5 // pred_region
      %s173 = ssub.s32 %s9, 1
      %s174 = smul.u32 32, %s19
      %p175 = scmp.lt.s32.totalorder %s18, 0
      %s176 = scalar_select %p175, %s18, 0
      %p177 = scmp.lt.s32.totalorder %s174, 63
      %s178 = scalar_select %p177, %s174, 63
      %s179 = smul.addr %s176, 64
      %s180 = sadd.s32 %s178, %s179
      %s181 = smul.addr %s180, 4
      %s182 = scalar_lea.vmem %s0, %s181
      %p183 = pneg %p49
      %p184 = pneg %p46
      %p185 = scmp.lt.s32.totalorder %s18, 0
      %s186 = scalar_select %p185, %s18, 0
      %s187 = smul.addr %s186, 8
      %s188 = smul.addr %s187, 4
      %s189 = scalar_lea.vmem %s1, %s188
      %p190 = pneg %p75
      %p191 = pneg %p72
      %p192 = pneg %p96
      %p193 = pneg %p93
      %p194 = pneg %p124
      %p195 = pneg %p121
      %s196 = smul.u32 32, %s19
      %p197 = scmp.lt.s32.totalorder %s18, 0
      %s198 = scalar_select %p197, %s18, 0
      %p199 = scmp.lt.s32.totalorder %s196, 63
      %s200 = scalar_select %p199, %s196, 63
      %s201 = smul.addr %s198, 64
      %s202 = sadd.s32 %s200, %s201
      %s203 = smul.addr %s202, 4
      %s204 = scalar_lea.vmem %s3, %s203
      %s205 = smul.u32 32, %s19
      %p206 = scmp.lt.s32.totalorder %s18, 0
      %s207 = scalar_select %p206, %s18, 0
      %p208 = scmp.lt.s32.totalorder %s205, 63
      %s209 = scalar_select %p208, %s205, 63
      %s210 = smul.addr %s207, 64
      %s211 = sadd.s32 %s209, %s210
      %s212 = smul.addr %s211, 4
      %s213 = scalar_lea.vmem %s0, %s212
      %s214 = smul.u32 32, %s19
      %p215 = scmp.lt.s32.totalorder %s18, 0
      %s216 = scalar_select %p215, %s18, 0
      %s217 = smul.addr %s216, 8
      %s218 = smul.addr %s217, 4
      %s219 = scalar_lea.vmem %s1, %s218
      %s220 = smul.u32 32, %s19
      %p221 = scmp.lt.s32.totalorder %s18, 0
      %s222 = scalar_select %p221, %s18, 0
      %p223 = scmp.lt.s32.totalorder %s220, 63
      %s224 = scalar_select %p223, %s220, 63
      %s225 = smul.addr %s222, 64
      %s226 = sadd.s32 %s224, %s225
      %s227 = smul.addr %s226, 4
      %s228 = scalar_lea.vmem %s3, %s227
      %s229 = smul.u32 32, %s19
      %v231 = vld [vmem:[%s213] sm:$0xf]
      %v232 = vld [vmem:[%s213 + $0x4] sm:$0xf]
      %v233 = vld [vmem:[%s213 + $0x8] sm:$0xf]
      %v234 = vld [vmem:[%s213 + $0xc] sm:$0xf]
      %v235 = vld [vmem:[%s213 + $0x10] sm:$0xf]
      %v236 = vld [vmem:[%s213 + $0x14] sm:$0xf]
      %v237 = vld [vmem:[%s213 + $0x18] sm:$0xf]
      %v238 = vld [vmem:[%s213 + $0x1c] sm:$0xf]
      %v239 = vld [vmem:[%s213 + $0x20] sm:$0xf]
      %v240 = vld [vmem:[%s213 + $0x24] sm:$0xf]
      %v241 = vld [vmem:[%s213 + $0x28] sm:$0xf]
      %v242 = vld [vmem:[%s213 + $0x2c] sm:$0xf]
      %v243 = vld [vmem:[%s213 + $0x30] sm:$0xf]
      %v244 = vld [vmem:[%s213 + $0x34] sm:$0xf]
      %v245 = vld [vmem:[%s213 + $0x38] sm:$0xf]
      %v246 = vld [vmem:[%s213 + $0x3c] sm:$0xf]
      %v247 = vld [vmem:[%s213 + $0x40] sm:$0xf]
      %v248 = vld [vmem:[%s213 + $0x44] sm:$0xf]
      %v249 = vld [vmem:[%s213 + $0x48] sm:$0xf]
      %v250 = vld [vmem:[%s213 + $0x4c] sm:$0xf]
      %v251 = vld [vmem:[%s213 + $0x50] sm:$0xf]
      %v252 = vld [vmem:[%s213 + $0x54] sm:$0xf]
      %v253 = vld [vmem:[%s213 + $0x58] sm:$0xf]
      %v254 = vld [vmem:[%s213 + $0x5c] sm:$0xf]
      %v255 = vld [vmem:[%s213 + $0x60] sm:$0xf]
      %v256 = vld [vmem:[%s213 + $0x64] sm:$0xf]
      %v257 = vld [vmem:[%s213 + $0x68] sm:$0xf]
      %v258 = vld [vmem:[%s213 + $0x6c] sm:$0xf]
      %v259 = vld [vmem:[%s213 + $0x70] sm:$0xf]
      %v260 = vld [vmem:[%s213 + $0x74] sm:$0xf]
      %v261 = vld [vmem:[%s213 + $0x78] sm:$0xf]
      %v262 = vld [vmem:[%s213 + $0x7c] sm:$0xf]
      %v263 = vld [vmem:[%s219] sm:$0xf]
      %v264 = vld [vmem:[%s219 + $0x4] sm:$0xf]
      %v265 = vld [vmem:[%s219 + $0x8] sm:$0xf]
      %v266 = vld [vmem:[%s219 + $0xc] sm:$0xf]
      %v267 = vld [vmem:[%s219 + $0x10] sm:$0xf]
      %v268 = vld [vmem:[%s219 + $0x14] sm:$0xf]
      %v269 = vld [vmem:[%s219 + $0x18] sm:$0xf]
      %v270 = vld [vmem:[%s219 + $0x1c] sm:$0xf]
      %v271 = vld [vmem:[%s2] sm:$0x1]
      %v273 = vlaneseq
      %v274 = vshrl.u32 %v273, 7
      %v275 = vsub.s32 0, %v274
      %v276 = vrot.slane %v271, %v275
      %v310 = vunpack.c.l.b16 %v231
      %v311 = vunpack.c.l.b16 %v232
      %v312 = vunpack.c.l.b16 %v233
      %v313 = vunpack.c.l.b16 %v234
      %v314 = vunpack.c.l.b16 %v235
      %v315 = vunpack.c.l.b16 %v236
      %v316 = vunpack.c.l.b16 %v237
      %v317 = vunpack.c.l.b16 %v238
      %v318 = vunpack.c.l.b16 %v239
      %v319 = vunpack.c.l.b16 %v240
      %v320 = vunpack.c.l.b16 %v241
      %v321 = vunpack.c.l.b16 %v242
      %v322 = vunpack.c.l.b16 %v243
      %v323 = vunpack.c.l.b16 %v244
      %v324 = vunpack.c.l.b16 %v245
      %v325 = vunpack.c.l.b16 %v246
      %v326 = vunpack.c.l.b16 %v247
      %v327 = vunpack.c.l.b16 %v248
      %v328 = vunpack.c.l.b16 %v249
      %v329 = vunpack.c.l.b16 %v250
      %v330 = vunpack.c.l.b16 %v251
      %v331 = vunpack.c.l.b16 %v252
      %v332 = vunpack.c.l.b16 %v253
      %v333 = vunpack.c.l.b16 %v254
      %v334 = vunpack.c.l.b16 %v255
      %v335 = vunpack.c.l.b16 %v256
      %v336 = vunpack.c.l.b16 %v257
      %v337 = vunpack.c.l.b16 %v258
      %v338 = vunpack.c.l.b16 %v259
      %v339 = vunpack.c.l.b16 %v260
      %v340 = vunpack.c.l.b16 %v261
      %v341 = vunpack.c.l.b16 %v262
      %v342 = vpack.c.b16 %v311, %v310
      %v343 = vpack.c.b16 %v313, %v312
      %v344 = vpack.c.b16 %v315, %v314
      %v345 = vpack.c.b16 %v317, %v316
      %v346 = vpack.c.b16 %v319, %v318
      %v347 = vpack.c.b16 %v321, %v320
      %v348 = vpack.c.b16 %v323, %v322
      %v349 = vpack.c.b16 %v325, %v324
      %v350 = vpack.c.b16 %v327, %v326
      %v351 = vpack.c.b16 %v329, %v328
      %v352 = vpack.c.b16 %v331, %v330
      %v353 = vpack.c.b16 %v333, %v332
      %v354 = vpack.c.b16 %v335, %v334
      %v355 = vpack.c.b16 %v337, %v336
      %v356 = vpack.c.b16 %v339, %v338
      %v357 = vpack.c.b16 %v341, %v340
      %v366 = vunpack.c.l.b16 %v263
      %v367 = vunpack.c.l.b16 %v264
      %v368 = vunpack.c.l.b16 %v265
      %v369 = vunpack.c.l.b16 %v266
      %v370 = vunpack.c.l.b16 %v267
      %v371 = vunpack.c.l.b16 %v268
      %v372 = vunpack.c.l.b16 %v269
      %v373 = vunpack.c.l.b16 %v270
      %v374 = vpack.c.b16 %v367, %v366
      %v375 = vpack.c.b16 %v369, %v368
      %v376 = vpack.c.b16 %v371, %v370
      %v377 = vpack.c.b16 %v373, %v372
      %vm382 = vcmask 523264
      %v384 = vsel %vm382, %v342, 0
      %v387 = vsel %vm382, %v343, 0
      %v390 = vsel %vm382, %v344, 0
      %v393 = vsel %vm382, %v345, 0
      %v396 = vsel %vm382, %v346, 0
      %v399 = vsel %vm382, %v347, 0
      %v402 = vsel %vm382, %v348, 0
      %v405 = vsel %vm382, %v349, 0
      %v408 = vsel %vm382, %v350, 0
      %v411 = vsel %vm382, %v351, 0
      %v414 = vsel %vm382, %v352, 0
      %v417 = vsel %vm382, %v353, 0
      %v420 = vsel %vm382, %v354, 0
      %v423 = vsel %vm382, %v355, 0
      %v426 = vsel %vm382, %v356, 0
      %v429 = vsel %vm382, %v357, 0
      %431 = vmatprep.subr.bf16.mxu0 0
      %432 = vmatpush1.bf16.msra.mxu0 %v374
      %433 = vmatprep.subr.bf16.mxu0 0
      %434 = vmatpush1.bf16.msra.mxu0 %v375
      %435 = vmatprep.subr.bf16.mxu0 0
      %436 = vmatpush1.bf16.msra.mxu0 %v376
      %437 = vmatprep.subr.bf16.mxu0 0
      %438 = vmatpush1.bf16.msra.mxu0 %v377
      %439 = vmatprep.subr.bf16.mxu0 0
      %440 = vmatpush1.bf16.msra.mxu0 0
      %441 = vmatprep.subr.bf16.mxu0 0
      %442 = vmatpush1.bf16.msra.mxu0 0
      %443 = vmatprep.subr.bf16.mxu0 0
      %444 = vmatpush1.bf16.msra.mxu0 0
      %445 = vmatprep.subr.bf16.mxu0 0
      %446 = vmatpush1.bf16.msra.mxu0 0
      %447 = vmatprep.subr.bf16.mxu0 0
      %448 = vmatpush1.bf16.msra.mxu0 0
      %449 = vmatprep.subr.bf16.mxu0 0
      %450 = vmatpush1.bf16.msra.mxu0 0
      %451 = vmatprep.subr.bf16.mxu0 0
      %452 = vmatpush1.bf16.msra.mxu0 0
      %453 = vmatprep.subr.bf16.mxu0 0
      %454 = vmatpush1.bf16.msra.mxu0 0
      %455 = vmatprep.subr.bf16.mxu0 0
      %456 = vmatpush1.bf16.msra.mxu0 0
      %457 = vmatprep.subr.bf16.mxu0 0
      %458 = vmatpush1.bf16.msra.mxu0 0
      %459 = vmatprep.subr.bf16.mxu0 0
      %460 = vmatpush1.bf16.msra.mxu0 0
      %461 = vmatprep.subr.bf16.mxu0 0
      %462 = vmatpush1.bf16.msra.mxu0 0
      %463 = vmatprep.mubr.bf16.mxu0 0
      %464 = vmatmul.mubr.bf16.gmra.mrb[0].mxu0 %v384
      %v465 = vpop.f32.mrb[0].mxu0
      %v466 = vadd.f32 %v276, %v465
      %v467 = vpop.f32.mrb[0].mxu0
      %v468 = vpop.f32.mrb[0].mxu0
      %v469 = vadd.f32 %v276, %v468
      %v470 = vpop.f32.mrb[0].mxu0
      %471 = vmatprep.mubr.bf16.mxu0 0
      %472 = vmatmul.mubr.bf16.gmra.mrb[0].mxu0 %v387
      %v473 = vpop.f32.mrb[0].mxu0
      %v474 = vadd.f32 %v276, %v473
      %v475 = vpop.f32.mrb[0].mxu0
      %v476 = vpop.f32.mrb[0].mxu0
      %v477 = vadd.f32 %v276, %v476
      %v478 = vpop.f32.mrb[0].mxu0
      %479 = vmatprep.mubr.bf16.mxu0 0
      %480 = vmatmul.mubr.bf16.gmra.mrb[0].mxu0 %v390
      %v481 = vpop.f32.mrb[0].mxu0
      %v482 = vadd.f32 %v276, %v481
      %v483 = vpop.f32.mrb[0].mxu0
      %v484 = vpop.f32.mrb[0].mxu0
      %v485 = vadd.f32 %v276, %v484
      %v486 = vpop.f32.mrb[0].mxu0
      %487 = vmatprep.mubr.bf16.mxu0 0
      %488 = vmatmul.mubr.bf16.gmra.mrb[0].mxu0 %v393
      %v489 = vpop.f32.mrb[0].mxu0
      %v490 = vadd.f32 %v276, %v489
      %v491 = vpop.f32.mrb[0].mxu0
      %v492 = vpop.f32.mrb[0].mxu0
      %v493 = vadd.f32 %v276, %v492
      %v494 = vpop.f32.mrb[0].mxu0
      %495 = vmatprep.mubr.bf16.mxu0 0
      %496 = vmatmul.mubr.bf16.gmra.mrb[0].mxu0 %v396
      %v497 = vpop.f32.mrb[0].mxu0
      %v498 = vadd.f32 %v276, %v497
      %v499 = vpop.f32.mrb[0].mxu0
      %v500 = vpop.f32.mrb[0].mxu0
      %v501 = vadd.f32 %v276, %v500
      %v502 = vpop.f32.mrb[0].mxu0
      %503 = vmatprep.mubr.bf16.mxu0 0
      %504 = vmatmul.mubr.bf16.gmra.mrb[0].mxu0 %v399
      %v505 = vpop.f32.mrb[0].mxu0
      %v506 = vadd.f32 %v276, %v505
      %v507 = vpop.f32.mrb[0].mxu0
      %v508 = vpop.f32.mrb[0].mxu0
      %v509 = vadd.f32 %v276, %v508
      %v510 = vpop.f32.mrb[0].mxu0
      %511 = vmatprep.mubr.bf16.mxu0 0
      %512 = vmatmul.mubr.bf16.gmra.mrb[0].mxu0 %v402
      %v513 = vpop.f32.mrb[0].mxu0
      %v514 = vadd.f32 %v276, %v513
      %v515 = vpop.f32.mrb[0].mxu0
      %v516 = vpop.f32.mrb[0].mxu0
      %v517 = vadd.f32 %v276, %v516
      %v518 = vpop.f32.mrb[0].mxu0
      %519 = vmatprep.mubr.bf16.mxu0 0
      %520 = vmatmul.mubr.bf16.gmra.mrb[0].mxu0 %v405
      %v521 = vpop.f32.mrb[0].mxu0
      %v522 = vadd.f32 %v276, %v521
      %v523 = vpop.f32.mrb[0].mxu0
      %v524 = vpop.f32.mrb[0].mxu0
      %v525 = vadd.f32 %v276, %v524
      %v526 = vpop.f32.mrb[0].mxu0
      %527 = vmatprep.mubr.bf16.mxu0 0
      %528 = vmatmul.mubr.bf16.gmra.mrb[0].mxu0 %v408
      %v529 = vpop.f32.mrb[0].mxu0
      %v530 = vadd.f32 %v276, %v529
      %v531 = vpop.f32.mrb[0].mxu0
      %v532 = vpop.f32.mrb[0].mxu0
      %v533 = vadd.f32 %v276, %v532
      %v534 = vpop.f32.mrb[0].mxu0
      %535 = vmatprep.mubr.bf16.mxu0 0
      %536 = vmatmul.mubr.bf16.gmra.mrb[0].mxu0 %v411
      %v537 = vpop.f32.mrb[0].mxu0
      %v538 = vadd.f32 %v276, %v537
      %v539 = vpop.f32.mrb[0].mxu0
      %v540 = vpop.f32.mrb[0].mxu0
      %v541 = vadd.f32 %v276, %v540
      %v542 = vpop.f32.mrb[0].mxu0
      %543 = vmatprep.mubr.bf16.mxu0 0
      %544 = vmatmul.mubr.bf16.gmra.mrb[0].mxu0 %v414
      %v545 = vpop.f32.mrb[0].mxu0
      %v546 = vadd.f32 %v276, %v545
      %v547 = vpop.f32.mrb[0].mxu0
      %v548 = vpop.f32.mrb[0].mxu0
      %v549 = vadd.f32 %v276, %v548
      %v550 = vpop.f32.mrb[0].mxu0
      %551 = vmatprep.mubr.bf16.mxu0 0
      %552 = vmatmul.mubr.bf16.gmra.mrb[0].mxu0 %v417
      %v553 = vpop.f32.mrb[0].mxu0
      %v554 = vadd.f32 %v276, %v553
      %v555 = vpop.f32.mrb[0].mxu0
      %v556 = vpop.f32.mrb[0].mxu0
      %v557 = vadd.f32 %v276, %v556
      %v558 = vpop.f32.mrb[0].mxu0
      %559 = vmatprep.mubr.bf16.mxu0 0
      %560 = vmatmul.mubr.bf16.gmra.mrb[0].mxu0 %v420
      %v561 = vpop.f32.mrb[0].mxu0
      %v562 = vadd.f32 %v276, %v561
      %v563 = vpop.f32.mrb[0].mxu0
      %v564 = vpop.f32.mrb[0].mxu0
      %v565 = vadd.f32 %v276, %v564
      %v566 = vpop.f32.mrb[0].mxu0
      %567 = vmatprep.mubr.bf16.mxu0 0
      %568 = vmatmul.mubr.bf16.gmra.mrb[0].mxu0 %v423
      %v569 = vpop.f32.mrb[0].mxu0
      %v570 = vadd.f32 %v276, %v569
      %v571 = vpop.f32.mrb[0].mxu0
      %v572 = vpop.f32.mrb[0].mxu0
      %v573 = vadd.f32 %v276, %v572
      %v574 = vpop.f32.mrb[0].mxu0
      %575 = vmatprep.mubr.bf16.mxu0 0
      %576 = vmatmul.mubr.bf16.gmra.mrb[0].mxu0 %v426
      %v577 = vpop.f32.mrb[0].mxu0
      %v578 = vadd.f32 %v276, %v577
      %v579 = vpop.f32.mrb[0].mxu0
      %v580 = vpop.f32.mrb[0].mxu0
      %v581 = vadd.f32 %v276, %v580
      %v582 = vpop.f32.mrb[0].mxu0
      %583 = vmatprep.mubr.bf16.mxu0 0
      %584 = vmatmul.mubr.bf16.gmra.mrb[0].mxu0 %v429
      %v585 = vpop.f32.mrb[0].mxu0
      %v586 = vadd.f32 %v276, %v585
      %v587 = vpop.f32.mrb[0].mxu0
      %v588 = vpop.f32.mrb[0].mxu0
      %v589 = vadd.f32 %v276, %v588
      %v590 = vpop.f32.mrb[0].mxu0
      %591 = vdwg.mxu0
      %vm592 = vcmp.gt.f32.partialorder %v466, 0.0
      %vm593 = vcmp.gt.f32.partialorder %v469, 0.0
      %vm594 = vcmp.gt.f32.partialorder %v474, 0.0
      %vm595 = vcmp.gt.f32.partialorder %v477, 0.0
      %vm596 = vcmp.gt.f32.partialorder %v482, 0.0
      %vm597 = vcmp.gt.f32.partialorder %v485, 0.0
      %vm598 = vcmp.gt.f32.partialorder %v490, 0.0
      %vm599 = vcmp.gt.f32.partialorder %v493, 0.0
      %vm600 = vcmp.gt.f32.partialorder %v498, 0.0
      %vm601 = vcmp.gt.f32.partialorder %v501, 0.0
      %vm602 = vcmp.gt.f32.partialorder %v506, 0.0
      %vm603 = vcmp.gt.f32.partialorder %v509, 0.0
      %vm604 = vcmp.gt.f32.partialorder %v514, 0.0
      %vm605 = vcmp.gt.f32.partialorder %v517, 0.0
      %vm606 = vcmp.gt.f32.partialorder %v522, 0.0
      %vm607 = vcmp.gt.f32.partialorder %v525, 0.0
      %vm608 = vcmp.gt.f32.partialorder %v530, 0.0
      %vm609 = vcmp.gt.f32.partialorder %v533, 0.0
      %vm610 = vcmp.gt.f32.partialorder %v538, 0.0
      %vm611 = vcmp.gt.f32.partialorder %v541, 0.0
      %vm612 = vcmp.gt.f32.partialorder %v546, 0.0
      %vm613 = vcmp.gt.f32.partialorder %v549, 0.0
      %vm614 = vcmp.gt.f32.partialorder %v554, 0.0
      %vm615 = vcmp.gt.f32.partialorder %v557, 0.0
      %vm616 = vcmp.gt.f32.partialorder %v562, 0.0
      %vm617 = vcmp.gt.f32.partialorder %v565, 0.0
      %vm618 = vcmp.gt.f32.partialorder %v570, 0.0
      %vm619 = vcmp.gt.f32.partialorder %v573, 0.0
      %vm620 = vcmp.gt.f32.partialorder %v578, 0.0
      %vm621 = vcmp.gt.f32.partialorder %v581, 0.0
      %vm622 = vcmp.gt.f32.partialorder %v586, 0.0
      %vm623 = vcmp.gt.f32.partialorder %v589, 0.0
      %v624 = vmul.f32 %v466, 0.2
      %v625 = vmul.f32 %v469, 0.2
      %v626 = vmul.f32 %v474, 0.2
      %v627 = vmul.f32 %v477, 0.2
      %v628 = vmul.f32 %v482, 0.2
      %v629 = vmul.f32 %v485, 0.2
      %v630 = vmul.f32 %v490, 0.2
      %v631 = vmul.f32 %v493, 0.2
      %v632 = vmul.f32 %v498, 0.2
      %v633 = vmul.f32 %v501, 0.2
      %v634 = vmul.f32 %v506, 0.2
      %v635 = vmul.f32 %v509, 0.2
      %v636 = vmul.f32 %v514, 0.2
      %v637 = vmul.f32 %v517, 0.2
      %v638 = vmul.f32 %v522, 0.2
      %v639 = vmul.f32 %v525, 0.2
      %v640 = vmul.f32 %v530, 0.2
      %v641 = vmul.f32 %v533, 0.2
      %v642 = vmul.f32 %v538, 0.2
      %v643 = vmul.f32 %v541, 0.2
      %v644 = vmul.f32 %v546, 0.2
      %v645 = vmul.f32 %v549, 0.2
      %v646 = vmul.f32 %v554, 0.2
      %v647 = vmul.f32 %v557, 0.2
      %v648 = vmul.f32 %v562, 0.2
      %v649 = vmul.f32 %v565, 0.2
      %v650 = vmul.f32 %v570, 0.2
      %v651 = vmul.f32 %v573, 0.2
      %v652 = vmul.f32 %v578, 0.2
      %v653 = vmul.f32 %v581, 0.2
      %v654 = vmul.f32 %v586, 0.2
      %v655 = vmul.f32 %v589, 0.2
      %v656 = vsel %vm592, %v466, %v624
      %v657 = vsel %vm593, %v469, %v625
      %v658 = vsel %vm594, %v474, %v626
      %v659 = vsel %vm595, %v477, %v627
      %v660 = vsel %vm596, %v482, %v628
      %v661 = vsel %vm597, %v485, %v629
      %v662 = vsel %vm598, %v490, %v630
      %v663 = vsel %vm599, %v493, %v631
      %v664 = vsel %vm600, %v498, %v632
      %v665 = vsel %vm601, %v501, %v633
      %v666 = vsel %vm602, %v506, %v634
      %v667 = vsel %vm603, %v509, %v635
      %v668 = vsel %vm604, %v514, %v636
      %v669 = vsel %vm605, %v517, %v637
      %v670 = vsel %vm606, %v522, %v638
      %v671 = vsel %vm607, %v525, %v639
      %v672 = vsel %vm608, %v530, %v640
      %v673 = vsel %vm609, %v533, %v641
      %v674 = vsel %vm610, %v538, %v642
      %v675 = vsel %vm611, %v541, %v643
      %v676 = vsel %vm612, %v546, %v644
      %v677 = vsel %vm613, %v549, %v645
      %v678 = vsel %vm614, %v554, %v646
      %v679 = vsel %vm615, %v557, %v647
      %v680 = vsel %vm616, %v562, %v648
      %v681 = vsel %vm617, %v565, %v649
      %v682 = vsel %vm618, %v570, %v650
      %v683 = vsel %vm619, %v573, %v651
      %v684 = vsel %vm620, %v578, %v652
      %v685 = vsel %vm621, %v581, %v653
      %v686 = vsel %vm622, %v586, %v654
      %v687 = vsel %vm623, %v589, %v655
      %v688 = vpack.c.bf16 %v657, %v656
      %v689 = vpack.c.bf16 %v659, %v658
      %v690 = vpack.c.bf16 %v661, %v660
      %v691 = vpack.c.bf16 %v663, %v662
      %v692 = vpack.c.bf16 %v665, %v664
      %v693 = vpack.c.bf16 %v667, %v666
      %v694 = vpack.c.bf16 %v669, %v668
      %v695 = vpack.c.bf16 %v671, %v670
      %v696 = vpack.c.bf16 %v673, %v672
      %v697 = vpack.c.bf16 %v675, %v674
      %v698 = vpack.c.bf16 %v677, %v676
      %v699 = vpack.c.bf16 %v679, %v678
      %v700 = vpack.c.bf16 %v681, %v680
      %v701 = vpack.c.bf16 %v683, %v682
      %v702 = vpack.c.bf16 %v685, %v684
      %v703 = vpack.c.bf16 %v687, %v686
      %v720 = vunpack.c.l.b16 %v688
      %v721 = vunpack.c.h.b16 %v688
      %v722 = vunpack.c.l.b16 %v689
      %v723 = vunpack.c.h.b16 %v689
      %v724 = vunpack.c.l.b16 %v690
      %v725 = vunpack.c.h.b16 %v690
      %v726 = vunpack.c.l.b16 %v691
      %v727 = vunpack.c.h.b16 %v691
      %v728 = vunpack.c.l.b16 %v692
      %v729 = vunpack.c.h.b16 %v692
      %v730 = vunpack.c.l.b16 %v693
      %v731 = vunpack.c.h.b16 %v693
      %v732 = vunpack.c.l.b16 %v694
      %v733 = vunpack.c.h.b16 %v694
      %v734 = vunpack.c.l.b16 %v695
      %v735 = vunpack.c.h.b16 %v695
      %v736 = vunpack.c.l.b16 %v696
      %v737 = vunpack.c.h.b16 %v696
      %v738 = vunpack.c.l.b16 %v697
      %v739 = vunpack.c.h.b16 %v697
      %v740 = vunpack.c.l.b16 %v698
      %v741 = vunpack.c.h.b16 %v698
      %v742 = vunpack.c.l.b16 %v699
      %v743 = vunpack.c.h.b16 %v699
      %v744 = vunpack.c.l.b16 %v700
      %v745 = vunpack.c.h.b16 %v700
      %v746 = vunpack.c.l.b16 %v701
      %v747 = vunpack.c.h.b16 %v701
      %v748 = vunpack.c.l.b16 %v702
      %v749 = vunpack.c.h.b16 %v702
      %v750 = vunpack.c.l.b16 %v703
      %v751 = vunpack.c.h.b16 %v703
      %v752 = vpack.c.b16 %v720, %v720
      %v753 = vpack.c.b16 %v721, %v721
      %v754 = vpack.c.b16 %v722, %v722
      %v755 = vpack.c.b16 %v723, %v723
      %v756 = vpack.c.b16 %v724, %v724
      %v757 = vpack.c.b16 %v725, %v725
      %v758 = vpack.c.b16 %v726, %v726
      %v759 = vpack.c.b16 %v727, %v727
      %v760 = vpack.c.b16 %v728, %v728
      %v761 = vpack.c.b16 %v729, %v729
      %v762 = vpack.c.b16 %v730, %v730
      %v763 = vpack.c.b16 %v731, %v731
      %v764 = vpack.c.b16 %v732, %v732
      %v765 = vpack.c.b16 %v733, %v733
      %v766 = vpack.c.b16 %v734, %v734
      %v767 = vpack.c.b16 %v735, %v735
      %v768 = vpack.c.b16 %v736, %v736
      %v769 = vpack.c.b16 %v737, %v737
      %v770 = vpack.c.b16 %v738, %v738
      %v771 = vpack.c.b16 %v739, %v739
      %v772 = vpack.c.b16 %v740, %v740
      %v773 = vpack.c.b16 %v741, %v741
      %v774 = vpack.c.b16 %v742, %v742
      %v775 = vpack.c.b16 %v743, %v743
      %v776 = vpack.c.b16 %v744, %v744
      %v777 = vpack.c.b16 %v745, %v745
      %v778 = vpack.c.b16 %v746, %v746
      %v779 = vpack.c.b16 %v747, %v747
      %v780 = vpack.c.b16 %v748, %v748
      %v781 = vpack.c.b16 %v749, %v749
      %v782 = vpack.c.b16 %v750, %v750
      %v783 = vpack.c.b16 %v751, %v751
      %vm816 = vcmask 60416
      %817 = vst.msk [vmem:[%s228] sm:$0xf] %vm816, %v752
      %818 = vst.msk [vmem:[%s228 + $0x4] sm:$0xf] %vm816, %v753
      %819 = vst.msk [vmem:[%s228 + $0x8] sm:$0xf] %vm816, %v754
      %820 = vst.msk [vmem:[%s228 + $0xc] sm:$0xf] %vm816, %v755
      %821 = vst.msk [vmem:[%s228 + $0x10] sm:$0xf] %vm816, %v756
      %822 = vst.msk [vmem:[%s228 + $0x14] sm:$0xf] %vm816, %v757
      %823 = vst.msk [vmem:[%s228 + $0x18] sm:$0xf] %vm816, %v758
      %824 = vst.msk [vmem:[%s228 + $0x1c] sm:$0xf] %vm816, %v759
      %825 = vst.msk [vmem:[%s228 + $0x20] sm:$0xf] %vm816, %v760
      %826 = vst.msk [vmem:[%s228 + $0x24] sm:$0xf] %vm816, %v761
      %827 = vst.msk [vmem:[%s228 + $0x28] sm:$0xf] %vm816, %v762
      %828 = vst.msk [vmem:[%s228 + $0x2c] sm:$0xf] %vm816, %v763
      %829 = vst.msk [vmem:[%s228 + $0x30] sm:$0xf] %vm816, %v764
      %830 = vst.msk [vmem:[%s228 + $0x34] sm:$0xf] %vm816, %v765
      %831 = vst.msk [vmem:[%s228 + $0x38] sm:$0xf] %vm816, %v766
      %832 = vst.msk [vmem:[%s228 + $0x3c] sm:$0xf] %vm816, %v767
      %833 = vst.msk [vmem:[%s228 + $0x40] sm:$0xf] %vm816, %v768
      %834 = vst.msk [vmem:[%s228 + $0x44] sm:$0xf] %vm816, %v769
      %835 = vst.msk [vmem:[%s228 + $0x48] sm:$0xf] %vm816, %v770
      %836 = vst.msk [vmem:[%s228 + $0x4c] sm:$0xf] %vm816, %v771
      %837 = vst.msk [vmem:[%s228 + $0x50] sm:$0xf] %vm816, %v772
      %838 = vst.msk [vmem:[%s228 + $0x54] sm:$0xf] %vm816, %v773
      %839 = vst.msk [vmem:[%s228 + $0x58] sm:$0xf] %vm816, %v774
      %840 = vst.msk [vmem:[%s228 + $0x5c] sm:$0xf] %vm816, %v775
      %841 = vst.msk [vmem:[%s228 + $0x60] sm:$0xf] %vm816, %v776
      %842 = vst.msk [vmem:[%s228 + $0x64] sm:$0xf] %vm816, %v777
      %843 = vst.msk [vmem:[%s228 + $0x68] sm:$0xf] %vm816, %v778
      %844 = vst.msk [vmem:[%s228 + $0x6c] sm:$0xf] %vm816, %v779
      %845 = vst.msk [vmem:[%s228 + $0x70] sm:$0xf] %vm816, %v780
      %846 = vst.msk [vmem:[%s228 + $0x74] sm:$0xf] %vm816, %v781
      %847 = vst.msk [vmem:[%s228 + $0x78] sm:$0xf] %vm816, %v782
      %848 = vst.msk [vmem:[%s228 + $0x7c] sm:$0xf] %vm816, %v783
      %s849 = smul.u32 32, %s19
      %p850 = scmp.lt.s32.totalorder %s18, 0
      %s851 = scalar_select %p850, %s18, 0
      %p852 = scmp.lt.s32.totalorder %s849, 63
      %s853 = scalar_select %p852, %s849, 63
      %s854 = smul.addr %s851, 64
      %s855 = sadd.s32 %s853, %s854
      %s856 = smul.addr %s855, 4
      %s857 = scalar_lea.vmem %s3, %s856
      // Predicated region
      $region33: #{_lambda_.17} parent=31 // pred_check
        %p858 = pneg %p121
      $region34: #{_lambda_.17} parent=31 // pred_check_branch
        %860 = sbr.rel (%p858) target = $region36
      $region35: #{_lambda_.17} parent=31 // pred_region
        %s861 = smul.u32 32, %s19
      $region36: #{_lambda_.17} parent=31 // pred_fallthru
        _
    $region32: #{_lambda_.17} parent=5 // pred_fallthru
      _
    %p862 = scmp.le.s32.totalorder 2, %s9
    // Predicated region
    $region37: #{_lambda_.17} parent=5 // pred_check
      %p863 = pneg %p862
    $region38: #{_lambda_.17} parent=5 // pred_check_branch
      %865 = sbr.rel (%p863) target = $region40
    $region39: #{_lambda_.17} parent=5 // pred_region
      %s866 = ssub.s32 %s9, 2
      // Predicated region
      $region41: #{_lambda_.17} parent=39 // pred_check
        %p867 = pneg %p127
      $region42: #{_lambda_.17} parent=39 // pred_check_branch
        %869 = sbr.rel (%p867) target = $region44
      $region43: #{_lambda_.17} parent=39 // pred_region
        %s870 = smul.u32 32, %s21
        %p871 = scmp.lt.s32.totalorder %s20, 0
        %s872 = scalar_select %p871, %s20, 0
        %p873 = scmp.lt.s32.totalorder %s870, 63
        %s874 = scalar_select %p873, %s870, 63
        %s875 = smul.addr %s872, 64
        %s876 = sadd.s32 %s874, %s875
        %s877 = smul.addr %s876, 4
        %s878 = scalar_lea.vmem %s3, %s877
      $region44: #{_lambda_.17} parent=39 // pred_fallthru
        _
    $region40: #{_lambda_.17} parent=5 // pred_fallthru
      _
  $region6: #{_lambda_.17} parent=0 // loop_footer
    %s13 = sadd.s32 1, %s9
  $region7: #{_lambda_.17} parent=0 // loop_footer_branch
    %8 = sbr.rel target = $region3
  $region8: #{_lambda_.17} parent=0 // loop_exit
    _

// kernel: _lambda_.18
$region0: #{_lambda_.18}
  #allocation0 [shape = 'u32[]', space=smem, size = 0x4, offset = 0x4, fixed_abs, tag = 'smem constant byte address 0x4 - core index']
  #allocation1 [shape = 'u32[144,128]{1,0:T(1,128)}', space=vmem, size = 0x12000, scoped, tag = 'internal scratch']
  %s0 = inlined_call_operand.vmem [shape: bf16[1,128,128], index: 0, kind: input, shape index: {}]
  %s1 = inlined_call_operand.vmem [shape: bf16[1,128,16], index: 1, kind: input, shape index: {}]
  %s2 = inlined_call_operand.vmem [shape: f32[1,1,16], index: 2, kind: input, shape index: {}]
  %s3 = inlined_call_operand.vmem [shape: bf16[1,128,16], index: 3, kind: output, shape index: {0}]
  %s4 = inlined_call_operand.vmem [shape: f32[1,1,1,16], index: 4, kind: output, shape index: {1}]
  %s5 = inlined_call_operand.vmem [shape: f32[1,1,1,16], index: 5, kind: output, shape index: {2}]
  %6 = xla_tuple %s3, %s4, %s5
  %s7 = sld [smem:[#allocation0]]
  $region38: #{_lambda_.18} parent=0
    _
  %s9 = ssub.s32 1, %s7
  %s10 = scalar_select 0, %s9, %s7
  // Predicated region
  $region2: #{_lambda_.18} parent=0 // pred_check
    _
  $region3: #{_lambda_.18} parent=0 // pred_check_branch
    %12 = sbr.rel (0) target = $region5
  $region4: #{_lambda_.18} parent=0 // pred_region
    _
  $region5: #{_lambda_.18} parent=0 // pred_fallthru
    _
  // Predicated region
  $region6: #{_lambda_.18} parent=0 // pred_check
    _
  $region7: #{_lambda_.18} parent=0 // pred_check_branch
    %14 = sbr.rel (0) target = $region9
  $region8: #{_lambda_.18} parent=0 // pred_region
    _
  $region9: #{_lambda_.18} parent=0 // pred_fallthru
    _
  // Predicated region
  $region10: #{_lambda_.18} parent=0 // pred_check
    _
  $region11: #{_lambda_.18} parent=0 // pred_check_branch
    %16 = sbr.rel (0) target = $region13
  $region12: #{_lambda_.18} parent=0 // pred_region
    _
  $region13: #{_lambda_.18} parent=0 // pred_fallthru
    _
  %v18 = vld [vmem:[%s0] sm:$0xf]
  %v19 = vld [vmem:[%s0 + $0x4] sm:$0xf]
  %v20 = vld [vmem:[%s0 + $0x8] sm:$0xf]
  %v21 = vld [vmem:[%s0 + $0xc] sm:$0xf]
  %v22 = vld [vmem:[%s0 + $0x10] sm:$0xf]
  %v23 = vld [vmem:[%s0 + $0x14] sm:$0xf]
  %v24 = vld [vmem:[%s0 + $0x18] sm:$0xf]
  %v25 = vld [vmem:[%s0 + $0x1c] sm:$0xf]
  %v26 = vld [vmem:[%s0 + $0x20] sm:$0xf]
  %v27 = vld [vmem:[%s0 + $0x24] sm:$0xf]
  %v28 = vld [vmem:[%s0 + $0x28] sm:$0xf]
  %v29 = vld [vmem:[%s0 + $0x2c] sm:$0xf]
  %v30 = vld [vmem:[%s0 + $0x30] sm:$0xf]
  %v31 = vld [vmem:[%s0 + $0x34] sm:$0xf]
  %v32 = vld [vmem:[%s0 + $0x38] sm:$0xf]
  %v33 = vld [vmem:[%s0 + $0x3c] sm:$0xf]
  %v34 = vld [vmem:[%s1] sm:$0xf]
  %v35 = vld [vmem:[%s1 + $0x4] sm:$0xf]
  %v36 = vld [vmem:[%s1 + $0x8] sm:$0xf]
  %v37 = vld [vmem:[%s1 + $0xc] sm:$0xf]
  %v38 = vld [vmem:[%s1 + $0x10] sm:$0xf]
  %v39 = vld [vmem:[%s1 + $0x14] sm:$0xf]
  %v40 = vld [vmem:[%s1 + $0x18] sm:$0xf]
  %v41 = vld [vmem:[%s1 + $0x1c] sm:$0xf]
  %v42 = vld [vmem:[%s1 + $0x20] sm:$0xf]
  %v43 = vld [vmem:[%s1 + $0x24] sm:$0xf]
  %v44 = vld [vmem:[%s1 + $0x28] sm:$0xf]
  %v45 = vld [vmem:[%s1 + $0x2c] sm:$0xf]
  %v46 = vld [vmem:[%s1 + $0x30] sm:$0xf]
  %v47 = vld [vmem:[%s1 + $0x34] sm:$0xf]
  %v48 = vld [vmem:[%s1 + $0x38] sm:$0xf]
  %v49 = vld [vmem:[%s1 + $0x3c] sm:$0xf]
  %v50 = vld [vmem:[%s2] sm:$0x1]
  %v52 = vlaneseq
  %v53 = vshrl.u32 %v52, 7
  %v54 = vsub.s32 0, %v53
  %v55 = vrot.slane %v50, %v54
  %v73 = vunpack.c.l.b16 %v18
  %v74 = vunpack.c.l.b16 %v19
  %v75 = vunpack.c.l.b16 %v20
  %v76 = vunpack.c.l.b16 %v21
  %v77 = vunpack.c.l.b16 %v22
  %v78 = vunpack.c.l.b16 %v23
  %v79 = vunpack.c.l.b16 %v24
  %v80 = vunpack.c.l.b16 %v25
  %v81 = vunpack.c.l.b16 %v26
  %v82 = vunpack.c.l.b16 %v27
  %v83 = vunpack.c.l.b16 %v28
  %v84 = vunpack.c.l.b16 %v29
  %v85 = vunpack.c.l.b16 %v30
  %v86 = vunpack.c.l.b16 %v31
  %v87 = vunpack.c.l.b16 %v32
  %v88 = vunpack.c.l.b16 %v33
  %v89 = vpack.c.b16 %v74, %v73
  %v90 = vpack.c.b16 %v76, %v75
  %v91 = vpack.c.b16 %v78, %v77
  %v92 = vpack.c.b16 %v80, %v79
  %v93 = vpack.c.b16 %v82, %v81
  %v94 = vpack.c.b16 %v84, %v83
  %v95 = vpack.c.b16 %v86, %v85
  %v96 = vpack.c.b16 %v88, %v87
  %v121 = vunpack.c.l.b16 %v34
  %v122 = vunpack.c.l.b16 %v35
  %v123 = vunpack.c.l.b16 %v36
  %v124 = vunpack.c.l.b16 %v37
  %v125 = vunpack.c.l.b16 %v38
  %v126 = vunpack.c.l.b16 %v39
  %v127 = vunpack.c.l.b16 %v40
  %v128 = vunpack.c.l.b16 %v41
  %v129 = vunpack.c.l.b16 %v42
  %v130 = vunpack.c.l.b16 %v43
  %v131 = vunpack.c.l.b16 %v44
  %v132 = vunpack.c.l.b16 %v45
  %v133 = vunpack.c.l.b16 %v46
  %v134 = vunpack.c.l.b16 %v47
  %v135 = vunpack.c.l.b16 %v48
  %v136 = vunpack.c.l.b16 %v49
  %v137 = vpack.c.b16 %v122, %v121
  %v138 = vpack.c.b16 %v124, %v123
  %v139 = vpack.c.b16 %v126, %v125
  %v140 = vpack.c.b16 %v128, %v127
  %v141 = vpack.c.b16 %v130, %v129
  %v142 = vpack.c.b16 %v132, %v131
  %v143 = vpack.c.b16 %v134, %v133
  %v144 = vpack.c.b16 %v136, %v135
  %153 = vmatprep.subr.bf16.mxu0 0
  %154 = vmatpush1.bf16.msra.mxu0 %v137
  %155 = vmatprep.subr.bf16.mxu0 0
  %156 = vmatpush1.bf16.msra.mxu0 %v138
  %157 = vmatprep.subr.bf16.mxu0 0
  %158 = vmatpush1.bf16.msra.mxu0 %v139
  %159 = vmatprep.subr.bf16.mxu0 0
  %160 = vmatpush1.bf16.msra.mxu0 %v140
  %161 = vmatprep.subr.bf16.mxu0 0
  %162 = vmatpush1.bf16.msra.mxu0 %v141
  %163 = vmatprep.subr.bf16.mxu0 0
  %164 = vmatpush1.bf16.msra.mxu0 %v142
  %165 = vmatprep.subr.bf16.mxu0 0
  %166 = vmatpush1.bf16.msra.mxu0 %v143
  %167 = vmatprep.subr.bf16.mxu0 0
  %168 = vmatpush1.bf16.msra.mxu0 %v144
  %169 = vmatprep.subr.bf16.mxu0 0
  %170 = vmatpush1.bf16.msra.mxu0 0
  %171 = vmatprep.subr.bf16.mxu0 0
  %172 = vmatpush1.bf16.msra.mxu0 0
  %173 = vmatprep.subr.bf16.mxu0 0
  %174 = vmatpush1.bf16.msra.mxu0 0
  %175 = vmatprep.subr.bf16.mxu0 0
  %176 = vmatpush1.bf16.msra.mxu0 0
  %177 = vmatprep.subr.bf16.mxu0 0
  %178 = vmatpush1.bf16.msra.mxu0 0
  %179 = vmatprep.subr.bf16.mxu0 0
  %180 = vmatpush1.bf16.msra.mxu0 0
  %181 = vmatprep.subr.bf16.mxu0 0
  %182 = vmatpush1.bf16.msra.mxu0 0
  %183 = vmatprep.subr.bf16.mxu0 0
  %184 = vmatpush1.bf16.msra.mxu0 0
  %185 = vmatprep.mubr.bf16.mxu0 0
  %186 = vmatmul.mubr.bf16.gmra.mrb[0].mxu0 %v89
  %v187 = vpop.f32.mrb[0].mxu0
  %v188 = vadd.f32 %v55, %v187
  %v189 = vpop.f32.mrb[0].mxu0
  %v190 = vpop.f32.mrb[0].mxu0
  %v191 = vadd.f32 %v55, %v190
  %v192 = vpop.f32.mrb[0].mxu0
  %193 = vmatprep.mubr.bf16.mxu0 0
  %194 = vmatmul.mubr.bf16.gmra.mrb[0].mxu0 %v90
  %v195 = vpop.f32.mrb[0].mxu0
  %v196 = vadd.f32 %v55, %v195
  %v197 = vpop.f32.mrb[0].mxu0
  %v198 = vpop.f32.mrb[0].mxu0
  %v199 = vadd.f32 %v55, %v198
  %v200 = vpop.f32.mrb[0].mxu0
  %201 = vmatprep.mubr.bf16.mxu0 0
  %202 = vmatmul.mubr.bf16.gmra.mrb[0].mxu0 %v91
  %v203 = vpop.f32.mrb[0].mxu0
  %v204 = vadd.f32 %v55, %v203
  %v205 = vpop.f32.mrb[0].mxu0
  %v206 = vpop.f32.mrb[0].mxu0
  %v207 = vadd.f32 %v55, %v206
  %v208 = vpop.f32.mrb[0].mxu0
  %209 = vmatprep.mubr.bf16.mxu0 0
  %210 = vmatmul.mubr.bf16.gmra.mrb[0].mxu0 %v92
  %v211 = vpop.f32.mrb[0].mxu0
  %v212 = vadd.f32 %v55, %v211
  %v213 = vpop.f32.mrb[0].mxu0
  %v214 = vpop.f32.mrb[0].mxu0
  %v215 = vadd.f32 %v55, %v214
  %v216 = vpop.f32.mrb[0].mxu0
  %217 = vmatprep.mubr.bf16.mxu0 0
  %218 = vmatmul.mubr.bf16.gmra.mrb[0].mxu0 %v93
  %v219 = vpop.f32.mrb[0].mxu0
  %v220 = vadd.f32 %v55, %v219
  %v221 = vpop.f32.mrb[0].mxu0
  %v222 = vpop.f32.mrb[0].mxu0
  %v223 = vadd.f32 %v55, %v222
  %v224 = vpop.f32.mrb[0].mxu0
  %225 = vmatprep.mubr.bf16.mxu0 0
  %226 = vmatmul.mubr.bf16.gmra.mrb[0].mxu0 %v94
  %v227 = vpop.f32.mrb[0].mxu0
  %v228 = vadd.f32 %v55, %v227
  %v229 = vpop.f32.mrb[0].mxu0
  %v230 = vpop.f32.mrb[0].mxu0
  %v231 = vadd.f32 %v55, %v230
  %v232 = vpop.f32.mrb[0].mxu0
  %233 = vmatprep.mubr.bf16.mxu0 0
  %234 = vmatmul.mubr.bf16.gmra.mrb[0].mxu0 %v95
  %v235 = vpop.f32.mrb[0].mxu0
  %v236 = vadd.f32 %v55, %v235
  %v237 = vpop.f32.mrb[0].mxu0
  %v238 = vpop.f32.mrb[0].mxu0
  %v239 = vadd.f32 %v55, %v238
  %v240 = vpop.f32.mrb[0].mxu0
  %241 = vmatprep.mubr.bf16.mxu0 0
  %242 = vmatmul.mubr.bf16.gmra.mrb[0].mxu0 %v96
  %v243 = vpop.f32.mrb[0].mxu0
  %v244 = vadd.f32 %v55, %v243
  %v245 = vpop.f32.mrb[0].mxu0
  %v246 = vpop.f32.mrb[0].mxu0
  %v247 = vadd.f32 %v55, %v246
  %v248 = vpop.f32.mrb[0].mxu0
  %249 = vdwg.mxu0
  %v250 = vpack.c.bf16 %v191, %v188
  %v251 = vpack.c.bf16 %v199, %v196
  %v252 = vpack.c.bf16 %v207, %v204
  %v253 = vpack.c.bf16 %v215, %v212
  %v254 = vpack.c.bf16 %v223, %v220
  %v255 = vpack.c.bf16 %v231, %v228
  %v256 = vpack.c.bf16 %v239, %v236
  %v257 = vpack.c.bf16 %v247, %v244
  %v266 = vunpack.c.l.b16 %v250
  %v267 = vunpack.c.h.b16 %v250
  %v268 = vunpack.c.l.b16 %v251
  %v269 = vunpack.c.h.b16 %v251
  %v270 = vunpack.c.l.b16 %v252
  %v271 = vunpack.c.h.b16 %v252
  %v272 = vunpack.c.l.b16 %v253
  %v273 = vunpack.c.h.b16 %v253
  %v274 = vunpack.c.l.b16 %v254
  %v275 = vunpack.c.h.b16 %v254
  %v276 = vunpack.c.l.b16 %v255
  %v277 = vunpack.c.h.b16 %v255
  %v278 = vunpack.c.l.b16 %v256
  %v279 = vunpack.c.h.b16 %v256
  %v280 = vunpack.c.l.b16 %v257
  %v281 = vunpack.c.h.b16 %v257
  %v282 = vpack.c.b16 %v266, %v266
  %v283 = vpack.c.b16 %v267, %v267
  %v284 = vpack.c.b16 %v268, %v268
  %v285 = vpack.c.b16 %v269, %v269
  %v286 = vpack.c.b16 %v270, %v270
  %v287 = vpack.c.b16 %v271, %v271
  %v288 = vpack.c.b16 %v272, %v272
  %v289 = vpack.c.b16 %v273, %v273
  %v290 = vpack.c.b16 %v274, %v274
  %v291 = vpack.c.b16 %v275, %v275
  %v292 = vpack.c.b16 %v276, %v276
  %v293 = vpack.c.b16 %v277, %v277
  %v294 = vpack.c.b16 %v278, %v278
  %v295 = vpack.c.b16 %v279, %v279
  %v296 = vpack.c.b16 %v280, %v280
  %v297 = vpack.c.b16 %v281, %v281
  %vm314 = vcmask 125952
  %315 = vst.msk [vmem:[%s3] sm:$0xf] %vm314, %v282
  %316 = vst.msk [vmem:[%s3 + $0x4] sm:$0xf] %vm314, %v283
  %317 = vst.msk [vmem:[%s3 + $0x8] sm:$0xf] %vm314, %v284
  %318 = vst.msk [vmem:[%s3 + $0xc] sm:$0xf] %vm314, %v285
  %319 = vst.msk [vmem:[%s3 + $0x10] sm:$0xf] %vm314, %v286
  %320 = vst.msk [vmem:[%s3 + $0x14] sm:$0xf] %vm314, %v287
  %321 = vst.msk [vmem:[%s3 + $0x18] sm:$0xf] %vm314, %v288
  %322 = vst.msk [vmem:[%s3 + $0x1c] sm:$0xf] %vm314, %v289
  %323 = vst.msk [vmem:[%s3 + $0x20] sm:$0xf] %vm314, %v290
  %324 = vst.msk [vmem:[%s3 + $0x24] sm:$0xf] %vm314, %v291
  %325 = vst.msk [vmem:[%s3 + $0x28] sm:$0xf] %vm314, %v292
  %326 = vst.msk [vmem:[%s3 + $0x2c] sm:$0xf] %vm314, %v293
  %327 = vst.msk [vmem:[%s3 + $0x30] sm:$0xf] %vm314, %v294
  %328 = vst.msk [vmem:[%s3 + $0x34] sm:$0xf] %vm314, %v295
  %329 = vst.msk [vmem:[%s3 + $0x38] sm:$0xf] %vm314, %v296
  %330 = vst.msk [vmem:[%s3 + $0x3c] sm:$0xf] %vm314, %v297
  %s331 = smul.u32 0, 128
  %v332 = vlaneseq
  %v333 = vshrl.u32 %v332, 7
  %v334 = vadd.s32 %v333, 8
  %v335 = vadd.s32 %v333, 16
  %v336 = vadd.s32 %v333, 24
  %v337 = vadd.s32 %v333, 32
  %v338 = vadd.s32 %v333, 40
  %v339 = vadd.s32 %v333, 48
  %v340 = vadd.s32 %v333, 56
  %v341 = vadd.s32 %v333, 64
  %v342 = vadd.s32 %v333, 72
  %v343 = vadd.s32 %v333, 80
  %v344 = vadd.s32 %v333, 88
  %v345 = vadd.s32 %v333, 96
  %v346 = vadd.s32 %v333, 104
  %v347 = vadd.s32 %v333, 112
  %v348 = vadd.s32 %v333, 120
  %v349 = vstv %s331
  %v350 = vadd.s32 %v349, %v333
  %v351 = vadd.s32 %v349, %v334
  %v352 = vadd.s32 %v349, %v335
  %v353 = vadd.s32 %v349, %v336
  %v354 = vadd.s32 %v349, %v337
  %v355 = vadd.s32 %v349, %v338
  %v356 = vadd.s32 %v349, %v339
  %v357 = vadd.s32 %v349, %v340
  %v358 = vadd.s32 %v349, %v341
  %v359 = vadd.s32 %v349, %v342
  %v360 = vadd.s32 %v349, %v343
  %v361 = vadd.s32 %v349, %v344
  %v362 = vadd.s32 %v349, %v345
  %v363 = vadd.s32 %v349, %v346
  %v364 = vadd.s32 %v349, %v347
  %v365 = vadd.s32 %v349, %v348
  %vm366 = vcmp.lt.s32.totalorder %v350, 128
  %vm367 = vcmp.lt.s32.totalorder %v351, 128
  %vm368 = vcmp.lt.s32.totalorder %v352, 128
  %vm369 = vcmp.lt.s32.totalorder %v353, 128
  %vm370 = vcmp.lt.s32.totalorder %v354, 128
  %vm371 = vcmp.lt.s32.totalorder %v355, 128
  %vm372 = vcmp.lt.s32.totalorder %v356, 128
  %vm373 = vcmp.lt.s32.totalorder %v357, 128
  %vm374 = vcmp.lt.s32.totalorder %v358, 128
  %vm375 = vcmp.lt.s32.totalorder %v359, 128
  %vm376 = vcmp.lt.s32.totalorder %v360, 128
  %vm377 = vcmp.lt.s32.totalorder %v361, 128
  %vm378 = vcmp.lt.s32.totalorder %v362, 128
  %vm379 = vcmp.lt.s32.totalorder %v363, 128
  %vm380 = vcmp.lt.s32.totalorder %v364, 128
  %vm381 = vcmp.lt.s32.totalorder %v365, 128
  %v382 = vsel %vm366, %v188, 0.0
  %v383 = vsel %vm367, %v191, 0.0
  %v384 = vsel %vm368, %v196, 0.0
  %v385 = vsel %vm369, %v199, 0.0
  %v386 = vsel %vm370, %v204, 0.0
  %v387 = vsel %vm371, %v207, 0.0
  %v388 = vsel %vm372, %v212, 0.0
  %v389 = vsel %vm373, %v215, 0.0
  %v390 = vsel %vm374, %v220, 0.0
  %v391 = vsel %vm375, %v223, 0.0
  %v392 = vsel %vm376, %v228, 0.0
  %v393 = vsel %vm377, %v231, 0.0
  %v394 = vsel %vm378, %v236, 0.0
  %v395 = vsel %vm379, %v239, 0.0
  %v396 = vsel %vm380, %v244, 0.0
  %v397 = vsel %vm381, %v247, 0.0
  %vm398 = vcmask 130048
  %v399 = vsel %vm398, %v382, 0.0
  %v400 = vsel %vm398, %v383, 0.0
  %v401 = vadd.f32 %v399, %v400
  %v402 = vsel %vm398, %v384, 0.0
  %v403 = vadd.f32 %v401, %v402
  %v404 = vsel %vm398, %v385, 0.0
  %v405 = vadd.f32 %v403, %v404
  %v406 = vsel %vm398, %v386, 0.0
  %v407 = vadd.f32 %v405, %v406
  %v408 = vsel %vm398, %v387, 0.0
  %v409 = vadd.f32 %v407, %v408
  %v410 = vsel %vm398, %v388, 0.0
  %v411 = vadd.f32 %v409, %v410
  %v412 = vsel %vm398, %v389, 0.0
  %v413 = vadd.f32 %v411, %v412
  %v414 = vsel %vm398, %v390, 0.0
  %v415 = vadd.f32 %v413, %v414
  %v416 = vsel %vm398, %v391, 0.0
  %v417 = vadd.f32 %v415, %v416
  %v418 = vsel %vm398, %v392, 0.0
  %v419 = vadd.f32 %v417, %v418
  %v420 = vsel %vm398, %v393, 0.0
  %v421 = vadd.f32 %v419, %v420
  %v422 = vsel %vm398, %v394, 0.0
  %v423 = vadd.f32 %v421, %v422
  %v424 = vsel %vm398, %v395, 0.0
  %v425 = vadd.f32 %v423, %v424
  %v426 = vsel %vm398, %v396, 0.0
  %v427 = vadd.f32 %v425, %v426
  %v428 = vsel %vm398, %v397, 0.0
  %v429 = vadd.f32 %v427, %v428
  %v430 = vrot.slane %v429, 4
  %v431 = vadd.f32 %v429, %v430
  %v432 = vrot.slane %v431, 2
  %v433 = vadd.f32 %v431, %v432
  %v434 = vrot.slane %v433, 1
  %v435 = vadd.f32 %v433, %v434
  %vm436 = vcmask 122880
  %437 = vst.msk [vmem:[%s4] sm:$0x1] %vm436, %v435
  %v438 = vmul.f32 %v382, %v382
  %v439 = vmul.f32 %v383, %v383
  %v440 = vmul.f32 %v384, %v384
  %v441 = vmul.f32 %v385, %v385
  %v442 = vmul.f32 %v386, %v386
  %v443 = vmul.f32 %v387, %v387
  %v444 = vmul.f32 %v388, %v388
  %v445 = vmul.f32 %v389, %v389
  %v446 = vmul.f32 %v390, %v390
  %v447 = vmul.f32 %v391, %v391
  %v448 = vmul.f32 %v392, %v392
  %v449 = vmul.f32 %v393, %v393
  %v450 = vmul.f32 %v394, %v394
  %v451 = vmul.f32 %v395, %v395
  %v452 = vmul.f32 %v396, %v396
  %v453 = vmul.f32 %v397, %v397
  %v454 = vsel %vm398, %v438, 0.0
  %v455 = vsel %vm398, %v439, 0.0
  %v456 = vadd.f32 %v454, %v455
  %v457 = vsel %vm398, %v440, 0.0
  %v458 = vadd.f32 %v456, %v457
  %v459 = vsel %vm398, %v441, 0.0
  %v460 = vadd.f32 %v458, %v459
  %v461 = vsel %vm398, %v442, 0.0
  %v462 = vadd.f32 %v460, %v461
  %v463 = vsel %vm398, %v443, 0.0
  %v464 = vadd.f32 %v462, %v463
  %v465 = vsel %vm398, %v444, 0.0
  %v466 = vadd.f32 %v464, %v465
  %v467 = vsel %vm398, %v445, 0.0
  %v468 = vadd.f32 %v466, %v467
  %v469 = vsel %vm398, %v446, 0.0
  %v470 = vadd.f32 %v468, %v469
  %v471 = vsel %vm398, %v447, 0.0
  %v472 = vadd.f32 %v470, %v471
  %v473 = vsel %vm398, %v448, 0.0
  %v474 = vadd.f32 %v472, %v473
  %v475 = vsel %vm398, %v449, 0.0
  %v476 = vadd.f32 %v474, %v475
  %v477 = vsel %vm398, %v450, 0.0
  %v478 = vadd.f32 %v476, %v477
  %v479 = vsel %vm398, %v451, 0.0
  %v480 = vadd.f32 %v478, %v479
  %v481 = vsel %vm398, %v452, 0.0
  %v482 = vadd.f32 %v480, %v481
  %v483 = vsel %vm398, %v453, 0.0
  %v484 = vadd.f32 %v482, %v483
  %v485 = vrot.slane %v484, 4
  %v486 = vadd.f32 %v484, %v485
  %v487 = vrot.slane %v486, 2
  %v488 = vadd.f32 %v486, %v487
  %v489 = vrot.slane %v488, 1
  %v490 = vadd.f32 %v488, %v489
  %491 = vst.msk [vmem:[%s5] sm:$0x1] %vm436, %v490
  // Predicated region
  $region14: #{_lambda_.18} parent=0 // pred_check
    _
  $region15: #{_lambda_.18} parent=0 // pred_check_branch
    %493 = sbr.rel (0) target = $region17
  $region16: #{_lambda_.18} parent=0 // pred_region
    _
  $region17: #{_lambda_.18} parent=0 // pred_fallthru
    _
  // Predicated region
  $region18: #{_lambda_.18} parent=0 // pred_check
    _
  $region19: #{_lambda_.18} parent=0 // pred_check_branch
    %495 = sbr.rel (0) target = $region21
  $region20: #{_lambda_.18} parent=0 // pred_region
    _
  $region21: #{_lambda_.18} parent=0 // pred_fallthru
    _
  // Predicated region
  $region22: #{_lambda_.18} parent=0 // pred_check
    _
  $region23: #{_lambda_.18} parent=0 // pred_check_branch
    %497 = sbr.rel (0) target = $region25
  $region24: #{_lambda_.18} parent=0 // pred_region
    _
  $region25: #{_lambda_.18} parent=0 // pred_fallthru
    _
  // Predicated region
  $region26: #{_lambda_.18} parent=0 // pred_check
    _
  $region27: #{_lambda_.18} parent=0 // pred_check_branch
    %499 = sbr.rel (0) target = $region29
  $region28: #{_lambda_.18} parent=0 // pred_region
    _
  $region29: #{_lambda_.18} parent=0 // pred_fallthru
    _
  // Predicated region
  $region30: #{_lambda_.18} parent=0 // pred_check
    _
  $region31: #{_lambda_.18} parent=0 // pred_check_branch
    %501 = sbr.rel (0) target = $region33
  $region32: #{_lambda_.18} parent=0 // pred_region
    _
  $region33: #{_lambda_.18} parent=0 // pred_fallthru
    _
  // Predicated region
  $region34: #{_lambda_.18} parent=0 // pred_check
    _
  $region35: #{_lambda_.18} parent=0 // pred_check_branch
    %503 = sbr.rel (0) target = $region37
  $region36: #{_lambda_.18} parent=0 // pred_region
    _
  $region37: #{_lambda_.18} parent=0 // pred_fallthru
    _

// kernel: _lambda_.19
$region0: #{_lambda_.19}
  #allocation0 [shape = 'u32[]', space=smem, size = 0x4, offset = 0x4, fixed_abs, tag = 'smem constant byte address 0x4 - core index']
  #allocation1 [shape = 'u32[144,128]{1,0:T(1,128)}', space=vmem, size = 0x12000, scoped, tag = 'internal scratch']
  %s0 = inlined_call_operand.vmem [shape: bf16[128,16], index: 0, kind: input, shape index: {}]
  %s1 = inlined_call_operand.vmem [shape: f32[1,16], index: 1, kind: input, shape index: {}]
  %s2 = inlined_call_operand.vmem [shape: f32[1,16], index: 2, kind: input, shape index: {}]
  %s3 = inlined_call_operand.vmem [shape: bf16[128,16], index: 3, kind: output, shape index: {}]
  %s4 = sld [smem:[#allocation0]]
  $region22: #{_lambda_.19} parent=0
    _
  %s6 = ssub.s32 1, %s4
  %s7 = scalar_select 0, %s6, %s4
  // Predicated region
  $region2: #{_lambda_.19} parent=0 // pred_check
    _
  $region3: #{_lambda_.19} parent=0 // pred_check_branch
    %9 = sbr.rel (0) target = $region5
  $region4: #{_lambda_.19} parent=0 // pred_region
    _
  $region5: #{_lambda_.19} parent=0 // pred_fallthru
    _
  // Predicated region
  $region6: #{_lambda_.19} parent=0 // pred_check
    _
  $region7: #{_lambda_.19} parent=0 // pred_check_branch
    %11 = sbr.rel (0) target = $region9
  $region8: #{_lambda_.19} parent=0 // pred_region
    _
  $region9: #{_lambda_.19} parent=0 // pred_fallthru
    _
  // Predicated region
  $region10: #{_lambda_.19} parent=0 // pred_check
    _
  $region11: #{_lambda_.19} parent=0 // pred_check_branch
    %13 = sbr.rel (0) target = $region13
  $region12: #{_lambda_.19} parent=0 // pred_region
    _
  $region13: #{_lambda_.19} parent=0 // pred_fallthru
    _
  %v14 = vld [vmem:[%s0] sm:$0xf]
  %v15 = vld [vmem:[%s0 + $0x4] sm:$0xf]
  %v16 = vld [vmem:[%s0 + $0x8] sm:$0xf]
  %v17 = vld [vmem:[%s0 + $0xc] sm:$0xf]
  %v18 = vld [vmem:[%s0 + $0x10] sm:$0xf]
  %v19 = vld [vmem:[%s0 + $0x14] sm:$0xf]
  %v20 = vld [vmem:[%s0 + $0x18] sm:$0xf]
  %v21 = vld [vmem:[%s0 + $0x1c] sm:$0xf]
  %v22 = vld [vmem:[%s0 + $0x20] sm:$0xf]
  %v23 = vld [vmem:[%s0 + $0x24] sm:$0xf]
  %v24 = vld [vmem:[%s0 + $0x28] sm:$0xf]
  %v25 = vld [vmem:[%s0 + $0x2c] sm:$0xf]
  %v26 = vld [vmem:[%s0 + $0x30] sm:$0xf]
  %v27 = vld [vmem:[%s0 + $0x34] sm:$0xf]
  %v28 = vld [vmem:[%s0 + $0x38] sm:$0xf]
  %v29 = vld [vmem:[%s0 + $0x3c] sm:$0xf]
  %v30 = vunpack.c.l.bf16 %v14
  %v31 = vunpack.c.l.bf16 %v15
  %v32 = vunpack.c.l.bf16 %v16
  %v33 = vunpack.c.l.bf16 %v17
  %v34 = vunpack.c.l.bf16 %v18
  %v35 = vunpack.c.l.bf16 %v19
  %v36 = vunpack.c.l.bf16 %v20
  %v37 = vunpack.c.l.bf16 %v21
  %v38 = vunpack.c.l.bf16 %v22
  %v39 = vunpack.c.l.bf16 %v23
  %v40 = vunpack.c.l.bf16 %v24
  %v41 = vunpack.c.l.bf16 %v25
  %v42 = vunpack.c.l.bf16 %v26
  %v43 = vunpack.c.l.bf16 %v27
  %v44 = vunpack.c.l.bf16 %v28
  %v45 = vunpack.c.l.bf16 %v29
  %v46 = vld [vmem:[%s1] sm:$0x1]
  %v48 = vlaneseq
  %v49 = vshrl.u32 %v48, 7
  %v50 = vsub.s32 0, %v49
  %v51 = vrot.slane %v46, %v50
  %v53 = vmul.f32 %v30, %v51
  %v54 = vmul.f32 %v31, %v51
  %v55 = vmul.f32 %v32, %v51
  %v56 = vmul.f32 %v33, %v51
  %v57 = vmul.f32 %v34, %v51
  %v58 = vmul.f32 %v35, %v51
  %v59 = vmul.f32 %v36, %v51
  %v60 = vmul.f32 %v37, %v51
  %v61 = vmul.f32 %v38, %v51
  %v62 = vmul.f32 %v39, %v51
  %v63 = vmul.f32 %v40, %v51
  %v64 = vmul.f32 %v41, %v51
  %v65 = vmul.f32 %v42, %v51
  %v66 = vmul.f32 %v43, %v51
  %v67 = vmul.f32 %v44, %v51
  %v68 = vmul.f32 %v45, %v51
  %v69 = vld [vmem:[%s2] sm:$0x1]
  %v71 = vlaneseq
  %v72 = vshrl.u32 %v71, 7
  %v73 = vsub.s32 0, %v72
  %v74 = vrot.slane %v69, %v73
  %v76 = vadd.f32 %v53, %v74
  %v77 = vadd.f32 %v54, %v74
  %v78 = vadd.f32 %v55, %v74
  %v79 = vadd.f32 %v56, %v74
  %v80 = vadd.f32 %v57, %v74
  %v81 = vadd.f32 %v58, %v74
  %v82 = vadd.f32 %v59, %v74
  %v83 = vadd.f32 %v60, %v74
  %v84 = vadd.f32 %v61, %v74
  %v85 = vadd.f32 %v62, %v74
  %v86 = vadd.f32 %v63, %v74
  %v87 = vadd.f32 %v64, %v74
  %v88 = vadd.f32 %v65, %v74
  %v89 = vadd.f32 %v66, %v74
  %v90 = vadd.f32 %v67, %v74
  %v91 = vadd.f32 %v68, %v74
  %vm92 = vcmp.gt.f32.partialorder %v76, 0.0
  %vm93 = vcmp.gt.f32.partialorder %v77, 0.0
  %vm94 = vcmp.gt.f32.partialorder %v78, 0.0
  %vm95 = vcmp.gt.f32.partialorder %v79, 0.0
  %vm96 = vcmp.gt.f32.partialorder %v80, 0.0
  %vm97 = vcmp.gt.f32.partialorder %v81, 0.0
  %vm98 = vcmp.gt.f32.partialorder %v82, 0.0
  %vm99 = vcmp.gt.f32.partialorder %v83, 0.0
  %vm100 = vcmp.gt.f32.partialorder %v84, 0.0
  %vm101 = vcmp.gt.f32.partialorder %v85, 0.0
  %vm102 = vcmp.gt.f32.partialorder %v86, 0.0
  %vm103 = vcmp.gt.f32.partialorder %v87, 0.0
  %vm104 = vcmp.gt.f32.partialorder %v88, 0.0
  %vm105 = vcmp.gt.f32.partialorder %v89, 0.0
  %vm106 = vcmp.gt.f32.partialorder %v90, 0.0
  %vm107 = vcmp.gt.f32.partialorder %v91, 0.0
  %v108 = vmul.f32 %v76, 0.2
  %v109 = vmul.f32 %v77, 0.2
  %v110 = vmul.f32 %v78, 0.2
  %v111 = vmul.f32 %v79, 0.2
  %v112 = vmul.f32 %v80, 0.2
  %v113 = vmul.f32 %v81, 0.2
  %v114 = vmul.f32 %v82, 0.2
  %v115 = vmul.f32 %v83, 0.2
  %v116 = vmul.f32 %v84, 0.2
  %v117 = vmul.f32 %v85, 0.2
  %v118 = vmul.f32 %v86, 0.2
  %v119 = vmul.f32 %v87, 0.2
  %v120 = vmul.f32 %v88, 0.2
  %v121 = vmul.f32 %v89, 0.2
  %v122 = vmul.f32 %v90, 0.2
  %v123 = vmul.f32 %v91, 0.2
  %v124 = vsel %vm92, %v76, %v108
  %v125 = vsel %vm93, %v77, %v109
  %v126 = vsel %vm94, %v78, %v110
  %v127 = vsel %vm95, %v79, %v111
  %v128 = vsel %vm96, %v80, %v112
  %v129 = vsel %vm97, %v81, %v113
  %v130 = vsel %vm98, %v82, %v114
  %v131 = vsel %vm99, %v83, %v115
  %v132 = vsel %vm100, %v84, %v116
  %v133 = vsel %vm101, %v85, %v117
  %v134 = vsel %vm102, %v86, %v118
  %v135 = vsel %vm103, %v87, %v119
  %v136 = vsel %vm104, %v88, %v120
  %v137 = vsel %vm105, %v89, %v121
  %v138 = vsel %vm106, %v90, %v122
  %v139 = vsel %vm107, %v91, %v123
  %v140 = vpack.c.bf16 %v125, %v124
  %v141 = vpack.c.bf16 %v127, %v126
  %v142 = vpack.c.bf16 %v129, %v128
  %v143 = vpack.c.bf16 %v131, %v130
  %v144 = vpack.c.bf16 %v133, %v132
  %v145 = vpack.c.bf16 %v135, %v134
  %v146 = vpack.c.bf16 %v137, %v136
  %v147 = vpack.c.bf16 %v139, %v138
  %v156 = vunpack.c.l.b16 %v140
  %v157 = vunpack.c.h.b16 %v140
  %v158 = vunpack.c.l.b16 %v141
  %v159 = vunpack.c.h.b16 %v141
  %v160 = vunpack.c.l.b16 %v142
  %v161 = vunpack.c.h.b16 %v142
  %v162 = vunpack.c.l.b16 %v143
  %v163 = vunpack.c.h.b16 %v143
  %v164 = vunpack.c.l.b16 %v144
  %v165 = vunpack.c.h.b16 %v144
  %v166 = vunpack.c.l.b16 %v145
  %v167 = vunpack.c.h.b16 %v145
  %v168 = vunpack.c.l.b16 %v146
  %v169 = vunpack.c.h.b16 %v146
  %v170 = vunpack.c.l.b16 %v147
  %v171 = vunpack.c.h.b16 %v147
  %v172 = vpack.c.b16 %v156, %v156
  %v173 = vpack.c.b16 %v157, %v157
  %v174 = vpack.c.b16 %v158, %v158
  %v175 = vpack.c.b16 %v159, %v159
  %v176 = vpack.c.b16 %v160, %v160
  %v177 = vpack.c.b16 %v161, %v161
  %v178 = vpack.c.b16 %v162, %v162
  %v179 = vpack.c.b16 %v163, %v163
  %v180 = vpack.c.b16 %v164, %v164
  %v181 = vpack.c.b16 %v165, %v165
  %v182 = vpack.c.b16 %v166, %v166
  %v183 = vpack.c.b16 %v167, %v167
  %v184 = vpack.c.b16 %v168, %v168
  %v185 = vpack.c.b16 %v169, %v169
  %v186 = vpack.c.b16 %v170, %v170
  %v187 = vpack.c.b16 %v171, %v171
  %vm204 = vcmask 125952
  %205 = vst.msk [vmem:[%s3] sm:$0xf] %vm204, %v172
  %206 = vst.msk [vmem:[%s3 + $0x4] sm:$0xf] %vm204, %v173
  %207 = vst.msk [vmem:[%s3 + $0x8] sm:$0xf] %vm204, %v174
  %208 = vst.msk [vmem:[%s3 + $0xc] sm:$0xf] %vm204, %v175
  %209 = vst.msk [vmem:[%s3 + $0x10] sm:$0xf] %vm204, %v176
  %210 = vst.msk [vmem:[%s3 + $0x14] sm:$0xf] %vm204, %v177
  %211 = vst.msk [vmem:[%s3 + $0x18] sm:$0xf] %vm204, %v178
  %212 = vst.msk [vmem:[%s3 + $0x1c] sm:$0xf] %vm204, %v179
  %213 = vst.msk [vmem:[%s3 + $0x20] sm:$0xf] %vm204, %v180
  %214 = vst.msk [vmem:[%s3 + $0x24] sm:$0xf] %vm204, %v181
  %215 = vst.msk [vmem:[%s3 + $0x28] sm:$0xf] %vm204, %v182
  %216 = vst.msk [vmem:[%s3 + $0x2c] sm:$0xf] %vm204, %v183
  %217 = vst.msk [vmem:[%s3 + $0x30] sm:$0xf] %vm204, %v184
  %218 = vst.msk [vmem:[%s3 + $0x34] sm:$0xf] %vm204, %v185
  %219 = vst.msk [vmem:[%s3 + $0x38] sm:$0xf] %vm204, %v186
  %220 = vst.msk [vmem:[%s3 + $0x3c] sm:$0xf] %vm204, %v187
  // Predicated region
  $region14: #{_lambda_.19} parent=0 // pred_check
    _
  $region15: #{_lambda_.19} parent=0 // pred_check_branch
    %222 = sbr.rel (0) target = $region17
  $region16: #{_lambda_.19} parent=0 // pred_region
    _
  $region17: #{_lambda_.19} parent=0 // pred_fallthru
    _
  // Predicated region
  $region18: #{_lambda_.19} parent=0 // pred_check
    _
  $region19: #{_lambda_.19} parent=0 // pred_check_branch
    %224 = sbr.rel (0) target = $region21
  $region20: #{_lambda_.19} parent=0 // pred_region
    _
  $region21: #{_lambda_.19} parent=0 // pred_fallthru
    _

// kernel: _lambda_.21
$region0: #{_lambda_.21}
  #allocation0 [shape = 'u32[]', space=smem, size = 0x4, offset = 0x4, fixed_abs, tag = 'smem constant byte address 0x4 - core index']
  #allocation1 [shape = 'u32[144,128]{1,0:T(1,128)}', space=vmem, size = 0x12000, scoped, tag = 'internal scratch']
  %s0 = inlined_call_operand.vmem [shape: bf16[32,32], index: 0, kind: input, shape index: {}]
  %s1 = inlined_call_operand.vmem [shape: f32[1,32], index: 1, kind: input, shape index: {}]
  %s2 = inlined_call_operand.vmem [shape: f32[1,32], index: 2, kind: input, shape index: {}]
  %s3 = inlined_call_operand.vmem [shape: bf16[32,32], index: 3, kind: output, shape index: {}]
  %s4 = sld [smem:[#allocation0]]
  $region22: #{_lambda_.21} parent=0
    _
  %s6 = ssub.s32 1, %s4
  %s7 = scalar_select 0, %s6, %s4
  // Predicated region
  $region2: #{_lambda_.21} parent=0 // pred_check
    _
  $region3: #{_lambda_.21} parent=0 // pred_check_branch
    %9 = sbr.rel (0) target = $region5
  $region4: #{_lambda_.21} parent=0 // pred_region
    _
  $region5: #{_lambda_.21} parent=0 // pred_fallthru
    _
  // Predicated region
  $region6: #{_lambda_.21} parent=0 // pred_check
    _
  $region7: #{_lambda_.21} parent=0 // pred_check_branch
    %11 = sbr.rel (0) target = $region9
  $region8: #{_lambda_.21} parent=0 // pred_region
    _
  $region9: #{_lambda_.21} parent=0 // pred_fallthru
    _
  // Predicated region
  $region10: #{_lambda_.21} parent=0 // pred_check
    _
  $region11: #{_lambda_.21} parent=0 // pred_check_branch
    %13 = sbr.rel (0) target = $region13
  $region12: #{_lambda_.21} parent=0 // pred_region
    _
  $region13: #{_lambda_.21} parent=0 // pred_fallthru
    _
  %v14 = vld [vmem:[%s0] sm:$0xf]
  %v15 = vld [vmem:[%s0 + $0x4] sm:$0xf]
  %v16 = vld [vmem:[%s0 + $0x8] sm:$0xf]
  %v17 = vld [vmem:[%s0 + $0xc] sm:$0xf]
  %v18 = vunpack.c.l.bf16 %v14
  %v19 = vunpack.c.l.bf16 %v15
  %v20 = vunpack.c.l.bf16 %v16
  %v21 = vunpack.c.l.bf16 %v17
  %v22 = vld [vmem:[%s1] sm:$0x1]
  %v24 = vlaneseq
  %v25 = vshrl.u32 %v24, 7
  %v26 = vsub.s32 0, %v25
  %v27 = vrot.slane %v22, %v26
  %v29 = vmul.f32 %v18, %v27
  %v30 = vmul.f32 %v19, %v27
  %v31 = vmul.f32 %v20, %v27
  %v32 = vmul.f32 %v21, %v27
  %v33 = vld [vmem:[%s2] sm:$0x1]
  %v35 = vlaneseq
  %v36 = vshrl.u32 %v35, 7
  %v37 = vsub.s32 0, %v36
  %v38 = vrot.slane %v33, %v37
  %v40 = vadd.f32 %v29, %v38
  %v41 = vadd.f32 %v30, %v38
  %v42 = vadd.f32 %v31, %v38
  %v43 = vadd.f32 %v32, %v38
  %vm44 = vcmp.gt.f32.partialorder %v40, 0.0
  %vm45 = vcmp.gt.f32.partialorder %v41, 0.0
  %vm46 = vcmp.gt.f32.partialorder %v42, 0.0
  %vm47 = vcmp.gt.f32.partialorder %v43, 0.0
  %v48 = vmul.f32 %v40, 0.2
  %v49 = vmul.f32 %v41, 0.2
  %v50 = vmul.f32 %v42, 0.2
  %v51 = vmul.f32 %v43, 0.2
  %v52 = vsel %vm44, %v40, %v48
  %v53 = vsel %vm45, %v41, %v49
  %v54 = vsel %vm46, %v42, %v50
  %v55 = vsel %vm47, %v43, %v51
  %v56 = vpack.c.bf16 %v53, %v52
  %v57 = vpack.c.bf16 %v55, %v54
  %v60 = vunpack.c.l.b16 %v56
  %v61 = vunpack.c.h.b16 %v56
  %v62 = vunpack.c.l.b16 %v57
  %v63 = vunpack.c.h.b16 %v57
  %v64 = vpack.c.b16 %v60, %v60
  %v65 = vpack.c.b16 %v61, %v61
  %v66 = vpack.c.b16 %v62, %v62
  %v67 = vpack.c.b16 %v63, %v63
  %vm72 = vcmask 257024
  %73 = vst.msk [vmem:[%s3] sm:$0xf] %vm72, %v64
  %74 = vst.msk [vmem:[%s3 + $0x4] sm:$0xf] %vm72, %v65
  %75 = vst.msk [vmem:[%s3 + $0x8] sm:$0xf] %vm72, %v66
  %76 = vst.msk [vmem:[%s3 + $0xc] sm:$0xf] %vm72, %v67
  // Predicated region
  $region14: #{_lambda_.21} parent=0 // pred_check
    _
  $region15: #{_lambda_.21} parent=0 // pred_check_branch
    %78 = sbr.rel (0) target = $region17
  $region16: #{_lambda_.21} parent=0 // pred_region
    _
  $region17: #{_lambda_.21} parent=0 // pred_fallthru
    _
  // Predicated region
  $region18: #{_lambda_.21} parent=0 // pred_check
    _
  $region19: #{_lambda_.21} parent=0 // pred_check_branch
    %80 = sbr.rel (0) target = $region21
  $region20: #{_lambda_.21} parent=0 // pred_region
    _
  $region21: #{_lambda_.21} parent=0 // pred_fallthru
    _

// kernel: _lambda_.20
$region0: #{_lambda_.20}
  #allocation0 [shape = 'u32[]', space=smem, size = 0x4, offset = 0x4, fixed_abs, tag = 'smem constant byte address 0x4 - core index']
  #allocation1 [shape = 'u32[144,128]{1,0:T(1,128)}', space=vmem, size = 0x12000, scoped, tag = 'internal scratch']
  %s0 = inlined_call_operand.vmem [shape: bf16[1,32,256], index: 0, kind: input, shape index: {}]
  %s1 = inlined_call_operand.vmem [shape: bf16[1,256,32], index: 1, kind: input, shape index: {}]
  %s2 = inlined_call_operand.vmem [shape: f32[1,1,32], index: 2, kind: input, shape index: {}]
  %s3 = inlined_call_operand.vmem [shape: bf16[1,32,32], index: 3, kind: output, shape index: {0}]
  %s4 = inlined_call_operand.vmem [shape: f32[1,1,1,32], index: 4, kind: output, shape index: {1}]
  %s5 = inlined_call_operand.vmem [shape: f32[1,1,1,32], index: 5, kind: output, shape index: {2}]
  %6 = xla_tuple %s3, %s4, %s5
  %s7 = sld [smem:[#allocation0]]
  $region38: #{_lambda_.20} parent=0
    _
  %s9 = ssub.s32 1, %s7
  %s10 = scalar_select 0, %s9, %s7
  // Predicated region
  $region2: #{_lambda_.20} parent=0 // pred_check
    _
  $region3: #{_lambda_.20} parent=0 // pred_check_branch
    %12 = sbr.rel (0) target = $region5
  $region4: #{_lambda_.20} parent=0 // pred_region
    _
  $region5: #{_lambda_.20} parent=0 // pred_fallthru
    _
  // Predicated region
  $region6: #{_lambda_.20} parent=0 // pred_check
    _
  $region7: #{_lambda_.20} parent=0 // pred_check_branch
    %14 = sbr.rel (0) target = $region9
  $region8: #{_lambda_.20} parent=0 // pred_region
    _
  $region9: #{_lambda_.20} parent=0 // pred_fallthru
    _
  // Predicated region
  $region10: #{_lambda_.20} parent=0 // pred_check
    _
  $region11: #{_lambda_.20} parent=0 // pred_check_branch
    %16 = sbr.rel (0) target = $region13
  $region12: #{_lambda_.20} parent=0 // pred_region
    _
  $region13: #{_lambda_.20} parent=0 // pred_fallthru
    _
  %v18 = vld [vmem:[%s0] sm:$0xff]
  %v19 = vld [vmem:[%s0 + $0x8] sm:$0xff]
  %v20 = vld [vmem:[%s0 + $0x10] sm:$0xff]
  %v21 = vld [vmem:[%s0 + $0x18] sm:$0xff]
  %v22 = vld [vmem:[%s1] sm:$0xf]
  %v23 = vld [vmem:[%s1 + $0x4] sm:$0xf]
  %v24 = vld [vmem:[%s1 + $0x8] sm:$0xf]
  %v25 = vld [vmem:[%s1 + $0xc] sm:$0xf]
  %v26 = vld [vmem:[%s1 + $0x10] sm:$0xf]
  %v27 = vld [vmem:[%s1 + $0x14] sm:$0xf]
  %v28 = vld [vmem:[%s1 + $0x18] sm:$0xf]
  %v29 = vld [vmem:[%s1 + $0x1c] sm:$0xf]
  %v30 = vld [vmem:[%s1 + $0x20] sm:$0xf]
  %v31 = vld [vmem:[%s1 + $0x24] sm:$0xf]
  %v32 = vld [vmem:[%s1 + $0x28] sm:$0xf]
  %v33 = vld [vmem:[%s1 + $0x2c] sm:$0xf]
  %v34 = vld [vmem:[%s1 + $0x30] sm:$0xf]
  %v35 = vld [vmem:[%s1 + $0x34] sm:$0xf]
  %v36 = vld [vmem:[%s1 + $0x38] sm:$0xf]
  %v37 = vld [vmem:[%s1 + $0x3c] sm:$0xf]
  %v38 = vld [vmem:[%s1 + $0x40] sm:$0xf]
  %v39 = vld [vmem:[%s1 + $0x44] sm:$0xf]
  %v40 = vld [vmem:[%s1 + $0x48] sm:$0xf]
  %v41 = vld [vmem:[%s1 + $0x4c] sm:$0xf]
  %v42 = vld [vmem:[%s1 + $0x50] sm:$0xf]
  %v43 = vld [vmem:[%s1 + $0x54] sm:$0xf]
  %v44 = vld [vmem:[%s1 + $0x58] sm:$0xf]
  %v45 = vld [vmem:[%s1 + $0x5c] sm:$0xf]
  %v46 = vld [vmem:[%s1 + $0x60] sm:$0xf]
  %v47 = vld [vmem:[%s1 + $0x64] sm:$0xf]
  %v48 = vld [vmem:[%s1 + $0x68] sm:$0xf]
  %v49 = vld [vmem:[%s1 + $0x6c] sm:$0xf]
  %v50 = vld [vmem:[%s1 + $0x70] sm:$0xf]
  %v51 = vld [vmem:[%s1 + $0x74] sm:$0xf]
  %v52 = vld [vmem:[%s1 + $0x78] sm:$0xf]
  %v53 = vld [vmem:[%s1 + $0x7c] sm:$0xf]
  %v54 = vld [vmem:[%s2] sm:$0x1]
  %v56 = vlaneseq
  %v57 = vshrl.u32 %v56, 7
  %v58 = vsub.s32 0, %v57
  %v59 = vrot.slane %v54, %v58
  %v65 = vunpack.c.l.b16 %v18
  %v66 = vunpack.c.h.b16 %v18
  %v67 = vunpack.c.l.b16 %v19
  %v68 = vunpack.c.h.b16 %v19
  %v69 = vunpack.c.l.b16 %v20
  %v70 = vunpack.c.h.b16 %v20
  %v71 = vunpack.c.l.b16 %v21
  %v72 = vunpack.c.h.b16 %v21
  %v73 = vpack.c.b16 %v67, %v65
  %v74 = vpack.c.b16 %v68, %v66
  %v75 = vpack.c.b16 %v71, %v69
  %v76 = vpack.c.b16 %v72, %v70
  %v113 = vunpack.c.l.b16 %v22
  %v114 = vunpack.c.l.b16 %v23
  %v115 = vunpack.c.l.b16 %v24
  %v116 = vunpack.c.l.b16 %v25
  %v117 = vunpack.c.l.b16 %v26
  %v118 = vunpack.c.l.b16 %v27
  %v119 = vunpack.c.l.b16 %v28
  %v120 = vunpack.c.l.b16 %v29
  %v121 = vunpack.c.l.b16 %v30
  %v122 = vunpack.c.l.b16 %v31
  %v123 = vunpack.c.l.b16 %v32
  %v124 = vunpack.c.l.b16 %v33
  %v125 = vunpack.c.l.b16 %v34
  %v126 = vunpack.c.l.b16 %v35
  %v127 = vunpack.c.l.b16 %v36
  %v128 = vunpack.c.l.b16 %v37
  %v129 = vunpack.c.l.b16 %v38
  %v130 = vunpack.c.l.b16 %v39
  %v131 = vunpack.c.l.b16 %v40
  %v132 = vunpack.c.l.b16 %v41
  %v133 = vunpack.c.l.b16 %v42
  %v134 = vunpack.c.l.b16 %v43
  %v135 = vunpack.c.l.b16 %v44
  %v136 = vunpack.c.l.b16 %v45
  %v137 = vunpack.c.l.b16 %v46
  %v138 = vunpack.c.l.b16 %v47
  %v139 = vunpack.c.l.b16 %v48
  %v140 = vunpack.c.l.b16 %v49
  %v141 = vunpack.c.l.b16 %v50
  %v142 = vunpack.c.l.b16 %v51
  %v143 = vunpack.c.l.b16 %v52
  %v144 = vunpack.c.l.b16 %v53
  %v145 = vpack.c.b16 %v114, %v113
  %v146 = vpack.c.b16 %v116, %v115
  %v147 = vpack.c.b16 %v118, %v117
  %v148 = vpack.c.b16 %v120, %v119
  %v149 = vpack.c.b16 %v122, %v121
  %v150 = vpack.c.b16 %v124, %v123
  %v151 = vpack.c.b16 %v126, %v125
  %v152 = vpack.c.b16 %v128, %v127
  %v153 = vpack.c.b16 %v130, %v129
  %v154 = vpack.c.b16 %v132, %v131
  %v155 = vpack.c.b16 %v134, %v133
  %v156 = vpack.c.b16 %v136, %v135
  %v157 = vpack.c.b16 %v138, %v137
  %v158 = vpack.c.b16 %v140, %v139
  %v159 = vpack.c.b16 %v142, %v141
  %v160 = vpack.c.b16 %v144, %v143
  %177 = vmatprep.subr.bf16.mxu0 0
  %178 = vmatpush1.bf16.msra.mxu0 %v145
  %179 = vmatprep.subr.bf16.mxu0 0
  %180 = vmatpush1.bf16.msra.mxu0 %v146
  %181 = vmatprep.subr.bf16.mxu0 0
  %182 = vmatpush1.bf16.msra.mxu0 %v147
  %183 = vmatprep.subr.bf16.mxu0 0
  %184 = vmatpush1.bf16.msra.mxu0 %v148
  %185 = vmatprep.subr.bf16.mxu0 0
  %186 = vmatpush1.bf16.msra.mxu0 %v149
  %187 = vmatprep.subr.bf16.mxu0 0
  %188 = vmatpush1.bf16.msra.mxu0 %v150
  %189 = vmatprep.subr.bf16.mxu0 0
  %190 = vmatpush1.bf16.msra.mxu0 %v151
  %191 = vmatprep.subr.bf16.mxu0 0
  %192 = vmatpush1.bf16.msra.mxu0 %v152
  %193 = vmatprep.subr.bf16.mxu0 0
  %194 = vmatpush1.bf16.msra.mxu0 %v153
  %195 = vmatprep.subr.bf16.mxu0 0
  %196 = vmatpush1.bf16.msra.mxu0 %v154
  %197 = vmatprep.subr.bf16.mxu0 0
  %198 = vmatpush1.bf16.msra.mxu0 %v155
  %199 = vmatprep.subr.bf16.mxu0 0
  %200 = vmatpush1.bf16.msra.mxu0 %v156
  %201 = vmatprep.subr.bf16.mxu0 0
  %202 = vmatpush1.bf16.msra.mxu0 %v157
  %203 = vmatprep.subr.bf16.mxu0 0
  %204 = vmatpush1.bf16.msra.mxu0 %v158
  %205 = vmatprep.subr.bf16.mxu0 0
  %206 = vmatpush1.bf16.msra.mxu0 %v159
  %207 = vmatprep.subr.bf16.mxu0 0
  %208 = vmatpush1.bf16.msra.mxu0 %v160
  %209 = vmatprep.mubr.bf16.mxu0 %v74
  %210 = vmatmul.mubr.bf16.gmra.mrb[0].mxu0 %v73
  %v211 = vpop.f32.mrb[0].mxu0
  %v212 = vadd.f32 %v59, %v211
  %v213 = vpop.f32.mrb[0].mxu0
  %v214 = vpop.f32.mrb[0].mxu0
  %v215 = vadd.f32 %v59, %v214
  %v216 = vpop.f32.mrb[0].mxu0
  %217 = vmatprep.mubr.bf16.mxu0 %v76
  %218 = vmatmul.mubr.bf16.gmra.mrb[0].mxu0 %v75
  %v219 = vpop.f32.mrb[0].mxu0
  %v220 = vadd.f32 %v59, %v219
  %v221 = vpop.f32.mrb[0].mxu0
  %v222 = vpop.f32.mrb[0].mxu0
  %v223 = vadd.f32 %v59, %v222
  %v224 = vpop.f32.mrb[0].mxu0
  %225 = vdwg.mxu0
  %v226 = vpack.c.bf16 %v215, %v212
  %v227 = vpack.c.bf16 %v223, %v220
  %v230 = vunpack.c.l.b16 %v226
  %v231 = vunpack.c.h.b16 %v226
  %v232 = vunpack.c.l.b16 %v227
  %v233 = vunpack.c.h.b16 %v227
  %v234 = vpack.c.b16 %v230, %v230
  %v235 = vpack.c.b16 %v231, %v231
  %v236 = vpack.c.b16 %v232, %v232
  %v237 = vpack.c.b16 %v233, %v233
  %vm242 = vcmask 257024
  %243 = vst.msk [vmem:[%s3] sm:$0xf] %vm242, %v234
  %244 = vst.msk [vmem:[%s3 + $0x4] sm:$0xf] %vm242, %v235
  %245 = vst.msk [vmem:[%s3 + $0x8] sm:$0xf] %vm242, %v236
  %246 = vst.msk [vmem:[%s3 + $0xc] sm:$0xf] %vm242, %v237
  %s247 = smul.u32 0, 32
  %v248 = vlaneseq
  %v249 = vshrl.u32 %v248, 7
  %v250 = vadd.s32 %v249, 8
  %v251 = vadd.s32 %v249, 16
  %v252 = vadd.s32 %v249, 24
  %v253 = vstv %s247
  %v254 = vadd.s32 %v253, %v249
  %v255 = vadd.s32 %v253, %v250
  %v256 = vadd.s32 %v253, %v251
  %v257 = vadd.s32 %v253, %v252
  %vm258 = vcmp.lt.s32.totalorder %v254, 32
  %vm259 = vcmp.lt.s32.totalorder %v255, 32
  %vm260 = vcmp.lt.s32.totalorder %v256, 32
  %vm261 = vcmp.lt.s32.totalorder %v257, 32
  %v262 = vsel %vm258, %v212, 0.0
  %v263 = vsel %vm259, %v215, 0.0
  %v264 = vsel %vm260, %v220, 0.0
  %v265 = vsel %vm261, %v223, 0.0
  %vm266 = vcmask 261120
  %v267 = vsel %vm266, %v262, 0.0
  %v268 = vsel %vm266, %v263, 0.0
  %v269 = vadd.f32 %v267, %v268
  %v270 = vsel %vm266, %v264, 0.0
  %v271 = vadd.f32 %v269, %v270
  %v272 = vsel %vm266, %v265, 0.0
  %v273 = vadd.f32 %v271, %v272
  %v274 = vrot.slane %v273, 4
  %v275 = vadd.f32 %v273, %v274
  %v276 = vrot.slane %v275, 2
  %v277 = vadd.f32 %v275, %v276
  %v278 = vrot.slane %v277, 1
  %v279 = vadd.f32 %v277, %v278
  %vm280 = vcmask 253952
  %281 = vst.msk [vmem:[%s4] sm:$0x1] %vm280, %v279
  %v282 = vmul.f32 %v262, %v262
  %v283 = vmul.f32 %v263, %v263
  %v284 = vmul.f32 %v264, %v264
  %v285 = vmul.f32 %v265, %v265
  %v286 = vsel %vm266, %v282, 0.0
  %v287 = vsel %vm266, %v283, 0.0
  %v288 = vadd.f32 %v286, %v287
  %v289 = vsel %vm266, %v284, 0.0
  %v290 = vadd.f32 %v288, %v289
  %v291 = vsel %vm266, %v285, 0.0
  %v292 = vadd.f32 %v290, %v291
  %v293 = vrot.slane %v292, 4
  %v294 = vadd.f32 %v292, %v293
  %v295 = vrot.slane %v294, 2
  %v296 = vadd.f32 %v294, %v295
  %v297 = vrot.slane %v296, 1
  %v298 = vadd.f32 %v296, %v297
  %299 = vst.msk [vmem:[%s5] sm:$0x1] %vm280, %v298
  // Predicated region
  $region14: #{_lambda_.20} parent=0 // pred_check
    _
  $region15: #{_lambda_.20} parent=0 // pred_check_branch
    %301 = sbr.rel (0) target = $region17
  $region16: #{_lambda_.20} parent=0 // pred_region
    _
  $region17: #{_lambda_.20} parent=0 // pred_fallthru
    _
  // Predicated region
  $region18: #{_lambda_.20} parent=0 // pred_check
    _
  $region19: #{_lambda_.20} parent=0 // pred_check_branch
    %303 = sbr.rel (0) target = $region21
  $region20: #{_lambda_.20} parent=0 // pred_region
    _
  $region21: #{_lambda_.20} parent=0 // pred_fallthru
    _
  // Predicated region
  $region22: #{_lambda_.20} parent=0 // pred_check
    _
  $region23: #{_lambda_.20} parent=0 // pred_check_branch
    %305 = sbr.rel (0) target = $region25
  $region24: #{_lambda_.20} parent=0 // pred_region
    _
  $region25: #{_lambda_.20} parent=0 // pred_fallthru
    _
  // Predicated region
  $region26: #{_lambda_.20} parent=0 // pred_check
    _
  $region27: #{_lambda_.20} parent=0 // pred_check_branch
    %307 = sbr.rel (0) target = $region29
  $region28: #{_lambda_.20} parent=0 // pred_region
    _
  $region29: #{_lambda_.20} parent=0 // pred_fallthru
    _
  // Predicated region
  $region30: #{_lambda_.20} parent=0 // pred_check
    _
  $region31: #{_lambda_.20} parent=0 // pred_check_branch
    %309 = sbr.rel (0) target = $region33
  $region32: #{_lambda_.20} parent=0 // pred_region
    _
  $region33: #{_lambda_.20} parent=0 // pred_fallthru
    _
  // Predicated region
  $region34: #{_lambda_.20} parent=0 // pred_check
    _
  $region35: #{_lambda_.20} parent=0 // pred_check_branch
    %311 = sbr.rel (0) target = $region37
  $region36: #{_lambda_.20} parent=0 // pred_region
    _
  $region37: #{_lambda_.20} parent=0 // pred_fallthru
    _

// kernel: _lambda_.23
$region0: #{_lambda_.23}
  #allocation0 [shape = 'u32[]', space=smem, size = 0x4, offset = 0x4, fixed_abs, tag = 'smem constant byte address 0x4 - core index']
  #allocation1 [shape = 'u32[144,128]{1,0:T(1,128)}', space=vmem, size = 0x12000, scoped, tag = 'internal scratch']
  %s0 = inlined_call_operand.vmem [shape: bf16[8,64], index: 0, kind: input, shape index: {}]
  %s1 = inlined_call_operand.vmem [shape: f32[1,64], index: 1, kind: input, shape index: {}]
  %s2 = inlined_call_operand.vmem [shape: f32[1,64], index: 2, kind: input, shape index: {}]
  %s3 = inlined_call_operand.vmem [shape: bf16[8,64], index: 3, kind: output, shape index: {}]
  %s4 = sld [smem:[#allocation0]]
  $region22: #{_lambda_.23} parent=0
    _
  %s6 = ssub.s32 1, %s4
  %s7 = scalar_select 0, %s6, %s4
  // Predicated region
  $region2: #{_lambda_.23} parent=0 // pred_check
    _
  $region3: #{_lambda_.23} parent=0 // pred_check_branch
    %9 = sbr.rel (0) target = $region5
  $region4: #{_lambda_.23} parent=0 // pred_region
    _
  $region5: #{_lambda_.23} parent=0 // pred_fallthru
    _
  // Predicated region
  $region6: #{_lambda_.23} parent=0 // pred_check
    _
  $region7: #{_lambda_.23} parent=0 // pred_check_branch
    %11 = sbr.rel (0) target = $region9
  $region8: #{_lambda_.23} parent=0 // pred_region
    _
  $region9: #{_lambda_.23} parent=0 // pred_fallthru
    _
  // Predicated region
  $region10: #{_lambda_.23} parent=0 // pred_check
    _
  $region11: #{_lambda_.23} parent=0 // pred_check_branch
    %13 = sbr.rel (0) target = $region13
  $region12: #{_lambda_.23} parent=0 // pred_region
    _
  $region13: #{_lambda_.23} parent=0 // pred_fallthru
    _
  %v14 = vld [vmem:[%s0] sm:$0xf]
  %v15 = vunpack.c.l.bf16 %v14
  %v16 = vld [vmem:[%s1] sm:$0x1]
  %v18 = vlaneseq
  %v19 = vshrl.u32 %v18, 7
  %v20 = vsub.s32 0, %v19
  %v21 = vrot.slane %v16, %v20
  %v23 = vmul.f32 %v15, %v21
  %v24 = vld [vmem:[%s2] sm:$0x1]
  %v26 = vlaneseq
  %v27 = vshrl.u32 %v26, 7
  %v28 = vsub.s32 0, %v27
  %v29 = vrot.slane %v24, %v28
  %v31 = vadd.f32 %v23, %v29
  %vm32 = vcmp.gt.f32.partialorder %v31, 0.0
  %v33 = vmul.f32 %v31, 0.2
  %v34 = vsel %vm32, %v31, %v33
  %v35 = vpack.c.bf16 %v34, %v34
  %vm36 = vcmask 519168
  %37 = vst.msk [vmem:[%s3] sm:$0xf] %vm36, %v35
  // Predicated region
  $region14: #{_lambda_.23} parent=0 // pred_check
    _
  $region15: #{_lambda_.23} parent=0 // pred_check_branch
    %39 = sbr.rel (0) target = $region17
  $region16: #{_lambda_.23} parent=0 // pred_region
    _
  $region17: #{_lambda_.23} parent=0 // pred_fallthru
    _
  // Predicated region
  $region18: #{_lambda_.23} parent=0 // pred_check
    _
  $region19: #{_lambda_.23} parent=0 // pred_check_branch
    %41 = sbr.rel (0) target = $region21
  $region20: #{_lambda_.23} parent=0 // pred_region
    _
  $region21: #{_lambda_.23} parent=0 // pred_fallthru
    _

// kernel: _lambda_.22
$region0: #{_lambda_.22}
  #allocation0 [shape = 'u32[]', space=smem, size = 0x4, offset = 0x4, fixed_abs, tag = 'smem constant byte address 0x4 - core index']
  #allocation1 [shape = 'u32[144,128]{1,0:T(1,128)}', space=vmem, size = 0x12000, scoped, tag = 'internal scratch']
  %s0 = inlined_call_operand.vmem [shape: bf16[1,8,512], index: 0, kind: input, shape index: {}]
  %s1 = inlined_call_operand.vmem [shape: bf16[1,512,64], index: 1, kind: input, shape index: {}]
  %s2 = inlined_call_operand.vmem [shape: f32[1,1,64], index: 2, kind: input, shape index: {}]
  %s3 = inlined_call_operand.vmem [shape: bf16[1,8,64], index: 3, kind: output, shape index: {0}]
  %s4 = inlined_call_operand.vmem [shape: f32[1,1,1,64], index: 4, kind: output, shape index: {1}]
  %s5 = inlined_call_operand.vmem [shape: f32[1,1,1,64], index: 5, kind: output, shape index: {2}]
  %6 = xla_tuple %s3, %s4, %s5
  %s7 = sld [smem:[#allocation0]]
  $region38: #{_lambda_.22} parent=0
    _
  %s9 = ssub.s32 1, %s7
  %s10 = scalar_select 0, %s9, %s7
  // Predicated region
  $region2: #{_lambda_.22} parent=0 // pred_check
    _
  $region3: #{_lambda_.22} parent=0 // pred_check_branch
    %12 = sbr.rel (0) target = $region5
  $region4: #{_lambda_.22} parent=0 // pred_region
    _
  $region5: #{_lambda_.22} parent=0 // pred_fallthru
    _
  // Predicated region
  $region6: #{_lambda_.22} parent=0 // pred_check
    _
  $region7: #{_lambda_.22} parent=0 // pred_check_branch
    %14 = sbr.rel (0) target = $region9
  $region8: #{_lambda_.22} parent=0 // pred_region
    _
  $region9: #{_lambda_.22} parent=0 // pred_fallthru
    _
  // Predicated region
  $region10: #{_lambda_.22} parent=0 // pred_check
    _
  $region11: #{_lambda_.22} parent=0 // pred_check_branch
    %16 = sbr.rel (0) target = $region13
  $region12: #{_lambda_.22} parent=0 // pred_region
    _
  $region13: #{_lambda_.22} parent=0 // pred_fallthru
    _
  %v18 = vld [vmem:[%s0] sm:$0xff]
  %v19 = vld [vmem:[%s0 + $0x8] sm:$0xff]
  %v20 = vld [vmem:[%s1] sm:$0xf]
  %v21 = vld [vmem:[%s1 + $0x4] sm:$0xf]
  %v22 = vld [vmem:[%s1 + $0x8] sm:$0xf]
  %v23 = vld [vmem:[%s1 + $0xc] sm:$0xf]
  %v24 = vld [vmem:[%s1 + $0x10] sm:$0xf]
  %v25 = vld [vmem:[%s1 + $0x14] sm:$0xf]
  %v26 = vld [vmem:[%s1 + $0x18] sm:$0xf]
  %v27 = vld [vmem:[%s1 + $0x1c] sm:$0xf]
  %v28 = vld [vmem:[%s1 + $0x20] sm:$0xf]
  %v29 = vld [vmem:[%s1 + $0x24] sm:$0xf]
  %v30 = vld [vmem:[%s1 + $0x28] sm:$0xf]
  %v31 = vld [vmem:[%s1 + $0x2c] sm:$0xf]
  %v32 = vld [vmem:[%s1 + $0x30] sm:$0xf]
  %v33 = vld [vmem:[%s1 + $0x34] sm:$0xf]
  %v34 = vld [vmem:[%s1 + $0x38] sm:$0xf]
  %v35 = vld [vmem:[%s1 + $0x3c] sm:$0xf]
  %v36 = vld [vmem:[%s1 + $0x40] sm:$0xf]
  %v37 = vld [vmem:[%s1 + $0x44] sm:$0xf]
  %v38 = vld [vmem:[%s1 + $0x48] sm:$0xf]
  %v39 = vld [vmem:[%s1 + $0x4c] sm:$0xf]
  %v40 = vld [vmem:[%s1 + $0x50] sm:$0xf]
  %v41 = vld [vmem:[%s1 + $0x54] sm:$0xf]
  %v42 = vld [vmem:[%s1 + $0x58] sm:$0xf]
  %v43 = vld [vmem:[%s1 + $0x5c] sm:$0xf]
  %v44 = vld [vmem:[%s1 + $0x60] sm:$0xf]
  %v45 = vld [vmem:[%s1 + $0x64] sm:$0xf]
  %v46 = vld [vmem:[%s1 + $0x68] sm:$0xf]
  %v47 = vld [vmem:[%s1 + $0x6c] sm:$0xf]
  %v48 = vld [vmem:[%s1 + $0x70] sm:$0xf]
  %v49 = vld [vmem:[%s1 + $0x74] sm:$0xf]
  %v50 = vld [vmem:[%s1 + $0x78] sm:$0xf]
  %v51 = vld [vmem:[%s1 + $0x7c] sm:$0xf]
  %v52 = vld [vmem:[%s1 + $0x80] sm:$0xf]
  %v53 = vld [vmem:[%s1 + $0x84] sm:$0xf]
  %v54 = vld [vmem:[%s1 + $0x88] sm:$0xf]
  %v55 = vld [vmem:[%s1 + $0x8c] sm:$0xf]
  %v56 = vld [vmem:[%s1 + $0x90] sm:$0xf]
  %v57 = vld [vmem:[%s1 + $0x94] sm:$0xf]
  %v58 = vld [vmem:[%s1 + $0x98] sm:$0xf]
  %v59 = vld [vmem:[%s1 + $0x9c] sm:$0xf]
  %v60 = vld [vmem:[%s1 + $0xa0] sm:$0xf]
  %v61 = vld [vmem:[%s1 + $0xa4] sm:$0xf]
  %v62 = vld [vmem:[%s1 + $0xa8] sm:$0xf]
  %v63 = vld [vmem:[%s1 + $0xac] sm:$0xf]
  %v64 = vld [vmem:[%s1 + $0xb0] sm:$0xf]
  %v65 = vld [vmem:[%s1 + $0xb4] sm:$0xf]
  %v66 = vld [vmem:[%s1 + $0xb8] sm:$0xf]
  %v67 = vld [vmem:[%s1 + $0xbc] sm:$0xf]
  %v68 = vld [vmem:[%s1 + $0xc0] sm:$0xf]
  %v69 = vld [vmem:[%s1 + $0xc4] sm:$0xf]
  %v70 = vld [vmem:[%s1 + $0xc8] sm:$0xf]
  %v71 = vld [vmem:[%s1 + $0xcc] sm:$0xf]
  %v72 = vld [vmem:[%s1 + $0xd0] sm:$0xf]
  %v73 = vld [vmem:[%s1 + $0xd4] sm:$0xf]
  %v74 = vld [vmem:[%s1 + $0xd8] sm:$0xf]
  %v75 = vld [vmem:[%s1 + $0xdc] sm:$0xf]
  %v76 = vld [vmem:[%s1 + $0xe0] sm:$0xf]
  %v77 = vld [vmem:[%s1 + $0xe4] sm:$0xf]
  %v78 = vld [vmem:[%s1 + $0xe8] sm:$0xf]
  %v79 = vld [vmem:[%s1 + $0xec] sm:$0xf]
  %v80 = vld [vmem:[%s1 + $0xf0] sm:$0xf]
  %v81 = vld [vmem:[%s1 + $0xf4] sm:$0xf]
  %v82 = vld [vmem:[%s1 + $0xf8] sm:$0xf]
  %v83 = vld [vmem:[%s1 + $0xfc] sm:$0xf]
  %v84 = vld [vmem:[%s2] sm:$0x1]
  %v86 = vlaneseq
  %v87 = vshrl.u32 %v86, 7
  %v88 = vsub.s32 0, %v87
  %v89 = vrot.slane %v84, %v88
  %v93 = vunpack.c.l.b16 %v18
  %v94 = vunpack.c.h.b16 %v18
  %v95 = vunpack.c.l.b16 %v19
  %v96 = vunpack.c.h.b16 %v19
  %v97 = vpack.c.b16 %v93, %v93
  %v98 = vpack.c.b16 %v94, %v94
  %v99 = vpack.c.b16 %v95, %v95
  %v100 = vpack.c.b16 %v96, %v96
  %v169 = vunpack.c.l.b16 %v20
  %v170 = vunpack.c.l.b16 %v21
  %v171 = vunpack.c.l.b16 %v22
  %v172 = vunpack.c.l.b16 %v23
  %v173 = vunpack.c.l.b16 %v24
  %v174 = vunpack.c.l.b16 %v25
  %v175 = vunpack.c.l.b16 %v26
  %v176 = vunpack.c.l.b16 %v27
  %v177 = vunpack.c.l.b16 %v28
  %v178 = vunpack.c.l.b16 %v29
  %v179 = vunpack.c.l.b16 %v30
  %v180 = vunpack.c.l.b16 %v31
  %v181 = vunpack.c.l.b16 %v32
  %v182 = vunpack.c.l.b16 %v33
  %v183 = vunpack.c.l.b16 %v34
  %v184 = vunpack.c.l.b16 %v35
  %v185 = vunpack.c.l.b16 %v36
  %v186 = vunpack.c.l.b16 %v37
  %v187 = vunpack.c.l.b16 %v38
  %v188 = vunpack.c.l.b16 %v39
  %v189 = vunpack.c.l.b16 %v40
  %v190 = vunpack.c.l.b16 %v41
  %v191 = vunpack.c.l.b16 %v42
  %v192 = vunpack.c.l.b16 %v43
  %v193 = vunpack.c.l.b16 %v44
  %v194 = vunpack.c.l.b16 %v45
  %v195 = vunpack.c.l.b16 %v46
  %v196 = vunpack.c.l.b16 %v47
  %v197 = vunpack.c.l.b16 %v48
  %v198 = vunpack.c.l.b16 %v49
  %v199 = vunpack.c.l.b16 %v50
  %v200 = vunpack.c.l.b16 %v51
  %v201 = vunpack.c.l.b16 %v52
  %v202 = vunpack.c.l.b16 %v53
  %v203 = vunpack.c.l.b16 %v54
  %v204 = vunpack.c.l.b16 %v55
  %v205 = vunpack.c.l.b16 %v56
  %v206 = vunpack.c.l.b16 %v57
  %v207 = vunpack.c.l.b16 %v58
  %v208 = vunpack.c.l.b16 %v59
  %v209 = vunpack.c.l.b16 %v60
  %v210 = vunpack.c.l.b16 %v61
  %v211 = vunpack.c.l.b16 %v62
  %v212 = vunpack.c.l.b16 %v63
  %v213 = vunpack.c.l.b16 %v64
  %v214 = vunpack.c.l.b16 %v65
  %v215 = vunpack.c.l.b16 %v66
  %v216 = vunpack.c.l.b16 %v67
  %v217 = vunpack.c.l.b16 %v68
  %v218 = vunpack.c.l.b16 %v69
  %v219 = vunpack.c.l.b16 %v70
  %v220 = vunpack.c.l.b16 %v71
  %v221 = vunpack.c.l.b16 %v72
  %v222 = vunpack.c.l.b16 %v73
  %v223 = vunpack.c.l.b16 %v74
  %v224 = vunpack.c.l.b16 %v75
  %v225 = vunpack.c.l.b16 %v76
  %v226 = vunpack.c.l.b16 %v77
  %v227 = vunpack.c.l.b16 %v78
  %v228 = vunpack.c.l.b16 %v79
  %v229 = vunpack.c.l.b16 %v80
  %v230 = vunpack.c.l.b16 %v81
  %v231 = vunpack.c.l.b16 %v82
  %v232 = vunpack.c.l.b16 %v83
  %v233 = vpack.c.b16 %v170, %v169
  %v234 = vpack.c.b16 %v172, %v171
  %v235 = vpack.c.b16 %v174, %v173
  %v236 = vpack.c.b16 %v176, %v175
  %v237 = vpack.c.b16 %v178, %v177
  %v238 = vpack.c.b16 %v180, %v179
  %v239 = vpack.c.b16 %v182, %v181
  %v240 = vpack.c.b16 %v184, %v183
  %v241 = vpack.c.b16 %v186, %v185
  %v242 = vpack.c.b16 %v188, %v187
  %v243 = vpack.c.b16 %v190, %v189
  %v244 = vpack.c.b16 %v192, %v191
  %v245 = vpack.c.b16 %v194, %v193
  %v246 = vpack.c.b16 %v196, %v195
  %v247 = vpack.c.b16 %v198, %v197
  %v248 = vpack.c.b16 %v200, %v199
  %v249 = vpack.c.b16 %v202, %v201
  %v250 = vpack.c.b16 %v204, %v203
  %v251 = vpack.c.b16 %v206, %v205
  %v252 = vpack.c.b16 %v208, %v207
  %v253 = vpack.c.b16 %v210, %v209
  %v254 = vpack.c.b16 %v212, %v211
  %v255 = vpack.c.b16 %v214, %v213
  %v256 = vpack.c.b16 %v216, %v215
  %v257 = vpack.c.b16 %v218, %v217
  %v258 = vpack.c.b16 %v220, %v219
  %v259 = vpack.c.b16 %v222, %v221
  %v260 = vpack.c.b16 %v224, %v223
  %v261 = vpack.c.b16 %v226, %v225
  %v262 = vpack.c.b16 %v228, %v227
  %v263 = vpack.c.b16 %v230, %v229
  %v264 = vpack.c.b16 %v232, %v231
  %297 = vmatprep.subr.bf16.mxu0 0
  %298 = vmatpush1.bf16.msra.mxu0 %v233
  %299 = vmatprep.subr.bf16.mxu0 0
  %300 = vmatpush1.bf16.msra.mxu0 %v234
  %301 = vmatprep.subr.bf16.mxu0 0
  %302 = vmatpush1.bf16.msra.mxu0 %v235
  %303 = vmatprep.subr.bf16.mxu0 0
  %304 = vmatpush1.bf16.msra.mxu0 %v236
  %305 = vmatprep.subr.bf16.mxu0 0
  %306 = vmatpush1.bf16.msra.mxu0 %v237
  %307 = vmatprep.subr.bf16.mxu0 0
  %308 = vmatpush1.bf16.msra.mxu0 %v238
  %309 = vmatprep.subr.bf16.mxu0 0
  %310 = vmatpush1.bf16.msra.mxu0 %v239
  %311 = vmatprep.subr.bf16.mxu0 0
  %312 = vmatpush1.bf16.msra.mxu0 %v240
  %313 = vmatprep.subr.bf16.mxu0 0
  %314 = vmatpush1.bf16.msra.mxu0 %v241
  %315 = vmatprep.subr.bf16.mxu0 0
  %316 = vmatpush1.bf16.msra.mxu0 %v242
  %317 = vmatprep.subr.bf16.mxu0 0
  %318 = vmatpush1.bf16.msra.mxu0 %v243
  %319 = vmatprep.subr.bf16.mxu0 0
  %320 = vmatpush1.bf16.msra.mxu0 %v244
  %321 = vmatprep.subr.bf16.mxu0 0
  %322 = vmatpush1.bf16.msra.mxu0 %v245
  %323 = vmatprep.subr.bf16.mxu0 0
  %324 = vmatpush1.bf16.msra.mxu0 %v246
  %325 = vmatprep.subr.bf16.mxu0 0
  %326 = vmatpush1.bf16.msra.mxu0 %v247
  %327 = vmatprep.subr.bf16.mxu0 0
  %328 = vmatpush1.bf16.msra.mxu0 %v248
  %329 = vmatprep.mubr.bf16.mxu0 %v98
  %330 = vmatmul.mubr.bf16.gmra.mrb[0].mxu0 %v97
  %v331 = vpop.f32.mrb[0].mxu0
  %v332 = vadd.f32 %v89, %v331
  %v333 = vpop.f32.mrb[0].mxu0
  %v334 = vpop.f32.mrb[0].mxu0
  %v335 = vpop.f32.mrb[0].mxu0
  %336 = vdwg.mxu0
  %337 = vmatprep.subr.bf16.mxu0 0
  %338 = vmatpush1.bf16.msra.mxu0 %v249
  %339 = vmatprep.subr.bf16.mxu0 0
  %340 = vmatpush1.bf16.msra.mxu0 %v250
  %341 = vmatprep.subr.bf16.mxu0 0
  %342 = vmatpush1.bf16.msra.mxu0 %v251
  %343 = vmatprep.subr.bf16.mxu0 0
  %344 = vmatpush1.bf16.msra.mxu0 %v252
  %345 = vmatprep.subr.bf16.mxu0 0
  %346 = vmatpush1.bf16.msra.mxu0 %v253
  %347 = vmatprep.subr.bf16.mxu0 0
  %348 = vmatpush1.bf16.msra.mxu0 %v254
  %349 = vmatprep.subr.bf16.mxu0 0
  %350 = vmatpush1.bf16.msra.mxu0 %v255
  %351 = vmatprep.subr.bf16.mxu0 0
  %352 = vmatpush1.bf16.msra.mxu0 %v256
  %353 = vmatprep.subr.bf16.mxu0 0
  %354 = vmatpush1.bf16.msra.mxu0 %v257
  %355 = vmatprep.subr.bf16.mxu0 0
  %356 = vmatpush1.bf16.msra.mxu0 %v258
  %357 = vmatprep.subr.bf16.mxu0 0
  %358 = vmatpush1.bf16.msra.mxu0 %v259
  %359 = vmatprep.subr.bf16.mxu0 0
  %360 = vmatpush1.bf16.msra.mxu0 %v260
  %361 = vmatprep.subr.bf16.mxu0 0
  %362 = vmatpush1.bf16.msra.mxu0 %v261
  %363 = vmatprep.subr.bf16.mxu0 0
  %364 = vmatpush1.bf16.msra.mxu0 %v262
  %365 = vmatprep.subr.bf16.mxu0 0
  %366 = vmatpush1.bf16.msra.mxu0 %v263
  %367 = vmatprep.subr.bf16.mxu0 0
  %368 = vmatpush1.bf16.msra.mxu0 %v264
  %369 = vmatprep.mubr.bf16.mxu0 %v100
  %370 = vmatmul.mubr.bf16.gmra.mrb[0].mxu0 %v99
  %v371 = vpop.f32.mrb[0].mxu0
  %v372 = vadd.f32 %v332, %v371
  %v373 = vpop.f32.mrb[0].mxu0
  %v374 = vpop.f32.mrb[0].mxu0
  %v375 = vpop.f32.mrb[0].mxu0
  %376 = vdwg.mxu0
  %v377 = vpack.c.bf16 %v372, %v372
  %vm378 = vcmask 519168
  %379 = vst.msk [vmem:[%s3] sm:$0xf] %vm378, %v377
  %s380 = smul.u32 0, 8
  %v381 = vlaneseq
  %v382 = vshrl.u32 %v381, 7
  %v383 = vstv %s380
  %v384 = vadd.s32 %v383, %v382
  %vm385 = vcmp.lt.s32.totalorder %v384, 8
  %v386 = vsel %vm385, %v372, 0.0
  %vm387 = vcmask 523264
  %v388 = vsel %vm387, %v386, 0.0
  %v389 = vrot.slane %v388, 4
  %v390 = vadd.f32 %v388, %v389
  %v391 = vrot.slane %v390, 2
  %v392 = vadd.f32 %v390, %v391
  %v393 = vrot.slane %v392, 1
  %v394 = vadd.f32 %v392, %v393
  %vm395 = vcmask 516096
  %396 = vst.msk [vmem:[%s4] sm:$0x1] %vm395, %v394
  %v397 = vmul.f32 %v386, %v386
  %v398 = vsel %vm387, %v397, 0.0
  %v399 = vrot.slane %v398, 4
  %v400 = vadd.f32 %v398, %v399
  %v401 = vrot.slane %v400, 2
  %v402 = vadd.f32 %v400, %v401
  %v403 = vrot.slane %v402, 1
  %v404 = vadd.f32 %v402, %v403
  %405 = vst.msk [vmem:[%s5] sm:$0x1] %vm395, %v404
  // Predicated region
  $region14: #{_lambda_.22} parent=0 // pred_check
    _
  $region15: #{_lambda_.22} parent=0 // pred_check_branch
    %407 = sbr.rel (0) target = $region17
  $region16: #{_lambda_.22} parent=0 // pred_region
    _
  $region17: #{_lambda_.22} parent=0 // pred_fallthru
    _
  // Predicated region
  $region18: #{_lambda_.22} parent=0 // pred_check
    _
  $region19: #{_lambda_.22} parent=0 // pred_check_branch
    %409 = sbr.rel (0) target = $region21
  $region20: #{_lambda_.22} parent=0 // pred_region
    _
  $region21: #{_lambda_.22} parent=0 // pred_fallthru
    _
  // Predicated region
  $region22: #{_lambda_.22} parent=0 // pred_check
    _
  $region23: #{_lambda_.22} parent=0 // pred_check_branch
    %411 = sbr.rel (0) target = $region25
  $region24: #{_lambda_.22} parent=0 // pred_region
    _
  $region25: #{_lambda_.22} parent=0 // pred_fallthru
    _
  // Predicated region
  $region26: #{_lambda_.22} parent=0 // pred_check
    _
  $region27: #{_lambda_.22} parent=0 // pred_check_branch
    %413 = sbr.rel (0) target = $region29
  $region28: #{_lambda_.22} parent=0 // pred_region
    _
  $region29: #{_lambda_.22} parent=0 // pred_fallthru
    _
  // Predicated region
  $region30: #{_lambda_.22} parent=0 // pred_check
    _
  $region31: #{_lambda_.22} parent=0 // pred_check_branch
    %415 = sbr.rel (0) target = $region33
  $region32: #{_lambda_.22} parent=0 // pred_region
    _
  $region33: #{_lambda_.22} parent=0 // pred_fallthru
    _
  // Predicated region
  $region34: #{_lambda_.22} parent=0 // pred_check
    _
  $region35: #{_lambda_.22} parent=0 // pred_check_branch
    %417 = sbr.rel (0) target = $region37
  $region36: #{_lambda_.22} parent=0 // pred_region
    _
  $region37: #{_lambda_.22} parent=0 // pred_fallthru
    _

// kernel: _lambda_.24
$region0: #{_lambda_.24}
  #allocation0 [shape = 'u32[]', space=smem, size = 0x4, offset = 0x4, fixed_abs, tag = 'smem constant byte address 0x4 - core index']
  #allocation1 [shape = 'u32[144,128]{1,0:T(1,128)}', space=vmem, size = 0x12000, scoped, tag = 'internal scratch']
  %s0 = inlined_call_operand.vmem [shape: bf16[1,2,1024], index: 0, kind: input, shape index: {}]
  %s1 = inlined_call_operand.vmem [shape: bf16[1,1024,64], index: 1, kind: input, shape index: {}]
  %s2 = inlined_call_operand.vmem [shape: f32[1,1,64], index: 2, kind: input, shape index: {}]
  %s3 = inlined_call_operand.vmem [shape: bf16[1,2,64], index: 3, kind: output, shape index: {}]
  %s4 = sld [smem:[#allocation0]]
  $region52: #{_lambda_.24} parent=0
    _
  %s6 = ssub.s32 1, %s4
  %s7 = scalar_select 0, %s6, %s4
  $region1: #{_lambda_.24} parent=0
    #allocation2 [shape = 'u8[2048]{0}', space=vmem, size = 0x800, scoped, tag = 'output window, operand 0, single buffered']
    // Predicated region
    $region2: #{_lambda_.24} parent=1 // pred_check
      _
    $region3: #{_lambda_.24} parent=1 // pred_check_branch
      %9 = sbr.rel (0) target = $region5
    $region4: #{_lambda_.24} parent=1 // pred_region
      _
    $region5: #{_lambda_.24} parent=1 // pred_fallthru
      _
    // Predicated region
    $region6: #{_lambda_.24} parent=1 // pred_check
      _
    $region7: #{_lambda_.24} parent=1 // pred_check_branch
      %11 = sbr.rel (0) target = $region9
    $region8: #{_lambda_.24} parent=1 // pred_region
      _
    $region9: #{_lambda_.24} parent=1 // pred_fallthru
      _
    // Predicated region
    $region10: #{_lambda_.24} parent=1 // pred_check
      _
    $region11: #{_lambda_.24} parent=1 // pred_check_branch
      %13 = sbr.rel (0) target = $region13
    $region12: #{_lambda_.24} parent=1 // pred_region
      _
    $region13: #{_lambda_.24} parent=1 // pred_fallthru
      _
    %v15 = vld [vmem:[%s0] sm:$0xff]
    %v16 = vld [vmem:[%s0 + $0x8] sm:$0xff]
    %v17 = vld [vmem:[%s0 + $0x10] sm:$0xff]
    %v18 = vld [vmem:[%s0 + $0x18] sm:$0xff]
    %v19 = vld [vmem:[%s1] sm:$0xf]
    %v20 = vld [vmem:[%s1 + $0x4] sm:$0xf]
    %v21 = vld [vmem:[%s1 + $0x8] sm:$0xf]
    %v22 = vld [vmem:[%s1 + $0xc] sm:$0xf]
    %v23 = vld [vmem:[%s1 + $0x10] sm:$0xf]
    %v24 = vld [vmem:[%s1 + $0x14] sm:$0xf]
    %v25 = vld [vmem:[%s1 + $0x18] sm:$0xf]
    %v26 = vld [vmem:[%s1 + $0x1c] sm:$0xf]
    %v27 = vld [vmem:[%s1 + $0x20] sm:$0xf]
    %v28 = vld [vmem:[%s1 + $0x24] sm:$0xf]
    %v29 = vld [vmem:[%s1 + $0x28] sm:$0xf]
    %v30 = vld [vmem:[%s1 + $0x2c] sm:$0xf]
    %v31 = vld [vmem:[%s1 + $0x30] sm:$0xf]
    %v32 = vld [vmem:[%s1 + $0x34] sm:$0xf]
    %v33 = vld [vmem:[%s1 + $0x38] sm:$0xf]
    %v34 = vld [vmem:[%s1 + $0x3c] sm:$0xf]
    %v35 = vld [vmem:[%s1 + $0x40] sm:$0xf]
    %v36 = vld [vmem:[%s1 + $0x44] sm:$0xf]
    %v37 = vld [vmem:[%s1 + $0x48] sm:$0xf]
    %v38 = vld [vmem:[%s1 + $0x4c] sm:$0xf]
    %v39 = vld [vmem:[%s1 + $0x50] sm:$0xf]
    %v40 = vld [vmem:[%s1 + $0x54] sm:$0xf]
    %v41 = vld [vmem:[%s1 + $0x58] sm:$0xf]
    %v42 = vld [vmem:[%s1 + $0x5c] sm:$0xf]
    %v43 = vld [vmem:[%s1 + $0x60] sm:$0xf]
    %v44 = vld [vmem:[%s1 + $0x64] sm:$0xf]
    %v45 = vld [vmem:[%s1 + $0x68] sm:$0xf]
    %v46 = vld [vmem:[%s1 + $0x6c] sm:$0xf]
    %v47 = vld [vmem:[%s1 + $0x70] sm:$0xf]
    %v48 = vld [vmem:[%s1 + $0x74] sm:$0xf]
    %v49 = vld [vmem:[%s1 + $0x78] sm:$0xf]
    %v50 = vld [vmem:[%s1 + $0x7c] sm:$0xf]
    %v51 = vld [vmem:[%s1 + $0x80] sm:$0xf]
    %v52 = vld [vmem:[%s1 + $0x84] sm:$0xf]
    %v53 = vld [vmem:[%s1 + $0x88] sm:$0xf]
    %v54 = vld [vmem:[%s1 + $0x8c] sm:$0xf]
    %v55 = vld [vmem:[%s1 + $0x90] sm:$0xf]
    %v56 = vld [vmem:[%s1 + $0x94] sm:$0xf]
    %v57 = vld [vmem:[%s1 + $0x98] sm:$0xf]
    %v58 = vld [vmem:[%s1 + $0x9c] sm:$0xf]
    %v59 = vld [vmem:[%s1 + $0xa0] sm:$0xf]
    %v60 = vld [vmem:[%s1 + $0xa4] sm:$0xf]
    %v61 = vld [vmem:[%s1 + $0xa8] sm:$0xf]
    %v62 = vld [vmem:[%s1 + $0xac] sm:$0xf]
    %v63 = vld [vmem:[%s1 + $0xb0] sm:$0xf]
    %v64 = vld [vmem:[%s1 + $0xb4] sm:$0xf]
    %v65 = vld [vmem:[%s1 + $0xb8] sm:$0xf]
    %v66 = vld [vmem:[%s1 + $0xbc] sm:$0xf]
    %v67 = vld [vmem:[%s1 + $0xc0] sm:$0xf]
    %v68 = vld [vmem:[%s1 + $0xc4] sm:$0xf]
    %v69 = vld [vmem:[%s1 + $0xc8] sm:$0xf]
    %v70 = vld [vmem:[%s1 + $0xcc] sm:$0xf]
    %v71 = vld [vmem:[%s1 + $0xd0] sm:$0xf]
    %v72 = vld [vmem:[%s1 + $0xd4] sm:$0xf]
    %v73 = vld [vmem:[%s1 + $0xd8] sm:$0xf]
    %v74 = vld [vmem:[%s1 + $0xdc] sm:$0xf]
    %v75 = vld [vmem:[%s1 + $0xe0] sm:$0xf]
    %v76 = vld [vmem:[%s1 + $0xe4] sm:$0xf]
    %v77 = vld [vmem:[%s1 + $0xe8] sm:$0xf]
    %v78 = vld [vmem:[%s1 + $0xec] sm:$0xf]
    %v79 = vld [vmem:[%s1 + $0xf0] sm:$0xf]
    %v80 = vld [vmem:[%s1 + $0xf4] sm:$0xf]
    %v81 = vld [vmem:[%s1 + $0xf8] sm:$0xf]
    %v82 = vld [vmem:[%s1 + $0xfc] sm:$0xf]
    %v83 = vld [vmem:[%s1 + $0x100] sm:$0xf]
    %v84 = vld [vmem:[%s1 + $0x104] sm:$0xf]
    %v85 = vld [vmem:[%s1 + $0x108] sm:$0xf]
    %v86 = vld [vmem:[%s1 + $0x10c] sm:$0xf]
    %v87 = vld [vmem:[%s1 + $0x110] sm:$0xf]
    %v88 = vld [vmem:[%s1 + $0x114] sm:$0xf]
    %v89 = vld [vmem:[%s1 + $0x118] sm:$0xf]
    %v90 = vld [vmem:[%s1 + $0x11c] sm:$0xf]
    %v91 = vld [vmem:[%s1 + $0x120] sm:$0xf]
    %v92 = vld [vmem:[%s1 + $0x124] sm:$0xf]
    %v93 = vld [vmem:[%s1 + $0x128] sm:$0xf]
    %v94 = vld [vmem:[%s1 + $0x12c] sm:$0xf]
    %v95 = vld [vmem:[%s1 + $0x130] sm:$0xf]
    %v96 = vld [vmem:[%s1 + $0x134] sm:$0xf]
    %v97 = vld [vmem:[%s1 + $0x138] sm:$0xf]
    %v98 = vld [vmem:[%s1 + $0x13c] sm:$0xf]
    %v99 = vld [vmem:[%s1 + $0x140] sm:$0xf]
    %v100 = vld [vmem:[%s1 + $0x144] sm:$0xf]
    %v101 = vld [vmem:[%s1 + $0x148] sm:$0xf]
    %v102 = vld [vmem:[%s1 + $0x14c] sm:$0xf]
    %v103 = vld [vmem:[%s1 + $0x150] sm:$0xf]
    %v104 = vld [vmem:[%s1 + $0x154] sm:$0xf]
    %v105 = vld [vmem:[%s1 + $0x158] sm:$0xf]
    %v106 = vld [vmem:[%s1 + $0x15c] sm:$0xf]
    %v107 = vld [vmem:[%s1 + $0x160] sm:$0xf]
    %v108 = vld [vmem:[%s1 + $0x164] sm:$0xf]
    %v109 = vld [vmem:[%s1 + $0x168] sm:$0xf]
    %v110 = vld [vmem:[%s1 + $0x16c] sm:$0xf]
    %v111 = vld [vmem:[%s1 + $0x170] sm:$0xf]
    %v112 = vld [vmem:[%s1 + $0x174] sm:$0xf]
    %v113 = vld [vmem:[%s1 + $0x178] sm:$0xf]
    %v114 = vld [vmem:[%s1 + $0x17c] sm:$0xf]
    %v115 = vld [vmem:[%s1 + $0x180] sm:$0xf]
    %v116 = vld [vmem:[%s1 + $0x184] sm:$0xf]
    %v117 = vld [vmem:[%s1 + $0x188] sm:$0xf]
    %v118 = vld [vmem:[%s1 + $0x18c] sm:$0xf]
    %v119 = vld [vmem:[%s1 + $0x190] sm:$0xf]
    %v120 = vld [vmem:[%s1 + $0x194] sm:$0xf]
    %v121 = vld [vmem:[%s1 + $0x198] sm:$0xf]
    %v122 = vld [vmem:[%s1 + $0x19c] sm:$0xf]
    %v123 = vld [vmem:[%s1 + $0x1a0] sm:$0xf]
    %v124 = vld [vmem:[%s1 + $0x1a4] sm:$0xf]
    %v125 = vld [vmem:[%s1 + $0x1a8] sm:$0xf]
    %v126 = vld [vmem:[%s1 + $0x1ac] sm:$0xf]
    %v127 = vld [vmem:[%s1 + $0x1b0] sm:$0xf]
    %v128 = vld [vmem:[%s1 + $0x1b4] sm:$0xf]
    %v129 = vld [vmem:[%s1 + $0x1b8] sm:$0xf]
    %v130 = vld [vmem:[%s1 + $0x1bc] sm:$0xf]
    %v131 = vld [vmem:[%s1 + $0x1c0] sm:$0xf]
    %v132 = vld [vmem:[%s1 + $0x1c4] sm:$0xf]
    %v133 = vld [vmem:[%s1 + $0x1c8] sm:$0xf]
    %v134 = vld [vmem:[%s1 + $0x1cc] sm:$0xf]
    %v135 = vld [vmem:[%s1 + $0x1d0] sm:$0xf]
    %v136 = vld [vmem:[%s1 + $0x1d4] sm:$0xf]
    %v137 = vld [vmem:[%s1 + $0x1d8] sm:$0xf]
    %v138 = vld [vmem:[%s1 + $0x1dc] sm:$0xf]
    %v139 = vld [vmem:[%s1 + $0x1e0] sm:$0xf]
    %v140 = vld [vmem:[%s1 + $0x1e4] sm:$0xf]
    %v141 = vld [vmem:[%s1 + $0x1e8] sm:$0xf]
    %v142 = vld [vmem:[%s1 + $0x1ec] sm:$0xf]
    %v143 = vld [vmem:[%s1 + $0x1f0] sm:$0xf]
    %v144 = vld [vmem:[%s1 + $0x1f4] sm:$0xf]
    %v145 = vld [vmem:[%s1 + $0x1f8] sm:$0xf]
    %v146 = vld [vmem:[%s1 + $0x1fc] sm:$0xf]
    %v147 = vld [vmem:[%s2] sm:$0x1]
    %v149 = vlaneseq
    %v150 = vshrl.u32 %v149, 7
    %v151 = vsub.s32 0, %v150
    %v152 = vrot.slane %v147, %v151
    %v158 = vcombine.low %v15, %v16
    %v159 = vcombine.high %v15, %v16
    %v160 = vcombine.low %v17, %v18
    %v161 = vcombine.high %v17, %v18
    %v163 = vunpack.c.l.s4 1966171168
    %v164 = vunpack.c.0.s8 %v163
    %v165 = vlaneseq
    %v166 = vshrl.u32 %v165, 7
    %v167 = vsub.s32 %v164, %v166
    %v168 = vrot.slane %v158, %v167
    %v170 = vunpack.c.l.s4 1966171168
    %v171 = vunpack.c.0.s8 %v170
    %v172 = vlaneseq
    %v173 = vshrl.u32 %v172, 7
    %v174 = vsub.s32 %v171, %v173
    %v175 = vrot.slane %v159, %v174
    %v177 = vunpack.c.l.s4 1966171168
    %v178 = vunpack.c.0.s8 %v177
    %v179 = vlaneseq
    %v180 = vshrl.u32 %v179, 7
    %v181 = vsub.s32 %v178, %v180
    %v182 = vrot.slane %v160, %v181
    %v184 = vunpack.c.l.s4 1966171168
    %v185 = vunpack.c.0.s8 %v184
    %v186 = vlaneseq
    %v187 = vshrl.u32 %v186, 7
    %v188 = vsub.s32 %v185, %v187
    %v189 = vrot.slane %v161, %v188
    %v190 = vcombine.low %v168, %v182
    %v191 = vcombine.high %v168, %v182
    %v192 = vcombine.low %v175, %v189
    %v193 = vcombine.high %v175, %v189
    %v195 = vunpack.c.l.s4 1966171168
    %v196 = vunpack.c.0.s8 %v195
    %v197 = vlaneseq
    %v198 = vshrl.u32 %v197, 7
    %v199 = vsub.s32 %v196, %v198
    %v200 = vrot.slane %v190, %v199
    %v202 = vunpack.c.l.s4 1966171168
    %v203 = vunpack.c.0.s8 %v202
    %v204 = vlaneseq
    %v205 = vshrl.u32 %v204, 7
    %v206 = vsub.s32 %v203, %v205
    %v207 = vrot.slane %v192, %v206
    %v209 = vunpack.c.l.s4 1966171168
    %v210 = vunpack.c.0.s8 %v209
    %v211 = vlaneseq
    %v212 = vshrl.u32 %v211, 7
    %v213 = vsub.s32 %v210, %v212
    %v214 = vrot.slane %v191, %v213
    %v216 = vunpack.c.l.s4 1966171168
    %v217 = vunpack.c.0.s8 %v216
    %v218 = vlaneseq
    %v219 = vshrl.u32 %v218, 7
    %v220 = vsub.s32 %v217, %v219
    %v221 = vrot.slane %v193, %v220
    %v222 = vcombine.high %v200, %v200
    %v223 = vcombine.high %v207, %v207
    %v224 = vcombine.high %v214, %v214
    %v225 = vcombine.high %v221, %v221
    %v362 = vunpack.c.l.b16 %v19
    %v363 = vunpack.c.l.b16 %v20
    %v364 = vunpack.c.l.b16 %v21
    %v365 = vunpack.c.l.b16 %v22
    %v366 = vunpack.c.l.b16 %v23
    %v367 = vunpack.c.l.b16 %v24
    %v368 = vunpack.c.l.b16 %v25
    %v369 = vunpack.c.l.b16 %v26
    %v370 = vunpack.c.l.b16 %v27
    %v371 = vunpack.c.l.b16 %v28
    %v372 = vunpack.c.l.b16 %v29
    %v373 = vunpack.c.l.b16 %v30
    %v374 = vunpack.c.l.b16 %v31
    %v375 = vunpack.c.l.b16 %v32
    %v376 = vunpack.c.l.b16 %v33
    %v377 = vunpack.c.l.b16 %v34
    %v378 = vunpack.c.l.b16 %v35
    %v379 = vunpack.c.l.b16 %v36
    %v380 = vunpack.c.l.b16 %v37
    %v381 = vunpack.c.l.b16 %v38
    %v382 = vunpack.c.l.b16 %v39
    %v383 = vunpack.c.l.b16 %v40
    %v384 = vunpack.c.l.b16 %v41
    %v385 = vunpack.c.l.b16 %v42
    %v386 = vunpack.c.l.b16 %v43
    %v387 = vunpack.c.l.b16 %v44
    %v388 = vunpack.c.l.b16 %v45
    %v389 = vunpack.c.l.b16 %v46
    %v390 = vunpack.c.l.b16 %v47
    %v391 = vunpack.c.l.b16 %v48
    %v392 = vunpack.c.l.b16 %v49
    %v393 = vunpack.c.l.b16 %v50
    %v394 = vunpack.c.l.b16 %v51
    %v395 = vunpack.c.l.b16 %v52
    %v396 = vunpack.c.l.b16 %v53
    %v397 = vunpack.c.l.b16 %v54
    %v398 = vunpack.c.l.b16 %v55
    %v399 = vunpack.c.l.b16 %v56
    %v400 = vunpack.c.l.b16 %v57
    %v401 = vunpack.c.l.b16 %v58
    %v402 = vunpack.c.l.b16 %v59
    %v403 = vunpack.c.l.b16 %v60
    %v404 = vunpack.c.l.b16 %v61
    %v405 = vunpack.c.l.b16 %v62
    %v406 = vunpack.c.l.b16 %v63
    %v407 = vunpack.c.l.b16 %v64
    %v408 = vunpack.c.l.b16 %v65
    %v409 = vunpack.c.l.b16 %v66
    %v410 = vunpack.c.l.b16 %v67
    %v411 = vunpack.c.l.b16 %v68
    %v412 = vunpack.c.l.b16 %v69
    %v413 = vunpack.c.l.b16 %v70
    %v414 = vunpack.c.l.b16 %v71
    %v415 = vunpack.c.l.b16 %v72
    %v416 = vunpack.c.l.b16 %v73
    %v417 = vunpack.c.l.b16 %v74
    %v418 = vunpack.c.l.b16 %v75
    %v419 = vunpack.c.l.b16 %v76
    %v420 = vunpack.c.l.b16 %v77
    %v421 = vunpack.c.l.b16 %v78
    %v422 = vunpack.c.l.b16 %v79
    %v423 = vunpack.c.l.b16 %v80
    %v424 = vunpack.c.l.b16 %v81
    %v425 = vunpack.c.l.b16 %v82
    %v426 = vunpack.c.l.b16 %v83
    %v427 = vunpack.c.l.b16 %v84
    %v428 = vunpack.c.l.b16 %v85
    %v429 = vunpack.c.l.b16 %v86
    %v430 = vunpack.c.l.b16 %v87
    %v431 = vunpack.c.l.b16 %v88
    %v432 = vunpack.c.l.b16 %v89
    %v433 = vunpack.c.l.b16 %v90
    %v434 = vunpack.c.l.b16 %v91
    %v435 = vunpack.c.l.b16 %v92
    %v436 = vunpack.c.l.b16 %v93
    %v437 = vunpack.c.l.b16 %v94
    %v438 = vunpack.c.l.b16 %v95
    %v439 = vunpack.c.l.b16 %v96
    %v440 = vunpack.c.l.b16 %v97
    %v441 = vunpack.c.l.b16 %v98
    %v442 = vunpack.c.l.b16 %v99
    %v443 = vunpack.c.l.b16 %v100
    %v444 = vunpack.c.l.b16 %v101
    %v445 = vunpack.c.l.b16 %v102
    %v446 = vunpack.c.l.b16 %v103
    %v447 = vunpack.c.l.b16 %v104
    %v448 = vunpack.c.l.b16 %v105
    %v449 = vunpack.c.l.b16 %v106
    %v450 = vunpack.c.l.b16 %v107
    %v451 = vunpack.c.l.b16 %v108
    %v452 = vunpack.c.l.b16 %v109
    %v453 = vunpack.c.l.b16 %v110
    %v454 = vunpack.c.l.b16 %v111
    %v455 = vunpack.c.l.b16 %v112
    %v456 = vunpack.c.l.b16 %v113
    %v457 = vunpack.c.l.b16 %v114
    %v458 = vunpack.c.l.b16 %v115
    %v459 = vunpack.c.l.b16 %v116
    %v460 = vunpack.c.l.b16 %v117
    %v461 = vunpack.c.l.b16 %v118
    %v462 = vunpack.c.l.b16 %v119
    %v463 = vunpack.c.l.b16 %v120
    %v464 = vunpack.c.l.b16 %v121
    %v465 = vunpack.c.l.b16 %v122
    %v466 = vunpack.c.l.b16 %v123
    %v467 = vunpack.c.l.b16 %v124
    %v468 = vunpack.c.l.b16 %v125
    %v469 = vunpack.c.l.b16 %v126
    %v470 = vunpack.c.l.b16 %v127
    %v471 = vunpack.c.l.b16 %v128
    %v472 = vunpack.c.l.b16 %v129
    %v473 = vunpack.c.l.b16 %v130
    %v474 = vunpack.c.l.b16 %v131
    %v475 = vunpack.c.l.b16 %v132
    %v476 = vunpack.c.l.b16 %v133
    %v477 = vunpack.c.l.b16 %v134
    %v478 = vunpack.c.l.b16 %v135
    %v479 = vunpack.c.l.b16 %v136
    %v480 = vunpack.c.l.b16 %v137
    %v481 = vunpack.c.l.b16 %v138
    %v482 = vunpack.c.l.b16 %v139
    %v483 = vunpack.c.l.b16 %v140
    %v484 = vunpack.c.l.b16 %v141
    %v485 = vunpack.c.l.b16 %v142
    %v486 = vunpack.c.l.b16 %v143
    %v487 = vunpack.c.l.b16 %v144
    %v488 = vunpack.c.l.b16 %v145
    %v489 = vunpack.c.l.b16 %v146
    %v490 = vpack.c.b16 %v363, %v362
    %v491 = vpack.c.b16 %v365, %v364
    %v492 = vpack.c.b16 %v367, %v366
    %v493 = vpack.c.b16 %v369, %v368
    %v494 = vpack.c.b16 %v371, %v370
    %v495 = vpack.c.b16 %v373, %v372
    %v496 = vpack.c.b16 %v375, %v374
    %v497 = vpack.c.b16 %v377, %v376
    %v498 = vpack.c.b16 %v379, %v378
    %v499 = vpack.c.b16 %v381, %v380
    %v500 = vpack.c.b16 %v383, %v382
    %v501 = vpack.c.b16 %v385, %v384
    %v502 = vpack.c.b16 %v387, %v386
    %v503 = vpack.c.b16 %v389, %v388
    %v504 = vpack.c.b16 %v391, %v390
    %v505 = vpack.c.b16 %v393, %v392
    %v506 = vpack.c.b16 %v395, %v394
    %v507 = vpack.c.b16 %v397, %v396
    %v508 = vpack.c.b16 %v399, %v398
    %v509 = vpack.c.b16 %v401, %v400
    %v510 = vpack.c.b16 %v403, %v402
    %v511 = vpack.c.b16 %v405, %v404
    %v512 = vpack.c.b16 %v407, %v406
    %v513 = vpack.c.b16 %v409, %v408
    %v514 = vpack.c.b16 %v411, %v410
    %v515 = vpack.c.b16 %v413, %v412
    %v516 = vpack.c.b16 %v415, %v414
    %v517 = vpack.c.b16 %v417, %v416
    %v518 = vpack.c.b16 %v419, %v418
    %v519 = vpack.c.b16 %v421, %v420
    %v520 = vpack.c.b16 %v423, %v422
    %v521 = vpack.c.b16 %v425, %v424
    %v522 = vpack.c.b16 %v427, %v426
    %v523 = vpack.c.b16 %v429, %v428
    %v524 = vpack.c.b16 %v431, %v430
    %v525 = vpack.c.b16 %v433, %v432
    %v526 = vpack.c.b16 %v435, %v434
    %v527 = vpack.c.b16 %v437, %v436
    %v528 = vpack.c.b16 %v439, %v438
    %v529 = vpack.c.b16 %v441, %v440
    %v530 = vpack.c.b16 %v443, %v442
    %v531 = vpack.c.b16 %v445, %v444
    %v532 = vpack.c.b16 %v447, %v446
    %v533 = vpack.c.b16 %v449, %v448
    %v534 = vpack.c.b16 %v451, %v450
    %v535 = vpack.c.b16 %v453, %v452
    %v536 = vpack.c.b16 %v455, %v454
    %v537 = vpack.c.b16 %v457, %v456
    %v538 = vpack.c.b16 %v459, %v458
    %v539 = vpack.c.b16 %v461, %v460
    %v540 = vpack.c.b16 %v463, %v462
    %v541 = vpack.c.b16 %v465, %v464
    %v542 = vpack.c.b16 %v467, %v466
    %v543 = vpack.c.b16 %v469, %v468
    %v544 = vpack.c.b16 %v471, %v470
    %v545 = vpack.c.b16 %v473, %v472
    %v546 = vpack.c.b16 %v475, %v474
    %v547 = vpack.c.b16 %v477, %v476
    %v548 = vpack.c.b16 %v479, %v478
    %v549 = vpack.c.b16 %v481, %v480
    %v550 = vpack.c.b16 %v483, %v482
    %v551 = vpack.c.b16 %v485, %v484
    %v552 = vpack.c.b16 %v487, %v486
    %v553 = vpack.c.b16 %v489, %v488
    %618 = vmatprep.subr.bf16.mxu0 0
    %619 = vmatpush1.bf16.msra.mxu0 %v490
    %620 = vmatprep.subr.bf16.mxu0 0
    %621 = vmatpush1.bf16.msra.mxu0 %v491
    %622 = vmatprep.subr.bf16.mxu0 0
    %623 = vmatpush1.bf16.msra.mxu0 %v492
    %624 = vmatprep.subr.bf16.mxu0 0
    %625 = vmatpush1.bf16.msra.mxu0 %v493
    %626 = vmatprep.subr.bf16.mxu0 0
    %627 = vmatpush1.bf16.msra.mxu0 %v494
    %628 = vmatprep.subr.bf16.mxu0 0
    %629 = vmatpush1.bf16.msra.mxu0 %v495
    %630 = vmatprep.subr.bf16.mxu0 0
    %631 = vmatpush1.bf16.msra.mxu0 %v496
    %632 = vmatprep.subr.bf16.mxu0 0
    %633 = vmatpush1.bf16.msra.mxu0 %v497
    %634 = vmatprep.subr.bf16.mxu0 0
    %635 = vmatpush1.bf16.msra.mxu0 %v498
    %636 = vmatprep.subr.bf16.mxu0 0
    %637 = vmatpush1.bf16.msra.mxu0 %v499
    %638 = vmatprep.subr.bf16.mxu0 0
    %639 = vmatpush1.bf16.msra.mxu0 %v500
    %640 = vmatprep.subr.bf16.mxu0 0
    %641 = vmatpush1.bf16.msra.mxu0 %v501
    %642 = vmatprep.subr.bf16.mxu0 0
    %643 = vmatpush1.bf16.msra.mxu0 %v502
    %644 = vmatprep.subr.bf16.mxu0 0
    %645 = vmatpush1.bf16.msra.mxu0 %v503
    %646 = vmatprep.subr.bf16.mxu0 0
    %647 = vmatpush1.bf16.msra.mxu0 %v504
    %648 = vmatprep.subr.bf16.mxu0 0
    %649 = vmatpush1.bf16.msra.mxu0 %v505
    %650 = vmatprep.mubr.bf16.mxu0 %v214
    %651 = vmatmul.mubr.bf16.gmra.mrb[0].mxu0 %v200
    %v652 = vpop.f32.mrb[0].mxu0
    %v653 = vadd.f32 %v152, %v652
    %v654 = vpop.f32.mrb[0].mxu0
    %v655 = vpop.f32.mrb[0].mxu0
    %v656 = vpop.f32.mrb[0].mxu0
    %657 = vdwg.mxu0
    %658 = vmatprep.subr.bf16.mxu0 0
    %659 = vmatpush1.bf16.msra.mxu0 %v506
    %660 = vmatprep.subr.bf16.mxu0 0
    %661 = vmatpush1.bf16.msra.mxu0 %v507
    %662 = vmatprep.subr.bf16.mxu0 0
    %663 = vmatpush1.bf16.msra.mxu0 %v508
    %664 = vmatprep.subr.bf16.mxu0 0
    %665 = vmatpush1.bf16.msra.mxu0 %v509
    %666 = vmatprep.subr.bf16.mxu0 0
    %667 = vmatpush1.bf16.msra.mxu0 %v510
    %668 = vmatprep.subr.bf16.mxu0 0
    %669 = vmatpush1.bf16.msra.mxu0 %v511
    %670 = vmatprep.subr.bf16.mxu0 0
    %671 = vmatpush1.bf16.msra.mxu0 %v512
    %672 = vmatprep.subr.bf16.mxu0 0
    %673 = vmatpush1.bf16.msra.mxu0 %v513
    %674 = vmatprep.subr.bf16.mxu0 0
    %675 = vmatpush1.bf16.msra.mxu0 %v514
    %676 = vmatprep.subr.bf16.mxu0 0
    %677 = vmatpush1.bf16.msra.mxu0 %v515
    %678 = vmatprep.subr.bf16.mxu0 0
    %679 = vmatpush1.bf16.msra.mxu0 %v516
    %680 = vmatprep.subr.bf16.mxu0 0
    %681 = vmatpush1.bf16.msra.mxu0 %v517
    %682 = vmatprep.subr.bf16.mxu0 0
    %683 = vmatpush1.bf16.msra.mxu0 %v518
    %684 = vmatprep.subr.bf16.mxu0 0
    %685 = vmatpush1.bf16.msra.mxu0 %v519
    %686 = vmatprep.subr.bf16.mxu0 0
    %687 = vmatpush1.bf16.msra.mxu0 %v520
    %688 = vmatprep.subr.bf16.mxu0 0
    %689 = vmatpush1.bf16.msra.mxu0 %v521
    %690 = vmatprep.mubr.bf16.mxu0 %v224
    %691 = vmatmul.mubr.bf16.gmra.mrb[0].mxu0 %v222
    %v692 = vpop.f32.mrb[0].mxu0
    %v693 = vadd.f32 %v653, %v692
    %v694 = vpop.f32.mrb[0].mxu0
    %v695 = vpop.f32.mrb[0].mxu0
    %v696 = vpop.f32.mrb[0].mxu0
    %697 = vdwg.mxu0
    %698 = vmatprep.subr.bf16.mxu0 0
    %699 = vmatpush1.bf16.msra.mxu0 %v522
    %700 = vmatprep.subr.bf16.mxu0 0
    %701 = vmatpush1.bf16.msra.mxu0 %v523
    %702 = vmatprep.subr.bf16.mxu0 0
    %703 = vmatpush1.bf16.msra.mxu0 %v524
    %704 = vmatprep.subr.bf16.mxu0 0
    %705 = vmatpush1.bf16.msra.mxu0 %v525
    %706 = vmatprep.subr.bf16.mxu0 0
    %707 = vmatpush1.bf16.msra.mxu0 %v526
    %708 = vmatprep.subr.bf16.mxu0 0
    %709 = vmatpush1.bf16.msra.mxu0 %v527
    %710 = vmatprep.subr.bf16.mxu0 0
    %711 = vmatpush1.bf16.msra.mxu0 %v528
    %712 = vmatprep.subr.bf16.mxu0 0
    %713 = vmatpush1.bf16.msra.mxu0 %v529
    %714 = vmatprep.subr.bf16.mxu0 0
    %715 = vmatpush1.bf16.msra.mxu0 %v530
    %716 = vmatprep.subr.bf16.mxu0 0
    %717 = vmatpush1.bf16.msra.mxu0 %v531
    %718 = vmatprep.subr.bf16.mxu0 0
    %719 = vmatpush1.bf16.msra.mxu0 %v532
    %720 = vmatprep.subr.bf16.mxu0 0
    %721 = vmatpush1.bf16.msra.mxu0 %v533
    %722 = vmatprep.subr.bf16.mxu0 0
    %723 = vmatpush1.bf16.msra.mxu0 %v534
    %724 = vmatprep.subr.bf16.mxu0 0
    %725 = vmatpush1.bf16.msra.mxu0 %v535
    %726 = vmatprep.subr.bf16.mxu0 0
    %727 = vmatpush1.bf16.msra.mxu0 %v536
    %728 = vmatprep.subr.bf16.mxu0 0
    %729 = vmatpush1.bf16.msra.mxu0 %v537
    %730 = vmatprep.mubr.bf16.mxu0 %v221
    %731 = vmatmul.mubr.bf16.gmra.mrb[0].mxu0 %v207
    %v732 = vpop.f32.mrb[0].mxu0
    %v733 = vadd.f32 %v693, %v732
    %v734 = vpop.f32.mrb[0].mxu0
    %v735 = vpop.f32.mrb[0].mxu0
    %v736 = vpop.f32.mrb[0].mxu0
    %737 = vdwg.mxu0
    %738 = vmatprep.subr.bf16.mxu0 0
    %739 = vmatpush1.bf16.msra.mxu0 %v538
    %740 = vmatprep.subr.bf16.mxu0 0
    %741 = vmatpush1.bf16.msra.mxu0 %v539
    %742 = vmatprep.subr.bf16.mxu0 0
    %743 = vmatpush1.bf16.msra.mxu0 %v540
    %744 = vmatprep.subr.bf16.mxu0 0
    %745 = vmatpush1.bf16.msra.mxu0 %v541
    %746 = vmatprep.subr.bf16.mxu0 0
    %747 = vmatpush1.bf16.msra.mxu0 %v542
    %748 = vmatprep.subr.bf16.mxu0 0
    %749 = vmatpush1.bf16.msra.mxu0 %v543
    %750 = vmatprep.subr.bf16.mxu0 0
    %751 = vmatpush1.bf16.msra.mxu0 %v544
    %752 = vmatprep.subr.bf16.mxu0 0
    %753 = vmatpush1.bf16.msra.mxu0 %v545
    %754 = vmatprep.subr.bf16.mxu0 0
    %755 = vmatpush1.bf16.msra.mxu0 %v546
    %756 = vmatprep.subr.bf16.mxu0 0
    %757 = vmatpush1.bf16.msra.mxu0 %v547
    %758 = vmatprep.subr.bf16.mxu0 0
    %759 = vmatpush1.bf16.msra.mxu0 %v548
    %760 = vmatprep.subr.bf16.mxu0 0
    %761 = vmatpush1.bf16.msra.mxu0 %v549
    %762 = vmatprep.subr.bf16.mxu0 0
    %763 = vmatpush1.bf16.msra.mxu0 %v550
    %764 = vmatprep.subr.bf16.mxu0 0
    %765 = vmatpush1.bf16.msra.mxu0 %v551
    %766 = vmatprep.subr.bf16.mxu0 0
    %767 = vmatpush1.bf16.msra.mxu0 %v552
    %768 = vmatprep.subr.bf16.mxu0 0
    %769 = vmatpush1.bf16.msra.mxu0 %v553
    %770 = vmatprep.mubr.bf16.mxu0 %v225
    %771 = vmatmul.mubr.bf16.gmra.mrb[0].mxu0 %v223
    %v772 = vpop.f32.mrb[0].mxu0
    %v773 = vadd.f32 %v733, %v772
    %v774 = vpop.f32.mrb[0].mxu0
    %v775 = vpop.f32.mrb[0].mxu0
    %v776 = vpop.f32.mrb[0].mxu0
    %777 = vdwg.mxu0
    %v778 = vmax.f32 %v773, 0.0
    %v779 = vpack.c.bf16 %v778, %v778
    %v782 = vunpack.c.l.s4 1966171168
    %v783 = vunpack.c.0.s8 %v782
    %v784 = vlaneseq
    %v785 = vshrl.u32 %v784, 7
    %v786 = vsub.s32 %v783, %v785
    %v787 = vrot.slane %v779, %v786
    %v788 = vcombine.high %v787, %v787
    %v790 = vunpack.c.l.s4 1966171168
    %v791 = vunpack.c.0.s8 %v790
    %v792 = vlaneseq
    %v793 = vshrl.u32 %v792, 7
    %v794 = vsub.s32 %v791, %v793
    %v795 = vrot.slane %v787, %v794
    %v797 = vunpack.c.l.s4 1966171168
    %v798 = vunpack.c.0.s8 %v797
    %v799 = vlaneseq
    %v800 = vshrl.u32 %v799, 7
    %v801 = vsub.s32 %v798, %v800
    %v802 = vrot.slane %v788, %v801
    %v803 = vcombine.high %v795, %v795
    %v804 = vcombine.high %v802, %v802
    %vm809 = vcmask 516096
    %810 = vst.msk [vmem:[#allocation2] sm:$0x1] %vm809, %v795
    %811 = vst.msk [vmem:[#allocation2 + $0x1] sm:$0x1] %vm809, %v802
    %812 = vst.msk [vmem:[#allocation2 + $0x2] sm:$0x1] %vm809, %v803
    %813 = vst.msk [vmem:[#allocation2 + $0x3] sm:$0x1] %vm809, %v804
    // Predicated region
    $region14: #{_lambda_.24} parent=1 // pred_check
      _
    $region15: #{_lambda_.24} parent=1 // pred_check_branch
      %815 = sbr.rel (0) target = $region17
    $region16: #{_lambda_.24} parent=1 // pred_region
      // Predicated region
      $region18: #{_lambda_.24} parent=16 // pred_check
        _
      $region19: #{_lambda_.24} parent=16 // pred_check_branch
        %817 = sbr.rel (0) target = $region21
      $region20: #{_lambda_.24} parent=16 // pred_region
        // Predicated region
        $region22: #{_lambda_.24} parent=20 // pred_check
          _
        $region23: #{_lambda_.24} parent=20 // pred_check_branch
          %819 = sbr.rel target = $region25
        $region24: #{_lambda_.24} parent=20 // pred_region
          // Predicated region
          $region37: #{_lambda_.24} parent=24 // pred_check
            _
          $region38: #{_lambda_.24} parent=24 // pred_check_branch
            %834 = sbr.rel (0) target = $region40
          $region39: #{_lambda_.24} parent=24 // pred_region
            loop: start=0, step=1, limit=1
            $region41: #{_lambda_.24} parent=39 // loop_pre_header
              _
            $region42: #{_lambda_.24} parent=39 // loop_header
              %s837 = sphi 0, %s841
              %p838 = scmp.ge.s32.totalorder %s837, 1
              %s842 = sphi [#allocation2], [#allocation2]
              %s843 = sphi %s3, %s3
            $region43: #{_lambda_.24} parent=39 // loop_header_branch
              %840 = sbr.rel (%p838) target = $region47
            $region44: #{_lambda_.24} parent=39 // loop_body
              %v844 = vld [vmem:[%s842] sm:$0x1]
              %845 = vst [vmem:[%s843] sm:$0x1] %v844
            $region45: #{_lambda_.24} parent=39 // loop_footer
              %s841 = sadd.s32 1, %s837
            $region46: #{_lambda_.24} parent=39 // loop_footer_branch
              %836 = sbr.rel target = $region42
            $region47: #{_lambda_.24} parent=39 // loop_exit
              _
          $region40: #{_lambda_.24} parent=24 // pred_fallthru
            _
        $region25: #{_lambda_.24} parent=20 // pred_fallthru
          _
        // Predicated region
        $region26: #{_lambda_.24} parent=20 // pred_check
          _
        $region27: #{_lambda_.24} parent=20 // pred_check_branch
          %821 = sbr.rel (0) target = $region29
        $region28: #{_lambda_.24} parent=20 // pred_region
          loop: start=0, step=1, limit=1
          $region30: #{_lambda_.24} parent=28 // loop_pre_header
            _
          $region31: #{_lambda_.24} parent=28 // loop_header
            %s824 = sphi 0, %s828
            %p825 = scmp.ge.s32.totalorder %s824, 1
            %s829 = sphi [#allocation2], [#allocation2]
            %s830 = sphi %s3, %s3
          $region32: #{_lambda_.24} parent=28 // loop_header_branch
            %827 = sbr.rel (%p825) target = $region36
          $region33: #{_lambda_.24} parent=28 // loop_body
            %v831 = vld [vmem:[%s829] sm:$0x1]
            %832 = vst [vmem:[%s830] sm:$0x1] %v831
          $region34: #{_lambda_.24} parent=28 // loop_footer
            %s828 = sadd.s32 1, %s824
          $region35: #{_lambda_.24} parent=28 // loop_footer_branch
            %823 = sbr.rel target = $region31
          $region36: #{_lambda_.24} parent=28 // loop_exit
            _
        $region29: #{_lambda_.24} parent=20 // pred_fallthru
          _
      $region21: #{_lambda_.24} parent=16 // pred_fallthru
        _
      %846 = vnop
    $region17: #{_lambda_.24} parent=1 // pred_fallthru
      _
    // Predicated region
    $region48: #{_lambda_.24} parent=1 // pred_check
      _
    $region49: #{_lambda_.24} parent=1 // pred_check_branch
      %848 = sbr.rel (0) target = $region51
    $region50: #{_lambda_.24} parent=1 // pred_region
      _
    $region51: #{_lambda_.24} parent=1 // pred_fallthru
      _

// kernel: _lambda_.25
$region0: #{_lambda_.25}
  #allocation0 [shape = 'u32[]', space=smem, size = 0x4, offset = 0x4, fixed_abs, tag = 'smem constant byte address 0x4 - core index']
  #allocation1 [shape = 'u32[144,128]{1,0:T(1,128)}', space=vmem, size = 0x12000, scoped, tag = 'internal scratch']
  %s0 = inlined_call_operand.vmem [shape: bf16[4,2,256], index: 0, kind: input, shape index: {}]
  %s1 = inlined_call_operand.vmem [shape: bf16[4,256,64], index: 1, kind: input, shape index: {}]
  %s2 = inlined_call_operand.vmem [shape: f32[1,1,64], index: 2, kind: input, shape index: {}]
  %s3 = inlined_call_operand.vmem [shape: bf16[4,2,64], index: 3, kind: output, shape index: {0}]
  %s4 = inlined_call_operand.vmem [shape: f32[4,1,1,64], index: 4, kind: output, shape index: {1}]
  %s5 = inlined_call_operand.vmem [shape: f32[4,1,1,64], index: 5, kind: output, shape index: {2}]
  %6 = xla_tuple %s3, %s4, %s5
  %s7 = sld [smem:[#allocation0]]
  $region123: #{_lambda_.25} parent=0
    _
  %s9 = ssub.s32 1, %s7
  %s10 = scalar_select 0, %s9, %s7
  $region1: #{_lambda_.25} parent=0
    #allocation2 [shape = 'u8[4096]{0}', space=vmem, size = 0x1000, scoped, tag = 'output window, operand 0']
    loop: start=0, step=1, limit=6
    $region2: #{_lambda_.25} parent=1 // loop_pre_header
      _
    $region3: #{_lambda_.25} parent=1 // loop_header
      %s12 = sphi 0, %s16
      %p13 = scmp.ge.s32.totalorder %s12, 6
      %s19 = sphi 0, %s31
      %s20 = sphi 0, %s27
      %s21 = sphi 0, %s19
      %s22 = sphi 0, %s20
      %s23 = sphi 0, %s21
      %s24 = sphi 0, %s22
      %s36 = sphi 0, %s38
      %s39 = sphi 0, %s36
      %s40 = sphi 0, %s39
      %s56 = sphi 0, %s40
      %s62 = sphi 0, %s64
      %s65 = sphi 0, %s62
      %s66 = sphi 0, %s65
      %s82 = sphi 0, %s66
      %s86 = sphi 0, %s86
      %s88 = sphi 0, %s86
      %s89 = sphi 0, %s88
      %s103 = sphi 0, %s89
      %s111 = sphi 0, %s113
      %s114 = sphi 0, %s111
      %s115 = sphi 0, %s114
      %s131 = sphi 0, %s115
      %s139 = sphi 0, %s141
      %s142 = sphi 0, %s139
      %s143 = sphi 0, %s142
      %s159 = sphi 0, %s143
      %s167 = sphi 0, %s169
      %s170 = sphi 0, %s167
      %s171 = sphi 0, %s170
      %s187 = sphi 0, %s171
    $region4: #{_lambda_.25} parent=1 // loop_header_branch
      %15 = sbr.rel (%p13) target = $region8
    $region5: #{_lambda_.25} parent=1 // loop_body
      %s17 = ssub.s32 %s12, 1
      %s18 = ssub.s32 %s12, 2
      %s25 = sadd.s32 1, %s20
      %p26 = scmp.ge.s32.totalorder %s25, 1
      %s27 = scalar_select %p26, 0, %s25
      %s28 = sadd.s32 1, %s19
      %s29 = scalar_select %p26, %s28, %s19
      %p30 = scmp.ge.s32.totalorder %s29, 4
      %s31 = scalar_select %p30, 0, %s29
      %s32 = ssub.s32 %s19, %s31
      %s33 = ssub.s32 %s20, %s27
      %s34 = sor.u32 %s32, %s33
      %p35 = scmp.eq.s32.totalorder %s34, 0
      %s37 = sadd.s32 %s36, 1
      %s38 = scalar_select %p35, %s36, %s37
      %p41 = pneg %p35
      %p42 = scmp.eq.s32.totalorder %s12, 3
      %p43 = por %p41, %p42
      %p44 = scmp.ne.s32.totalorder %s36, %s39
      %p45 = scmp.eq.s32.totalorder %s12, 0
      %p46 = por %p44, %p45
      %p47 = scmp.ne.s32.totalorder %s36, %s39
      %p48 = scmp.eq.s32.totalorder %s17, 3
      %p49 = por %p47, %p48
      %p50 = scmp.ne.s32.totalorder %s39, %s40
      %p51 = scmp.eq.s32.totalorder %s17, 0
      %p52 = por %p50, %p51
      %p53 = scmp.ne.s32.totalorder %s39, %s40
      %p54 = scmp.eq.s32.totalorder %s18, 3
      %p55 = por %p53, %p54
      %p57 = scmp.ne.s32.totalorder %s40, %s56
      %p58 = scmp.eq.s32.totalorder %s18, 0
      %p59 = por %p57, %p58
      %s60 = ssub.s32 %s19, %s31
      %p61 = scmp.eq.s32.totalorder %s60, 0
      %s63 = sadd.s32 %s62, 1
      %s64 = scalar_select %p61, %s62, %s63
      %p67 = pneg %p61
      %p68 = scmp.eq.s32.totalorder %s12, 3
      %p69 = por %p67, %p68
      %p70 = scmp.ne.s32.totalorder %s62, %s65
      %p71 = scmp.eq.s32.totalorder %s12, 0
      %p72 = por %p70, %p71
      %p73 = scmp.ne.s32.totalorder %s62, %s65
      %p74 = scmp.eq.s32.totalorder %s17, 3
      %p75 = por %p73, %p74
      %p76 = scmp.ne.s32.totalorder %s65, %s66
      %p77 = scmp.eq.s32.totalorder %s17, 0
      %p78 = por %p76, %p77
      %p79 = scmp.ne.s32.totalorder %s65, %s66
      %p80 = scmp.eq.s32.totalorder %s18, 3
      %p81 = por %p79, %p80
      %p83 = scmp.ne.s32.totalorder %s66, %s82
      %p84 = scmp.eq.s32.totalorder %s18, 0
      %p85 = por %p83, %p84
      %s87 = sadd.s32 %s86, 1
      %p90 = scmp.eq.s32.totalorder %s12, 3
      %p91 = scmp.ne.s32.totalorder %s86, %s88
      %p92 = scmp.eq.s32.totalorder %s12, 0
      %p93 = por %p91, %p92
      %p94 = scmp.ne.s32.totalorder %s86, %s88
      %p95 = scmp.eq.s32.totalorder %s17, 3
      %p96 = por %p94, %p95
      %p97 = scmp.ne.s32.totalorder %s88, %s89
      %p98 = scmp.eq.s32.totalorder %s17, 0
      %p99 = por %p97, %p98
      %p100 = scmp.ne.s32.totalorder %s88, %s89
      %p101 = scmp.eq.s32.totalorder %s18, 3
      %p102 = por %p100, %p101
      %p104 = scmp.ne.s32.totalorder %s89, %s103
      %p105 = scmp.eq.s32.totalorder %s18, 0
      %p106 = por %p104, %p105
      %s107 = ssub.s32 %s19, %s31
      %s108 = ssub.s32 %s20, %s27
      %s109 = sor.u32 %s107, %s108
      %p110 = scmp.eq.s32.totalorder %s109, 0
      %s112 = sadd.s32 %s111, 1
      %s113 = scalar_select %p110, %s111, %s112
      %p116 = pneg %p110
      %p117 = scmp.eq.s32.totalorder %s12, 3
      %p118 = por %p116, %p117
      %p119 = scmp.ne.s32.totalorder %s111, %s114
      %p120 = scmp.eq.s32.totalorder %s12, 0
      %p121 = por %p119, %p120
      %p122 = scmp.ne.s32.totalorder %s111, %s114
      %p123 = scmp.eq.s32.totalorder %s17, 3
      %p124 = por %p122, %p123
      %p125 = scmp.ne.s32.totalorder %s114, %s115
      %p126 = scmp.eq.s32.totalorder %s17, 0
      %p127 = por %p125, %p126
      %p128 = scmp.ne.s32.totalorder %s114, %s115
      %p129 = scmp.eq.s32.totalorder %s18, 3
      %p130 = por %p128, %p129
      %p132 = scmp.ne.s32.totalorder %s115, %s131
      %p133 = scmp.eq.s32.totalorder %s18, 0
      %p134 = por %p132, %p133
      %s135 = ssub.s32 %s19, %s31
      %s136 = ssub.s32 %s20, %s27
      %s137 = sor.u32 %s135, %s136
      %p138 = scmp.eq.s32.totalorder %s137, 0
      %s140 = sadd.s32 %s139, 1
      %s141 = scalar_select %p138, %s139, %s140
      %p144 = pneg %p138
      %p145 = scmp.eq.s32.totalorder %s12, 3
      %p146 = por %p144, %p145
      %p147 = scmp.ne.s32.totalorder %s139, %s142
      %p148 = scmp.eq.s32.totalorder %s12, 0
      %p149 = por %p147, %p148
      %p150 = scmp.ne.s32.totalorder %s139, %s142
      %p151 = scmp.eq.s32.totalorder %s17, 3
      %p152 = por %p150, %p151
      %p153 = scmp.ne.s32.totalorder %s142, %s143
      %p154 = scmp.eq.s32.totalorder %s17, 0
      %p155 = por %p153, %p154
      %p156 = scmp.ne.s32.totalorder %s142, %s143
      %p157 = scmp.eq.s32.totalorder %s18, 3
      %p158 = por %p156, %p157
      %p160 = scmp.ne.s32.totalorder %s143, %s159
      %p161 = scmp.eq.s32.totalorder %s18, 0
      %p162 = por %p160, %p161
      %s163 = ssub.s32 %s19, %s31
      %s164 = ssub.s32 %s20, %s27
      %s165 = sor.u32 %s163, %s164
      %p166 = scmp.eq.s32.totalorder %s165, 0
      %s168 = sadd.s32 %s167, 1
      %s169 = scalar_select %p166, %s167, %s168
      %p172 = pneg %p166
      %p173 = scmp.eq.s32.totalorder %s12, 3
      %p174 = por %p172, %p173
      %p175 = scmp.ne.s32.totalorder %s167, %s170
      %p176 = scmp.eq.s32.totalorder %s12, 0
      %p177 = por %p175, %p176
      %p178 = scmp.ne.s32.totalorder %s167, %s170
      %p179 = scmp.eq.s32.totalorder %s17, 3
      %p180 = por %p178, %p179
      %p181 = scmp.ne.s32.totalorder %s170, %s171
      %p182 = scmp.eq.s32.totalorder %s17, 0
      %p183 = por %p181, %p182
      %p184 = scmp.ne.s32.totalorder %s170, %s171
      %p185 = scmp.eq.s32.totalorder %s18, 3
      %p186 = por %p184, %p185
      %p188 = scmp.ne.s32.totalorder %s171, %s187
      %p189 = scmp.eq.s32.totalorder %s18, 0
      %p190 = por %p188, %p189
      %p191 = scmp.le.s32.totalorder 1, %s12
      %p192 = scmp.lt.s32.totalorder %s12, 5
      %p193 = pnand %p191, %p192
      %p194 = pneg %p193
      // Predicated region
      $region9: #{_lambda_.25} parent=5 // pred_check
        _
      $region10: #{_lambda_.25} parent=5 // pred_check_branch
        %196 = sbr.rel (%p193) target = $region12
      $region11: #{_lambda_.25} parent=5 // pred_region
        %s197 = ssub.s32 %s12, 1
        // Predicated region
        $region13: #{_lambda_.25} parent=11 // pred_check
          %p198 = pneg %p99
        $region14: #{_lambda_.25} parent=11 // pred_check_branch
          %200 = sbr.rel (%p198) target = $region16
        $region15: #{_lambda_.25} parent=11 // pred_region
          _
        $region16: #{_lambda_.25} parent=11 // pred_fallthru
          _
      $region12: #{_lambda_.25} parent=5 // pred_fallthru
        _
      %p201 = scmp.lt.s32.totalorder %s12, 4
      // Predicated region
      $region17: #{_lambda_.25} parent=5 // pred_check
        %p202 = pneg %p201
      $region18: #{_lambda_.25} parent=5 // pred_check_branch
        %204 = sbr.rel (%p202) target = $region20
      $region19: #{_lambda_.25} parent=5 // pred_region
        // Predicated region
        $region21: #{_lambda_.25} parent=19 // pred_check
          %p205 = pneg %p46
        $region22: #{_lambda_.25} parent=19 // pred_check_branch
          %207 = sbr.rel (%p205) target = $region24
        $region23: #{_lambda_.25} parent=19 // pred_region
          %s208 = smul.u32 4, %s20
          %s209 = ssub.s32 1, %s208
          %s210 = smul.u32 16, %s209
          %s211 = smul.u32 %s210, 2
          %p212 = scmp.lt.s32.totalorder %s19, 3
          %s213 = scalar_select %p212, %s19, 3
          %p214 = scmp.lt.s32.totalorder %s208, 0
          %s215 = scalar_select %p214, %s208, 0
          %s216 = smul.addr %s215, 2
          %s217 = smul.addr %s213, 2
          %s218 = sadd.s32 %s216, %s217
          %s219 = scalar_lea.vmem %s0, %s218
          %s220 = smul.u32 4, %s20
          %s221 = ssub.s32 1, %s220
          %s222 = smul.u32 16, %s221
          %s223 = smul.u32 %s222, 2
        $region24: #{_lambda_.25} parent=19 // pred_fallthru
          _
        // Predicated region
        $region25: #{_lambda_.25} parent=19 // pred_check
          %p224 = pneg %p72
        $region26: #{_lambda_.25} parent=19 // pred_check_branch
          %226 = sbr.rel (%p224) target = $region28
        $region27: #{_lambda_.25} parent=19 // pred_region
          %p227 = scmp.lt.s32.totalorder %s19, 3
          %s228 = scalar_select %p227, %s19, 3
          %s229 = smul.addr %s228, 32
          %s230 = smul.addr %s229, 4
          %s231 = scalar_lea.vmem %s1, %s230
        $region28: #{_lambda_.25} parent=19 // pred_fallthru
          _
      $region20: #{_lambda_.25} parent=5 // pred_fallthru
        _
      %p232 = scmp.le.s32.totalorder 1, %s12
      %p233 = scmp.lt.s32.totalorder %s12, 5
      %p234 = pnand %p232, %p233
      %p235 = pneg %p234
      // Predicated region
      $region29: #{_lambda_.25} parent=5 // pred_check
        _
      $region30: #{_lambda_.25} parent=5 // pred_check_branch
        %237 = sbr.rel (%p234) target = $region32
      $region31: #{_lambda_.25} parent=5 // pred_region
        %s238 = ssub.s32 %s12, 1
        %s239 = smul.u32 4, %s22
        %s240 = ssub.s32 1, %s239
        %s241 = smul.u32 16, %s240
        %s242 = smul.u32 %s241, 2
        %p243 = scmp.lt.s32.totalorder %s21, 3
        %s244 = scalar_select %p243, %s21, 3
        %p245 = scmp.lt.s32.totalorder %s239, 0
        %s246 = scalar_select %p245, %s239, 0
        %s247 = smul.addr %s246, 2
        %s248 = smul.addr %s244, 2
        %s249 = sadd.s32 %s247, %s248
        %s250 = scalar_lea.vmem %s0, %s249
        %p251 = pneg %p52
        %p252 = pneg %p49
        %p253 = scmp.lt.s32.totalorder %s21, 3
        %s254 = scalar_select %p253, %s21, 3
        %s255 = smul.addr %s254, 32
        %s256 = smul.addr %s255, 4
        %s257 = scalar_lea.vmem %s1, %s256
        %p258 = pneg %p78
        %p259 = pneg %p75
        %p260 = pneg %p99
        %p261 = pneg %p96
        %p262 = pneg %p127
        %p263 = pneg %p124
        %s264 = sand.u32 %s114, 1
        %s265 = sand.u32 %s114, 1
        %s266 = smul.addr %s265, 4
        %s267 = scalar_lea.vmem [#allocation2], %s266
        %p268 = pneg %p155
        %p269 = pneg %p152
        %p270 = scmp.lt.s32.totalorder %s21, 3
        %s271 = scalar_select %p270, %s21, 3
        %p272 = scmp.lt.s32.totalorder %s22, 0
        %s273 = scalar_select %p272, %s22, 0
        %s274 = sadd.s32 %s273, %s271
        %s275 = scalar_lea.vmem %s4, %s274
        %p276 = pneg %p183
        %p277 = pneg %p180
        %p278 = scmp.lt.s32.totalorder %s21, 3
        %s279 = scalar_select %p278, %s21, 3
        %p280 = scmp.lt.s32.totalorder %s22, 0
        %s281 = scalar_select %p280, %s22, 0
        %s282 = sadd.s32 %s281, %s279
        %s283 = scalar_lea.vmem %s5, %s282
        %s284 = smul.u32 4, %s22
        %s285 = ssub.s32 1, %s284
        %s286 = smul.u32 16, %s285
        %s287 = smul.u32 %s286, 2
        %p288 = scmp.lt.s32.totalorder %s21, 3
        %s289 = scalar_select %p288, %s21, 3
        %p290 = scmp.lt.s32.totalorder %s284, 0
        %s291 = scalar_select %p290, %s284, 0
        %s292 = smul.addr %s291, 2
        %s293 = smul.addr %s289, 2
        %s294 = sadd.s32 %s292, %s293
        %s295 = scalar_lea.vmem %s0, %s294
        %s296 = smul.u32 4, %s22
        %s297 = ssub.s32 1, %s296
        %s298 = smul.u32 16, %s297
        %s299 = smul.u32 %s298, 2
        %p300 = scmp.lt.s32.totalorder %s21, 3
        %s301 = scalar_select %p300, %s21, 3
        %s302 = smul.addr %s301, 32
        %s303 = smul.addr %s302, 4
        %s304 = scalar_lea.vmem %s1, %s303
        %s305 = smul.u32 4, %s22
        %s306 = ssub.s32 1, %s305
        %s307 = smul.u32 16, %s306
        %p308 = scmp.lt.s32.totalorder %s21, 3
        %s309 = scalar_select %p308, %s21, 3
        %p310 = scmp.lt.s32.totalorder %s22, 0
        %s311 = scalar_select %p310, %s22, 0
        %s312 = sadd.s32 %s311, %s309
        %s313 = scalar_lea.vmem %s4, %s312
        %p314 = scmp.lt.s32.totalorder %s21, 3
        %s315 = scalar_select %p314, %s21, 3
        %p316 = scmp.lt.s32.totalorder %s22, 0
        %s317 = scalar_select %p316, %s22, 0
        %s318 = sadd.s32 %s317, %s315
        %s319 = scalar_lea.vmem %s5, %s318
        %v321 = vld [vmem:[%s295] sm:$0x3]
        %v322 = vld [vmem:[%s295 + $0x2] sm:$0x3]
        %v323 = vld [vmem:[%s295 + $0x4] sm:$0x3]
        %v324 = vld [vmem:[%s295 + $0x6] sm:$0x3]
        %v325 = vld [vmem:[%s304] sm:$0xf]
        %v326 = vld [vmem:[%s304 + $0x4] sm:$0xf]
        %v327 = vld [vmem:[%s304 + $0x8] sm:$0xf]
        %v328 = vld [vmem:[%s304 + $0xc] sm:$0xf]
        %v329 = vld [vmem:[%s304 + $0x10] sm:$0xf]
        %v330 = vld [vmem:[%s304 + $0x14] sm:$0xf]
        %v331 = vld [vmem:[%s304 + $0x18] sm:$0xf]
        %v332 = vld [vmem:[%s304 + $0x1c] sm:$0xf]
        %v333 = vld [vmem:[%s304 + $0x20] sm:$0xf]
        %v334 = vld [vmem:[%s304 + $0x24] sm:$0xf]
        %v335 = vld [vmem:[%s304 + $0x28] sm:$0xf]
        %v336 = vld [vmem:[%s304 + $0x2c] sm:$0xf]
        %v337 = vld [vmem:[%s304 + $0x30] sm:$0xf]
        %v338 = vld [vmem:[%s304 + $0x34] sm:$0xf]
        %v339 = vld [vmem:[%s304 + $0x38] sm:$0xf]
        %v340 = vld [vmem:[%s304 + $0x3c] sm:$0xf]
        %v341 = vld [vmem:[%s304 + $0x40] sm:$0xf]
        %v342 = vld [vmem:[%s304 + $0x44] sm:$0xf]
        %v343 = vld [vmem:[%s304 + $0x48] sm:$0xf]
        %v344 = vld [vmem:[%s304 + $0x4c] sm:$0xf]
        %v345 = vld [vmem:[%s304 + $0x50] sm:$0xf]
        %v346 = vld [vmem:[%s304 + $0x54] sm:$0xf]
        %v347 = vld [vmem:[%s304 + $0x58] sm:$0xf]
        %v348 = vld [vmem:[%s304 + $0x5c] sm:$0xf]
        %v349 = vld [vmem:[%s304 + $0x60] sm:$0xf]
        %v350 = vld [vmem:[%s304 + $0x64] sm:$0xf]
        %v351 = vld [vmem:[%s304 + $0x68] sm:$0xf]
        %v352 = vld [vmem:[%s304 + $0x6c] sm:$0xf]
        %v353 = vld [vmem:[%s304 + $0x70] sm:$0xf]
        %v354 = vld [vmem:[%s304 + $0x74] sm:$0xf]
        %v355 = vld [vmem:[%s304 + $0x78] sm:$0xf]
        %v356 = vld [vmem:[%s304 + $0x7c] sm:$0xf]
        %v357 = vld [vmem:[%s2] sm:$0x1]
        %v359 = vlaneseq
        %v360 = vshrl.u32 %v359, 7
        %v361 = vsub.s32 0, %v360
        %v362 = vrot.slane %v357, %v361
        %v368 = vcombine.low %v321, %v322
        %v369 = vcombine.low %v323, %v324
        %v371 = vunpack.c.l.s4 1966171168
        %v372 = vunpack.c.0.s8 %v371
        %v373 = vlaneseq
        %v374 = vshrl.u32 %v373, 7
        %v375 = vsub.s32 %v372, %v374
        %v376 = vrot.slane %v368, %v375
        %v378 = vunpack.c.l.s4 1966171168
        %v379 = vunpack.c.0.s8 %v378
        %v380 = vlaneseq
        %v381 = vshrl.u32 %v380, 7
        %v382 = vsub.s32 %v379, %v381
        %v383 = vrot.slane %v369, %v382
        %v384 = vcombine.low %v376, %v383
        %v385 = vcombine.high %v376, %v383
        %v387 = vunpack.c.l.s4 1966171168
        %v388 = vunpack.c.0.s8 %v387
        %v389 = vlaneseq
        %v390 = vshrl.u32 %v389, 7
        %v391 = vsub.s32 %v388, %v390
        %v392 = vrot.slane %v384, %v391
        %v394 = vunpack.c.l.s4 1966171168
        %v395 = vunpack.c.0.s8 %v394
        %v396 = vlaneseq
        %v397 = vshrl.u32 %v396, 7
        %v398 = vsub.s32 %v395, %v397
        %v399 = vrot.slane %v385, %v398
        %v434 = vunpack.c.l.b16 %v325
        %v435 = vunpack.c.l.b16 %v326
        %v436 = vunpack.c.l.b16 %v327
        %v437 = vunpack.c.l.b16 %v328
        %v438 = vunpack.c.l.b16 %v329
        %v439 = vunpack.c.l.b16 %v330
        %v440 = vunpack.c.l.b16 %v331
        %v441 = vunpack.c.l.b16 %v332
        %v442 = vunpack.c.l.b16 %v333
        %v443 = vunpack.c.l.b16 %v334
        %v444 = vunpack.c.l.b16 %v335
        %v445 = vunpack.c.l.b16 %v336
        %v446 = vunpack.c.l.b16 %v337
        %v447 = vunpack.c.l.b16 %v338
        %v448 = vunpack.c.l.b16 %v339
        %v449 = vunpack.c.l.b16 %v340
        %v450 = vunpack.c.l.b16 %v341
        %v451 = vunpack.c.l.b16 %v342
        %v452 = vunpack.c.l.b16 %v343
        %v453 = vunpack.c.l.b16 %v344
        %v454 = vunpack.c.l.b16 %v345
        %v455 = vunpack.c.l.b16 %v346
        %v456 = vunpack.c.l.b16 %v347
        %v457 = vunpack.c.l.b16 %v348
        %v458 = vunpack.c.l.b16 %v349
        %v459 = vunpack.c.l.b16 %v350
        %v460 = vunpack.c.l.b16 %v351
        %v461 = vunpack.c.l.b16 %v352
        %v462 = vunpack.c.l.b16 %v353
        %v463 = vunpack.c.l.b16 %v354
        %v464 = vunpack.c.l.b16 %v355
        %v465 = vunpack.c.l.b16 %v356
        %v466 = vpack.c.b16 %v435, %v434
        %v467 = vpack.c.b16 %v437, %v436
        %v468 = vpack.c.b16 %v439, %v438
        %v469 = vpack.c.b16 %v441, %v440
        %v470 = vpack.c.b16 %v443, %v442
        %v471 = vpack.c.b16 %v445, %v444
        %v472 = vpack.c.b16 %v447, %v446
        %v473 = vpack.c.b16 %v449, %v448
        %v474 = vpack.c.b16 %v451, %v450
        %v475 = vpack.c.b16 %v453, %v452
        %v476 = vpack.c.b16 %v455, %v454
        %v477 = vpack.c.b16 %v457, %v456
        %v478 = vpack.c.b16 %v459, %v458
        %v479 = vpack.c.b16 %v461, %v460
        %v480 = vpack.c.b16 %v463, %v462
        %v481 = vpack.c.b16 %v465, %v464
        %498 = vmatprep.subr.bf16.mxu0 0
        %499 = vmatpush1.bf16.msra.mxu0 %v466
        %500 = vmatprep.subr.bf16.mxu0 0
        %501 = vmatpush1.bf16.msra.mxu0 %v467
        %502 = vmatprep.subr.bf16.mxu0 0
        %503 = vmatpush1.bf16.msra.mxu0 %v468
        %504 = vmatprep.subr.bf16.mxu0 0
        %505 = vmatpush1.bf16.msra.mxu0 %v469
        %506 = vmatprep.subr.bf16.mxu0 0
        %507 = vmatpush1.bf16.msra.mxu0 %v470
        %508 = vmatprep.subr.bf16.mxu0 0
        %509 = vmatpush1.bf16.msra.mxu0 %v471
        %510 = vmatprep.subr.bf16.mxu0 0
        %511 = vmatpush1.bf16.msra.mxu0 %v472
        %512 = vmatprep.subr.bf16.mxu0 0
        %513 = vmatpush1.bf16.msra.mxu0 %v473
        %514 = vmatprep.subr.bf16.mxu0 0
        %515 = vmatpush1.bf16.msra.mxu0 %v474
        %516 = vmatprep.subr.bf16.mxu0 0
        %517 = vmatpush1.bf16.msra.mxu0 %v475
        %518 = vmatprep.subr.bf16.mxu0 0
        %519 = vmatpush1.bf16.msra.mxu0 %v476
        %520 = vmatprep.subr.bf16.mxu0 0
        %521 = vmatpush1.bf16.msra.mxu0 %v477
        %522 = vmatprep.subr.bf16.mxu0 0
        %523 = vmatpush1.bf16.msra.mxu0 %v478
        %524 = vmatprep.subr.bf16.mxu0 0
        %525 = vmatpush1.bf16.msra.mxu0 %v479
        %526 = vmatprep.subr.bf16.mxu0 0
        %527 = vmatpush1.bf16.msra.mxu0 %v480
        %528 = vmatprep.subr.bf16.mxu0 0
        %529 = vmatpush1.bf16.msra.mxu0 %v481
        %530 = vmatprep.mubr.bf16.mxu0 %v399
        %531 = vmatmul.mubr.bf16.gmra.mrb[0].mxu0 %v392
        %v532 = vpop.f32.mrb[0].mxu0
        %v533 = vadd.f32 %v362, %v532
        %v534 = vpop.f32.mrb[0].mxu0
        %v535 = vpop.f32.mrb[0].mxu0
        %v536 = vpop.f32.mrb[0].mxu0
        %537 = vdwg.mxu0
        %v538 = vpack.c.bf16 %v533, %v533
        %v541 = vunpack.c.l.s4 1966171168
        %v542 = vunpack.c.0.s8 %v541
        %v543 = vlaneseq
        %v544 = vshrl.u32 %v543, 7
        %v545 = vsub.s32 %v542, %v544
        %v546 = vrot.slane %v538, %v545
        %v547 = vcombine.high %v546, %v546
        %v549 = vunpack.c.l.s4 1966171168
        %v550 = vunpack.c.0.s8 %v549
        %v551 = vlaneseq
        %v552 = vshrl.u32 %v551, 7
        %v553 = vsub.s32 %v550, %v552
        %v554 = vrot.slane %v546, %v553
        %v556 = vunpack.c.l.s4 1966171168
        %v557 = vunpack.c.0.s8 %v556
        %v558 = vlaneseq
        %v559 = vshrl.u32 %v558, 7
        %v560 = vsub.s32 %v557, %v559
        %v561 = vrot.slane %v547, %v560
        %v562 = vcombine.high %v554, %v554
        %v563 = vcombine.high %v561, %v561
        %vm568 = vcmask 516096
        %569 = vst.msk [vmem:[%s267] sm:$0x1] %vm568, %v554
        %570 = vst.msk [vmem:[%s267 + $0x1] sm:$0x1] %vm568, %v561
        %571 = vst.msk [vmem:[%s267 + $0x2] sm:$0x1] %vm568, %v562
        %572 = vst.msk [vmem:[%s267 + $0x3] sm:$0x1] %vm568, %v563
        %s573 = smul.u32 %s22, 8
        %v574 = vlaneseq
        %v575 = vshrl.u32 %v574, 7
        %v576 = vstv %s573
        %v577 = vadd.s32 %v576, %v575
        %vm578 = vcmp.lt.s32.totalorder %v577, 2
        %v579 = vsel %vm578, %v533, 0.0
        %vm580 = vcmask 523264
        %v581 = vsel %vm580, %v579, 0.0
        %v582 = vrot.slane %v581, 4
        %v583 = vadd.f32 %v581, %v582
        %v584 = vrot.slane %v583, 2
        %v585 = vadd.f32 %v583, %v584
        %v586 = vrot.slane %v585, 1
        %v587 = vadd.f32 %v585, %v586
        %588 = vst.msk [vmem:[%s313] sm:$0x1] %vm568, %v587
        %v589 = vmul.f32 %v579, %v579
        %v590 = vsel %vm580, %v589, 0.0
        %v591 = vrot.slane %v590, 4
        %v592 = vadd.f32 %v590, %v591
        %v593 = vrot.slane %v592, 2
        %v594 = vadd.f32 %v592, %v593
        %v595 = vrot.slane %v594, 1
        %v596 = vadd.f32 %v594, %v595
        %597 = vst.msk [vmem:[%s319] sm:$0x1] %vm568, %v596
        %s598 = sand.u32 %s114, 1
        %s599 = sand.u32 %s114, 1
        %s600 = smul.addr %s599, 4
        %s601 = scalar_lea.vmem [#allocation2], %s600
        %p602 = scmp.lt.s32.totalorder %s21, 3
        %s603 = scalar_select %p602, %s21, 3
        %p604 = scmp.lt.s32.totalorder %s22, 0
        %s605 = scalar_select %p604, %s22, 0
        %s606 = sadd.s32 %s605, %s603
        %s607 = scalar_lea.vmem %s4, %s606
        %p608 = scmp.lt.s32.totalorder %s21, 3
        %s609 = scalar_select %p608, %s21, 3
        %p610 = scmp.lt.s32.totalorder %s22, 0
        %s611 = scalar_select %p610, %s22, 0
        %s612 = sadd.s32 %s611, %s609
        %s613 = scalar_lea.vmem %s5, %s612
        // Predicated region
        $region33: #{_lambda_.25} parent=31 // pred_check
          %p614 = pneg %p124
        $region34: #{_lambda_.25} parent=31 // pred_check_branch
          %616 = sbr.rel (%p614) target = $region36
        $region35: #{_lambda_.25} parent=31 // pred_region
          %s617 = smul.u32 4, %s22
          %s618 = ssub.s32 1, %s617
          %s619 = smul.u32 16, %s618
          %p620 = scmp.ne.s32.totalorder 0, %s619
          %s621 = sadd.s32 %s617, %s21
          %s622 = scalar_lea.vmem %s3, %s621
          // Predicated region
          $region37: #{_lambda_.25} parent=35 // pred_check
            %p623 = pneg %p620
          $region38: #{_lambda_.25} parent=35 // pred_check_branch
            %625 = sbr.rel (%p623) target = $region40
          $region39: #{_lambda_.25} parent=35 // pred_region
            %p626 = scmp.lt.u32.totalorder %s618, 8
            %p627 = pneg %p626
            // Predicated region
            $region41: #{_lambda_.25} parent=39 // pred_check
              _
            $region42: #{_lambda_.25} parent=39 // pred_check_branch
              %629 = sbr.rel (%p626) target = $region44
            $region43: #{_lambda_.25} parent=39 // pred_region
              %s644 = sand.u32 %s618, 7
              %p645 = scmp.eq.s32.totalorder %s644, 0
              // Predicated region
              $region56: #{_lambda_.25} parent=43 // pred_check
                %p646 = pneg %p645
              $region57: #{_lambda_.25} parent=43 // pred_check_branch
                %648 = sbr.rel (%p646) target = $region59
              $region58: #{_lambda_.25} parent=43 // pred_region
                %s649 = sshrl.u32 %s618, 3
                %s650 = sshrl.u32 %s649, 6
                // While loop
                $region60: #{_lambda_.25} parent=58 // loop_pre_header
                  _
                $region61: #{_lambda_.25} parent=58 // loop_header
                  %s654 = sphi 0, %s656
                  %p655 = scmp.ge.s32.totalorder %s654, %s650
                  %s659 = sphi 0, %s792
                  %s660 = sphi %s601, %s795
                  %s661 = sphi %s622, %s796
                $region62: #{_lambda_.25} parent=58 // loop_header_branch
                  %658 = sbr.rel (%p655) target = $region66
                $region63: #{_lambda_.25} parent=58 // loop_body
                  %v662 = vld [vmem:[%s660] sm:$0xff]
                  %663 = vst [vmem:[%s661] sm:$0xff] %v662
                  %v664 = vld [vmem:[%s660 + $0x8] sm:$0xff]
                  %665 = vst [vmem:[%s661 + $0x8] sm:$0xff] %v664
                  %v666 = vld [vmem:[%s660 + $0x10] sm:$0xff]
                  %667 = vst [vmem:[%s661 + $0x10] sm:$0xff] %v666
                  %v668 = vld [vmem:[%s660 + $0x18] sm:$0xff]
                  %669 = vst [vmem:[%s661 + $0x18] sm:$0xff] %v668
                  %v670 = vld [vmem:[%s660 + $0x20] sm:$0xff]
                  %671 = vst [vmem:[%s661 + $0x20] sm:$0xff] %v670
                  %v672 = vld [vmem:[%s660 + $0x28] sm:$0xff]
                  %673 = vst [vmem:[%s661 + $0x28] sm:$0xff] %v672
                  %v674 = vld [vmem:[%s660 + $0x30] sm:$0xff]
                  %675 = vst [vmem:[%s661 + $0x30] sm:$0xff] %v674
                  %v676 = vld [vmem:[%s660 + $0x38] sm:$0xff]
                  %677 = vst [vmem:[%s661 + $0x38] sm:$0xff] %v676
                  %v678 = vld [vmem:[%s660 + $0x40] sm:$0xff]
                  %679 = vst [vmem:[%s661 + $0x40] sm:$0xff] %v678
                  %v680 = vld [vmem:[%s660 + $0x48] sm:$0xff]
                  %681 = vst [vmem:[%s661 + $0x48] sm:$0xff] %v680
                  %v682 = vld [vmem:[%s660 + $0x50] sm:$0xff]
                  %683 = vst [vmem:[%s661 + $0x50] sm:$0xff] %v682
                  %v684 = vld [vmem:[%s660 + $0x58] sm:$0xff]
                  %685 = vst [vmem:[%s661 + $0x58] sm:$0xff] %v684
                  %v686 = vld [vmem:[%s660 + $0x60] sm:$0xff]
                  %687 = vst [vmem:[%s661 + $0x60] sm:$0xff] %v686
                  %v688 = vld [vmem:[%s660 + $0x68] sm:$0xff]
                  %689 = vst [vmem:[%s661 + $0x68] sm:$0xff] %v688
                  %v690 = vld [vmem:[%s660 + $0x70] sm:$0xff]
                  %691 = vst [vmem:[%s661 + $0x70] sm:$0xff] %v690
                  %v692 = vld [vmem:[%s660 + $0x78] sm:$0xff]
                  %693 = vst [vmem:[%s661 + $0x78] sm:$0xff] %v692
                  %v694 = vld [vmem:[%s660 + $0x80] sm:$0xff]
                  %695 = vst [vmem:[%s661 + $0x80] sm:$0xff] %v694
                  %v696 = vld [vmem:[%s660 + $0x88] sm:$0xff]
                  %697 = vst [vmem:[%s661 + $0x88] sm:$0xff] %v696
                  %v698 = vld [vmem:[%s660 + $0x90] sm:$0xff]
                  %699 = vst [vmem:[%s661 + $0x90] sm:$0xff] %v698
                  %v700 = vld [vmem:[%s660 + $0x98] sm:$0xff]
                  %701 = vst [vmem:[%s661 + $0x98] sm:$0xff] %v700
                  %v702 = vld [vmem:[%s660 + $0xa0] sm:$0xff]
                  %703 = vst [vmem:[%s661 + $0xa0] sm:$0xff] %v702
                  %v704 = vld [vmem:[%s660 + $0xa8] sm:$0xff]
                  %705 = vst [vmem:[%s661 + $0xa8] sm:$0xff] %v704
                  %v706 = vld [vmem:[%s660 + $0xb0] sm:$0xff]
                  %707 = vst [vmem:[%s661 + $0xb0] sm:$0xff] %v706
                  %v708 = vld [vmem:[%s660 + $0xb8] sm:$0xff]
                  %709 = vst [vmem:[%s661 + $0xb8] sm:$0xff] %v708
                  %v710 = vld [vmem:[%s660 + $0xc0] sm:$0xff]
                  %711 = vst [vmem:[%s661 + $0xc0] sm:$0xff] %v710
                  %v712 = vld [vmem:[%s660 + $0xc8] sm:$0xff]
                  %713 = vst [vmem:[%s661 + $0xc8] sm:$0xff] %v712
                  %v714 = vld [vmem:[%s660 + $0xd0] sm:$0xff]
                  %715 = vst [vmem:[%s661 + $0xd0] sm:$0xff] %v714
                  %v716 = vld [vmem:[%s660 + $0xd8] sm:$0xff]
                  %717 = vst [vmem:[%s661 + $0xd8] sm:$0xff] %v716
                  %v718 = vld [vmem:[%s660 + $0xe0] sm:$0xff]
                  %719 = vst [vmem:[%s661 + $0xe0] sm:$0xff] %v718
                  %v720 = vld [vmem:[%s660 + $0xe8] sm:$0xff]
                  %721 = vst [vmem:[%s661 + $0xe8] sm:$0xff] %v720
                  %v722 = vld [vmem:[%s660 + $0xf0] sm:$0xff]
                  %723 = vst [vmem:[%s661 + $0xf0] sm:$0xff] %v722
                  %v724 = vld [vmem:[%s660 + $0xf8] sm:$0xff]
                  %725 = vst [vmem:[%s661 + $0xf8] sm:$0xff] %v724
                  %v726 = vld [vmem:[%s660 + $0x100] sm:$0xff]
                  %727 = vst [vmem:[%s661 + $0x100] sm:$0xff] %v726
                  %v728 = vld [vmem:[%s660 + $0x108] sm:$0xff]
                  %729 = vst [vmem:[%s661 + $0x108] sm:$0xff] %v728
                  %v730 = vld [vmem:[%s660 + $0x110] sm:$0xff]
                  %731 = vst [vmem:[%s661 + $0x110] sm:$0xff] %v730
                  %v732 = vld [vmem:[%s660 + $0x118] sm:$0xff]
                  %733 = vst [vmem:[%s661 + $0x118] sm:$0xff] %v732
                  %v734 = vld [vmem:[%s660 + $0x120] sm:$0xff]
                  %735 = vst [vmem:[%s661 + $0x120] sm:$0xff] %v734
                  %v736 = vld [vmem:[%s660 + $0x128] sm:$0xff]
                  %737 = vst [vmem:[%s661 + $0x128] sm:$0xff] %v736
                  %v738 = vld [vmem:[%s660 + $0x130] sm:$0xff]
                  %739 = vst [vmem:[%s661 + $0x130] sm:$0xff] %v738
                  %v740 = vld [vmem:[%s660 + $0x138] sm:$0xff]
                  %741 = vst [vmem:[%s661 + $0x138] sm:$0xff] %v740
                  %v742 = vld [vmem:[%s660 + $0x140] sm:$0xff]
                  %743 = vst [vmem:[%s661 + $0x140] sm:$0xff] %v742
                  %v744 = vld [vmem:[%s660 + $0x148] sm:$0xff]
                  %745 = vst [vmem:[%s661 + $0x148] sm:$0xff] %v744
                  %v746 = vld [vmem:[%s660 + $0x150] sm:$0xff]
                  %747 = vst [vmem:[%s661 + $0x150] sm:$0xff] %v746
                  %v748 = vld [vmem:[%s660 + $0x158] sm:$0xff]
                  %749 = vst [vmem:[%s661 + $0x158] sm:$0xff] %v748
                  %v750 = vld [vmem:[%s660 + $0x160] sm:$0xff]
                  %751 = vst [vmem:[%s661 + $0x160] sm:$0xff] %v750
                  %v752 = vld [vmem:[%s660 + $0x168] sm:$0xff]
                  %753 = vst [vmem:[%s661 + $0x168] sm:$0xff] %v752
                  %v754 = vld [vmem:[%s660 + $0x170] sm:$0xff]
                  %755 = vst [vmem:[%s661 + $0x170] sm:$0xff] %v754
                  %v756 = vld [vmem:[%s660 + $0x178] sm:$0xff]
                  %757 = vst [vmem:[%s661 + $0x178] sm:$0xff] %v756
                  %v758 = vld [vmem:[%s660 + $0x180] sm:$0xff]
                  %759 = vst [vmem:[%s661 + $0x180] sm:$0xff] %v758
                  %v760 = vld [vmem:[%s660 + $0x188] sm:$0xff]
                  %761 = vst [vmem:[%s661 + $0x188] sm:$0xff] %v760
                  %v762 = vld [vmem:[%s660 + $0x190] sm:$0xff]
                  %763 = vst [vmem:[%s661 + $0x190] sm:$0xff] %v762
                  %v764 = vld [vmem:[%s660 + $0x198] sm:$0xff]
                  %765 = vst [vmem:[%s661 + $0x198] sm:$0xff] %v764
                  %v766 = vld [vmem:[%s660 + $0x1a0] sm:$0xff]
                  %767 = vst [vmem:[%s661 + $0x1a0] sm:$0xff] %v766
                  %v768 = vld [vmem:[%s660 + $0x1a8] sm:$0xff]
                  %769 = vst [vmem:[%s661 + $0x1a8] sm:$0xff] %v768
                  %v770 = vld [vmem:[%s660 + $0x1b0] sm:$0xff]
                  %771 = vst [vmem:[%s661 + $0x1b0] sm:$0xff] %v770
                  %v772 = vld [vmem:[%s660 + $0x1b8] sm:$0xff]
                  %773 = vst [vmem:[%s661 + $0x1b8] sm:$0xff] %v772
                  %v774 = vld [vmem:[%s660 + $0x1c0] sm:$0xff]
                  %775 = vst [vmem:[%s661 + $0x1c0] sm:$0xff] %v774
                  %v776 = vld [vmem:[%s660 + $0x1c8] sm:$0xff]
                  %777 = vst [vmem:[%s661 + $0x1c8] sm:$0xff] %v776
                  %v778 = vld [vmem:[%s660 + $0x1d0] sm:$0xff]
                  %779 = vst [vmem:[%s661 + $0x1d0] sm:$0xff] %v778
                  %v780 = vld [vmem:[%s660 + $0x1d8] sm:$0xff]
                  %781 = vst [vmem:[%s661 + $0x1d8] sm:$0xff] %v780
                  %v782 = vld [vmem:[%s660 + $0x1e0] sm:$0xff]
                  %783 = vst [vmem:[%s661 + $0x1e0] sm:$0xff] %v782
                  %v784 = vld [vmem:[%s660 + $0x1e8] sm:$0xff]
                  %785 = vst [vmem:[%s661 + $0x1e8] sm:$0xff] %v784
                  %v786 = vld [vmem:[%s660 + $0x1f0] sm:$0xff]
                  %787 = vst [vmem:[%s661 + $0x1f0] sm:$0xff] %v786
                  %v788 = vld [vmem:[%s660 + $0x1f8] sm:$0xff]
                  %789 = vst [vmem:[%s661 + $0x1f8] sm:$0xff] %v788
                  %s790 = sadd.s32 1, %s659
                  %p791 = scmp.ge.s32.totalorder %s790, %s650
                  %s792 = scalar_select %p791, 0, %s790
                  %s793 = smul.u32 %s792, 512
                  %s794 = smul.u32 %s792, 512
                  %s795 = scalar_lea.vmem %s601, %s793 [#allocation2]
                  %s796 = scalar_lea.vmem %s622, %s794
                $region64: #{_lambda_.25} parent=58 // loop_footer
                  %s656 = sadd.s32 %s654, 1
                $region65: #{_lambda_.25} parent=58 // loop_footer_branch
                  %653 = sbr.rel target = $region61
                $region66: #{_lambda_.25} parent=58 // loop_exit
                  _
                %s797 = sshrl.u32 %s649, 6
                %s798 = sand.u32 %s649, 63
                %s799 = smul.u32 %s797, 64
                %s800 = smul.u32 128, %s799
                %s801 = sshra.s32 %s800, 4
                %s802 = scalar_lea.vmem %s601, %s801 [#allocation2]
                %s803 = smul.u32 128, %s799
                %s804 = sshra.s32 %s803, 4
                %s805 = scalar_lea.vmem %s622, %s804
                // While loop
                $region67: #{_lambda_.25} parent=58 // loop_pre_header
                  _
                $region68: #{_lambda_.25} parent=58 // loop_header
                  %s809 = sphi 0, %s811
                  %p810 = scmp.ge.s32.totalorder %s809, %s798
                  %s814 = sphi 0, %s821
                  %s815 = sphi %s802, %s824
                  %s816 = sphi %s805, %s825
                $region69: #{_lambda_.25} parent=58 // loop_header_branch
                  %813 = sbr.rel (%p810) target = $region73
                $region70: #{_lambda_.25} parent=58 // loop_body
                  %v817 = vld [vmem:[%s815] sm:$0xff]
                  %818 = vst [vmem:[%s816] sm:$0xff] %v817
                  %s819 = sadd.s32 1, %s814
                  %p820 = scmp.ge.s32.totalorder %s819, %s798
                  %s821 = scalar_select %p820, 0, %s819
                  %s822 = smul.u32 %s821, 8
                  %s823 = smul.u32 %s821, 8
                  %s824 = scalar_lea.vmem %s802, %s822 [#allocation2]
                  %s825 = scalar_lea.vmem %s805, %s823
                $region71: #{_lambda_.25} parent=58 // loop_footer
                  %s811 = sadd.s32 %s809, 1
                $region72: #{_lambda_.25} parent=58 // loop_footer_branch
                  %808 = sbr.rel target = $region68
                $region73: #{_lambda_.25} parent=58 // loop_exit
                  _
              $region59: #{_lambda_.25} parent=43 // pred_fallthru
                _
              %p826 = pneg %p645
              // Predicated region
              $region74: #{_lambda_.25} parent=43 // pred_check
                _
              $region75: #{_lambda_.25} parent=43 // pred_check_branch
                %828 = sbr.rel (%p645) target = $region77
              $region76: #{_lambda_.25} parent=43 // pred_region
                %s829 = sand.u32 %s618, 7
                %s830 = ssub.s32 %s618, %s829
                %s831 = scalar_lea.vmem %s601, %s830 [#allocation2]
                %s832 = ssub.s32 %s618, %s829
                %s833 = scalar_lea.vmem %s622, %s832
                %s834 = sshrl.u32 %s618, 3
                %s835 = sshrl.u32 %s834, 6
                // While loop
                $region78: #{_lambda_.25} parent=76 // loop_pre_header
                  _
                $region79: #{_lambda_.25} parent=76 // loop_header
                  %s839 = sphi 0, %s841
                  %p840 = scmp.ge.s32.totalorder %s839, %s835
                  %s844 = sphi 0, %s977
                  %s845 = sphi %s601, %s980
                  %s846 = sphi %s622, %s981
                $region80: #{_lambda_.25} parent=76 // loop_header_branch
                  %843 = sbr.rel (%p840) target = $region84
                $region81: #{_lambda_.25} parent=76 // loop_body
                  %v847 = vld [vmem:[%s845] sm:$0xff]
                  %848 = vst [vmem:[%s846] sm:$0xff] %v847
                  %v849 = vld [vmem:[%s845 + $0x8] sm:$0xff]
                  %850 = vst [vmem:[%s846 + $0x8] sm:$0xff] %v849
                  %v851 = vld [vmem:[%s845 + $0x10] sm:$0xff]
                  %852 = vst [vmem:[%s846 + $0x10] sm:$0xff] %v851
                  %v853 = vld [vmem:[%s845 + $0x18] sm:$0xff]
                  %854 = vst [vmem:[%s846 + $0x18] sm:$0xff] %v853
                  %v855 = vld [vmem:[%s845 + $0x20] sm:$0xff]
                  %856 = vst [vmem:[%s846 + $0x20] sm:$0xff] %v855
                  %v857 = vld [vmem:[%s845 + $0x28] sm:$0xff]
                  %858 = vst [vmem:[%s846 + $0x28] sm:$0xff] %v857
                  %v859 = vld [vmem:[%s845 + $0x30] sm:$0xff]
                  %860 = vst [vmem:[%s846 + $0x30] sm:$0xff] %v859
                  %v861 = vld [vmem:[%s845 + $0x38] sm:$0xff]
                  %862 = vst [vmem:[%s846 + $0x38] sm:$0xff] %v861
                  %v863 = vld [vmem:[%s845 + $0x40] sm:$0xff]
                  %864 = vst [vmem:[%s846 + $0x40] sm:$0xff] %v863
                  %v865 = vld [vmem:[%s845 + $0x48] sm:$0xff]
                  %866 = vst [vmem:[%s846 + $0x48] sm:$0xff] %v865
                  %v867 = vld [vmem:[%s845 + $0x50] sm:$0xff]
                  %868 = vst [vmem:[%s846 + $0x50] sm:$0xff] %v867
                  %v869 = vld [vmem:[%s845 + $0x58] sm:$0xff]
                  %870 = vst [vmem:[%s846 + $0x58] sm:$0xff] %v869
                  %v871 = vld [vmem:[%s845 + $0x60] sm:$0xff]
                  %872 = vst [vmem:[%s846 + $0x60] sm:$0xff] %v871
                  %v873 = vld [vmem:[%s845 + $0x68] sm:$0xff]
                  %874 = vst [vmem:[%s846 + $0x68] sm:$0xff] %v873
                  %v875 = vld [vmem:[%s845 + $0x70] sm:$0xff]
                  %876 = vst [vmem:[%s846 + $0x70] sm:$0xff] %v875
                  %v877 = vld [vmem:[%s845 + $0x78] sm:$0xff]
                  %878 = vst [vmem:[%s846 + $0x78] sm:$0xff] %v877
                  %v879 = vld [vmem:[%s845 + $0x80] sm:$0xff]
                  %880 = vst [vmem:[%s846 + $0x80] sm:$0xff] %v879
                  %v881 = vld [vmem:[%s845 + $0x88] sm:$0xff]
                  %882 = vst [vmem:[%s846 + $0x88] sm:$0xff] %v881
                  %v883 = vld [vmem:[%s845 + $0x90] sm:$0xff]
                  %884 = vst [vmem:[%s846 + $0x90] sm:$0xff] %v883
                  %v885 = vld [vmem:[%s845 + $0x98] sm:$0xff]
                  %886 = vst [vmem:[%s846 + $0x98] sm:$0xff] %v885
                  %v887 = vld [vmem:[%s845 + $0xa0] sm:$0xff]
                  %888 = vst [vmem:[%s846 + $0xa0] sm:$0xff] %v887
                  %v889 = vld [vmem:[%s845 + $0xa8] sm:$0xff]
                  %890 = vst [vmem:[%s846 + $0xa8] sm:$0xff] %v889
                  %v891 = vld [vmem:[%s845 + $0xb0] sm:$0xff]
                  %892 = vst [vmem:[%s846 + $0xb0] sm:$0xff] %v891
                  %v893 = vld [vmem:[%s845 + $0xb8] sm:$0xff]
                  %894 = vst [vmem:[%s846 + $0xb8] sm:$0xff] %v893
                  %v895 = vld [vmem:[%s845 + $0xc0] sm:$0xff]
                  %896 = vst [vmem:[%s846 + $0xc0] sm:$0xff] %v895
                  %v897 = vld [vmem:[%s845 + $0xc8] sm:$0xff]
                  %898 = vst [vmem:[%s846 + $0xc8] sm:$0xff] %v897
                  %v899 = vld [vmem:[%s845 + $0xd0] sm:$0xff]
                  %900 = vst [vmem:[%s846 + $0xd0] sm:$0xff] %v899
                  %v901 = vld [vmem:[%s845 + $0xd8] sm:$0xff]
                  %902 = vst [vmem:[%s846 + $0xd8] sm:$0xff] %v901
                  %v903 = vld [vmem:[%s845 + $0xe0] sm:$0xff]
                  %904 = vst [vmem:[%s846 + $0xe0] sm:$0xff] %v903
                  %v905 = vld [vmem:[%s845 + $0xe8] sm:$0xff]
                  %906 = vst [vmem:[%s846 + $0xe8] sm:$0xff] %v905
                  %v907 = vld [vmem:[%s845 + $0xf0] sm:$0xff]
                  %908 = vst [vmem:[%s846 + $0xf0] sm:$0xff] %v907
                  %v909 = vld [vmem:[%s845 + $0xf8] sm:$0xff]
                  %910 = vst [vmem:[%s846 + $0xf8] sm:$0xff] %v909
                  %v911 = vld [vmem:[%s845 + $0x100] sm:$0xff]
                  %912 = vst [vmem:[%s846 + $0x100] sm:$0xff] %v911
                  %v913 = vld [vmem:[%s845 + $0x108] sm:$0xff]
                  %914 = vst [vmem:[%s846 + $0x108] sm:$0xff] %v913
                  %v915 = vld [vmem:[%s845 + $0x110] sm:$0xff]
                  %916 = vst [vmem:[%s846 + $0x110] sm:$0xff] %v915
                  %v917 = vld [vmem:[%s845 + $0x118] sm:$0xff]
                  %918 = vst [vmem:[%s846 + $0x118] sm:$0xff] %v917
                  %v919 = vld [vmem:[%s845 + $0x120] sm:$0xff]
                  %920 = vst [vmem:[%s846 + $0x120] sm:$0xff] %v919
                  %v921 = vld [vmem:[%s845 + $0x128] sm:$0xff]
                  %922 = vst [vmem:[%s846 + $0x128] sm:$0xff] %v921
                  %v923 = vld [vmem:[%s845 + $0x130] sm:$0xff]
                  %924 = vst [vmem:[%s846 + $0x130] sm:$0xff] %v923
                  %v925 = vld [vmem:[%s845 + $0x138] sm:$0xff]
                  %926 = vst [vmem:[%s846 + $0x138] sm:$0xff] %v925
                  %v927 = vld [vmem:[%s845 + $0x140] sm:$0xff]
                  %928 = vst [vmem:[%s846 + $0x140] sm:$0xff] %v927
                  %v929 = vld [vmem:[%s845 + $0x148] sm:$0xff]
                  %930 = vst [vmem:[%s846 + $0x148] sm:$0xff] %v929
                  %v931 = vld [vmem:[%s845 + $0x150] sm:$0xff]
                  %932 = vst [vmem:[%s846 + $0x150] sm:$0xff] %v931
                  %v933 = vld [vmem:[%s845 + $0x158] sm:$0xff]
                  %934 = vst [vmem:[%s846 + $0x158] sm:$0xff] %v933
                  %v935 = vld [vmem:[%s845 + $0x160] sm:$0xff]
                  %936 = vst [vmem:[%s846 + $0x160] sm:$0xff] %v935
                  %v937 = vld [vmem:[%s845 + $0x168] sm:$0xff]
                  %938 = vst [vmem:[%s846 + $0x168] sm:$0xff] %v937
                  %v939 = vld [vmem:[%s845 + $0x170] sm:$0xff]
                  %940 = vst [vmem:[%s846 + $0x170] sm:$0xff] %v939
                  %v941 = vld [vmem:[%s845 + $0x178] sm:$0xff]
                  %942 = vst [vmem:[%s846 + $0x178] sm:$0xff] %v941
                  %v943 = vld [vmem:[%s845 + $0x180] sm:$0xff]
                  %944 = vst [vmem:[%s846 + $0x180] sm:$0xff] %v943
                  %v945 = vld [vmem:[%s845 + $0x188] sm:$0xff]
                  %946 = vst [vmem:[%s846 + $0x188] sm:$0xff] %v945
                  %v947 = vld [vmem:[%s845 + $0x190] sm:$0xff]
                  %948 = vst [vmem:[%s846 + $0x190] sm:$0xff] %v947
                  %v949 = vld [vmem:[%s845 + $0x198] sm:$0xff]
                  %950 = vst [vmem:[%s846 + $0x198] sm:$0xff] %v949
                  %v951 = vld [vmem:[%s845 + $0x1a0] sm:$0xff]
                  %952 = vst [vmem:[%s846 + $0x1a0] sm:$0xff] %v951
                  %v953 = vld [vmem:[%s845 + $0x1a8] sm:$0xff]
                  %954 = vst [vmem:[%s846 + $0x1a8] sm:$0xff] %v953
                  %v955 = vld [vmem:[%s845 + $0x1b0] sm:$0xff]
                  %956 = vst [vmem:[%s846 + $0x1b0] sm:$0xff] %v955
                  %v957 = vld [vmem:[%s845 + $0x1b8] sm:$0xff]
                  %958 = vst [vmem:[%s846 + $0x1b8] sm:$0xff] %v957
                  %v959 = vld [vmem:[%s845 + $0x1c0] sm:$0xff]
                  %960 = vst [vmem:[%s846 + $0x1c0] sm:$0xff] %v959
                  %v961 = vld [vmem:[%s845 + $0x1c8] sm:$0xff]
                  %962 = vst [vmem:[%s846 + $0x1c8] sm:$0xff] %v961
                  %v963 = vld [vmem:[%s845 + $0x1d0] sm:$0xff]
                  %964 = vst [vmem:[%s846 + $0x1d0] sm:$0xff] %v963
                  %v965 = vld [vmem:[%s845 + $0x1d8] sm:$0xff]
                  %966 = vst [vmem:[%s846 + $0x1d8] sm:$0xff] %v965
                  %v967 = vld [vmem:[%s845 + $0x1e0] sm:$0xff]
                  %968 = vst [vmem:[%s846 + $0x1e0] sm:$0xff] %v967
                  %v969 = vld [vmem:[%s845 + $0x1e8] sm:$0xff]
                  %970 = vst [vmem:[%s846 + $0x1e8] sm:$0xff] %v969
                  %v971 = vld [vmem:[%s845 + $0x1f0] sm:$0xff]
                  %972 = vst [vmem:[%s846 + $0x1f0] sm:$0xff] %v971
                  %v973 = vld [vmem:[%s845 + $0x1f8] sm:$0xff]
                  %974 = vst [vmem:[%s846 + $0x1f8] sm:$0xff] %v973
                  %s975 = sadd.s32 1, %s844
                  %p976 = scmp.ge.s32.totalorder %s975, %s835
                  %s977 = scalar_select %p976, 0, %s975
                  %s978 = smul.u32 %s977, 512
                  %s979 = smul.u32 %s977, 512
                  %s980 = scalar_lea.vmem %s601, %s978 [#allocation2]
                  %s981 = scalar_lea.vmem %s622, %s979
                $region82: #{_lambda_.25} parent=76 // loop_footer
                  %s841 = sadd.s32 %s839, 1
                $region83: #{_lambda_.25} parent=76 // loop_footer_branch
                  %838 = sbr.rel target = $region79
                $region84: #{_lambda_.25} parent=76 // loop_exit
                  _
                %s982 = sshrl.u32 %s834, 6
                %s983 = sand.u32 %s834, 63
                %s984 = smul.u32 %s982, 64
                %s985 = smul.u32 128, %s984
                %s986 = sshra.s32 %s985, 4
                %s987 = scalar_lea.vmem %s601, %s986 [#allocation2]
                %s988 = smul.u32 128, %s984
                %s989 = sshra.s32 %s988, 4
                %s990 = scalar_lea.vmem %s622, %s989
                // While loop
                $region85: #{_lambda_.25} parent=76 // loop_pre_header
                  _
                $region86: #{_lambda_.25} parent=76 // loop_header
                  %s994 = sphi 0, %s996
                  %p995 = scmp.ge.s32.totalorder %s994, %s983
                  %s999 = sphi 0, %s1006
                  %s1000 = sphi %s987, %s1009
                  %s1001 = sphi %s990, %s1010
                $region87: #{_lambda_.25} parent=76 // loop_header_branch
                  %998 = sbr.rel (%p995) target = $region91
                $region88: #{_lambda_.25} parent=76 // loop_body
                  %v1002 = vld [vmem:[%s1000] sm:$0xff]
                  %1003 = vst [vmem:[%s1001] sm:$0xff] %v1002
                  %s1004 = sadd.s32 1, %s999
                  %p1005 = scmp.ge.s32.totalorder %s1004, %s983
                  %s1006 = scalar_select %p1005, 0, %s1004
                  %s1007 = smul.u32 %s1006, 8
                  %s1008 = smul.u32 %s1006, 8
                  %s1009 = scalar_lea.vmem %s987, %s1007 [#allocation2]
                  %s1010 = scalar_lea.vmem %s990, %s1008
                $region89: #{_lambda_.25} parent=76 // loop_footer
                  %s996 = sadd.s32 %s994, 1
                $region90: #{_lambda_.25} parent=76 // loop_footer_branch
                  %993 = sbr.rel target = $region86
                $region91: #{_lambda_.25} parent=76 // loop_exit
                  _
                %s1011 = sshllo.u32 0, %s829
                loop: start=0, step=1, limit=1
                $region92: #{_lambda_.25} parent=76 // loop_pre_header
                  _
                $region93: #{_lambda_.25} parent=76 // loop_header
                  %s1013 = sphi 0, %s1017
                  %p1014 = scmp.ge.s32.totalorder %s1013, 1
                  %s1018 = sphi %s831, %s831
                  %s1019 = sphi %s833, %s833
                $region94: #{_lambda_.25} parent=76 // loop_header_branch
                  %1016 = sbr.rel (%p1014) target = $region98
                $region95: #{_lambda_.25} parent=76 // loop_body
                  %v1020 = vld [vmem:[%s1018] sm:%s1011]
                  %1021 = vst [vmem:[%s1019] sm:%s1011] %v1020
                $region96: #{_lambda_.25} parent=76 // loop_footer
                  %s1017 = sadd.s32 1, %s1013
                $region97: #{_lambda_.25} parent=76 // loop_footer_branch
                  %1012 = sbr.rel target = $region93
                $region98: #{_lambda_.25} parent=76 // loop_exit
                  _
              $region77: #{_lambda_.25} parent=43 // pred_fallthru
                _
            $region44: #{_lambda_.25} parent=39 // pred_fallthru
              _
            // Predicated region
            $region45: #{_lambda_.25} parent=39 // pred_check
              %p630 = pneg %p626
            $region46: #{_lambda_.25} parent=39 // pred_check_branch
              %632 = sbr.rel (%p630) target = $region48
            $region47: #{_lambda_.25} parent=39 // pred_region
              %s633 = sshllo.u32 0, %s618
              loop: start=0, step=1, limit=1
              $region49: #{_lambda_.25} parent=47 // loop_pre_header
                _
              $region50: #{_lambda_.25} parent=47 // loop_header
                %s635 = sphi 0, %s639
                %p636 = scmp.ge.s32.totalorder %s635, 1
                %s640 = sphi %s601, %s601
                %s641 = sphi %s622, %s622
              $region51: #{_lambda_.25} parent=47 // loop_header_branch
                %638 = sbr.rel (%p636) target = $region55
              $region52: #{_lambda_.25} parent=47 // loop_body
                %v642 = vld [vmem:[%s640] sm:%s633]
                %643 = vst [vmem:[%s641] sm:%s633] %v642
              $region53: #{_lambda_.25} parent=47 // loop_footer
                %s639 = sadd.s32 1, %s635
              $region54: #{_lambda_.25} parent=47 // loop_footer_branch
                %634 = sbr.rel target = $region50
              $region55: #{_lambda_.25} parent=47 // loop_exit
                _
            $region48: #{_lambda_.25} parent=39 // pred_fallthru
              _
          $region40: #{_lambda_.25} parent=35 // pred_fallthru
            _
          %1022 = vnop
        $region36: #{_lambda_.25} parent=31 // pred_fallthru
          _
        // Predicated region
        $region99: #{_lambda_.25} parent=31 // pred_check
          %p1023 = pneg %p152
        $region100: #{_lambda_.25} parent=31 // pred_check_branch
          %1025 = sbr.rel (%p1023) target = $region102
        $region101: #{_lambda_.25} parent=31 // pred_region
          _
        $region102: #{_lambda_.25} parent=31 // pred_fallthru
          _
        // Predicated region
        $region103: #{_lambda_.25} parent=31 // pred_check
          %p1026 = pneg %p180
        $region104: #{_lambda_.25} parent=31 // pred_check_branch
          %1028 = sbr.rel (%p1026) target = $region106
        $region105: #{_lambda_.25} parent=31 // pred_region
          _
        $region106: #{_lambda_.25} parent=31 // pred_fallthru
          _
      $region32: #{_lambda_.25} parent=5 // pred_fallthru
        _
      %p1029 = scmp.le.s32.totalorder 2, %s12
      // Predicated region
      $region107: #{_lambda_.25} parent=5 // pred_check
        %p1030 = pneg %p1029
      $region108: #{_lambda_.25} parent=5 // pred_check_branch
        %1032 = sbr.rel (%p1030) target = $region110
      $region109: #{_lambda_.25} parent=5 // pred_region
        %s1033 = ssub.s32 %s12, 2
        // Predicated region
        $region111: #{_lambda_.25} parent=109 // pred_check
          %p1034 = pneg %p130
        $region112: #{_lambda_.25} parent=109 // pred_check_branch
          %1036 = sbr.rel (%p1034) target = $region114
        $region113: #{_lambda_.25} parent=109 // pred_region
          %s1037 = sand.u32 %s115, 1
          %s1038 = sand.u32 %s115, 1
          %s1039 = smul.addr %s1038, 4
          %s1040 = scalar_lea.vmem [#allocation2], %s1039
        $region114: #{_lambda_.25} parent=109 // pred_fallthru
          _
        // Predicated region
        $region115: #{_lambda_.25} parent=109 // pred_check
          %p1041 = pneg %p158
        $region116: #{_lambda_.25} parent=109 // pred_check_branch
          %1043 = sbr.rel (%p1041) target = $region118
        $region117: #{_lambda_.25} parent=109 // pred_region
          %p1044 = scmp.lt.s32.totalorder %s23, 3
          %s1045 = scalar_select %p1044, %s23, 3
          %p1046 = scmp.lt.s32.totalorder %s24, 0
          %s1047 = scalar_select %p1046, %s24, 0
          %s1048 = sadd.s32 %s1047, %s1045
          %s1049 = scalar_lea.vmem %s4, %s1048
        $region118: #{_lambda_.25} parent=109 // pred_fallthru
          _
        // Predicated region
        $region119: #{_lambda_.25} parent=109 // pred_check
          %p1050 = pneg %p186
        $region120: #{_lambda_.25} parent=109 // pred_check_branch
          %1052 = sbr.rel (%p1050) target = $region122
        $region121: #{_lambda_.25} parent=109 // pred_region
          %p1053 = scmp.lt.s32.totalorder %s23, 3
          %s1054 = scalar_select %p1053, %s23, 3
          %p1055 = scmp.lt.s32.totalorder %s24, 0
          %s1056 = scalar_select %p1055, %s24, 0
          %s1057 = sadd.s32 %s1056, %s1054
          %s1058 = scalar_lea.vmem %s5, %s1057
        $region122: #{_lambda_.25} parent=109 // pred_fallthru
          _
      $region110: #{_lambda_.25} parent=5 // pred_fallthru
        _
    $region6: #{_lambda_.25} parent=1 // loop_footer
      %s16 = sadd.s32 1, %s12
    $region7: #{_lambda_.25} parent=1 // loop_footer_branch
      %11 = sbr.rel target = $region3
    $region8: #{_lambda_.25} parent=1 // loop_exit
      _

// kernel: _lambda_.26
$region0: #{_lambda_.26}
  #allocation0 [shape = 'u32[]', space=smem, size = 0x4, offset = 0x4, fixed_abs, tag = 'smem constant byte address 0x4 - core index']
  #allocation1 [shape = 'u32[144,128]{1,0:T(1,128)}', space=vmem, size = 0x12000, scoped, tag = 'internal scratch']
  %s0 = inlined_call_operand.vmem [shape: bf16[8,64], index: 0, kind: input, shape index: {}]
  %s1 = inlined_call_operand.vmem [shape: f32[1,64], index: 1, kind: input, shape index: {}]
  %s2 = inlined_call_operand.vmem [shape: f32[1,64], index: 2, kind: input, shape index: {}]
  %s3 = inlined_call_operand.vmem [shape: bf16[8,64], index: 3, kind: output, shape index: {}]
  %s4 = sld [smem:[#allocation0]]
  $region22: #{_lambda_.26} parent=0
    _
  %s6 = ssub.s32 1, %s4
  %s7 = scalar_select 0, %s6, %s4
  // Predicated region
  $region2: #{_lambda_.26} parent=0 // pred_check
    _
  $region3: #{_lambda_.26} parent=0 // pred_check_branch
    %9 = sbr.rel (0) target = $region5
  $region4: #{_lambda_.26} parent=0 // pred_region
    _
  $region5: #{_lambda_.26} parent=0 // pred_fallthru
    _
  // Predicated region
  $region6: #{_lambda_.26} parent=0 // pred_check
    _
  $region7: #{_lambda_.26} parent=0 // pred_check_branch
    %11 = sbr.rel (0) target = $region9
  $region8: #{_lambda_.26} parent=0 // pred_region
    _
  $region9: #{_lambda_.26} parent=0 // pred_fallthru
    _
  // Predicated region
  $region10: #{_lambda_.26} parent=0 // pred_check
    _
  $region11: #{_lambda_.26} parent=0 // pred_check_branch
    %13 = sbr.rel (0) target = $region13
  $region12: #{_lambda_.26} parent=0 // pred_region
    _
  $region13: #{_lambda_.26} parent=0 // pred_fallthru
    _
  %v14 = vld [vmem:[%s0] sm:$0xf]
  %v15 = vunpack.c.l.bf16 %v14
  %v16 = vld [vmem:[%s1] sm:$0x1]
  %v18 = vlaneseq
  %v19 = vshrl.u32 %v18, 7
  %v20 = vsub.s32 0, %v19
  %v21 = vrot.slane %v16, %v20
  %v23 = vmul.f32 %v15, %v21
  %v24 = vld [vmem:[%s2] sm:$0x1]
  %v26 = vlaneseq
  %v27 = vshrl.u32 %v26, 7
  %v28 = vsub.s32 0, %v27
  %v29 = vrot.slane %v24, %v28
  %v31 = vadd.f32 %v23, %v29
  %v32 = vmax.f32 %v31, 0.0
  %v33 = vpack.c.bf16 %v32, %v32
  %vm34 = vcmask 519168
  %35 = vst.msk [vmem:[%s3] sm:$0xf] %vm34, %v33
  // Predicated region
  $region14: #{_lambda_.26} parent=0 // pred_check
    _
  $region15: #{_lambda_.26} parent=0 // pred_check_branch
    %37 = sbr.rel (0) target = $region17
  $region16: #{_lambda_.26} parent=0 // pred_region
    _
  $region17: #{_lambda_.26} parent=0 // pred_fallthru
    _
  // Predicated region
  $region18: #{_lambda_.26} parent=0 // pred_check
    _
  $region19: #{_lambda_.26} parent=0 // pred_check_branch
    %39 = sbr.rel (0) target = $region21
  $region20: #{_lambda_.26} parent=0 // pred_region
    _
  $region21: #{_lambda_.26} parent=0 // pred_fallthru
    _

// kernel: _lambda_.28
$region0: #{_lambda_.28}
  #allocation0 [shape = 'u32[]', space=smem, size = 0x4, offset = 0x4, fixed_abs, tag = 'smem constant byte address 0x4 - core index']
  #allocation1 [shape = 'u32[144,128]{1,0:T(1,128)}', space=vmem, size = 0x12000, scoped, tag = 'internal scratch']
  %s0 = inlined_call_operand.vmem [shape: bf16[32,32], index: 0, kind: input, shape index: {}]
  %s1 = inlined_call_operand.vmem [shape: f32[1,32], index: 1, kind: input, shape index: {}]
  %s2 = inlined_call_operand.vmem [shape: f32[1,32], index: 2, kind: input, shape index: {}]
  %s3 = inlined_call_operand.vmem [shape: bf16[32,32], index: 3, kind: output, shape index: {}]
  %s4 = sld [smem:[#allocation0]]
  $region22: #{_lambda_.28} parent=0
    _
  %s6 = ssub.s32 1, %s4
  %s7 = scalar_select 0, %s6, %s4
  // Predicated region
  $region2: #{_lambda_.28} parent=0 // pred_check
    _
  $region3: #{_lambda_.28} parent=0 // pred_check_branch
    %9 = sbr.rel (0) target = $region5
  $region4: #{_lambda_.28} parent=0 // pred_region
    _
  $region5: #{_lambda_.28} parent=0 // pred_fallthru
    _
  // Predicated region
  $region6: #{_lambda_.28} parent=0 // pred_check
    _
  $region7: #{_lambda_.28} parent=0 // pred_check_branch
    %11 = sbr.rel (0) target = $region9
  $region8: #{_lambda_.28} parent=0 // pred_region
    _
  $region9: #{_lambda_.28} parent=0 // pred_fallthru
    _
  // Predicated region
  $region10: #{_lambda_.28} parent=0 // pred_check
    _
  $region11: #{_lambda_.28} parent=0 // pred_check_branch
    %13 = sbr.rel (0) target = $region13
  $region12: #{_lambda_.28} parent=0 // pred_region
    _
  $region13: #{_lambda_.28} parent=0 // pred_fallthru
    _
  %v14 = vld [vmem:[%s0] sm:$0xf]
  %v15 = vld [vmem:[%s0 + $0x4] sm:$0xf]
  %v16 = vld [vmem:[%s0 + $0x8] sm:$0xf]
  %v17 = vld [vmem:[%s0 + $0xc] sm:$0xf]
  %v18 = vunpack.c.l.bf16 %v14
  %v19 = vunpack.c.l.bf16 %v15
  %v20 = vunpack.c.l.bf16 %v16
  %v21 = vunpack.c.l.bf16 %v17
  %v22 = vld [vmem:[%s1] sm:$0x1]
  %v24 = vlaneseq
  %v25 = vshrl.u32 %v24, 7
  %v26 = vsub.s32 0, %v25
  %v27 = vrot.slane %v22, %v26
  %v29 = vmul.f32 %v18, %v27
  %v30 = vmul.f32 %v19, %v27
  %v31 = vmul.f32 %v20, %v27
  %v32 = vmul.f32 %v21, %v27
  %v33 = vld [vmem:[%s2] sm:$0x1]
  %v35 = vlaneseq
  %v36 = vshrl.u32 %v35, 7
  %v37 = vsub.s32 0, %v36
  %v38 = vrot.slane %v33, %v37
  %v40 = vadd.f32 %v29, %v38
  %v41 = vadd.f32 %v30, %v38
  %v42 = vadd.f32 %v31, %v38
  %v43 = vadd.f32 %v32, %v38
  %v44 = vmax.f32 %v40, 0.0
  %v45 = vmax.f32 %v41, 0.0
  %v46 = vmax.f32 %v42, 0.0
  %v47 = vmax.f32 %v43, 0.0
  %v48 = vpack.c.bf16 %v45, %v44
  %v49 = vpack.c.bf16 %v47, %v46
  %v52 = vunpack.c.l.b16 %v48
  %v53 = vunpack.c.h.b16 %v48
  %v54 = vunpack.c.l.b16 %v49
  %v55 = vunpack.c.h.b16 %v49
  %v56 = vpack.c.b16 %v52, %v52
  %v57 = vpack.c.b16 %v53, %v53
  %v58 = vpack.c.b16 %v54, %v54
  %v59 = vpack.c.b16 %v55, %v55
  %vm64 = vcmask 257024
  %65 = vst.msk [vmem:[%s3] sm:$0xf] %vm64, %v56
  %66 = vst.msk [vmem:[%s3 + $0x4] sm:$0xf] %vm64, %v57
  %67 = vst.msk [vmem:[%s3 + $0x8] sm:$0xf] %vm64, %v58
  %68 = vst.msk [vmem:[%s3 + $0xc] sm:$0xf] %vm64, %v59
  // Predicated region
  $region14: #{_lambda_.28} parent=0 // pred_check
    _
  $region15: #{_lambda_.28} parent=0 // pred_check_branch
    %70 = sbr.rel (0) target = $region17
  $region16: #{_lambda_.28} parent=0 // pred_region
    _
  $region17: #{_lambda_.28} parent=0 // pred_fallthru
    _
  // Predicated region
  $region18: #{_lambda_.28} parent=0 // pred_check
    _
  $region19: #{_lambda_.28} parent=0 // pred_check_branch
    %72 = sbr.rel (0) target = $region21
  $region20: #{_lambda_.28} parent=0 // pred_region
    _
  $region21: #{_lambda_.28} parent=0 // pred_fallthru
    _

// kernel: _lambda_.27
$region0: #{_lambda_.27}
  #allocation0 [shape = 'u32[]', space=smem, size = 0x4, offset = 0x4, fixed_abs, tag = 'smem constant byte address 0x4 - core index']
  #allocation1 [shape = 'u32[144,128]{1,0:T(1,128)}', space=vmem, size = 0x12000, scoped, tag = 'internal scratch']
  %s0 = inlined_call_operand.vmem [shape: bf16[4,8,256], index: 0, kind: input, shape index: {}]
  %s1 = inlined_call_operand.vmem [shape: bf16[4,8,256], index: 1, kind: input, shape index: {}]
  %s2 = inlined_call_operand.vmem [shape: bf16[4,256,32], index: 2, kind: input, shape index: {}]
  %s3 = inlined_call_operand.vmem [shape: bf16[4,256,32], index: 3, kind: input, shape index: {}]
  %s4 = inlined_call_operand.vmem [shape: f32[1,1,32], index: 4, kind: input, shape index: {}]
  %s5 = inlined_call_operand.vmem [shape: bf16[4,8,32], index: 5, kind: output, shape index: {0}]
  %s6 = inlined_call_operand.vmem [shape: f32[4,1,1,32], index: 6, kind: output, shape index: {1}]
  %s7 = inlined_call_operand.vmem [shape: f32[4,1,1,32], index: 7, kind: output, shape index: {2}]
  %8 = xla_tuple %s5, %s6, %s7
  %s9 = sld [smem:[#allocation0]]
  $region69: #{_lambda_.27} parent=0
    _
  %s11 = ssub.s32 1, %s9
  %s12 = scalar_select 0, %s11, %s9
  loop: start=0, step=1, limit=6
  $region2: #{_lambda_.27} parent=0 // loop_pre_header
    _
  $region3: #{_lambda_.27} parent=0 // loop_header
    %s14 = sphi 0, %s18
    %p15 = scmp.ge.s32.totalorder %s14, 6
    %s21 = sphi 0, %s33
    %s22 = sphi 0, %s29
    %s23 = sphi 0, %s21
    %s24 = sphi 0, %s22
    %s25 = sphi 0, %s23
    %s26 = sphi 0, %s24
    %s38 = sphi 0, %s40
    %s41 = sphi 0, %s38
    %s42 = sphi 0, %s41
    %s58 = sphi 0, %s42
    %s66 = sphi 0, %s68
    %s69 = sphi 0, %s66
    %s70 = sphi 0, %s69
    %s86 = sphi 0, %s70
    %s92 = sphi 0, %s94
    %s95 = sphi 0, %s92
    %s96 = sphi 0, %s95
    %s112 = sphi 0, %s96
    %s118 = sphi 0, %s120
    %s121 = sphi 0, %s118
    %s122 = sphi 0, %s121
    %s138 = sphi 0, %s122
    %s142 = sphi 0, %s142
    %s144 = sphi 0, %s142
    %s145 = sphi 0, %s144
    %s159 = sphi 0, %s145
    %s167 = sphi 0, %s169
    %s170 = sphi 0, %s167
    %s171 = sphi 0, %s170
    %s187 = sphi 0, %s171
    %s195 = sphi 0, %s197
    %s198 = sphi 0, %s195
    %s199 = sphi 0, %s198
    %s215 = sphi 0, %s199
    %s223 = sphi 0, %s225
    %s226 = sphi 0, %s223
    %s227 = sphi 0, %s226
    %s243 = sphi 0, %s227
  $region4: #{_lambda_.27} parent=0 // loop_header_branch
    %17 = sbr.rel (%p15) target = $region8
  $region5: #{_lambda_.27} parent=0 // loop_body
    %s19 = ssub.s32 %s14, 1
    %s20 = ssub.s32 %s14, 2
    %s27 = sadd.s32 1, %s22
    %p28 = scmp.ge.s32.totalorder %s27, 1
    %s29 = scalar_select %p28, 0, %s27
    %s30 = sadd.s32 1, %s21
    %s31 = scalar_select %p28, %s30, %s21
    %p32 = scmp.ge.s32.totalorder %s31, 4
    %s33 = scalar_select %p32, 0, %s31
    %s34 = ssub.s32 %s21, %s33
    %s35 = ssub.s32 %s22, %s29
    %s36 = sor.u32 %s34, %s35
    %p37 = scmp.eq.s32.totalorder %s36, 0
    %s39 = sadd.s32 %s38, 1
    %s40 = scalar_select %p37, %s38, %s39
    %p43 = pneg %p37
    %p44 = scmp.eq.s32.totalorder %s14, 3
    %p45 = por %p43, %p44
    %p46 = scmp.ne.s32.totalorder %s38, %s41
    %p47 = scmp.eq.s32.totalorder %s14, 0
    %p48 = por %p46, %p47
    %p49 = scmp.ne.s32.totalorder %s38, %s41
    %p50 = scmp.eq.s32.totalorder %s19, 3
    %p51 = por %p49, %p50
    %p52 = scmp.ne.s32.totalorder %s41, %s42
    %p53 = scmp.eq.s32.totalorder %s19, 0
    %p54 = por %p52, %p53
    %p55 = scmp.ne.s32.totalorder %s41, %s42
    %p56 = scmp.eq.s32.totalorder %s20, 3
    %p57 = por %p55, %p56
    %p59 = scmp.ne.s32.totalorder %s42, %s58
    %p60 = scmp.eq.s32.totalorder %s20, 0
    %p61 = por %p59, %p60
    %s62 = ssub.s32 %s21, %s33
    %s63 = ssub.s32 %s22, %s29
    %s64 = sor.u32 %s62, %s63
    %p65 = scmp.eq.s32.totalorder %s64, 0
    %s67 = sadd.s32 %s66, 1
    %s68 = scalar_select %p65, %s66, %s67
    %p71 = pneg %p65
    %p72 = scmp.eq.s32.totalorder %s14, 3
    %p73 = por %p71, %p72
    %p74 = scmp.ne.s32.totalorder %s66, %s69
    %p75 = scmp.eq.s32.totalorder %s14, 0
    %p76 = por %p74, %p75
    %p77 = scmp.ne.s32.totalorder %s66, %s69
    %p78 = scmp.eq.s32.totalorder %s19, 3
    %p79 = por %p77, %p78
    %p80 = scmp.ne.s32.totalorder %s69, %s70
    %p81 = scmp.eq.s32.totalorder %s19, 0
    %p82 = por %p80, %p81
    %p83 = scmp.ne.s32.totalorder %s69, %s70
    %p84 = scmp.eq.s32.totalorder %s20, 3
    %p85 = por %p83, %p84
    %p87 = scmp.ne.s32.totalorder %s70, %s86
    %p88 = scmp.eq.s32.totalorder %s20, 0
    %p89 = por %p87, %p88
    %s90 = ssub.s32 %s21, %s33
    %p91 = scmp.eq.s32.totalorder %s90, 0
    %s93 = sadd.s32 %s92, 1
    %s94 = scalar_select %p91, %s92, %s93
    %p97 = pneg %p91
    %p98 = scmp.eq.s32.totalorder %s14, 3
    %p99 = por %p97, %p98
    %p100 = scmp.ne.s32.totalorder %s92, %s95
    %p101 = scmp.eq.s32.totalorder %s14, 0
    %p102 = por %p100, %p101
    %p103 = scmp.ne.s32.totalorder %s92, %s95
    %p104 = scmp.eq.s32.totalorder %s19, 3
    %p105 = por %p103, %p104
    %p106 = scmp.ne.s32.totalorder %s95, %s96
    %p107 = scmp.eq.s32.totalorder %s19, 0
    %p108 = por %p106, %p107
    %p109 = scmp.ne.s32.totalorder %s95, %s96
    %p110 = scmp.eq.s32.totalorder %s20, 3
    %p111 = por %p109, %p110
    %p113 = scmp.ne.s32.totalorder %s96, %s112
    %p114 = scmp.eq.s32.totalorder %s20, 0
    %p115 = por %p113, %p114
    %s116 = ssub.s32 %s21, %s33
    %p117 = scmp.eq.s32.totalorder %s116, 0
    %s119 = sadd.s32 %s118, 1
    %s120 = scalar_select %p117, %s118, %s119
    %p123 = pneg %p117
    %p124 = scmp.eq.s32.totalorder %s14, 3
    %p125 = por %p123, %p124
    %p126 = scmp.ne.s32.totalorder %s118, %s121
    %p127 = scmp.eq.s32.totalorder %s14, 0
    %p128 = por %p126, %p127
    %p129 = scmp.ne.s32.totalorder %s118, %s121
    %p130 = scmp.eq.s32.totalorder %s19, 3
    %p131 = por %p129, %p130
    %p132 = scmp.ne.s32.totalorder %s121, %s122
    %p133 = scmp.eq.s32.totalorder %s19, 0
    %p134 = por %p132, %p133
    %p135 = scmp.ne.s32.totalorder %s121, %s122
    %p136 = scmp.eq.s32.totalorder %s20, 3
    %p137 = por %p135, %p136
    %p139 = scmp.ne.s32.totalorder %s122, %s138
    %p140 = scmp.eq.s32.totalorder %s20, 0
    %p141 = por %p139, %p140
    %s143 = sadd.s32 %s142, 1
    %p146 = scmp.eq.s32.totalorder %s14, 3
    %p147 = scmp.ne.s32.totalorder %s142, %s144
    %p148 = scmp.eq.s32.totalorder %s14, 0
    %p149 = por %p147, %p148
    %p150 = scmp.ne.s32.totalorder %s142, %s144
    %p151 = scmp.eq.s32.totalorder %s19, 3
    %p152 = por %p150, %p151
    %p153 = scmp.ne.s32.totalorder %s144, %s145
    %p154 = scmp.eq.s32.totalorder %s19, 0
    %p155 = por %p153, %p154
    %p156 = scmp.ne.s32.totalorder %s144, %s145
    %p157 = scmp.eq.s32.totalorder %s20, 3
    %p158 = por %p156, %p157
    %p160 = scmp.ne.s32.totalorder %s145, %s159
    %p161 = scmp.eq.s32.totalorder %s20, 0
    %p162 = por %p160, %p161
    %s163 = ssub.s32 %s21, %s33
    %s164 = ssub.s32 %s22, %s29
    %s165 = sor.u32 %s163, %s164
    %p166 = scmp.eq.s32.totalorder %s165, 0
    %s168 = sadd.s32 %s167, 1
    %s169 = scalar_select %p166, %s167, %s168
    %p172 = pneg %p166
    %p173 = scmp.eq.s32.totalorder %s14, 3
    %p174 = por %p172, %p173
    %p175 = scmp.ne.s32.totalorder %s167, %s170
    %p176 = scmp.eq.s32.totalorder %s14, 0
    %p177 = por %p175, %p176
    %p178 = scmp.ne.s32.totalorder %s167, %s170
    %p179 = scmp.eq.s32.totalorder %s19, 3
    %p180 = por %p178, %p179
    %p181 = scmp.ne.s32.totalorder %s170, %s171
    %p182 = scmp.eq.s32.totalorder %s19, 0
    %p183 = por %p181, %p182
    %p184 = scmp.ne.s32.totalorder %s170, %s171
    %p185 = scmp.eq.s32.totalorder %s20, 3
    %p186 = por %p184, %p185
    %p188 = scmp.ne.s32.totalorder %s171, %s187
    %p189 = scmp.eq.s32.totalorder %s20, 0
    %p190 = por %p188, %p189
    %s191 = ssub.s32 %s21, %s33
    %s192 = ssub.s32 %s22, %s29
    %s193 = sor.u32 %s191, %s192
    %p194 = scmp.eq.s32.totalorder %s193, 0
    %s196 = sadd.s32 %s195, 1
    %s197 = scalar_select %p194, %s195, %s196
    %p200 = pneg %p194
    %p201 = scmp.eq.s32.totalorder %s14, 3
    %p202 = por %p200, %p201
    %p203 = scmp.ne.s32.totalorder %s195, %s198
    %p204 = scmp.eq.s32.totalorder %s14, 0
    %p205 = por %p203, %p204
    %p206 = scmp.ne.s32.totalorder %s195, %s198
    %p207 = scmp.eq.s32.totalorder %s19, 3
    %p208 = por %p206, %p207
    %p209 = scmp.ne.s32.totalorder %s198, %s199
    %p210 = scmp.eq.s32.totalorder %s19, 0
    %p211 = por %p209, %p210
    %p212 = scmp.ne.s32.totalorder %s198, %s199
    %p213 = scmp.eq.s32.totalorder %s20, 3
    %p214 = por %p212, %p213
    %p216 = scmp.ne.s32.totalorder %s199, %s215
    %p217 = scmp.eq.s32.totalorder %s20, 0
    %p218 = por %p216, %p217
    %s219 = ssub.s32 %s21, %s33
    %s220 = ssub.s32 %s22, %s29
    %s221 = sor.u32 %s219, %s220
    %p222 = scmp.eq.s32.totalorder %s221, 0
    %s224 = sadd.s32 %s223, 1
    %s225 = scalar_select %p222, %s223, %s224
    %p228 = pneg %p222
    %p229 = scmp.eq.s32.totalorder %s14, 3
    %p230 = por %p228, %p229
    %p231 = scmp.ne.s32.totalorder %s223, %s226
    %p232 = scmp.eq.s32.totalorder %s14, 0
    %p233 = por %p231, %p232
    %p234 = scmp.ne.s32.totalorder %s223, %s226
    %p235 = scmp.eq.s32.totalorder %s19, 3
    %p236 = por %p234, %p235
    %p237 = scmp.ne.s32.totalorder %s226, %s227
    %p238 = scmp.eq.s32.totalorder %s19, 0
    %p239 = por %p237, %p238
    %p240 = scmp.ne.s32.totalorder %s226, %s227
    %p241 = scmp.eq.s32.totalorder %s20, 3
    %p242 = por %p240, %p241
    %p244 = scmp.ne.s32.totalorder %s227, %s243
    %p245 = scmp.eq.s32.totalorder %s20, 0
    %p246 = por %p244, %p245
    %p247 = scmp.le.s32.totalorder 1, %s14
    %p248 = scmp.lt.s32.totalorder %s14, 5
    %p249 = pnand %p247, %p248
    %p250 = pneg %p249
    // Predicated region
    $region9: #{_lambda_.27} parent=5 // pred_check
      _
    $region10: #{_lambda_.27} parent=5 // pred_check_branch
      %252 = sbr.rel (%p249) target = $region12
    $region11: #{_lambda_.27} parent=5 // pred_region
      %s253 = ssub.s32 %s14, 1
      // Predicated region
      $region13: #{_lambda_.27} parent=11 // pred_check
        %p254 = pneg %p155
      $region14: #{_lambda_.27} parent=11 // pred_check_branch
        %256 = sbr.rel (%p254) target = $region16
      $region15: #{_lambda_.27} parent=11 // pred_region
        _
      $region16: #{_lambda_.27} parent=11 // pred_fallthru
        _
    $region12: #{_lambda_.27} parent=5 // pred_fallthru
      _
    %p257 = scmp.lt.s32.totalorder %s14, 4
    // Predicated region
    $region17: #{_lambda_.27} parent=5 // pred_check
      %p258 = pneg %p257
    $region18: #{_lambda_.27} parent=5 // pred_check_branch
      %260 = sbr.rel (%p258) target = $region20
    $region19: #{_lambda_.27} parent=5 // pred_region
      // Predicated region
      $region21: #{_lambda_.27} parent=19 // pred_check
        %p261 = pneg %p48
      $region22: #{_lambda_.27} parent=19 // pred_check_branch
        %263 = sbr.rel (%p261) target = $region24
      $region23: #{_lambda_.27} parent=19 // pred_region
        %p264 = scmp.lt.s32.totalorder %s21, 3
        %s265 = scalar_select %p264, %s21, 3
        %p266 = scmp.lt.s32.totalorder %s22, 0
        %s267 = scalar_select %p266, %s22, 0
        %s268 = smul.addr %s267, 2
        %s269 = smul.addr %s265, 2
        %s270 = sadd.s32 %s268, %s269
        %s271 = smul.addr %s270, 4
        %s272 = scalar_lea.vmem %s0, %s271
      $region24: #{_lambda_.27} parent=19 // pred_fallthru
        _
      // Predicated region
      $region25: #{_lambda_.27} parent=19 // pred_check
        %p273 = pneg %p76
      $region26: #{_lambda_.27} parent=19 // pred_check_branch
        %275 = sbr.rel (%p273) target = $region28
      $region27: #{_lambda_.27} parent=19 // pred_region
        %p276 = scmp.lt.s32.totalorder %s21, 3
        %s277 = scalar_select %p276, %s21, 3
        %p278 = scmp.lt.s32.totalorder %s22, 0
        %s279 = scalar_select %p278, %s22, 0
        %s280 = smul.addr %s279, 2
        %s281 = smul.addr %s277, 2
        %s282 = sadd.s32 %s280, %s281
        %s283 = smul.addr %s282, 4
        %s284 = scalar_lea.vmem %s1, %s283
      $region28: #{_lambda_.27} parent=19 // pred_fallthru
        _
      // Predicated region
      $region29: #{_lambda_.27} parent=19 // pred_check
        %p285 = pneg %p102
      $region30: #{_lambda_.27} parent=19 // pred_check_branch
        %287 = sbr.rel (%p285) target = $region32
      $region31: #{_lambda_.27} parent=19 // pred_region
        %p288 = scmp.lt.s32.totalorder %s21, 3
        %s289 = scalar_select %p288, %s21, 3
        %s290 = smul.addr %s289, 32
        %s291 = smul.addr %s290, 4
        %s292 = scalar_lea.vmem %s2, %s291
      $region32: #{_lambda_.27} parent=19 // pred_fallthru
        _
      // Predicated region
      $region33: #{_lambda_.27} parent=19 // pred_check
        %p293 = pneg %p128
      $region34: #{_lambda_.27} parent=19 // pred_check_branch
        %295 = sbr.rel (%p293) target = $region36
      $region35: #{_lambda_.27} parent=19 // pred_region
        %p296 = scmp.lt.s32.totalorder %s21, 3
        %s297 = scalar_select %p296, %s21, 3
        %s298 = smul.addr %s297, 32
        %s299 = smul.addr %s298, 4
        %s300 = scalar_lea.vmem %s3, %s299
      $region36: #{_lambda_.27} parent=19 // pred_fallthru
        _
    $region20: #{_lambda_.27} parent=5 // pred_fallthru
      _
    %p301 = scmp.le.s32.totalorder 1, %s14
    %p302 = scmp.lt.s32.totalorder %s14, 5
    %p303 = pnand %p301, %p302
    %p304 = pneg %p303
    // Predicated region
    $region37: #{_lambda_.27} parent=5 // pred_check
      _
    $region38: #{_lambda_.27} parent=5 // pred_check_branch
      %306 = sbr.rel (%p303) target = $region40
    $region39: #{_lambda_.27} parent=5 // pred_region
      %s307 = ssub.s32 %s14, 1
      %p308 = scmp.lt.s32.totalorder %s23, 3
      %s309 = scalar_select %p308, %s23, 3
      %p310 = scmp.lt.s32.totalorder %s24, 0
      %s311 = scalar_select %p310, %s24, 0
      %s312 = smul.addr %s311, 2
      %s313 = smul.addr %s309, 2
      %s314 = sadd.s32 %s312, %s313
      %s315 = smul.addr %s314, 4
      %s316 = scalar_lea.vmem %s0, %s315
      %p317 = pneg %p54
      %p318 = pneg %p51
      %p319 = scmp.lt.s32.totalorder %s23, 3
      %s320 = scalar_select %p319, %s23, 3
      %p321 = scmp.lt.s32.totalorder %s24, 0
      %s322 = scalar_select %p321, %s24, 0
      %s323 = smul.addr %s322, 2
      %s324 = smul.addr %s320, 2
      %s325 = sadd.s32 %s323, %s324
      %s326 = smul.addr %s325, 4
      %s327 = scalar_lea.vmem %s1, %s326
      %p328 = pneg %p82
      %p329 = pneg %p79
      %p330 = scmp.lt.s32.totalorder %s23, 3
      %s331 = scalar_select %p330, %s23, 3
      %s332 = smul.addr %s331, 32
      %s333 = smul.addr %s332, 4
      %s334 = scalar_lea.vmem %s2, %s333
      %p335 = pneg %p108
      %p336 = pneg %p105
      %p337 = scmp.lt.s32.totalorder %s23, 3
      %s338 = scalar_select %p337, %s23, 3
      %s339 = smul.addr %s338, 32
      %s340 = smul.addr %s339, 4
      %s341 = scalar_lea.vmem %s3, %s340
      %p342 = pneg %p134
      %p343 = pneg %p131
      %p344 = pneg %p155
      %p345 = pneg %p152
      %p346 = pneg %p183
      %p347 = pneg %p180
      %p348 = scmp.lt.s32.totalorder %s23, 3
      %s349 = scalar_select %p348, %s23, 3
      %p350 = scmp.lt.s32.totalorder %s24, 0
      %s351 = scalar_select %p350, %s24, 0
      %s352 = sadd.s32 %s351, %s349
      %s353 = smul.addr %s352, 4
      %s354 = scalar_lea.vmem %s5, %s353
      %p355 = pneg %p211
      %p356 = pneg %p208
      %p357 = scmp.lt.s32.totalorder %s23, 3
      %s358 = scalar_select %p357, %s23, 3
      %p359 = scmp.lt.s32.totalorder %s24, 0
      %s360 = scalar_select %p359, %s24, 0
      %s361 = sadd.s32 %s360, %s358
      %s362 = scalar_lea.vmem %s6, %s361
      %p363 = pneg %p239
      %p364 = pneg %p236
      %p365 = scmp.lt.s32.totalorder %s23, 3
      %s366 = scalar_select %p365, %s23, 3
      %p367 = scmp.lt.s32.totalorder %s24, 0
      %s368 = scalar_select %p367, %s24, 0
      %s369 = sadd.s32 %s368, %s366
      %s370 = scalar_lea.vmem %s7, %s369
      %p371 = scmp.lt.s32.totalorder %s23, 3
      %s372 = scalar_select %p371, %s23, 3
      %p373 = scmp.lt.s32.totalorder %s24, 0
      %s374 = scalar_select %p373, %s24, 0
      %s375 = smul.addr %s374, 2
      %s376 = smul.addr %s372, 2
      %s377 = sadd.s32 %s375, %s376
      %s378 = smul.addr %s377, 4
      %s379 = scalar_lea.vmem %s0, %s378
      %p380 = scmp.lt.s32.totalorder %s23, 3
      %s381 = scalar_select %p380, %s23, 3
      %p382 = scmp.lt.s32.totalorder %s24, 0
      %s383 = scalar_select %p382, %s24, 0
      %s384 = smul.addr %s383, 2
      %s385 = smul.addr %s381, 2
      %s386 = sadd.s32 %s384, %s385
      %s387 = smul.addr %s386, 4
      %s388 = scalar_lea.vmem %s1, %s387
      %p389 = scmp.lt.s32.totalorder %s23, 3
      %s390 = scalar_select %p389, %s23, 3
      %s391 = smul.addr %s390, 32
      %s392 = smul.addr %s391, 4
      %s393 = scalar_lea.vmem %s2, %s392
      %p394 = scmp.lt.s32.totalorder %s23, 3
      %s395 = scalar_select %p394, %s23, 3
      %s396 = smul.addr %s395, 32
      %s397 = smul.addr %s396, 4
      %s398 = scalar_lea.vmem %s3, %s397
      %p399 = scmp.lt.s32.totalorder %s23, 3
      %s400 = scalar_select %p399, %s23, 3
      %p401 = scmp.lt.s32.totalorder %s24, 0
      %s402 = scalar_select %p401, %s24, 0
      %s403 = sadd.s32 %s402, %s400
      %s404 = smul.addr %s403, 4
      %s405 = scalar_lea.vmem %s5, %s404
      %p406 = scmp.lt.s32.totalorder %s23, 3
      %s407 = scalar_select %p406, %s23, 3
      %p408 = scmp.lt.s32.totalorder %s24, 0
      %s409 = scalar_select %p408, %s24, 0
      %s410 = sadd.s32 %s409, %s407
      %s411 = scalar_lea.vmem %s6, %s410
      %p412 = scmp.lt.s32.totalorder %s23, 3
      %s413 = scalar_select %p412, %s23, 3
      %p414 = scmp.lt.s32.totalorder %s24, 0
      %s415 = scalar_select %p414, %s24, 0
      %s416 = sadd.s32 %s415, %s413
      %s417 = scalar_lea.vmem %s7, %s416
      %v419 = vld [vmem:[%s379] sm:$0xff]
      %v420 = vld [vmem:[%s393] sm:$0xf]
      %v421 = vld [vmem:[%s393 + $0x4] sm:$0xf]
      %v422 = vld [vmem:[%s393 + $0x8] sm:$0xf]
      %v423 = vld [vmem:[%s393 + $0xc] sm:$0xf]
      %v424 = vld [vmem:[%s393 + $0x10] sm:$0xf]
      %v425 = vld [vmem:[%s393 + $0x14] sm:$0xf]
      %v426 = vld [vmem:[%s393 + $0x18] sm:$0xf]
      %v427 = vld [vmem:[%s393 + $0x1c] sm:$0xf]
      %v428 = vld [vmem:[%s393 + $0x20] sm:$0xf]
      %v429 = vld [vmem:[%s393 + $0x24] sm:$0xf]
      %v430 = vld [vmem:[%s393 + $0x28] sm:$0xf]
      %v431 = vld [vmem:[%s393 + $0x2c] sm:$0xf]
      %v432 = vld [vmem:[%s393 + $0x30] sm:$0xf]
      %v433 = vld [vmem:[%s393 + $0x34] sm:$0xf]
      %v434 = vld [vmem:[%s393 + $0x38] sm:$0xf]
      %v435 = vld [vmem:[%s393 + $0x3c] sm:$0xf]
      %v436 = vld [vmem:[%s393 + $0x40] sm:$0xf]
      %v437 = vld [vmem:[%s393 + $0x44] sm:$0xf]
      %v438 = vld [vmem:[%s393 + $0x48] sm:$0xf]
      %v439 = vld [vmem:[%s393 + $0x4c] sm:$0xf]
      %v440 = vld [vmem:[%s393 + $0x50] sm:$0xf]
      %v441 = vld [vmem:[%s393 + $0x54] sm:$0xf]
      %v442 = vld [vmem:[%s393 + $0x58] sm:$0xf]
      %v443 = vld [vmem:[%s393 + $0x5c] sm:$0xf]
      %v444 = vld [vmem:[%s393 + $0x60] sm:$0xf]
      %v445 = vld [vmem:[%s393 + $0x64] sm:$0xf]
      %v446 = vld [vmem:[%s393 + $0x68] sm:$0xf]
      %v447 = vld [vmem:[%s393 + $0x6c] sm:$0xf]
      %v448 = vld [vmem:[%s393 + $0x70] sm:$0xf]
      %v449 = vld [vmem:[%s393 + $0x74] sm:$0xf]
      %v450 = vld [vmem:[%s393 + $0x78] sm:$0xf]
      %v451 = vld [vmem:[%s393 + $0x7c] sm:$0xf]
      %v452 = vld [vmem:[%s388] sm:$0xff]
      %v453 = vld [vmem:[%s398] sm:$0xf]
      %v454 = vld [vmem:[%s398 + $0x4] sm:$0xf]
      %v455 = vld [vmem:[%s398 + $0x8] sm:$0xf]
      %v456 = vld [vmem:[%s398 + $0xc] sm:$0xf]
      %v457 = vld [vmem:[%s398 + $0x10] sm:$0xf]
      %v458 = vld [vmem:[%s398 + $0x14] sm:$0xf]
      %v459 = vld [vmem:[%s398 + $0x18] sm:$0xf]
      %v460 = vld [vmem:[%s398 + $0x1c] sm:$0xf]
      %v461 = vld [vmem:[%s398 + $0x20] sm:$0xf]
      %v462 = vld [vmem:[%s398 + $0x24] sm:$0xf]
      %v463 = vld [vmem:[%s398 + $0x28] sm:$0xf]
      %v464 = vld [vmem:[%s398 + $0x2c] sm:$0xf]
      %v465 = vld [vmem:[%s398 + $0x30] sm:$0xf]
      %v466 = vld [vmem:[%s398 + $0x34] sm:$0xf]
      %v467 = vld [vmem:[%s398 + $0x38] sm:$0xf]
      %v468 = vld [vmem:[%s398 + $0x3c] sm:$0xf]
      %v469 = vld [vmem:[%s398 + $0x40] sm:$0xf]
      %v470 = vld [vmem:[%s398 + $0x44] sm:$0xf]
      %v471 = vld [vmem:[%s398 + $0x48] sm:$0xf]
      %v472 = vld [vmem:[%s398 + $0x4c] sm:$0xf]
      %v473 = vld [vmem:[%s398 + $0x50] sm:$0xf]
      %v474 = vld [vmem:[%s398 + $0x54] sm:$0xf]
      %v475 = vld [vmem:[%s398 + $0x58] sm:$0xf]
      %v476 = vld [vmem:[%s398 + $0x5c] sm:$0xf]
      %v477 = vld [vmem:[%s398 + $0x60] sm:$0xf]
      %v478 = vld [vmem:[%s398 + $0x64] sm:$0xf]
      %v479 = vld [vmem:[%s398 + $0x68] sm:$0xf]
      %v480 = vld [vmem:[%s398 + $0x6c] sm:$0xf]
      %v481 = vld [vmem:[%s398 + $0x70] sm:$0xf]
      %v482 = vld [vmem:[%s398 + $0x74] sm:$0xf]
      %v483 = vld [vmem:[%s398 + $0x78] sm:$0xf]
      %v484 = vld [vmem:[%s398 + $0x7c] sm:$0xf]
      %v486 = vunpack.c.l.b16 %v452
      %v487 = vunpack.c.h.b16 %v452
      %v488 = vpack.c.b16 %v486, %v486
      %v489 = vpack.c.b16 %v487, %v487
      %v524 = vunpack.c.l.b16 %v453
      %v525 = vunpack.c.l.b16 %v454
      %v526 = vunpack.c.l.b16 %v455
      %v527 = vunpack.c.l.b16 %v456
      %v528 = vunpack.c.l.b16 %v457
      %v529 = vunpack.c.l.b16 %v458
      %v530 = vunpack.c.l.b16 %v459
      %v531 = vunpack.c.l.b16 %v460
      %v532 = vunpack.c.l.b16 %v461
      %v533 = vunpack.c.l.b16 %v462
      %v534 = vunpack.c.l.b16 %v463
      %v535 = vunpack.c.l.b16 %v464
      %v536 = vunpack.c.l.b16 %v465
      %v537 = vunpack.c.l.b16 %v466
      %v538 = vunpack.c.l.b16 %v467
      %v539 = vunpack.c.l.b16 %v468
      %v540 = vunpack.c.l.b16 %v469
      %v541 = vunpack.c.l.b16 %v470
      %v542 = vunpack.c.l.b16 %v471
      %v543 = vunpack.c.l.b16 %v472
      %v544 = vunpack.c.l.b16 %v473
      %v545 = vunpack.c.l.b16 %v474
      %v546 = vunpack.c.l.b16 %v475
      %v547 = vunpack.c.l.b16 %v476
      %v548 = vunpack.c.l.b16 %v477
      %v549 = vunpack.c.l.b16 %v478
      %v550 = vunpack.c.l.b16 %v479
      %v551 = vunpack.c.l.b16 %v480
      %v552 = vunpack.c.l.b16 %v481
      %v553 = vunpack.c.l.b16 %v482
      %v554 = vunpack.c.l.b16 %v483
      %v555 = vunpack.c.l.b16 %v484
      %v556 = vpack.c.b16 %v525, %v524
      %v557 = vpack.c.b16 %v527, %v526
      %v558 = vpack.c.b16 %v529, %v528
      %v559 = vpack.c.b16 %v531, %v530
      %v560 = vpack.c.b16 %v533, %v532
      %v561 = vpack.c.b16 %v535, %v534
      %v562 = vpack.c.b16 %v537, %v536
      %v563 = vpack.c.b16 %v539, %v538
      %v564 = vpack.c.b16 %v541, %v540
      %v565 = vpack.c.b16 %v543, %v542
      %v566 = vpack.c.b16 %v545, %v544
      %v567 = vpack.c.b16 %v547, %v546
      %v568 = vpack.c.b16 %v549, %v548
      %v569 = vpack.c.b16 %v551, %v550
      %v570 = vpack.c.b16 %v553, %v552
      %v571 = vpack.c.b16 %v555, %v554
      %588 = vmatprep.subr.bf16.mxu0 0
      %589 = vmatpush1.bf16.msra.mxu0 %v556
      %590 = vmatprep.subr.bf16.mxu0 0
      %591 = vmatpush1.bf16.msra.mxu0 %v557
      %592 = vmatprep.subr.bf16.mxu0 0
      %593 = vmatpush1.bf16.msra.mxu0 %v558
      %594 = vmatprep.subr.bf16.mxu0 0
      %595 = vmatpush1.bf16.msra.mxu0 %v559
      %596 = vmatprep.subr.bf16.mxu0 0
      %597 = vmatpush1.bf16.msra.mxu0 %v560
      %598 = vmatprep.subr.bf16.mxu0 0
      %599 = vmatpush1.bf16.msra.mxu0 %v561
      %600 = vmatprep.subr.bf16.mxu0 0
      %601 = vmatpush1.bf16.msra.mxu0 %v562
      %602 = vmatprep.subr.bf16.mxu0 0
      %603 = vmatpush1.bf16.msra.mxu0 %v563
      %604 = vmatprep.subr.bf16.mxu0 0
      %605 = vmatpush1.bf16.msra.mxu0 %v564
      %606 = vmatprep.subr.bf16.mxu0 0
      %607 = vmatpush1.bf16.msra.mxu0 %v565
      %608 = vmatprep.subr.bf16.mxu0 0
      %609 = vmatpush1.bf16.msra.mxu0 %v566
      %610 = vmatprep.subr.bf16.mxu0 0
      %611 = vmatpush1.bf16.msra.mxu0 %v567
      %612 = vmatprep.subr.bf16.mxu0 0
      %613 = vmatpush1.bf16.msra.mxu0 %v568
      %614 = vmatprep.subr.bf16.mxu0 0
      %615 = vmatpush1.bf16.msra.mxu0 %v569
      %616 = vmatprep.subr.bf16.mxu0 0
      %617 = vmatpush1.bf16.msra.mxu0 %v570
      %618 = vmatprep.subr.bf16.mxu0 0
      %619 = vmatpush1.bf16.msra.mxu0 %v571
      %620 = vmatprep.mubr.bf16.mxu0 %v489
      %621 = vmatmul.mubr.bf16.gmra.mrb[0].mxu0 %v488
      %v622 = vpop.f32.mrb[0].mxu0
      %v623 = vadd.f32 0.0, %v622
      %v624 = vpop.f32.mrb[0].mxu0
      %v625 = vpop.f32.mrb[0].mxu0
      %v626 = vpop.f32.mrb[0].mxu0
      %627 = vdwg.mxu0
      %v629 = vunpack.c.l.b16 %v419
      %v630 = vunpack.c.h.b16 %v419
      %v631 = vpack.c.b16 %v629, %v629
      %v632 = vpack.c.b16 %v630, %v630
      %v667 = vunpack.c.l.b16 %v420
      %v668 = vunpack.c.l.b16 %v421
      %v669 = vunpack.c.l.b16 %v422
      %v670 = vunpack.c.l.b16 %v423
      %v671 = vunpack.c.l.b16 %v424
      %v672 = vunpack.c.l.b16 %v425
      %v673 = vunpack.c.l.b16 %v426
      %v674 = vunpack.c.l.b16 %v427
      %v675 = vunpack.c.l.b16 %v428
      %v676 = vunpack.c.l.b16 %v429
      %v677 = vunpack.c.l.b16 %v430
      %v678 = vunpack.c.l.b16 %v431
      %v679 = vunpack.c.l.b16 %v432
      %v680 = vunpack.c.l.b16 %v433
      %v681 = vunpack.c.l.b16 %v434
      %v682 = vunpack.c.l.b16 %v435
      %v683 = vunpack.c.l.b16 %v436
      %v684 = vunpack.c.l.b16 %v437
      %v685 = vunpack.c.l.b16 %v438
      %v686 = vunpack.c.l.b16 %v439
      %v687 = vunpack.c.l.b16 %v440
      %v688 = vunpack.c.l.b16 %v441
      %v689 = vunpack.c.l.b16 %v442
      %v690 = vunpack.c.l.b16 %v443
      %v691 = vunpack.c.l.b16 %v444
      %v692 = vunpack.c.l.b16 %v445
      %v693 = vunpack.c.l.b16 %v446
      %v694 = vunpack.c.l.b16 %v447
      %v695 = vunpack.c.l.b16 %v448
      %v696 = vunpack.c.l.b16 %v449
      %v697 = vunpack.c.l.b16 %v450
      %v698 = vunpack.c.l.b16 %v451
      %v699 = vpack.c.b16 %v668, %v667
      %v700 = vpack.c.b16 %v670, %v669
      %v701 = vpack.c.b16 %v672, %v671
      %v702 = vpack.c.b16 %v674, %v673
      %v703 = vpack.c.b16 %v676, %v675
      %v704 = vpack.c.b16 %v678, %v677
      %v705 = vpack.c.b16 %v680, %v679
      %v706 = vpack.c.b16 %v682, %v681
      %v707 = vpack.c.b16 %v684, %v683
      %v708 = vpack.c.b16 %v686, %v685
      %v709 = vpack.c.b16 %v688, %v687
      %v710 = vpack.c.b16 %v690, %v689
      %v711 = vpack.c.b16 %v692, %v691
      %v712 = vpack.c.b16 %v694, %v693
      %v713 = vpack.c.b16 %v696, %v695
      %v714 = vpack.c.b16 %v698, %v697
      %731 = vmatprep.subr.bf16.mxu0 0
      %732 = vmatpush1.bf16.msra.mxu0 %v699
      %733 = vmatprep.subr.bf16.mxu0 0
      %734 = vmatpush1.bf16.msra.mxu0 %v700
      %735 = vmatprep.subr.bf16.mxu0 0
      %736 = vmatpush1.bf16.msra.mxu0 %v701
      %737 = vmatprep.subr.bf16.mxu0 0
      %738 = vmatpush1.bf16.msra.mxu0 %v702
      %739 = vmatprep.subr.bf16.mxu0 0
      %740 = vmatpush1.bf16.msra.mxu0 %v703
      %741 = vmatprep.subr.bf16.mxu0 0
      %742 = vmatpush1.bf16.msra.mxu0 %v704
      %743 = vmatprep.subr.bf16.mxu0 0
      %744 = vmatpush1.bf16.msra.mxu0 %v705
      %745 = vmatprep.subr.bf16.mxu0 0
      %746 = vmatpush1.bf16.msra.mxu0 %v706
      %747 = vmatprep.subr.bf16.mxu0 0
      %748 = vmatpush1.bf16.msra.mxu0 %v707
      %749 = vmatprep.subr.bf16.mxu0 0
      %750 = vmatpush1.bf16.msra.mxu0 %v708
      %751 = vmatprep.subr.bf16.mxu0 0
      %752 = vmatpush1.bf16.msra.mxu0 %v709
      %753 = vmatprep.subr.bf16.mxu0 0
      %754 = vmatpush1.bf16.msra.mxu0 %v710
      %755 = vmatprep.subr.bf16.mxu0 0
      %756 = vmatpush1.bf16.msra.mxu0 %v711
      %757 = vmatprep.subr.bf16.mxu0 0
      %758 = vmatpush1.bf16.msra.mxu0 %v712
      %759 = vmatprep.subr.bf16.mxu0 0
      %760 = vmatpush1.bf16.msra.mxu0 %v713
      %761 = vmatprep.subr.bf16.mxu0 0
      %762 = vmatpush1.bf16.msra.mxu0 %v714
      %763 = vmatprep.mubr.bf16.mxu0 %v632
      %764 = vmatmul.mubr.bf16.gmra.mrb[0].mxu0 %v631
      %v765 = vpop.f32.mrb[0].mxu0
      %v766 = vadd.f32 %v623, %v765
      %v767 = vpop.f32.mrb[0].mxu0
      %v768 = vpop.f32.mrb[0].mxu0
      %v769 = vpop.f32.mrb[0].mxu0
      %770 = vdwg.mxu0
      %v771 = vld [vmem:[%s4] sm:$0x1]
      %v773 = vlaneseq
      %v774 = vshrl.u32 %v773, 7
      %v775 = vsub.s32 0, %v774
      %v776 = vrot.slane %v771, %v775
      %v778 = vadd.f32 %v766, %v776
      %v779 = vpack.c.bf16 %v778, %v778
      %vm780 = vcmask 257024
      %781 = vst.msk [vmem:[%s405] sm:$0xf] %vm780, %v779
      %s782 = smul.u32 %s24, 8
      %v783 = vlaneseq
      %v784 = vshrl.u32 %v783, 7
      %v785 = vstv %s782
      %v786 = vadd.s32 %v785, %v784
      %vm787 = vcmp.lt.s32.totalorder %v786, 8
      %v788 = vsel %vm787, %v778, 0.0
      %vm789 = vcmask 261120
      %v790 = vsel %vm789, %v788, 0.0
      %v791 = vrot.slane %v790, 4
      %v792 = vadd.f32 %v790, %v791
      %v793 = vrot.slane %v792, 2
      %v794 = vadd.f32 %v792, %v793
      %v795 = vrot.slane %v794, 1
      %v796 = vadd.f32 %v794, %v795
      %vm797 = vcmask 253952
      %798 = vst.msk [vmem:[%s411] sm:$0x1] %vm797, %v796
      %v799 = vmul.f32 %v788, %v788
      %v800 = vsel %vm789, %v799, 0.0
      %v801 = vrot.slane %v800, 4
      %v802 = vadd.f32 %v800, %v801
      %v803 = vrot.slane %v802, 2
      %v804 = vadd.f32 %v802, %v803
      %v805 = vrot.slane %v804, 1
      %v806 = vadd.f32 %v804, %v805
      %807 = vst.msk [vmem:[%s417] sm:$0x1] %vm797, %v806
      %p808 = scmp.lt.s32.totalorder %s23, 3
      %s809 = scalar_select %p808, %s23, 3
      %p810 = scmp.lt.s32.totalorder %s24, 0
      %s811 = scalar_select %p810, %s24, 0
      %s812 = sadd.s32 %s811, %s809
      %s813 = smul.addr %s812, 4
      %s814 = scalar_lea.vmem %s5, %s813
      %p815 = scmp.lt.s32.totalorder %s23, 3
      %s816 = scalar_select %p815, %s23, 3
      %p817 = scmp.lt.s32.totalorder %s24, 0
      %s818 = scalar_select %p817, %s24, 0
      %s819 = sadd.s32 %s818, %s816
      %s820 = scalar_lea.vmem %s6, %s819
      %p821 = scmp.lt.s32.totalorder %s23, 3
      %s822 = scalar_select %p821, %s23, 3
      %p823 = scmp.lt.s32.totalorder %s24, 0
      %s824 = scalar_select %p823, %s24, 0
      %s825 = sadd.s32 %s824, %s822
      %s826 = scalar_lea.vmem %s7, %s825
      // Predicated region
      $region41: #{_lambda_.27} parent=39 // pred_check
        %p827 = pneg %p180
      $region42: #{_lambda_.27} parent=39 // pred_check_branch
        %829 = sbr.rel (%p827) target = $region44
      $region43: #{_lambda_.27} parent=39 // pred_region
        _
      $region44: #{_lambda_.27} parent=39 // pred_fallthru
        _
      // Predicated region
      $region45: #{_lambda_.27} parent=39 // pred_check
        %p830 = pneg %p208
      $region46: #{_lambda_.27} parent=39 // pred_check_branch
        %832 = sbr.rel (%p830) target = $region48
      $region47: #{_lambda_.27} parent=39 // pred_region
        _
      $region48: #{_lambda_.27} parent=39 // pred_fallthru
        _
      // Predicated region
      $region49: #{_lambda_.27} parent=39 // pred_check
        %p833 = pneg %p236
      $region50: #{_lambda_.27} parent=39 // pred_check_branch
        %835 = sbr.rel (%p833) target = $region52
      $region51: #{_lambda_.27} parent=39 // pred_region
        _
      $region52: #{_lambda_.27} parent=39 // pred_fallthru
        _
    $region40: #{_lambda_.27} parent=5 // pred_fallthru
      _
    %p836 = scmp.le.s32.totalorder 2, %s14
    // Predicated region
    $region53: #{_lambda_.27} parent=5 // pred_check
      %p837 = pneg %p836
    $region54: #{_lambda_.27} parent=5 // pred_check_branch
      %839 = sbr.rel (%p837) target = $region56
    $region55: #{_lambda_.27} parent=5 // pred_region
      %s840 = ssub.s32 %s14, 2
      // Predicated region
      $region57: #{_lambda_.27} parent=55 // pred_check
        %p841 = pneg %p186
      $region58: #{_lambda_.27} parent=55 // pred_check_branch
        %843 = sbr.rel (%p841) target = $region60
      $region59: #{_lambda_.27} parent=55 // pred_region
        %p844 = scmp.lt.s32.totalorder %s25, 3
        %s845 = scalar_select %p844, %s25, 3
        %p846 = scmp.lt.s32.totalorder %s26, 0
        %s847 = scalar_select %p846, %s26, 0
        %s848 = sadd.s32 %s847, %s845
        %s849 = smul.addr %s848, 4
        %s850 = scalar_lea.vmem %s5, %s849
      $region60: #{_lambda_.27} parent=55 // pred_fallthru
        _
      // Predicated region
      $region61: #{_lambda_.27} parent=55 // pred_check
        %p851 = pneg %p214
      $region62: #{_lambda_.27} parent=55 // pred_check_branch
        %853 = sbr.rel (%p851) target = $region64
      $region63: #{_lambda_.27} parent=55 // pred_region
        %p854 = scmp.lt.s32.totalorder %s25, 3
        %s855 = scalar_select %p854, %s25, 3
        %p856 = scmp.lt.s32.totalorder %s26, 0
        %s857 = scalar_select %p856, %s26, 0
        %s858 = sadd.s32 %s857, %s855
        %s859 = scalar_lea.vmem %s6, %s858
      $region64: #{_lambda_.27} parent=55 // pred_fallthru
        _
      // Predicated region
      $region65: #{_lambda_.27} parent=55 // pred_check
        %p860 = pneg %p242
      $region66: #{_lambda_.27} parent=55 // pred_check_branch
        %862 = sbr.rel (%p860) target = $region68
      $region67: #{_lambda_.27} parent=55 // pred_region
        %p863 = scmp.lt.s32.totalorder %s25, 3
        %s864 = scalar_select %p863, %s25, 3
        %p865 = scmp.lt.s32.totalorder %s26, 0
        %s866 = scalar_select %p865, %s26, 0
        %s867 = sadd.s32 %s866, %s864
        %s868 = scalar_lea.vmem %s7, %s867
      $region68: #{_lambda_.27} parent=55 // pred_fallthru
        _
    $region56: #{_lambda_.27} parent=5 // pred_fallthru
      _
  $region6: #{_lambda_.27} parent=0 // loop_footer
    %s18 = sadd.s32 1, %s14
  $region7: #{_lambda_.27} parent=0 // loop_footer_branch
    %13 = sbr.rel target = $region3
  $region8: #{_lambda_.27} parent=0 // loop_exit
    _

// kernel: _lambda_.30
$region0: #{_lambda_.30}
  #allocation0 [shape = 'u32[]', space=smem, size = 0x4, offset = 0x4, fixed_abs, tag = 'smem constant byte address 0x4 - core index']
  #allocation1 [shape = 'u32[144,128]{1,0:T(1,128)}', space=vmem, size = 0x12000, scoped, tag = 'internal scratch']
  %s0 = inlined_call_operand.vmem [shape: bf16[128,16], index: 0, kind: input, shape index: {}]
  %s1 = inlined_call_operand.vmem [shape: f32[1,16], index: 1, kind: input, shape index: {}]
  %s2 = inlined_call_operand.vmem [shape: f32[1,16], index: 2, kind: input, shape index: {}]
  %s3 = inlined_call_operand.vmem [shape: bf16[128,16], index: 3, kind: output, shape index: {}]
  %s4 = sld [smem:[#allocation0]]
  $region22: #{_lambda_.30} parent=0
    _
  %s6 = ssub.s32 1, %s4
  %s7 = scalar_select 0, %s6, %s4
  // Predicated region
  $region2: #{_lambda_.30} parent=0 // pred_check
    _
  $region3: #{_lambda_.30} parent=0 // pred_check_branch
    %9 = sbr.rel (0) target = $region5
  $region4: #{_lambda_.30} parent=0 // pred_region
    _
  $region5: #{_lambda_.30} parent=0 // pred_fallthru
    _
  // Predicated region
  $region6: #{_lambda_.30} parent=0 // pred_check
    _
  $region7: #{_lambda_.30} parent=0 // pred_check_branch
    %11 = sbr.rel (0) target = $region9
  $region8: #{_lambda_.30} parent=0 // pred_region
    _
  $region9: #{_lambda_.30} parent=0 // pred_fallthru
    _
  // Predicated region
  $region10: #{_lambda_.30} parent=0 // pred_check
    _
  $region11: #{_lambda_.30} parent=0 // pred_check_branch
    %13 = sbr.rel (0) target = $region13
  $region12: #{_lambda_.30} parent=0 // pred_region
    _
  $region13: #{_lambda_.30} parent=0 // pred_fallthru
    _
  %v14 = vld [vmem:[%s0] sm:$0xf]
  %v15 = vld [vmem:[%s0 + $0x4] sm:$0xf]
  %v16 = vld [vmem:[%s0 + $0x8] sm:$0xf]
  %v17 = vld [vmem:[%s0 + $0xc] sm:$0xf]
  %v18 = vld [vmem:[%s0 + $0x10] sm:$0xf]
  %v19 = vld [vmem:[%s0 + $0x14] sm:$0xf]
  %v20 = vld [vmem:[%s0 + $0x18] sm:$0xf]
  %v21 = vld [vmem:[%s0 + $0x1c] sm:$0xf]
  %v22 = vld [vmem:[%s0 + $0x20] sm:$0xf]
  %v23 = vld [vmem:[%s0 + $0x24] sm:$0xf]
  %v24 = vld [vmem:[%s0 + $0x28] sm:$0xf]
  %v25 = vld [vmem:[%s0 + $0x2c] sm:$0xf]
  %v26 = vld [vmem:[%s0 + $0x30] sm:$0xf]
  %v27 = vld [vmem:[%s0 + $0x34] sm:$0xf]
  %v28 = vld [vmem:[%s0 + $0x38] sm:$0xf]
  %v29 = vld [vmem:[%s0 + $0x3c] sm:$0xf]
  %v30 = vunpack.c.l.bf16 %v14
  %v31 = vunpack.c.l.bf16 %v15
  %v32 = vunpack.c.l.bf16 %v16
  %v33 = vunpack.c.l.bf16 %v17
  %v34 = vunpack.c.l.bf16 %v18
  %v35 = vunpack.c.l.bf16 %v19
  %v36 = vunpack.c.l.bf16 %v20
  %v37 = vunpack.c.l.bf16 %v21
  %v38 = vunpack.c.l.bf16 %v22
  %v39 = vunpack.c.l.bf16 %v23
  %v40 = vunpack.c.l.bf16 %v24
  %v41 = vunpack.c.l.bf16 %v25
  %v42 = vunpack.c.l.bf16 %v26
  %v43 = vunpack.c.l.bf16 %v27
  %v44 = vunpack.c.l.bf16 %v28
  %v45 = vunpack.c.l.bf16 %v29
  %v46 = vld [vmem:[%s1] sm:$0x1]
  %v48 = vlaneseq
  %v49 = vshrl.u32 %v48, 7
  %v50 = vsub.s32 0, %v49
  %v51 = vrot.slane %v46, %v50
  %v53 = vmul.f32 %v30, %v51
  %v54 = vmul.f32 %v31, %v51
  %v55 = vmul.f32 %v32, %v51
  %v56 = vmul.f32 %v33, %v51
  %v57 = vmul.f32 %v34, %v51
  %v58 = vmul.f32 %v35, %v51
  %v59 = vmul.f32 %v36, %v51
  %v60 = vmul.f32 %v37, %v51
  %v61 = vmul.f32 %v38, %v51
  %v62 = vmul.f32 %v39, %v51
  %v63 = vmul.f32 %v40, %v51
  %v64 = vmul.f32 %v41, %v51
  %v65 = vmul.f32 %v42, %v51
  %v66 = vmul.f32 %v43, %v51
  %v67 = vmul.f32 %v44, %v51
  %v68 = vmul.f32 %v45, %v51
  %v69 = vld [vmem:[%s2] sm:$0x1]
  %v71 = vlaneseq
  %v72 = vshrl.u32 %v71, 7
  %v73 = vsub.s32 0, %v72
  %v74 = vrot.slane %v69, %v73
  %v76 = vadd.f32 %v53, %v74
  %v77 = vadd.f32 %v54, %v74
  %v78 = vadd.f32 %v55, %v74
  %v79 = vadd.f32 %v56, %v74
  %v80 = vadd.f32 %v57, %v74
  %v81 = vadd.f32 %v58, %v74
  %v82 = vadd.f32 %v59, %v74
  %v83 = vadd.f32 %v60, %v74
  %v84 = vadd.f32 %v61, %v74
  %v85 = vadd.f32 %v62, %v74
  %v86 = vadd.f32 %v63, %v74
  %v87 = vadd.f32 %v64, %v74
  %v88 = vadd.f32 %v65, %v74
  %v89 = vadd.f32 %v66, %v74
  %v90 = vadd.f32 %v67, %v74
  %v91 = vadd.f32 %v68, %v74
  %v92 = vmax.f32 %v76, 0.0
  %v93 = vmax.f32 %v77, 0.0
  %v94 = vmax.f32 %v78, 0.0
  %v95 = vmax.f32 %v79, 0.0
  %v96 = vmax.f32 %v80, 0.0
  %v97 = vmax.f32 %v81, 0.0
  %v98 = vmax.f32 %v82, 0.0
  %v99 = vmax.f32 %v83, 0.0
  %v100 = vmax.f32 %v84, 0.0
  %v101 = vmax.f32 %v85, 0.0
  %v102 = vmax.f32 %v86, 0.0
  %v103 = vmax.f32 %v87, 0.0
  %v104 = vmax.f32 %v88, 0.0
  %v105 = vmax.f32 %v89, 0.0
  %v106 = vmax.f32 %v90, 0.0
  %v107 = vmax.f32 %v91, 0.0
  %v108 = vpack.c.bf16 %v93, %v92
  %v109 = vpack.c.bf16 %v95, %v94
  %v110 = vpack.c.bf16 %v97, %v96
  %v111 = vpack.c.bf16 %v99, %v98
  %v112 = vpack.c.bf16 %v101, %v100
  %v113 = vpack.c.bf16 %v103, %v102
  %v114 = vpack.c.bf16 %v105, %v104
  %v115 = vpack.c.bf16 %v107, %v106
  %v124 = vunpack.c.l.b16 %v108
  %v125 = vunpack.c.h.b16 %v108
  %v126 = vunpack.c.l.b16 %v109
  %v127 = vunpack.c.h.b16 %v109
  %v128 = vunpack.c.l.b16 %v110
  %v129 = vunpack.c.h.b16 %v110
  %v130 = vunpack.c.l.b16 %v111
  %v131 = vunpack.c.h.b16 %v111
  %v132 = vunpack.c.l.b16 %v112
  %v133 = vunpack.c.h.b16 %v112
  %v134 = vunpack.c.l.b16 %v113
  %v135 = vunpack.c.h.b16 %v113
  %v136 = vunpack.c.l.b16 %v114
  %v137 = vunpack.c.h.b16 %v114
  %v138 = vunpack.c.l.b16 %v115
  %v139 = vunpack.c.h.b16 %v115
  %v140 = vpack.c.b16 %v124, %v124
  %v141 = vpack.c.b16 %v125, %v125
  %v142 = vpack.c.b16 %v126, %v126
  %v143 = vpack.c.b16 %v127, %v127
  %v144 = vpack.c.b16 %v128, %v128
  %v145 = vpack.c.b16 %v129, %v129
  %v146 = vpack.c.b16 %v130, %v130
  %v147 = vpack.c.b16 %v131, %v131
  %v148 = vpack.c.b16 %v132, %v132
  %v149 = vpack.c.b16 %v133, %v133
  %v150 = vpack.c.b16 %v134, %v134
  %v151 = vpack.c.b16 %v135, %v135
  %v152 = vpack.c.b16 %v136, %v136
  %v153 = vpack.c.b16 %v137, %v137
  %v154 = vpack.c.b16 %v138, %v138
  %v155 = vpack.c.b16 %v139, %v139
  %vm172 = vcmask 125952
  %173 = vst.msk [vmem:[%s3] sm:$0xf] %vm172, %v140
  %174 = vst.msk [vmem:[%s3 + $0x4] sm:$0xf] %vm172, %v141
  %175 = vst.msk [vmem:[%s3 + $0x8] sm:$0xf] %vm172, %v142
  %176 = vst.msk [vmem:[%s3 + $0xc] sm:$0xf] %vm172, %v143
  %177 = vst.msk [vmem:[%s3 + $0x10] sm:$0xf] %vm172, %v144
  %178 = vst.msk [vmem:[%s3 + $0x14] sm:$0xf] %vm172, %v145
  %179 = vst.msk [vmem:[%s3 + $0x18] sm:$0xf] %vm172, %v146
  %180 = vst.msk [vmem:[%s3 + $0x1c] sm:$0xf] %vm172, %v147
  %181 = vst.msk [vmem:[%s3 + $0x20] sm:$0xf] %vm172, %v148
  %182 = vst.msk [vmem:[%s3 + $0x24] sm:$0xf] %vm172, %v149
  %183 = vst.msk [vmem:[%s3 + $0x28] sm:$0xf] %vm172, %v150
  %184 = vst.msk [vmem:[%s3 + $0x2c] sm:$0xf] %vm172, %v151
  %185 = vst.msk [vmem:[%s3 + $0x30] sm:$0xf] %vm172, %v152
  %186 = vst.msk [vmem:[%s3 + $0x34] sm:$0xf] %vm172, %v153
  %187 = vst.msk [vmem:[%s3 + $0x38] sm:$0xf] %vm172, %v154
  %188 = vst.msk [vmem:[%s3 + $0x3c] sm:$0xf] %vm172, %v155
  // Predicated region
  $region14: #{_lambda_.30} parent=0 // pred_check
    _
  $region15: #{_lambda_.30} parent=0 // pred_check_branch
    %190 = sbr.rel (0) target = $region17
  $region16: #{_lambda_.30} parent=0 // pred_region
    _
  $region17: #{_lambda_.30} parent=0 // pred_fallthru
    _
  // Predicated region
  $region18: #{_lambda_.30} parent=0 // pred_check
    _
  $region19: #{_lambda_.30} parent=0 // pred_check_branch
    %192 = sbr.rel (0) target = $region21
  $region20: #{_lambda_.30} parent=0 // pred_region
    _
  $region21: #{_lambda_.30} parent=0 // pred_fallthru
    _

// kernel: _lambda_.29
$region0: #{_lambda_.29}
  #allocation0 [shape = 'u32[]', space=smem, size = 0x4, offset = 0x4, fixed_abs, tag = 'smem constant byte address 0x4 - core index']
  #allocation1 [shape = 'u32[144,128]{1,0:T(1,128)}', space=vmem, size = 0x12000, scoped, tag = 'internal scratch']
  %s0 = inlined_call_operand.vmem [shape: bf16[4,32,128], index: 0, kind: input, shape index: {}]
  %s1 = inlined_call_operand.vmem [shape: bf16[4,32,128], index: 1, kind: input, shape index: {}]
  %s2 = inlined_call_operand.vmem [shape: bf16[4,128,16], index: 2, kind: input, shape index: {}]
  %s3 = inlined_call_operand.vmem [shape: bf16[4,128,16], index: 3, kind: input, shape index: {}]
  %s4 = inlined_call_operand.vmem [shape: f32[1,1,16], index: 4, kind: input, shape index: {}]
  %s5 = inlined_call_operand.vmem [shape: bf16[4,32,16], index: 5, kind: output, shape index: {0}]
  %s6 = inlined_call_operand.vmem [shape: f32[4,1,1,16], index: 6, kind: output, shape index: {1}]
  %s7 = inlined_call_operand.vmem [shape: f32[4,1,1,16], index: 7, kind: output, shape index: {2}]
  %8 = xla_tuple %s5, %s6, %s7
  %s9 = sld [smem:[#allocation0]]
  $region69: #{_lambda_.29} parent=0
    _
  %s11 = ssub.s32 1, %s9
  %s12 = scalar_select 0, %s11, %s9
  loop: start=0, step=1, limit=6
  $region2: #{_lambda_.29} parent=0 // loop_pre_header
    _
  $region3: #{_lambda_.29} parent=0 // loop_header
    %s14 = sphi 0, %s18
    %p15 = scmp.ge.s32.totalorder %s14, 6
    %s21 = sphi 0, %s33
    %s22 = sphi 0, %s29
    %s23 = sphi 0, %s21
    %s24 = sphi 0, %s22
    %s25 = sphi 0, %s23
    %s26 = sphi 0, %s24
    %s38 = sphi 0, %s40
    %s41 = sphi 0, %s38
    %s42 = sphi 0, %s41
    %s58 = sphi 0, %s42
    %s66 = sphi 0, %s68
    %s69 = sphi 0, %s66
    %s70 = sphi 0, %s69
    %s86 = sphi 0, %s70
    %s92 = sphi 0, %s94
    %s95 = sphi 0, %s92
    %s96 = sphi 0, %s95
    %s112 = sphi 0, %s96
    %s118 = sphi 0, %s120
    %s121 = sphi 0, %s118
    %s122 = sphi 0, %s121
    %s138 = sphi 0, %s122
    %s142 = sphi 0, %s142
    %s144 = sphi 0, %s142
    %s145 = sphi 0, %s144
    %s159 = sphi 0, %s145
    %s167 = sphi 0, %s169
    %s170 = sphi 0, %s167
    %s171 = sphi 0, %s170
    %s187 = sphi 0, %s171
    %s195 = sphi 0, %s197
    %s198 = sphi 0, %s195
    %s199 = sphi 0, %s198
    %s215 = sphi 0, %s199
    %s223 = sphi 0, %s225
    %s226 = sphi 0, %s223
    %s227 = sphi 0, %s226
    %s243 = sphi 0, %s227
  $region4: #{_lambda_.29} parent=0 // loop_header_branch
    %17 = sbr.rel (%p15) target = $region8
  $region5: #{_lambda_.29} parent=0 // loop_body
    %s19 = ssub.s32 %s14, 1
    %s20 = ssub.s32 %s14, 2
    %s27 = sadd.s32 1, %s22
    %p28 = scmp.ge.s32.totalorder %s27, 1
    %s29 = scalar_select %p28, 0, %s27
    %s30 = sadd.s32 1, %s21
    %s31 = scalar_select %p28, %s30, %s21
    %p32 = scmp.ge.s32.totalorder %s31, 4
    %s33 = scalar_select %p32, 0, %s31
    %s34 = ssub.s32 %s21, %s33
    %s35 = ssub.s32 %s22, %s29
    %s36 = sor.u32 %s34, %s35
    %p37 = scmp.eq.s32.totalorder %s36, 0
    %s39 = sadd.s32 %s38, 1
    %s40 = scalar_select %p37, %s38, %s39
    %p43 = pneg %p37
    %p44 = scmp.eq.s32.totalorder %s14, 3
    %p45 = por %p43, %p44
    %p46 = scmp.ne.s32.totalorder %s38, %s41
    %p47 = scmp.eq.s32.totalorder %s14, 0
    %p48 = por %p46, %p47
    %p49 = scmp.ne.s32.totalorder %s38, %s41
    %p50 = scmp.eq.s32.totalorder %s19, 3
    %p51 = por %p49, %p50
    %p52 = scmp.ne.s32.totalorder %s41, %s42
    %p53 = scmp.eq.s32.totalorder %s19, 0
    %p54 = por %p52, %p53
    %p55 = scmp.ne.s32.totalorder %s41, %s42
    %p56 = scmp.eq.s32.totalorder %s20, 3
    %p57 = por %p55, %p56
    %p59 = scmp.ne.s32.totalorder %s42, %s58
    %p60 = scmp.eq.s32.totalorder %s20, 0
    %p61 = por %p59, %p60
    %s62 = ssub.s32 %s21, %s33
    %s63 = ssub.s32 %s22, %s29
    %s64 = sor.u32 %s62, %s63
    %p65 = scmp.eq.s32.totalorder %s64, 0
    %s67 = sadd.s32 %s66, 1
    %s68 = scalar_select %p65, %s66, %s67
    %p71 = pneg %p65
    %p72 = scmp.eq.s32.totalorder %s14, 3
    %p73 = por %p71, %p72
    %p74 = scmp.ne.s32.totalorder %s66, %s69
    %p75 = scmp.eq.s32.totalorder %s14, 0
    %p76 = por %p74, %p75
    %p77 = scmp.ne.s32.totalorder %s66, %s69
    %p78 = scmp.eq.s32.totalorder %s19, 3
    %p79 = por %p77, %p78
    %p80 = scmp.ne.s32.totalorder %s69, %s70
    %p81 = scmp.eq.s32.totalorder %s19, 0
    %p82 = por %p80, %p81
    %p83 = scmp.ne.s32.totalorder %s69, %s70
    %p84 = scmp.eq.s32.totalorder %s20, 3
    %p85 = por %p83, %p84
    %p87 = scmp.ne.s32.totalorder %s70, %s86
    %p88 = scmp.eq.s32.totalorder %s20, 0
    %p89 = por %p87, %p88
    %s90 = ssub.s32 %s21, %s33
    %p91 = scmp.eq.s32.totalorder %s90, 0
    %s93 = sadd.s32 %s92, 1
    %s94 = scalar_select %p91, %s92, %s93
    %p97 = pneg %p91
    %p98 = scmp.eq.s32.totalorder %s14, 3
    %p99 = por %p97, %p98
    %p100 = scmp.ne.s32.totalorder %s92, %s95
    %p101 = scmp.eq.s32.totalorder %s14, 0
    %p102 = por %p100, %p101
    %p103 = scmp.ne.s32.totalorder %s92, %s95
    %p104 = scmp.eq.s32.totalorder %s19, 3
    %p105 = por %p103, %p104
    %p106 = scmp.ne.s32.totalorder %s95, %s96
    %p107 = scmp.eq.s32.totalorder %s19, 0
    %p108 = por %p106, %p107
    %p109 = scmp.ne.s32.totalorder %s95, %s96
    %p110 = scmp.eq.s32.totalorder %s20, 3
    %p111 = por %p109, %p110
    %p113 = scmp.ne.s32.totalorder %s96, %s112
    %p114 = scmp.eq.s32.totalorder %s20, 0
    %p115 = por %p113, %p114
    %s116 = ssub.s32 %s21, %s33
    %p117 = scmp.eq.s32.totalorder %s116, 0
    %s119 = sadd.s32 %s118, 1
    %s120 = scalar_select %p117, %s118, %s119
    %p123 = pneg %p117
    %p124 = scmp.eq.s32.totalorder %s14, 3
    %p125 = por %p123, %p124
    %p126 = scmp.ne.s32.totalorder %s118, %s121
    %p127 = scmp.eq.s32.totalorder %s14, 0
    %p128 = por %p126, %p127
    %p129 = scmp.ne.s32.totalorder %s118, %s121
    %p130 = scmp.eq.s32.totalorder %s19, 3
    %p131 = por %p129, %p130
    %p132 = scmp.ne.s32.totalorder %s121, %s122
    %p133 = scmp.eq.s32.totalorder %s19, 0
    %p134 = por %p132, %p133
    %p135 = scmp.ne.s32.totalorder %s121, %s122
    %p136 = scmp.eq.s32.totalorder %s20, 3
    %p137 = por %p135, %p136
    %p139 = scmp.ne.s32.totalorder %s122, %s138
    %p140 = scmp.eq.s32.totalorder %s20, 0
    %p141 = por %p139, %p140
    %s143 = sadd.s32 %s142, 1
    %p146 = scmp.eq.s32.totalorder %s14, 3
    %p147 = scmp.ne.s32.totalorder %s142, %s144
    %p148 = scmp.eq.s32.totalorder %s14, 0
    %p149 = por %p147, %p148
    %p150 = scmp.ne.s32.totalorder %s142, %s144
    %p151 = scmp.eq.s32.totalorder %s19, 3
    %p152 = por %p150, %p151
    %p153 = scmp.ne.s32.totalorder %s144, %s145
    %p154 = scmp.eq.s32.totalorder %s19, 0
    %p155 = por %p153, %p154
    %p156 = scmp.ne.s32.totalorder %s144, %s145
    %p157 = scmp.eq.s32.totalorder %s20, 3
    %p158 = por %p156, %p157
    %p160 = scmp.ne.s32.totalorder %s145, %s159
    %p161 = scmp.eq.s32.totalorder %s20, 0
    %p162 = por %p160, %p161
    %s163 = ssub.s32 %s21, %s33
    %s164 = ssub.s32 %s22, %s29
    %s165 = sor.u32 %s163, %s164
    %p166 = scmp.eq.s32.totalorder %s165, 0
    %s168 = sadd.s32 %s167, 1
    %s169 = scalar_select %p166, %s167, %s168
    %p172 = pneg %p166
    %p173 = scmp.eq.s32.totalorder %s14, 3
    %p174 = por %p172, %p173
    %p175 = scmp.ne.s32.totalorder %s167, %s170
    %p176 = scmp.eq.s32.totalorder %s14, 0
    %p177 = por %p175, %p176
    %p178 = scmp.ne.s32.totalorder %s167, %s170
    %p179 = scmp.eq.s32.totalorder %s19, 3
    %p180 = por %p178, %p179
    %p181 = scmp.ne.s32.totalorder %s170, %s171
    %p182 = scmp.eq.s32.totalorder %s19, 0
    %p183 = por %p181, %p182
    %p184 = scmp.ne.s32.totalorder %s170, %s171
    %p185 = scmp.eq.s32.totalorder %s20, 3
    %p186 = por %p184, %p185
    %p188 = scmp.ne.s32.totalorder %s171, %s187
    %p189 = scmp.eq.s32.totalorder %s20, 0
    %p190 = por %p188, %p189
    %s191 = ssub.s32 %s21, %s33
    %s192 = ssub.s32 %s22, %s29
    %s193 = sor.u32 %s191, %s192
    %p194 = scmp.eq.s32.totalorder %s193, 0
    %s196 = sadd.s32 %s195, 1
    %s197 = scalar_select %p194, %s195, %s196
    %p200 = pneg %p194
    %p201 = scmp.eq.s32.totalorder %s14, 3
    %p202 = por %p200, %p201
    %p203 = scmp.ne.s32.totalorder %s195, %s198
    %p204 = scmp.eq.s32.totalorder %s14, 0
    %p205 = por %p203, %p204
    %p206 = scmp.ne.s32.totalorder %s195, %s198
    %p207 = scmp.eq.s32.totalorder %s19, 3
    %p208 = por %p206, %p207
    %p209 = scmp.ne.s32.totalorder %s198, %s199
    %p210 = scmp.eq.s32.totalorder %s19, 0
    %p211 = por %p209, %p210
    %p212 = scmp.ne.s32.totalorder %s198, %s199
    %p213 = scmp.eq.s32.totalorder %s20, 3
    %p214 = por %p212, %p213
    %p216 = scmp.ne.s32.totalorder %s199, %s215
    %p217 = scmp.eq.s32.totalorder %s20, 0
    %p218 = por %p216, %p217
    %s219 = ssub.s32 %s21, %s33
    %s220 = ssub.s32 %s22, %s29
    %s221 = sor.u32 %s219, %s220
    %p222 = scmp.eq.s32.totalorder %s221, 0
    %s224 = sadd.s32 %s223, 1
    %s225 = scalar_select %p222, %s223, %s224
    %p228 = pneg %p222
    %p229 = scmp.eq.s32.totalorder %s14, 3
    %p230 = por %p228, %p229
    %p231 = scmp.ne.s32.totalorder %s223, %s226
    %p232 = scmp.eq.s32.totalorder %s14, 0
    %p233 = por %p231, %p232
    %p234 = scmp.ne.s32.totalorder %s223, %s226
    %p235 = scmp.eq.s32.totalorder %s19, 3
    %p236 = por %p234, %p235
    %p237 = scmp.ne.s32.totalorder %s226, %s227
    %p238 = scmp.eq.s32.totalorder %s19, 0
    %p239 = por %p237, %p238
    %p240 = scmp.ne.s32.totalorder %s226, %s227
    %p241 = scmp.eq.s32.totalorder %s20, 3
    %p242 = por %p240, %p241
    %p244 = scmp.ne.s32.totalorder %s227, %s243
    %p245 = scmp.eq.s32.totalorder %s20, 0
    %p246 = por %p244, %p245
    %p247 = scmp.le.s32.totalorder 1, %s14
    %p248 = scmp.lt.s32.totalorder %s14, 5
    %p249 = pnand %p247, %p248
    %p250 = pneg %p249
    // Predicated region
    $region9: #{_lambda_.29} parent=5 // pred_check
      _
    $region10: #{_lambda_.29} parent=5 // pred_check_branch
      %252 = sbr.rel (%p249) target = $region12
    $region11: #{_lambda_.29} parent=5 // pred_region
      %s253 = ssub.s32 %s14, 1
      // Predicated region
      $region13: #{_lambda_.29} parent=11 // pred_check
        %p254 = pneg %p155
      $region14: #{_lambda_.29} parent=11 // pred_check_branch
        %256 = sbr.rel (%p254) target = $region16
      $region15: #{_lambda_.29} parent=11 // pred_region
        _
      $region16: #{_lambda_.29} parent=11 // pred_fallthru
        _
    $region12: #{_lambda_.29} parent=5 // pred_fallthru
      _
    %p257 = scmp.lt.s32.totalorder %s14, 4
    // Predicated region
    $region17: #{_lambda_.29} parent=5 // pred_check
      %p258 = pneg %p257
    $region18: #{_lambda_.29} parent=5 // pred_check_branch
      %260 = sbr.rel (%p258) target = $region20
    $region19: #{_lambda_.29} parent=5 // pred_region
      // Predicated region
      $region21: #{_lambda_.29} parent=19 // pred_check
        %p261 = pneg %p48
      $region22: #{_lambda_.29} parent=19 // pred_check_branch
        %263 = sbr.rel (%p261) target = $region24
      $region23: #{_lambda_.29} parent=19 // pred_region
        %s264 = smul.u32 4, %s22
        %p265 = scmp.lt.s32.totalorder %s21, 3
        %s266 = scalar_select %p265, %s21, 3
        %p267 = scmp.lt.s32.totalorder %s264, 3
        %s268 = scalar_select %p267, %s264, 3
        %s269 = smul.addr %s266, 4
        %s270 = sadd.s32 %s268, %s269
        %s271 = smul.addr %s270, 4
        %s272 = scalar_lea.vmem %s0, %s271
        %s273 = smul.u32 4, %s22
      $region24: #{_lambda_.29} parent=19 // pred_fallthru
        _
      // Predicated region
      $region25: #{_lambda_.29} parent=19 // pred_check
        %p274 = pneg %p76
      $region26: #{_lambda_.29} parent=19 // pred_check_branch
        %276 = sbr.rel (%p274) target = $region28
      $region27: #{_lambda_.29} parent=19 // pred_region
        %s277 = smul.u32 4, %s22
        %p278 = scmp.lt.s32.totalorder %s21, 3
        %s279 = scalar_select %p278, %s21, 3
        %p280 = scmp.lt.s32.totalorder %s277, 3
        %s281 = scalar_select %p280, %s277, 3
        %s282 = smul.addr %s279, 4
        %s283 = sadd.s32 %s281, %s282
        %s284 = smul.addr %s283, 4
        %s285 = scalar_lea.vmem %s1, %s284
        %s286 = smul.u32 4, %s22
      $region28: #{_lambda_.29} parent=19 // pred_fallthru
        _
      // Predicated region
      $region29: #{_lambda_.29} parent=19 // pred_check
        %p287 = pneg %p102
      $region30: #{_lambda_.29} parent=19 // pred_check_branch
        %289 = sbr.rel (%p287) target = $region32
      $region31: #{_lambda_.29} parent=19 // pred_region
        %p290 = scmp.lt.s32.totalorder %s21, 3
        %s291 = scalar_select %p290, %s21, 3
        %s292 = smul.addr %s291, 16
        %s293 = smul.addr %s292, 4
        %s294 = scalar_lea.vmem %s2, %s293
      $region32: #{_lambda_.29} parent=19 // pred_fallthru
        _
      // Predicated region
      $region33: #{_lambda_.29} parent=19 // pred_check
        %p295 = pneg %p128
      $region34: #{_lambda_.29} parent=19 // pred_check_branch
        %297 = sbr.rel (%p295) target = $region36
      $region35: #{_lambda_.29} parent=19 // pred_region
        %p298 = scmp.lt.s32.totalorder %s21, 3
        %s299 = scalar_select %p298, %s21, 3
        %s300 = smul.addr %s299, 16
        %s301 = smul.addr %s300, 4
        %s302 = scalar_lea.vmem %s3, %s301
      $region36: #{_lambda_.29} parent=19 // pred_fallthru
        _
    $region20: #{_lambda_.29} parent=5 // pred_fallthru
      _
    %p303 = scmp.le.s32.totalorder 1, %s14
    %p304 = scmp.lt.s32.totalorder %s14, 5
    %p305 = pnand %p303, %p304
    %p306 = pneg %p305
    // Predicated region
    $region37: #{_lambda_.29} parent=5 // pred_check
      _
    $region38: #{_lambda_.29} parent=5 // pred_check_branch
      %308 = sbr.rel (%p305) target = $region40
    $region39: #{_lambda_.29} parent=5 // pred_region
      %s309 = ssub.s32 %s14, 1
      %s310 = smul.u32 4, %s24
      %p311 = scmp.lt.s32.totalorder %s23, 3
      %s312 = scalar_select %p311, %s23, 3
      %p313 = scmp.lt.s32.totalorder %s310, 3
      %s314 = scalar_select %p313, %s310, 3
      %s315 = smul.addr %s312, 4
      %s316 = sadd.s32 %s314, %s315
      %s317 = smul.addr %s316, 4
      %s318 = scalar_lea.vmem %s0, %s317
      %p319 = pneg %p54
      %p320 = pneg %p51
      %s321 = smul.u32 4, %s24
      %p322 = scmp.lt.s32.totalorder %s23, 3
      %s323 = scalar_select %p322, %s23, 3
      %p324 = scmp.lt.s32.totalorder %s321, 3
      %s325 = scalar_select %p324, %s321, 3
      %s326 = smul.addr %s323, 4
      %s327 = sadd.s32 %s325, %s326
      %s328 = smul.addr %s327, 4
      %s329 = scalar_lea.vmem %s1, %s328
      %p330 = pneg %p82
      %p331 = pneg %p79
      %p332 = scmp.lt.s32.totalorder %s23, 3
      %s333 = scalar_select %p332, %s23, 3
      %s334 = smul.addr %s333, 16
      %s335 = smul.addr %s334, 4
      %s336 = scalar_lea.vmem %s2, %s335
      %p337 = pneg %p108
      %p338 = pneg %p105
      %p339 = scmp.lt.s32.totalorder %s23, 3
      %s340 = scalar_select %p339, %s23, 3
      %s341 = smul.addr %s340, 16
      %s342 = smul.addr %s341, 4
      %s343 = scalar_lea.vmem %s3, %s342
      %p344 = pneg %p134
      %p345 = pneg %p131
      %p346 = pneg %p155
      %p347 = pneg %p152
      %p348 = pneg %p183
      %p349 = pneg %p180
      %s350 = smul.u32 4, %s24
      %p351 = scmp.lt.s32.totalorder %s23, 3
      %s352 = scalar_select %p351, %s23, 3
      %p353 = scmp.lt.s32.totalorder %s350, 3
      %s354 = scalar_select %p353, %s350, 3
      %s355 = smul.addr %s352, 4
      %s356 = sadd.s32 %s354, %s355
      %s357 = smul.addr %s356, 4
      %s358 = scalar_lea.vmem %s5, %s357
      %p359 = pneg %p211
      %p360 = pneg %p208
      %p361 = scmp.lt.s32.totalorder %s23, 3
      %s362 = scalar_select %p361, %s23, 3
      %p363 = scmp.lt.s32.totalorder %s24, 0
      %s364 = scalar_select %p363, %s24, 0
      %s365 = sadd.s32 %s364, %s362
      %s366 = scalar_lea.vmem %s6, %s365
      %p367 = pneg %p239
      %p368 = pneg %p236
      %p369 = scmp.lt.s32.totalorder %s23, 3
      %s370 = scalar_select %p369, %s23, 3
      %p371 = scmp.lt.s32.totalorder %s24, 0
      %s372 = scalar_select %p371, %s24, 0
      %s373 = sadd.s32 %s372, %s370
      %s374 = scalar_lea.vmem %s7, %s373
      %s375 = smul.u32 4, %s24
      %p376 = scmp.lt.s32.totalorder %s23, 3
      %s377 = scalar_select %p376, %s23, 3
      %p378 = scmp.lt.s32.totalorder %s375, 3
      %s379 = scalar_select %p378, %s375, 3
      %s380 = smul.addr %s377, 4
      %s381 = sadd.s32 %s379, %s380
      %s382 = smul.addr %s381, 4
      %s383 = scalar_lea.vmem %s0, %s382
      %s384 = smul.u32 4, %s24
      %s385 = smul.u32 4, %s24
      %p386 = scmp.lt.s32.totalorder %s23, 3
      %s387 = scalar_select %p386, %s23, 3
      %p388 = scmp.lt.s32.totalorder %s385, 3
      %s389 = scalar_select %p388, %s385, 3
      %s390 = smul.addr %s387, 4
      %s391 = sadd.s32 %s389, %s390
      %s392 = smul.addr %s391, 4
      %s393 = scalar_lea.vmem %s1, %s392
      %s394 = smul.u32 4, %s24
      %p395 = scmp.lt.s32.totalorder %s23, 3
      %s396 = scalar_select %p395, %s23, 3
      %s397 = smul.addr %s396, 16
      %s398 = smul.addr %s397, 4
      %s399 = scalar_lea.vmem %s2, %s398
      %p400 = scmp.lt.s32.totalorder %s23, 3
      %s401 = scalar_select %p400, %s23, 3
      %s402 = smul.addr %s401, 16
      %s403 = smul.addr %s402, 4
      %s404 = scalar_lea.vmem %s3, %s403
      %s405 = smul.u32 4, %s24
      %p406 = scmp.lt.s32.totalorder %s23, 3
      %s407 = scalar_select %p406, %s23, 3
      %p408 = scmp.lt.s32.totalorder %s405, 3
      %s409 = scalar_select %p408, %s405, 3
      %s410 = smul.addr %s407, 4
      %s411 = sadd.s32 %s409, %s410
      %s412 = smul.addr %s411, 4
      %s413 = scalar_lea.vmem %s5, %s412
      %s414 = smul.u32 4, %s24
      %p415 = scmp.lt.s32.totalorder %s23, 3
      %s416 = scalar_select %p415, %s23, 3
      %p417 = scmp.lt.s32.totalorder %s24, 0
      %s418 = scalar_select %p417, %s24, 0
      %s419 = sadd.s32 %s418, %s416
      %s420 = scalar_lea.vmem %s6, %s419
      %p421 = scmp.lt.s32.totalorder %s23, 3
      %s422 = scalar_select %p421, %s23, 3
      %p423 = scmp.lt.s32.totalorder %s24, 0
      %s424 = scalar_select %p423, %s24, 0
      %s425 = sadd.s32 %s424, %s422
      %s426 = scalar_lea.vmem %s7, %s425
      %v428 = vld [vmem:[%s383] sm:$0xf]
      %v429 = vld [vmem:[%s383 + $0x4] sm:$0xf]
      %v430 = vld [vmem:[%s383 + $0x8] sm:$0xf]
      %v431 = vld [vmem:[%s383 + $0xc] sm:$0xf]
      %v432 = vld [vmem:[%s399] sm:$0xf]
      %v433 = vld [vmem:[%s399 + $0x4] sm:$0xf]
      %v434 = vld [vmem:[%s399 + $0x8] sm:$0xf]
      %v435 = vld [vmem:[%s399 + $0xc] sm:$0xf]
      %v436 = vld [vmem:[%s399 + $0x10] sm:$0xf]
      %v437 = vld [vmem:[%s399 + $0x14] sm:$0xf]
      %v438 = vld [vmem:[%s399 + $0x18] sm:$0xf]
      %v439 = vld [vmem:[%s399 + $0x1c] sm:$0xf]
      %v440 = vld [vmem:[%s399 + $0x20] sm:$0xf]
      %v441 = vld [vmem:[%s399 + $0x24] sm:$0xf]
      %v442 = vld [vmem:[%s399 + $0x28] sm:$0xf]
      %v443 = vld [vmem:[%s399 + $0x2c] sm:$0xf]
      %v444 = vld [vmem:[%s399 + $0x30] sm:$0xf]
      %v445 = vld [vmem:[%s399 + $0x34] sm:$0xf]
      %v446 = vld [vmem:[%s399 + $0x38] sm:$0xf]
      %v447 = vld [vmem:[%s399 + $0x3c] sm:$0xf]
      %v448 = vld [vmem:[%s393] sm:$0xf]
      %v449 = vld [vmem:[%s393 + $0x4] sm:$0xf]
      %v450 = vld [vmem:[%s393 + $0x8] sm:$0xf]
      %v451 = vld [vmem:[%s393 + $0xc] sm:$0xf]
      %v452 = vld [vmem:[%s404] sm:$0xf]
      %v453 = vld [vmem:[%s404 + $0x4] sm:$0xf]
      %v454 = vld [vmem:[%s404 + $0x8] sm:$0xf]
      %v455 = vld [vmem:[%s404 + $0xc] sm:$0xf]
      %v456 = vld [vmem:[%s404 + $0x10] sm:$0xf]
      %v457 = vld [vmem:[%s404 + $0x14] sm:$0xf]
      %v458 = vld [vmem:[%s404 + $0x18] sm:$0xf]
      %v459 = vld [vmem:[%s404 + $0x1c] sm:$0xf]
      %v460 = vld [vmem:[%s404 + $0x20] sm:$0xf]
      %v461 = vld [vmem:[%s404 + $0x24] sm:$0xf]
      %v462 = vld [vmem:[%s404 + $0x28] sm:$0xf]
      %v463 = vld [vmem:[%s404 + $0x2c] sm:$0xf]
      %v464 = vld [vmem:[%s404 + $0x30] sm:$0xf]
      %v465 = vld [vmem:[%s404 + $0x34] sm:$0xf]
      %v466 = vld [vmem:[%s404 + $0x38] sm:$0xf]
      %v467 = vld [vmem:[%s404 + $0x3c] sm:$0xf]
      %v472 = vunpack.c.l.b16 %v448
      %v473 = vunpack.c.l.b16 %v449
      %v474 = vunpack.c.l.b16 %v450
      %v475 = vunpack.c.l.b16 %v451
      %v476 = vpack.c.b16 %v473, %v472
      %v477 = vpack.c.b16 %v475, %v474
      %v496 = vunpack.c.l.b16 %v452
      %v497 = vunpack.c.l.b16 %v453
      %v498 = vunpack.c.l.b16 %v454
      %v499 = vunpack.c.l.b16 %v455
      %v500 = vunpack.c.l.b16 %v456
      %v501 = vunpack.c.l.b16 %v457
      %v502 = vunpack.c.l.b16 %v458
      %v503 = vunpack.c.l.b16 %v459
      %v504 = vunpack.c.l.b16 %v460
      %v505 = vunpack.c.l.b16 %v461
      %v506 = vunpack.c.l.b16 %v462
      %v507 = vunpack.c.l.b16 %v463
      %v508 = vunpack.c.l.b16 %v464
      %v509 = vunpack.c.l.b16 %v465
      %v510 = vunpack.c.l.b16 %v466
      %v511 = vunpack.c.l.b16 %v467
      %v512 = vpack.c.b16 %v497, %v496
      %v513 = vpack.c.b16 %v499, %v498
      %v514 = vpack.c.b16 %v501, %v500
      %v515 = vpack.c.b16 %v503, %v502
      %v516 = vpack.c.b16 %v505, %v504
      %v517 = vpack.c.b16 %v507, %v506
      %v518 = vpack.c.b16 %v509, %v508
      %v519 = vpack.c.b16 %v511, %v510
      %528 = vmatprep.subr.bf16.mxu0 0
      %529 = vmatpush1.bf16.msra.mxu0 %v512
      %530 = vmatprep.subr.bf16.mxu0 0
      %531 = vmatpush1.bf16.msra.mxu0 %v513
      %532 = vmatprep.subr.bf16.mxu0 0
      %533 = vmatpush1.bf16.msra.mxu0 %v514
      %534 = vmatprep.subr.bf16.mxu0 0
      %535 = vmatpush1.bf16.msra.mxu0 %v515
      %536 = vmatprep.subr.bf16.mxu0 0
      %537 = vmatpush1.bf16.msra.mxu0 %v516
      %538 = vmatprep.subr.bf16.mxu0 0
      %539 = vmatpush1.bf16.msra.mxu0 %v517
      %540 = vmatprep.subr.bf16.mxu0 0
      %541 = vmatpush1.bf16.msra.mxu0 %v518
      %542 = vmatprep.subr.bf16.mxu0 0
      %543 = vmatpush1.bf16.msra.mxu0 %v519
      %544 = vmatprep.subr.bf16.mxu0 0
      %545 = vmatpush1.bf16.msra.mxu0 0
      %546 = vmatprep.subr.bf16.mxu0 0
      %547 = vmatpush1.bf16.msra.mxu0 0
      %548 = vmatprep.subr.bf16.mxu0 0
      %549 = vmatpush1.bf16.msra.mxu0 0
      %550 = vmatprep.subr.bf16.mxu0 0
      %551 = vmatpush1.bf16.msra.mxu0 0
      %552 = vmatprep.subr.bf16.mxu0 0
      %553 = vmatpush1.bf16.msra.mxu0 0
      %554 = vmatprep.subr.bf16.mxu0 0
      %555 = vmatpush1.bf16.msra.mxu0 0
      %556 = vmatprep.subr.bf16.mxu0 0
      %557 = vmatpush1.bf16.msra.mxu0 0
      %558 = vmatprep.subr.bf16.mxu0 0
      %559 = vmatpush1.bf16.msra.mxu0 0
      %560 = vmatprep.mubr.bf16.mxu0 0
      %561 = vmatmul.mubr.bf16.gmra.mrb[0].mxu0 %v476
      %v562 = vpop.f32.mrb[0].mxu0
      %v563 = vadd.f32 0.0, %v562
      %v564 = vpop.f32.mrb[0].mxu0
      %v565 = vpop.f32.mrb[0].mxu0
      %v566 = vadd.f32 0.0, %v565
      %v567 = vpop.f32.mrb[0].mxu0
      %568 = vmatprep.mubr.bf16.mxu0 0
      %569 = vmatmul.mubr.bf16.gmra.mrb[0].mxu0 %v477
      %v570 = vpop.f32.mrb[0].mxu0
      %v571 = vadd.f32 0.0, %v570
      %v572 = vpop.f32.mrb[0].mxu0
      %v573 = vpop.f32.mrb[0].mxu0
      %v574 = vadd.f32 0.0, %v573
      %v575 = vpop.f32.mrb[0].mxu0
      %576 = vdwg.mxu0
      %v581 = vunpack.c.l.b16 %v428
      %v582 = vunpack.c.l.b16 %v429
      %v583 = vunpack.c.l.b16 %v430
      %v584 = vunpack.c.l.b16 %v431
      %v585 = vpack.c.b16 %v582, %v581
      %v586 = vpack.c.b16 %v584, %v583
      %v605 = vunpack.c.l.b16 %v432
      %v606 = vunpack.c.l.b16 %v433
      %v607 = vunpack.c.l.b16 %v434
      %v608 = vunpack.c.l.b16 %v435
      %v609 = vunpack.c.l.b16 %v436
      %v610 = vunpack.c.l.b16 %v437
      %v611 = vunpack.c.l.b16 %v438
      %v612 = vunpack.c.l.b16 %v439
      %v613 = vunpack.c.l.b16 %v440
      %v614 = vunpack.c.l.b16 %v441
      %v615 = vunpack.c.l.b16 %v442
      %v616 = vunpack.c.l.b16 %v443
      %v617 = vunpack.c.l.b16 %v444
      %v618 = vunpack.c.l.b16 %v445
      %v619 = vunpack.c.l.b16 %v446
      %v620 = vunpack.c.l.b16 %v447
      %v621 = vpack.c.b16 %v606, %v605
      %v622 = vpack.c.b16 %v608, %v607
      %v623 = vpack.c.b16 %v610, %v609
      %v624 = vpack.c.b16 %v612, %v611
      %v625 = vpack.c.b16 %v614, %v613
      %v626 = vpack.c.b16 %v616, %v615
      %v627 = vpack.c.b16 %v618, %v617
      %v628 = vpack.c.b16 %v620, %v619
      %637 = vmatprep.subr.bf16.mxu0 0
      %638 = vmatpush1.bf16.msra.mxu0 %v621
      %639 = vmatprep.subr.bf16.mxu0 0
      %640 = vmatpush1.bf16.msra.mxu0 %v622
      %641 = vmatprep.subr.bf16.mxu0 0
      %642 = vmatpush1.bf16.msra.mxu0 %v623
      %643 = vmatprep.subr.bf16.mxu0 0
      %644 = vmatpush1.bf16.msra.mxu0 %v624
      %645 = vmatprep.subr.bf16.mxu0 0
      %646 = vmatpush1.bf16.msra.mxu0 %v625
      %647 = vmatprep.subr.bf16.mxu0 0
      %648 = vmatpush1.bf16.msra.mxu0 %v626
      %649 = vmatprep.subr.bf16.mxu0 0
      %650 = vmatpush1.bf16.msra.mxu0 %v627
      %651 = vmatprep.subr.bf16.mxu0 0
      %652 = vmatpush1.bf16.msra.mxu0 %v628
      %653 = vmatprep.subr.bf16.mxu0 0
      %654 = vmatpush1.bf16.msra.mxu0 0
      %655 = vmatprep.subr.bf16.mxu0 0
      %656 = vmatpush1.bf16.msra.mxu0 0
      %657 = vmatprep.subr.bf16.mxu0 0
      %658 = vmatpush1.bf16.msra.mxu0 0
      %659 = vmatprep.subr.bf16.mxu0 0
      %660 = vmatpush1.bf16.msra.mxu0 0
      %661 = vmatprep.subr.bf16.mxu0 0
      %662 = vmatpush1.bf16.msra.mxu0 0
      %663 = vmatprep.subr.bf16.mxu0 0
      %664 = vmatpush1.bf16.msra.mxu0 0
      %665 = vmatprep.subr.bf16.mxu0 0
      %666 = vmatpush1.bf16.msra.mxu0 0
      %667 = vmatprep.subr.bf16.mxu0 0
      %668 = vmatpush1.bf16.msra.mxu0 0
      %669 = vmatprep.mubr.bf16.mxu0 0
      %670 = vmatmul.mubr.bf16.gmra.mrb[0].mxu0 %v585
      %v671 = vpop.f32.mrb[0].mxu0
      %v672 = vadd.f32 %v563, %v671
      %v673 = vpop.f32.mrb[0].mxu0
      %v674 = vpop.f32.mrb[0].mxu0
      %v675 = vadd.f32 %v566, %v674
      %v676 = vpop.f32.mrb[0].mxu0
      %677 = vmatprep.mubr.bf16.mxu0 0
      %678 = vmatmul.mubr.bf16.gmra.mrb[0].mxu0 %v586
      %v679 = vpop.f32.mrb[0].mxu0
      %v680 = vadd.f32 %v571, %v679
      %v681 = vpop.f32.mrb[0].mxu0
      %v682 = vpop.f32.mrb[0].mxu0
      %v683 = vadd.f32 %v574, %v682
      %v684 = vpop.f32.mrb[0].mxu0
      %685 = vdwg.mxu0
      %v686 = vld [vmem:[%s4] sm:$0x1]
      %v688 = vlaneseq
      %v689 = vshrl.u32 %v688, 7
      %v690 = vsub.s32 0, %v689
      %v691 = vrot.slane %v686, %v690
      %v693 = vadd.f32 %v672, %v691
      %v694 = vadd.f32 %v675, %v691
      %v695 = vadd.f32 %v680, %v691
      %v696 = vadd.f32 %v683, %v691
      %v697 = vpack.c.bf16 %v694, %v693
      %v698 = vpack.c.bf16 %v696, %v695
      %v701 = vunpack.c.l.b16 %v697
      %v702 = vunpack.c.h.b16 %v697
      %v703 = vunpack.c.l.b16 %v698
      %v704 = vunpack.c.h.b16 %v698
      %v705 = vpack.c.b16 %v701, %v701
      %v706 = vpack.c.b16 %v702, %v702
      %v707 = vpack.c.b16 %v703, %v703
      %v708 = vpack.c.b16 %v704, %v704
      %vm713 = vcmask 125952
      %714 = vst.msk [vmem:[%s413] sm:$0xf] %vm713, %v705
      %715 = vst.msk [vmem:[%s413 + $0x4] sm:$0xf] %vm713, %v706
      %716 = vst.msk [vmem:[%s413 + $0x8] sm:$0xf] %vm713, %v707
      %717 = vst.msk [vmem:[%s413 + $0xc] sm:$0xf] %vm713, %v708
      %s718 = smul.u32 %s24, 32
      %v719 = vlaneseq
      %v720 = vshrl.u32 %v719, 7
      %v721 = vadd.s32 %v720, 8
      %v722 = vadd.s32 %v720, 16
      %v723 = vadd.s32 %v720, 24
      %v724 = vstv %s718
      %v725 = vadd.s32 %v724, %v720
      %v726 = vadd.s32 %v724, %v721
      %v727 = vadd.s32 %v724, %v722
      %v728 = vadd.s32 %v724, %v723
      %vm729 = vcmp.lt.s32.totalorder %v725, 32
      %vm730 = vcmp.lt.s32.totalorder %v726, 32
      %vm731 = vcmp.lt.s32.totalorder %v727, 32
      %vm732 = vcmp.lt.s32.totalorder %v728, 32
      %v733 = vsel %vm729, %v693, 0.0
      %v734 = vsel %vm730, %v694, 0.0
      %v735 = vsel %vm731, %v695, 0.0
      %v736 = vsel %vm732, %v696, 0.0
      %vm737 = vcmask 130048
      %v738 = vsel %vm737, %v733, 0.0
      %v739 = vsel %vm737, %v734, 0.0
      %v740 = vadd.f32 %v738, %v739
      %v741 = vsel %vm737, %v735, 0.0
      %v742 = vadd.f32 %v740, %v741
      %v743 = vsel %vm737, %v736, 0.0
      %v744 = vadd.f32 %v742, %v743
      %v745 = vrot.slane %v744, 4
      %v746 = vadd.f32 %v744, %v745
      %v747 = vrot.slane %v746, 2
      %v748 = vadd.f32 %v746, %v747
      %v749 = vrot.slane %v748, 1
      %v750 = vadd.f32 %v748, %v749
      %vm751 = vcmask 122880
      %752 = vst.msk [vmem:[%s420] sm:$0x1] %vm751, %v750
      %v753 = vmul.f32 %v733, %v733
      %v754 = vmul.f32 %v734, %v734
      %v755 = vmul.f32 %v735, %v735
      %v756 = vmul.f32 %v736, %v736
      %v757 = vsel %vm737, %v753, 0.0
      %v758 = vsel %vm737, %v754, 0.0
      %v759 = vadd.f32 %v757, %v758
      %v760 = vsel %vm737, %v755, 0.0
      %v761 = vadd.f32 %v759, %v760
      %v762 = vsel %vm737, %v756, 0.0
      %v763 = vadd.f32 %v761, %v762
      %v764 = vrot.slane %v763, 4
      %v765 = vadd.f32 %v763, %v764
      %v766 = vrot.slane %v765, 2
      %v767 = vadd.f32 %v765, %v766
      %v768 = vrot.slane %v767, 1
      %v769 = vadd.f32 %v767, %v768
      %770 = vst.msk [vmem:[%s426] sm:$0x1] %vm751, %v769
      %s771 = smul.u32 4, %s24
      %p772 = scmp.lt.s32.totalorder %s23, 3
      %s773 = scalar_select %p772, %s23, 3
      %p774 = scmp.lt.s32.totalorder %s771, 3
      %s775 = scalar_select %p774, %s771, 3
      %s776 = smul.addr %s773, 4
      %s777 = sadd.s32 %s775, %s776
      %s778 = smul.addr %s777, 4
      %s779 = scalar_lea.vmem %s5, %s778
      %p780 = scmp.lt.s32.totalorder %s23, 3
      %s781 = scalar_select %p780, %s23, 3
      %p782 = scmp.lt.s32.totalorder %s24, 0
      %s783 = scalar_select %p782, %s24, 0
      %s784 = sadd.s32 %s783, %s781
      %s785 = scalar_lea.vmem %s6, %s784
      %p786 = scmp.lt.s32.totalorder %s23, 3
      %s787 = scalar_select %p786, %s23, 3
      %p788 = scmp.lt.s32.totalorder %s24, 0
      %s789 = scalar_select %p788, %s24, 0
      %s790 = sadd.s32 %s789, %s787
      %s791 = scalar_lea.vmem %s7, %s790
      // Predicated region
      $region41: #{_lambda_.29} parent=39 // pred_check
        %p792 = pneg %p180
      $region42: #{_lambda_.29} parent=39 // pred_check_branch
        %794 = sbr.rel (%p792) target = $region44
      $region43: #{_lambda_.29} parent=39 // pred_region
        %s795 = smul.u32 4, %s24
      $region44: #{_lambda_.29} parent=39 // pred_fallthru
        _
      // Predicated region
      $region45: #{_lambda_.29} parent=39 // pred_check
        %p796 = pneg %p208
      $region46: #{_lambda_.29} parent=39 // pred_check_branch
        %798 = sbr.rel (%p796) target = $region48
      $region47: #{_lambda_.29} parent=39 // pred_region
        _
      $region48: #{_lambda_.29} parent=39 // pred_fallthru
        _
      // Predicated region
      $region49: #{_lambda_.29} parent=39 // pred_check
        %p799 = pneg %p236
      $region50: #{_lambda_.29} parent=39 // pred_check_branch
        %801 = sbr.rel (%p799) target = $region52
      $region51: #{_lambda_.29} parent=39 // pred_region
        _
      $region52: #{_lambda_.29} parent=39 // pred_fallthru
        _
    $region40: #{_lambda_.29} parent=5 // pred_fallthru
      _
    %p802 = scmp.le.s32.totalorder 2, %s14
    // Predicated region
    $region53: #{_lambda_.29} parent=5 // pred_check
      %p803 = pneg %p802
    $region54: #{_lambda_.29} parent=5 // pred_check_branch
      %805 = sbr.rel (%p803) target = $region56
    $region55: #{_lambda_.29} parent=5 // pred_region
      %s806 = ssub.s32 %s14, 2
      // Predicated region
      $region57: #{_lambda_.29} parent=55 // pred_check
        %p807 = pneg %p186
      $region58: #{_lambda_.29} parent=55 // pred_check_branch
        %809 = sbr.rel (%p807) target = $region60
      $region59: #{_lambda_.29} parent=55 // pred_region
        %s810 = smul.u32 4, %s26
        %p811 = scmp.lt.s32.totalorder %s25, 3
        %s812 = scalar_select %p811, %s25, 3
        %p813 = scmp.lt.s32.totalorder %s810, 3
        %s814 = scalar_select %p813, %s810, 3
        %s815 = smul.addr %s812, 4
        %s816 = sadd.s32 %s814, %s815
        %s817 = smul.addr %s816, 4
        %s818 = scalar_lea.vmem %s5, %s817
      $region60: #{_lambda_.29} parent=55 // pred_fallthru
        _
      // Predicated region
      $region61: #{_lambda_.29} parent=55 // pred_check
        %p819 = pneg %p214
      $region62: #{_lambda_.29} parent=55 // pred_check_branch
        %821 = sbr.rel (%p819) target = $region64
      $region63: #{_lambda_.29} parent=55 // pred_region
        %p822 = scmp.lt.s32.totalorder %s25, 3
        %s823 = scalar_select %p822, %s25, 3
        %p824 = scmp.lt.s32.totalorder %s26, 0
        %s825 = scalar_select %p824, %s26, 0
        %s826 = sadd.s32 %s825, %s823
        %s827 = scalar_lea.vmem %s6, %s826
      $region64: #{_lambda_.29} parent=55 // pred_fallthru
        _
      // Predicated region
      $region65: #{_lambda_.29} parent=55 // pred_check
        %p828 = pneg %p242
      $region66: #{_lambda_.29} parent=55 // pred_check_branch
        %830 = sbr.rel (%p828) target = $region68
      $region67: #{_lambda_.29} parent=55 // pred_region
        %p831 = scmp.lt.s32.totalorder %s25, 3
        %s832 = scalar_select %p831, %s25, 3
        %p833 = scmp.lt.s32.totalorder %s26, 0
        %s834 = scalar_select %p833, %s26, 0
        %s835 = sadd.s32 %s834, %s832
        %s836 = scalar_lea.vmem %s7, %s835
      $region68: #{_lambda_.29} parent=55 // pred_fallthru
        _
    $region56: #{_lambda_.29} parent=5 // pred_fallthru
      _
  $region6: #{_lambda_.29} parent=0 // loop_footer
    %s18 = sadd.s32 1, %s14
  $region7: #{_lambda_.29} parent=0 // loop_footer_branch
    %13 = sbr.rel target = $region3
  $region8: #{_lambda_.29} parent=0 // loop_exit
    _

// kernel: _lambda_.31
$region0: #{_lambda_.31}
  #allocation0 [shape = 'u32[]', space=smem, size = 0x4, offset = 0x4, fixed_abs, tag = 'smem constant byte address 0x4 - core index']
  #allocation1 [shape = 'u32[144,128]{1,0:T(1,128)}', space=vmem, size = 0x12000, scoped, tag = 'internal scratch']
  %s0 = inlined_call_operand.vmem [shape: bf16[4,128,64], index: 0, kind: input, shape index: {}]
  %s1 = inlined_call_operand.vmem [shape: bf16[4,128,64], index: 1, kind: input, shape index: {}]
  %s2 = inlined_call_operand.vmem [shape: bf16[4,64,8], index: 2, kind: input, shape index: {}]
  %s3 = inlined_call_operand.vmem [shape: bf16[4,64,8], index: 3, kind: input, shape index: {}]
  %s4 = inlined_call_operand.vmem [shape: f32[1,1,8], index: 4, kind: input, shape index: {}]
  %s5 = inlined_call_operand.vmem [shape: bf16[4,128,8], index: 5, kind: output, shape index: {0}]
  %s6 = inlined_call_operand.vmem [shape: f32[4,1,1,8], index: 6, kind: output, shape index: {1}]
  %s7 = inlined_call_operand.vmem [shape: f32[4,1,1,8], index: 7, kind: output, shape index: {2}]
  %8 = xla_tuple %s5, %s6, %s7
  %s9 = sld [smem:[#allocation0]]
  $region69: #{_lambda_.31} parent=0
    _
  %s11 = ssub.s32 1, %s9
  %s12 = scalar_select 0, %s11, %s9
  loop: start=0, step=1, limit=6
  $region2: #{_lambda_.31} parent=0 // loop_pre_header
    _
  $region3: #{_lambda_.31} parent=0 // loop_header
    %s14 = sphi 0, %s18
    %p15 = scmp.ge.s32.totalorder %s14, 6
    %s21 = sphi 0, %s33
    %s22 = sphi 0, %s29
    %s23 = sphi 0, %s21
    %s24 = sphi 0, %s22
    %s25 = sphi 0, %s23
    %s26 = sphi 0, %s24
    %s38 = sphi 0, %s40
    %s41 = sphi 0, %s38
    %s42 = sphi 0, %s41
    %s58 = sphi 0, %s42
    %s66 = sphi 0, %s68
    %s69 = sphi 0, %s66
    %s70 = sphi 0, %s69
    %s86 = sphi 0, %s70
    %s92 = sphi 0, %s94
    %s95 = sphi 0, %s92
    %s96 = sphi 0, %s95
    %s112 = sphi 0, %s96
    %s118 = sphi 0, %s120
    %s121 = sphi 0, %s118
    %s122 = sphi 0, %s121
    %s138 = sphi 0, %s122
    %s142 = sphi 0, %s142
    %s144 = sphi 0, %s142
    %s145 = sphi 0, %s144
    %s159 = sphi 0, %s145
    %s167 = sphi 0, %s169
    %s170 = sphi 0, %s167
    %s171 = sphi 0, %s170
    %s187 = sphi 0, %s171
    %s195 = sphi 0, %s197
    %s198 = sphi 0, %s195
    %s199 = sphi 0, %s198
    %s215 = sphi 0, %s199
    %s223 = sphi 0, %s225
    %s226 = sphi 0, %s223
    %s227 = sphi 0, %s226
    %s243 = sphi 0, %s227
  $region4: #{_lambda_.31} parent=0 // loop_header_branch
    %17 = sbr.rel (%p15) target = $region8
  $region5: #{_lambda_.31} parent=0 // loop_body
    %s19 = ssub.s32 %s14, 1
    %s20 = ssub.s32 %s14, 2
    %s27 = sadd.s32 1, %s22
    %p28 = scmp.ge.s32.totalorder %s27, 1
    %s29 = scalar_select %p28, 0, %s27
    %s30 = sadd.s32 1, %s21
    %s31 = scalar_select %p28, %s30, %s21
    %p32 = scmp.ge.s32.totalorder %s31, 4
    %s33 = scalar_select %p32, 0, %s31
    %s34 = ssub.s32 %s21, %s33
    %s35 = ssub.s32 %s22, %s29
    %s36 = sor.u32 %s34, %s35
    %p37 = scmp.eq.s32.totalorder %s36, 0
    %s39 = sadd.s32 %s38, 1
    %s40 = scalar_select %p37, %s38, %s39
    %p43 = pneg %p37
    %p44 = scmp.eq.s32.totalorder %s14, 3
    %p45 = por %p43, %p44
    %p46 = scmp.ne.s32.totalorder %s38, %s41
    %p47 = scmp.eq.s32.totalorder %s14, 0
    %p48 = por %p46, %p47
    %p49 = scmp.ne.s32.totalorder %s38, %s41
    %p50 = scmp.eq.s32.totalorder %s19, 3
    %p51 = por %p49, %p50
    %p52 = scmp.ne.s32.totalorder %s41, %s42
    %p53 = scmp.eq.s32.totalorder %s19, 0
    %p54 = por %p52, %p53
    %p55 = scmp.ne.s32.totalorder %s41, %s42
    %p56 = scmp.eq.s32.totalorder %s20, 3
    %p57 = por %p55, %p56
    %p59 = scmp.ne.s32.totalorder %s42, %s58
    %p60 = scmp.eq.s32.totalorder %s20, 0
    %p61 = por %p59, %p60
    %s62 = ssub.s32 %s21, %s33
    %s63 = ssub.s32 %s22, %s29
    %s64 = sor.u32 %s62, %s63
    %p65 = scmp.eq.s32.totalorder %s64, 0
    %s67 = sadd.s32 %s66, 1
    %s68 = scalar_select %p65, %s66, %s67
    %p71 = pneg %p65
    %p72 = scmp.eq.s32.totalorder %s14, 3
    %p73 = por %p71, %p72
    %p74 = scmp.ne.s32.totalorder %s66, %s69
    %p75 = scmp.eq.s32.totalorder %s14, 0
    %p76 = por %p74, %p75
    %p77 = scmp.ne.s32.totalorder %s66, %s69
    %p78 = scmp.eq.s32.totalorder %s19, 3
    %p79 = por %p77, %p78
    %p80 = scmp.ne.s32.totalorder %s69, %s70
    %p81 = scmp.eq.s32.totalorder %s19, 0
    %p82 = por %p80, %p81
    %p83 = scmp.ne.s32.totalorder %s69, %s70
    %p84 = scmp.eq.s32.totalorder %s20, 3
    %p85 = por %p83, %p84
    %p87 = scmp.ne.s32.totalorder %s70, %s86
    %p88 = scmp.eq.s32.totalorder %s20, 0
    %p89 = por %p87, %p88
    %s90 = ssub.s32 %s21, %s33
    %p91 = scmp.eq.s32.totalorder %s90, 0
    %s93 = sadd.s32 %s92, 1
    %s94 = scalar_select %p91, %s92, %s93
    %p97 = pneg %p91
    %p98 = scmp.eq.s32.totalorder %s14, 3
    %p99 = por %p97, %p98
    %p100 = scmp.ne.s32.totalorder %s92, %s95
    %p101 = scmp.eq.s32.totalorder %s14, 0
    %p102 = por %p100, %p101
    %p103 = scmp.ne.s32.totalorder %s92, %s95
    %p104 = scmp.eq.s32.totalorder %s19, 3
    %p105 = por %p103, %p104
    %p106 = scmp.ne.s32.totalorder %s95, %s96
    %p107 = scmp.eq.s32.totalorder %s19, 0
    %p108 = por %p106, %p107
    %p109 = scmp.ne.s32.totalorder %s95, %s96
    %p110 = scmp.eq.s32.totalorder %s20, 3
    %p111 = por %p109, %p110
    %p113 = scmp.ne.s32.totalorder %s96, %s112
    %p114 = scmp.eq.s32.totalorder %s20, 0
    %p115 = por %p113, %p114
    %s116 = ssub.s32 %s21, %s33
    %p117 = scmp.eq.s32.totalorder %s116, 0
    %s119 = sadd.s32 %s118, 1
    %s120 = scalar_select %p117, %s118, %s119
    %p123 = pneg %p117
    %p124 = scmp.eq.s32.totalorder %s14, 3
    %p125 = por %p123, %p124
    %p126 = scmp.ne.s32.totalorder %s118, %s121
    %p127 = scmp.eq.s32.totalorder %s14, 0
    %p128 = por %p126, %p127
    %p129 = scmp.ne.s32.totalorder %s118, %s121
    %p130 = scmp.eq.s32.totalorder %s19, 3
    %p131 = por %p129, %p130
    %p132 = scmp.ne.s32.totalorder %s121, %s122
    %p133 = scmp.eq.s32.totalorder %s19, 0
    %p134 = por %p132, %p133
    %p135 = scmp.ne.s32.totalorder %s121, %s122
    %p136 = scmp.eq.s32.totalorder %s20, 3
    %p137 = por %p135, %p136
    %p139 = scmp.ne.s32.totalorder %s122, %s138
    %p140 = scmp.eq.s32.totalorder %s20, 0
    %p141 = por %p139, %p140
    %s143 = sadd.s32 %s142, 1
    %p146 = scmp.eq.s32.totalorder %s14, 3
    %p147 = scmp.ne.s32.totalorder %s142, %s144
    %p148 = scmp.eq.s32.totalorder %s14, 0
    %p149 = por %p147, %p148
    %p150 = scmp.ne.s32.totalorder %s142, %s144
    %p151 = scmp.eq.s32.totalorder %s19, 3
    %p152 = por %p150, %p151
    %p153 = scmp.ne.s32.totalorder %s144, %s145
    %p154 = scmp.eq.s32.totalorder %s19, 0
    %p155 = por %p153, %p154
    %p156 = scmp.ne.s32.totalorder %s144, %s145
    %p157 = scmp.eq.s32.totalorder %s20, 3
    %p158 = por %p156, %p157
    %p160 = scmp.ne.s32.totalorder %s145, %s159
    %p161 = scmp.eq.s32.totalorder %s20, 0
    %p162 = por %p160, %p161
    %s163 = ssub.s32 %s21, %s33
    %s164 = ssub.s32 %s22, %s29
    %s165 = sor.u32 %s163, %s164
    %p166 = scmp.eq.s32.totalorder %s165, 0
    %s168 = sadd.s32 %s167, 1
    %s169 = scalar_select %p166, %s167, %s168
    %p172 = pneg %p166
    %p173 = scmp.eq.s32.totalorder %s14, 3
    %p174 = por %p172, %p173
    %p175 = scmp.ne.s32.totalorder %s167, %s170
    %p176 = scmp.eq.s32.totalorder %s14, 0
    %p177 = por %p175, %p176
    %p178 = scmp.ne.s32.totalorder %s167, %s170
    %p179 = scmp.eq.s32.totalorder %s19, 3
    %p180 = por %p178, %p179
    %p181 = scmp.ne.s32.totalorder %s170, %s171
    %p182 = scmp.eq.s32.totalorder %s19, 0
    %p183 = por %p181, %p182
    %p184 = scmp.ne.s32.totalorder %s170, %s171
    %p185 = scmp.eq.s32.totalorder %s20, 3
    %p186 = por %p184, %p185
    %p188 = scmp.ne.s32.totalorder %s171, %s187
    %p189 = scmp.eq.s32.totalorder %s20, 0
    %p190 = por %p188, %p189
    %s191 = ssub.s32 %s21, %s33
    %s192 = ssub.s32 %s22, %s29
    %s193 = sor.u32 %s191, %s192
    %p194 = scmp.eq.s32.totalorder %s193, 0
    %s196 = sadd.s32 %s195, 1
    %s197 = scalar_select %p194, %s195, %s196
    %p200 = pneg %p194
    %p201 = scmp.eq.s32.totalorder %s14, 3
    %p202 = por %p200, %p201
    %p203 = scmp.ne.s32.totalorder %s195, %s198
    %p204 = scmp.eq.s32.totalorder %s14, 0
    %p205 = por %p203, %p204
    %p206 = scmp.ne.s32.totalorder %s195, %s198
    %p207 = scmp.eq.s32.totalorder %s19, 3
    %p208 = por %p206, %p207
    %p209 = scmp.ne.s32.totalorder %s198, %s199
    %p210 = scmp.eq.s32.totalorder %s19, 0
    %p211 = por %p209, %p210
    %p212 = scmp.ne.s32.totalorder %s198, %s199
    %p213 = scmp.eq.s32.totalorder %s20, 3
    %p214 = por %p212, %p213
    %p216 = scmp.ne.s32.totalorder %s199, %s215
    %p217 = scmp.eq.s32.totalorder %s20, 0
    %p218 = por %p216, %p217
    %s219 = ssub.s32 %s21, %s33
    %s220 = ssub.s32 %s22, %s29
    %s221 = sor.u32 %s219, %s220
    %p222 = scmp.eq.s32.totalorder %s221, 0
    %s224 = sadd.s32 %s223, 1
    %s225 = scalar_select %p222, %s223, %s224
    %p228 = pneg %p222
    %p229 = scmp.eq.s32.totalorder %s14, 3
    %p230 = por %p228, %p229
    %p231 = scmp.ne.s32.totalorder %s223, %s226
    %p232 = scmp.eq.s32.totalorder %s14, 0
    %p233 = por %p231, %p232
    %p234 = scmp.ne.s32.totalorder %s223, %s226
    %p235 = scmp.eq.s32.totalorder %s19, 3
    %p236 = por %p234, %p235
    %p237 = scmp.ne.s32.totalorder %s226, %s227
    %p238 = scmp.eq.s32.totalorder %s19, 0
    %p239 = por %p237, %p238
    %p240 = scmp.ne.s32.totalorder %s226, %s227
    %p241 = scmp.eq.s32.totalorder %s20, 3
    %p242 = por %p240, %p241
    %p244 = scmp.ne.s32.totalorder %s227, %s243
    %p245 = scmp.eq.s32.totalorder %s20, 0
    %p246 = por %p244, %p245
    %p247 = scmp.le.s32.totalorder 1, %s14
    %p248 = scmp.lt.s32.totalorder %s14, 5
    %p249 = pnand %p247, %p248
    %p250 = pneg %p249
    // Predicated region
    $region9: #{_lambda_.31} parent=5 // pred_check
      _
    $region10: #{_lambda_.31} parent=5 // pred_check_branch
      %252 = sbr.rel (%p249) target = $region12
    $region11: #{_lambda_.31} parent=5 // pred_region
      %s253 = ssub.s32 %s14, 1
      // Predicated region
      $region13: #{_lambda_.31} parent=11 // pred_check
        %p254 = pneg %p155
      $region14: #{_lambda_.31} parent=11 // pred_check_branch
        %256 = sbr.rel (%p254) target = $region16
      $region15: #{_lambda_.31} parent=11 // pred_region
        _
      $region16: #{_lambda_.31} parent=11 // pred_fallthru
        _
    $region12: #{_lambda_.31} parent=5 // pred_fallthru
      _
    %p257 = scmp.lt.s32.totalorder %s14, 4
    // Predicated region
    $region17: #{_lambda_.31} parent=5 // pred_check
      %p258 = pneg %p257
    $region18: #{_lambda_.31} parent=5 // pred_check_branch
      %260 = sbr.rel (%p258) target = $region20
    $region19: #{_lambda_.31} parent=5 // pred_region
      // Predicated region
      $region21: #{_lambda_.31} parent=19 // pred_check
        %p261 = pneg %p48
      $region22: #{_lambda_.31} parent=19 // pred_check_branch
        %263 = sbr.rel (%p261) target = $region24
      $region23: #{_lambda_.31} parent=19 // pred_region
        %s264 = smul.u32 16, %s22
        %p265 = scmp.lt.s32.totalorder %s21, 3
        %s266 = scalar_select %p265, %s21, 3
        %p267 = scmp.lt.s32.totalorder %s264, 15
        %s268 = scalar_select %p267, %s264, 15
        %s269 = smul.addr %s266, 16
        %s270 = sadd.s32 %s268, %s269
        %s271 = smul.addr %s270, 4
        %s272 = scalar_lea.vmem %s0, %s271
        %s273 = smul.u32 16, %s22
      $region24: #{_lambda_.31} parent=19 // pred_fallthru
        _
      // Predicated region
      $region25: #{_lambda_.31} parent=19 // pred_check
        %p274 = pneg %p76
      $region26: #{_lambda_.31} parent=19 // pred_check_branch
        %276 = sbr.rel (%p274) target = $region28
      $region27: #{_lambda_.31} parent=19 // pred_region
        %s277 = smul.u32 16, %s22
        %p278 = scmp.lt.s32.totalorder %s21, 3
        %s279 = scalar_select %p278, %s21, 3
        %p280 = scmp.lt.s32.totalorder %s277, 15
        %s281 = scalar_select %p280, %s277, 15
        %s282 = smul.addr %s279, 16
        %s283 = sadd.s32 %s281, %s282
        %s284 = smul.addr %s283, 4
        %s285 = scalar_lea.vmem %s1, %s284
        %s286 = smul.u32 16, %s22
      $region28: #{_lambda_.31} parent=19 // pred_fallthru
        _
      // Predicated region
      $region29: #{_lambda_.31} parent=19 // pred_check
        %p287 = pneg %p102
      $region30: #{_lambda_.31} parent=19 // pred_check_branch
        %289 = sbr.rel (%p287) target = $region32
      $region31: #{_lambda_.31} parent=19 // pred_region
        %p290 = scmp.lt.s32.totalorder %s21, 3
        %s291 = scalar_select %p290, %s21, 3
        %s292 = smul.addr %s291, 8
        %s293 = smul.addr %s292, 4
        %s294 = scalar_lea.vmem %s2, %s293
      $region32: #{_lambda_.31} parent=19 // pred_fallthru
        _
      // Predicated region
      $region33: #{_lambda_.31} parent=19 // pred_check
        %p295 = pneg %p128
      $region34: #{_lambda_.31} parent=19 // pred_check_branch
        %297 = sbr.rel (%p295) target = $region36
      $region35: #{_lambda_.31} parent=19 // pred_region
        %p298 = scmp.lt.s32.totalorder %s21, 3
        %s299 = scalar_select %p298, %s21, 3
        %s300 = smul.addr %s299, 8
        %s301 = smul.addr %s300, 4
        %s302 = scalar_lea.vmem %s3, %s301
      $region36: #{_lambda_.31} parent=19 // pred_fallthru
        _
    $region20: #{_lambda_.31} parent=5 // pred_fallthru
      _
    %p303 = scmp.le.s32.totalorder 1, %s14
    %p304 = scmp.lt.s32.totalorder %s14, 5
    %p305 = pnand %p303, %p304
    %p306 = pneg %p305
    // Predicated region
    $region37: #{_lambda_.31} parent=5 // pred_check
      _
    $region38: #{_lambda_.31} parent=5 // pred_check_branch
      %308 = sbr.rel (%p305) target = $region40
    $region39: #{_lambda_.31} parent=5 // pred_region
      %s309 = ssub.s32 %s14, 1
      %s310 = smul.u32 16, %s24
      %p311 = scmp.lt.s32.totalorder %s23, 3
      %s312 = scalar_select %p311, %s23, 3
      %p313 = scmp.lt.s32.totalorder %s310, 15
      %s314 = scalar_select %p313, %s310, 15
      %s315 = smul.addr %s312, 16
      %s316 = sadd.s32 %s314, %s315
      %s317 = smul.addr %s316, 4
      %s318 = scalar_lea.vmem %s0, %s317
      %p319 = pneg %p54
      %p320 = pneg %p51
      %s321 = smul.u32 16, %s24
      %p322 = scmp.lt.s32.totalorder %s23, 3
      %s323 = scalar_select %p322, %s23, 3
      %p324 = scmp.lt.s32.totalorder %s321, 15
      %s325 = scalar_select %p324, %s321, 15
      %s326 = smul.addr %s323, 16
      %s327 = sadd.s32 %s325, %s326
      %s328 = smul.addr %s327, 4
      %s329 = scalar_lea.vmem %s1, %s328
      %p330 = pneg %p82
      %p331 = pneg %p79
      %p332 = scmp.lt.s32.totalorder %s23, 3
      %s333 = scalar_select %p332, %s23, 3
      %s334 = smul.addr %s333, 8
      %s335 = smul.addr %s334, 4
      %s336 = scalar_lea.vmem %s2, %s335
      %p337 = pneg %p108
      %p338 = pneg %p105
      %p339 = scmp.lt.s32.totalorder %s23, 3
      %s340 = scalar_select %p339, %s23, 3
      %s341 = smul.addr %s340, 8
      %s342 = smul.addr %s341, 4
      %s343 = scalar_lea.vmem %s3, %s342
      %p344 = pneg %p134
      %p345 = pneg %p131
      %p346 = pneg %p155
      %p347 = pneg %p152
      %p348 = pneg %p183
      %p349 = pneg %p180
      %s350 = smul.u32 16, %s24
      %p351 = scmp.lt.s32.totalorder %s23, 3
      %s352 = scalar_select %p351, %s23, 3
      %p353 = scmp.lt.s32.totalorder %s350, 15
      %s354 = scalar_select %p353, %s350, 15
      %s355 = smul.addr %s352, 16
      %s356 = sadd.s32 %s354, %s355
      %s357 = smul.addr %s356, 4
      %s358 = scalar_lea.vmem %s5, %s357
      %p359 = pneg %p211
      %p360 = pneg %p208
      %p361 = scmp.lt.s32.totalorder %s23, 3
      %s362 = scalar_select %p361, %s23, 3
      %p363 = scmp.lt.s32.totalorder %s24, 0
      %s364 = scalar_select %p363, %s24, 0
      %s365 = sadd.s32 %s364, %s362
      %s366 = scalar_lea.vmem %s6, %s365
      %p367 = pneg %p239
      %p368 = pneg %p236
      %p369 = scmp.lt.s32.totalorder %s23, 3
      %s370 = scalar_select %p369, %s23, 3
      %p371 = scmp.lt.s32.totalorder %s24, 0
      %s372 = scalar_select %p371, %s24, 0
      %s373 = sadd.s32 %s372, %s370
      %s374 = scalar_lea.vmem %s7, %s373
      %s375 = smul.u32 16, %s24
      %p376 = scmp.lt.s32.totalorder %s23, 3
      %s377 = scalar_select %p376, %s23, 3
      %p378 = scmp.lt.s32.totalorder %s375, 15
      %s379 = scalar_select %p378, %s375, 15
      %s380 = smul.addr %s377, 16
      %s381 = sadd.s32 %s379, %s380
      %s382 = smul.addr %s381, 4
      %s383 = scalar_lea.vmem %s0, %s382
      %s384 = smul.u32 16, %s24
      %s385 = smul.u32 16, %s24
      %p386 = scmp.lt.s32.totalorder %s23, 3
      %s387 = scalar_select %p386, %s23, 3
      %p388 = scmp.lt.s32.totalorder %s385, 15
      %s389 = scalar_select %p388, %s385, 15
      %s390 = smul.addr %s387, 16
      %s391 = sadd.s32 %s389, %s390
      %s392 = smul.addr %s391, 4
      %s393 = scalar_lea.vmem %s1, %s392
      %s394 = smul.u32 16, %s24
      %p395 = scmp.lt.s32.totalorder %s23, 3
      %s396 = scalar_select %p395, %s23, 3
      %s397 = smul.addr %s396, 8
      %s398 = smul.addr %s397, 4
      %s399 = scalar_lea.vmem %s2, %s398
      %p400 = scmp.lt.s32.totalorder %s23, 3
      %s401 = scalar_select %p400, %s23, 3
      %s402 = smul.addr %s401, 8
      %s403 = smul.addr %s402, 4
      %s404 = scalar_lea.vmem %s3, %s403
      %s405 = smul.u32 16, %s24
      %p406 = scmp.lt.s32.totalorder %s23, 3
      %s407 = scalar_select %p406, %s23, 3
      %p408 = scmp.lt.s32.totalorder %s405, 15
      %s409 = scalar_select %p408, %s405, 15
      %s410 = smul.addr %s407, 16
      %s411 = sadd.s32 %s409, %s410
      %s412 = smul.addr %s411, 4
      %s413 = scalar_lea.vmem %s5, %s412
      %s414 = smul.u32 16, %s24
      %p415 = scmp.lt.s32.totalorder %s23, 3
      %s416 = scalar_select %p415, %s23, 3
      %p417 = scmp.lt.s32.totalorder %s24, 0
      %s418 = scalar_select %p417, %s24, 0
      %s419 = sadd.s32 %s418, %s416
      %s420 = scalar_lea.vmem %s6, %s419
      %p421 = scmp.lt.s32.totalorder %s23, 3
      %s422 = scalar_select %p421, %s23, 3
      %p423 = scmp.lt.s32.totalorder %s24, 0
      %s424 = scalar_select %p423, %s24, 0
      %s425 = sadd.s32 %s424, %s422
      %s426 = scalar_lea.vmem %s7, %s425
      %v428 = vld [vmem:[%s383] sm:$0xf]
      %v429 = vld [vmem:[%s383 + $0x4] sm:$0xf]
      %v430 = vld [vmem:[%s383 + $0x8] sm:$0xf]
      %v431 = vld [vmem:[%s383 + $0xc] sm:$0xf]
      %v432 = vld [vmem:[%s383 + $0x10] sm:$0xf]
      %v433 = vld [vmem:[%s383 + $0x14] sm:$0xf]
      %v434 = vld [vmem:[%s383 + $0x18] sm:$0xf]
      %v435 = vld [vmem:[%s383 + $0x1c] sm:$0xf]
      %v436 = vld [vmem:[%s383 + $0x20] sm:$0xf]
      %v437 = vld [vmem:[%s383 + $0x24] sm:$0xf]
      %v438 = vld [vmem:[%s383 + $0x28] sm:$0xf]
      %v439 = vld [vmem:[%s383 + $0x2c] sm:$0xf]
      %v440 = vld [vmem:[%s383 + $0x30] sm:$0xf]
      %v441 = vld [vmem:[%s383 + $0x34] sm:$0xf]
      %v442 = vld [vmem:[%s383 + $0x38] sm:$0xf]
      %v443 = vld [vmem:[%s383 + $0x3c] sm:$0xf]
      %v444 = vld [vmem:[%s399] sm:$0xf]
      %v445 = vld [vmem:[%s399 + $0x4] sm:$0xf]
      %v446 = vld [vmem:[%s399 + $0x8] sm:$0xf]
      %v447 = vld [vmem:[%s399 + $0xc] sm:$0xf]
      %v448 = vld [vmem:[%s399 + $0x10] sm:$0xf]
      %v449 = vld [vmem:[%s399 + $0x14] sm:$0xf]
      %v450 = vld [vmem:[%s399 + $0x18] sm:$0xf]
      %v451 = vld [vmem:[%s399 + $0x1c] sm:$0xf]
      %v452 = vld [vmem:[%s393] sm:$0xf]
      %v453 = vld [vmem:[%s393 + $0x4] sm:$0xf]
      %v454 = vld [vmem:[%s393 + $0x8] sm:$0xf]
      %v455 = vld [vmem:[%s393 + $0xc] sm:$0xf]
      %v456 = vld [vmem:[%s393 + $0x10] sm:$0xf]
      %v457 = vld [vmem:[%s393 + $0x14] sm:$0xf]
      %v458 = vld [vmem:[%s393 + $0x18] sm:$0xf]
      %v459 = vld [vmem:[%s393 + $0x1c] sm:$0xf]
      %v460 = vld [vmem:[%s393 + $0x20] sm:$0xf]
      %v461 = vld [vmem:[%s393 + $0x24] sm:$0xf]
      %v462 = vld [vmem:[%s393 + $0x28] sm:$0xf]
      %v463 = vld [vmem:[%s393 + $0x2c] sm:$0xf]
      %v464 = vld [vmem:[%s393 + $0x30] sm:$0xf]
      %v465 = vld [vmem:[%s393 + $0x34] sm:$0xf]
      %v466 = vld [vmem:[%s393 + $0x38] sm:$0xf]
      %v467 = vld [vmem:[%s393 + $0x3c] sm:$0xf]
      %v468 = vld [vmem:[%s404] sm:$0xf]
      %v469 = vld [vmem:[%s404 + $0x4] sm:$0xf]
      %v470 = vld [vmem:[%s404 + $0x8] sm:$0xf]
      %v471 = vld [vmem:[%s404 + $0xc] sm:$0xf]
      %v472 = vld [vmem:[%s404 + $0x10] sm:$0xf]
      %v473 = vld [vmem:[%s404 + $0x14] sm:$0xf]
      %v474 = vld [vmem:[%s404 + $0x18] sm:$0xf]
      %v475 = vld [vmem:[%s404 + $0x1c] sm:$0xf]
      %v492 = vunpack.c.l.b16 %v452
      %v493 = vunpack.c.l.b16 %v453
      %v494 = vunpack.c.l.b16 %v454
      %v495 = vunpack.c.l.b16 %v455
      %v496 = vunpack.c.l.b16 %v456
      %v497 = vunpack.c.l.b16 %v457
      %v498 = vunpack.c.l.b16 %v458
      %v499 = vunpack.c.l.b16 %v459
      %v500 = vunpack.c.l.b16 %v460
      %v501 = vunpack.c.l.b16 %v461
      %v502 = vunpack.c.l.b16 %v462
      %v503 = vunpack.c.l.b16 %v463
      %v504 = vunpack.c.l.b16 %v464
      %v505 = vunpack.c.l.b16 %v465
      %v506 = vunpack.c.l.b16 %v466
      %v507 = vunpack.c.l.b16 %v467
      %v508 = vpack.c.b16 %v493, %v492
      %v509 = vpack.c.b16 %v495, %v494
      %v510 = vpack.c.b16 %v497, %v496
      %v511 = vpack.c.b16 %v499, %v498
      %v512 = vpack.c.b16 %v501, %v500
      %v513 = vpack.c.b16 %v503, %v502
      %v514 = vpack.c.b16 %v505, %v504
      %v515 = vpack.c.b16 %v507, %v506
      %v524 = vunpack.c.l.b16 %v468
      %v525 = vunpack.c.l.b16 %v469
      %v526 = vunpack.c.l.b16 %v470
      %v527 = vunpack.c.l.b16 %v471
      %v528 = vunpack.c.l.b16 %v472
      %v529 = vunpack.c.l.b16 %v473
      %v530 = vunpack.c.l.b16 %v474
      %v531 = vunpack.c.l.b16 %v475
      %v532 = vpack.c.b16 %v525, %v524
      %v533 = vpack.c.b16 %v527, %v526
      %v534 = vpack.c.b16 %v529, %v528
      %v535 = vpack.c.b16 %v531, %v530
      %vm540 = vcmask 523264
      %v542 = vsel %vm540, %v508, 0
      %v545 = vsel %vm540, %v509, 0
      %v548 = vsel %vm540, %v510, 0
      %v551 = vsel %vm540, %v511, 0
      %v554 = vsel %vm540, %v512, 0
      %v557 = vsel %vm540, %v513, 0
      %v560 = vsel %vm540, %v514, 0
      %v563 = vsel %vm540, %v515, 0
      %565 = vmatprep.subr.bf16.mxu0 0
      %566 = vmatpush1.bf16.msra.mxu0 %v532
      %567 = vmatprep.subr.bf16.mxu0 0
      %568 = vmatpush1.bf16.msra.mxu0 %v533
      %569 = vmatprep.subr.bf16.mxu0 0
      %570 = vmatpush1.bf16.msra.mxu0 %v534
      %571 = vmatprep.subr.bf16.mxu0 0
      %572 = vmatpush1.bf16.msra.mxu0 %v535
      %573 = vmatprep.subr.bf16.mxu0 0
      %574 = vmatpush1.bf16.msra.mxu0 0
      %575 = vmatprep.subr.bf16.mxu0 0
      %576 = vmatpush1.bf16.msra.mxu0 0
      %577 = vmatprep.subr.bf16.mxu0 0
      %578 = vmatpush1.bf16.msra.mxu0 0
      %579 = vmatprep.subr.bf16.mxu0 0
      %580 = vmatpush1.bf16.msra.mxu0 0
      %581 = vmatprep.subr.bf16.mxu0 0
      %582 = vmatpush1.bf16.msra.mxu0 0
      %583 = vmatprep.subr.bf16.mxu0 0
      %584 = vmatpush1.bf16.msra.mxu0 0
      %585 = vmatprep.subr.bf16.mxu0 0
      %586 = vmatpush1.bf16.msra.mxu0 0
      %587 = vmatprep.subr.bf16.mxu0 0
      %588 = vmatpush1.bf16.msra.mxu0 0
      %589 = vmatprep.subr.bf16.mxu0 0
      %590 = vmatpush1.bf16.msra.mxu0 0
      %591 = vmatprep.subr.bf16.mxu0 0
      %592 = vmatpush1.bf16.msra.mxu0 0
      %593 = vmatprep.subr.bf16.mxu0 0
      %594 = vmatpush1.bf16.msra.mxu0 0
      %595 = vmatprep.subr.bf16.mxu0 0
      %596 = vmatpush1.bf16.msra.mxu0 0
      %597 = vmatprep.mubr.bf16.mxu0 0
      %598 = vmatmul.mubr.bf16.gmra.mrb[0].mxu0 %v542
      %v599 = vpop.f32.mrb[0].mxu0
      %v600 = vadd.f32 0.0, %v599
      %v601 = vpop.f32.mrb[0].mxu0
      %v602 = vpop.f32.mrb[0].mxu0
      %v603 = vadd.f32 0.0, %v602
      %v604 = vpop.f32.mrb[0].mxu0
      %605 = vmatprep.mubr.bf16.mxu0 0
      %606 = vmatmul.mubr.bf16.gmra.mrb[0].mxu0 %v545
      %v607 = vpop.f32.mrb[0].mxu0
      %v608 = vadd.f32 0.0, %v607
      %v609 = vpop.f32.mrb[0].mxu0
      %v610 = vpop.f32.mrb[0].mxu0
      %v611 = vadd.f32 0.0, %v610
      %v612 = vpop.f32.mrb[0].mxu0
      %613 = vmatprep.mubr.bf16.mxu0 0
      %614 = vmatmul.mubr.bf16.gmra.mrb[0].mxu0 %v548
      %v615 = vpop.f32.mrb[0].mxu0
      %v616 = vadd.f32 0.0, %v615
      %v617 = vpop.f32.mrb[0].mxu0
      %v618 = vpop.f32.mrb[0].mxu0
      %v619 = vadd.f32 0.0, %v618
      %v620 = vpop.f32.mrb[0].mxu0
      %621 = vmatprep.mubr.bf16.mxu0 0
      %622 = vmatmul.mubr.bf16.gmra.mrb[0].mxu0 %v551
      %v623 = vpop.f32.mrb[0].mxu0
      %v624 = vadd.f32 0.0, %v623
      %v625 = vpop.f32.mrb[0].mxu0
      %v626 = vpop.f32.mrb[0].mxu0
      %v627 = vadd.f32 0.0, %v626
      %v628 = vpop.f32.mrb[0].mxu0
      %629 = vmatprep.mubr.bf16.mxu0 0
      %630 = vmatmul.mubr.bf16.gmra.mrb[0].mxu0 %v554
      %v631 = vpop.f32.mrb[0].mxu0
      %v632 = vadd.f32 0.0, %v631
      %v633 = vpop.f32.mrb[0].mxu0
      %v634 = vpop.f32.mrb[0].mxu0
      %v635 = vadd.f32 0.0, %v634
      %v636 = vpop.f32.mrb[0].mxu0
      %637 = vmatprep.mubr.bf16.mxu0 0
      %638 = vmatmul.mubr.bf16.gmra.mrb[0].mxu0 %v557
      %v639 = vpop.f32.mrb[0].mxu0
      %v640 = vadd.f32 0.0, %v639
      %v641 = vpop.f32.mrb[0].mxu0
      %v642 = vpop.f32.mrb[0].mxu0
      %v643 = vadd.f32 0.0, %v642
      %v644 = vpop.f32.mrb[0].mxu0
      %645 = vmatprep.mubr.bf16.mxu0 0
      %646 = vmatmul.mubr.bf16.gmra.mrb[0].mxu0 %v560
      %v647 = vpop.f32.mrb[0].mxu0
      %v648 = vadd.f32 0.0, %v647
      %v649 = vpop.f32.mrb[0].mxu0
      %v650 = vpop.f32.mrb[0].mxu0
      %v651 = vadd.f32 0.0, %v650
      %v652 = vpop.f32.mrb[0].mxu0
      %653 = vmatprep.mubr.bf16.mxu0 0
      %654 = vmatmul.mubr.bf16.gmra.mrb[0].mxu0 %v563
      %v655 = vpop.f32.mrb[0].mxu0
      %v656 = vadd.f32 0.0, %v655
      %v657 = vpop.f32.mrb[0].mxu0
      %v658 = vpop.f32.mrb[0].mxu0
      %v659 = vadd.f32 0.0, %v658
      %v660 = vpop.f32.mrb[0].mxu0
      %661 = vdwg.mxu0
      %v678 = vunpack.c.l.b16 %v428
      %v679 = vunpack.c.l.b16 %v429
      %v680 = vunpack.c.l.b16 %v430
      %v681 = vunpack.c.l.b16 %v431
      %v682 = vunpack.c.l.b16 %v432
      %v683 = vunpack.c.l.b16 %v433
      %v684 = vunpack.c.l.b16 %v434
      %v685 = vunpack.c.l.b16 %v435
      %v686 = vunpack.c.l.b16 %v436
      %v687 = vunpack.c.l.b16 %v437
      %v688 = vunpack.c.l.b16 %v438
      %v689 = vunpack.c.l.b16 %v439
      %v690 = vunpack.c.l.b16 %v440
      %v691 = vunpack.c.l.b16 %v441
      %v692 = vunpack.c.l.b16 %v442
      %v693 = vunpack.c.l.b16 %v443
      %v694 = vpack.c.b16 %v679, %v678
      %v695 = vpack.c.b16 %v681, %v680
      %v696 = vpack.c.b16 %v683, %v682
      %v697 = vpack.c.b16 %v685, %v684
      %v698 = vpack.c.b16 %v687, %v686
      %v699 = vpack.c.b16 %v689, %v688
      %v700 = vpack.c.b16 %v691, %v690
      %v701 = vpack.c.b16 %v693, %v692
      %v710 = vunpack.c.l.b16 %v444
      %v711 = vunpack.c.l.b16 %v445
      %v712 = vunpack.c.l.b16 %v446
      %v713 = vunpack.c.l.b16 %v447
      %v714 = vunpack.c.l.b16 %v448
      %v715 = vunpack.c.l.b16 %v449
      %v716 = vunpack.c.l.b16 %v450
      %v717 = vunpack.c.l.b16 %v451
      %v718 = vpack.c.b16 %v711, %v710
      %v719 = vpack.c.b16 %v713, %v712
      %v720 = vpack.c.b16 %v715, %v714
      %v721 = vpack.c.b16 %v717, %v716
      %v727 = vsel %vm540, %v694, 0
      %v730 = vsel %vm540, %v695, 0
      %v733 = vsel %vm540, %v696, 0
      %v736 = vsel %vm540, %v697, 0
      %v739 = vsel %vm540, %v698, 0
      %v742 = vsel %vm540, %v699, 0
      %v745 = vsel %vm540, %v700, 0
      %v748 = vsel %vm540, %v701, 0
      %750 = vmatprep.subr.bf16.mxu0 0
      %751 = vmatpush1.bf16.msra.mxu0 %v718
      %752 = vmatprep.subr.bf16.mxu0 0
      %753 = vmatpush1.bf16.msra.mxu0 %v719
      %754 = vmatprep.subr.bf16.mxu0 0
      %755 = vmatpush1.bf16.msra.mxu0 %v720
      %756 = vmatprep.subr.bf16.mxu0 0
      %757 = vmatpush1.bf16.msra.mxu0 %v721
      %758 = vmatprep.subr.bf16.mxu0 0
      %759 = vmatpush1.bf16.msra.mxu0 0
      %760 = vmatprep.subr.bf16.mxu0 0
      %761 = vmatpush1.bf16.msra.mxu0 0
      %762 = vmatprep.subr.bf16.mxu0 0
      %763 = vmatpush1.bf16.msra.mxu0 0
      %764 = vmatprep.subr.bf16.mxu0 0
      %765 = vmatpush1.bf16.msra.mxu0 0
      %766 = vmatprep.subr.bf16.mxu0 0
      %767 = vmatpush1.bf16.msra.mxu0 0
      %768 = vmatprep.subr.bf16.mxu0 0
      %769 = vmatpush1.bf16.msra.mxu0 0
      %770 = vmatprep.subr.bf16.mxu0 0
      %771 = vmatpush1.bf16.msra.mxu0 0
      %772 = vmatprep.subr.bf16.mxu0 0
      %773 = vmatpush1.bf16.msra.mxu0 0
      %774 = vmatprep.subr.bf16.mxu0 0
      %775 = vmatpush1.bf16.msra.mxu0 0
      %776 = vmatprep.subr.bf16.mxu0 0
      %777 = vmatpush1.bf16.msra.mxu0 0
      %778 = vmatprep.subr.bf16.mxu0 0
      %779 = vmatpush1.bf16.msra.mxu0 0
      %780 = vmatprep.subr.bf16.mxu0 0
      %781 = vmatpush1.bf16.msra.mxu0 0
      %782 = vmatprep.mubr.bf16.mxu0 0
      %783 = vmatmul.mubr.bf16.gmra.mrb[0].mxu0 %v727
      %v784 = vpop.f32.mrb[0].mxu0
      %v785 = vadd.f32 %v600, %v784
      %v786 = vpop.f32.mrb[0].mxu0
      %v787 = vpop.f32.mrb[0].mxu0
      %v788 = vadd.f32 %v603, %v787
      %v789 = vpop.f32.mrb[0].mxu0
      %790 = vmatprep.mubr.bf16.mxu0 0
      %791 = vmatmul.mubr.bf16.gmra.mrb[0].mxu0 %v730
      %v792 = vpop.f32.mrb[0].mxu0
      %v793 = vadd.f32 %v608, %v792
      %v794 = vpop.f32.mrb[0].mxu0
      %v795 = vpop.f32.mrb[0].mxu0
      %v796 = vadd.f32 %v611, %v795
      %v797 = vpop.f32.mrb[0].mxu0
      %798 = vmatprep.mubr.bf16.mxu0 0
      %799 = vmatmul.mubr.bf16.gmra.mrb[0].mxu0 %v733
      %v800 = vpop.f32.mrb[0].mxu0
      %v801 = vadd.f32 %v616, %v800
      %v802 = vpop.f32.mrb[0].mxu0
      %v803 = vpop.f32.mrb[0].mxu0
      %v804 = vadd.f32 %v619, %v803
      %v805 = vpop.f32.mrb[0].mxu0
      %806 = vmatprep.mubr.bf16.mxu0 0
      %807 = vmatmul.mubr.bf16.gmra.mrb[0].mxu0 %v736
      %v808 = vpop.f32.mrb[0].mxu0
      %v809 = vadd.f32 %v624, %v808
      %v810 = vpop.f32.mrb[0].mxu0
      %v811 = vpop.f32.mrb[0].mxu0
      %v812 = vadd.f32 %v627, %v811
      %v813 = vpop.f32.mrb[0].mxu0
      %814 = vmatprep.mubr.bf16.mxu0 0
      %815 = vmatmul.mubr.bf16.gmra.mrb[0].mxu0 %v739
      %v816 = vpop.f32.mrb[0].mxu0
      %v817 = vadd.f32 %v632, %v816
      %v818 = vpop.f32.mrb[0].mxu0
      %v819 = vpop.f32.mrb[0].mxu0
      %v820 = vadd.f32 %v635, %v819
      %v821 = vpop.f32.mrb[0].mxu0
      %822 = vmatprep.mubr.bf16.mxu0 0
      %823 = vmatmul.mubr.bf16.gmra.mrb[0].mxu0 %v742
      %v824 = vpop.f32.mrb[0].mxu0
      %v825 = vadd.f32 %v640, %v824
      %v826 = vpop.f32.mrb[0].mxu0
      %v827 = vpop.f32.mrb[0].mxu0
      %v828 = vadd.f32 %v643, %v827
      %v829 = vpop.f32.mrb[0].mxu0
      %830 = vmatprep.mubr.bf16.mxu0 0
      %831 = vmatmul.mubr.bf16.gmra.mrb[0].mxu0 %v745
      %v832 = vpop.f32.mrb[0].mxu0
      %v833 = vadd.f32 %v648, %v832
      %v834 = vpop.f32.mrb[0].mxu0
      %v835 = vpop.f32.mrb[0].mxu0
      %v836 = vadd.f32 %v651, %v835
      %v837 = vpop.f32.mrb[0].mxu0
      %838 = vmatprep.mubr.bf16.mxu0 0
      %839 = vmatmul.mubr.bf16.gmra.mrb[0].mxu0 %v748
      %v840 = vpop.f32.mrb[0].mxu0
      %v841 = vadd.f32 %v656, %v840
      %v842 = vpop.f32.mrb[0].mxu0
      %v843 = vpop.f32.mrb[0].mxu0
      %v844 = vadd.f32 %v659, %v843
      %v845 = vpop.f32.mrb[0].mxu0
      %846 = vdwg.mxu0
      %v847 = vld [vmem:[%s4] sm:$0x1]
      %v849 = vlaneseq
      %v850 = vshrl.u32 %v849, 7
      %v851 = vsub.s32 0, %v850
      %v852 = vrot.slane %v847, %v851
      %v854 = vadd.f32 %v785, %v852
      %v855 = vadd.f32 %v788, %v852
      %v856 = vadd.f32 %v793, %v852
      %v857 = vadd.f32 %v796, %v852
      %v858 = vadd.f32 %v801, %v852
      %v859 = vadd.f32 %v804, %v852
      %v860 = vadd.f32 %v809, %v852
      %v861 = vadd.f32 %v812, %v852
      %v862 = vadd.f32 %v817, %v852
      %v863 = vadd.f32 %v820, %v852
      %v864 = vadd.f32 %v825, %v852
      %v865 = vadd.f32 %v828, %v852
      %v866 = vadd.f32 %v833, %v852
      %v867 = vadd.f32 %v836, %v852
      %v868 = vadd.f32 %v841, %v852
      %v869 = vadd.f32 %v844, %v852
      %v870 = vpack.c.bf16 %v855, %v854
      %v871 = vpack.c.bf16 %v857, %v856
      %v872 = vpack.c.bf16 %v859, %v858
      %v873 = vpack.c.bf16 %v861, %v860
      %v874 = vpack.c.bf16 %v863, %v862
      %v875 = vpack.c.bf16 %v865, %v864
      %v876 = vpack.c.bf16 %v867, %v866
      %v877 = vpack.c.bf16 %v869, %v868
      %v886 = vunpack.c.l.b16 %v870
      %v887 = vunpack.c.h.b16 %v870
      %v888 = vunpack.c.l.b16 %v871
      %v889 = vunpack.c.h.b16 %v871
      %v890 = vunpack.c.l.b16 %v872
      %v891 = vunpack.c.h.b16 %v872
      %v892 = vunpack.c.l.b16 %v873
      %v893 = vunpack.c.h.b16 %v873
      %v894 = vunpack.c.l.b16 %v874
      %v895 = vunpack.c.h.b16 %v874
      %v896 = vunpack.c.l.b16 %v875
      %v897 = vunpack.c.h.b16 %v875
      %v898 = vunpack.c.l.b16 %v876
      %v899 = vunpack.c.h.b16 %v876
      %v900 = vunpack.c.l.b16 %v877
      %v901 = vunpack.c.h.b16 %v877
      %v902 = vpack.c.b16 %v886, %v886
      %v903 = vpack.c.b16 %v887, %v887
      %v904 = vpack.c.b16 %v888, %v888
      %v905 = vpack.c.b16 %v889, %v889
      %v906 = vpack.c.b16 %v890, %v890
      %v907 = vpack.c.b16 %v891, %v891
      %v908 = vpack.c.b16 %v892, %v892
      %v909 = vpack.c.b16 %v893, %v893
      %v910 = vpack.c.b16 %v894, %v894
      %v911 = vpack.c.b16 %v895, %v895
      %v912 = vpack.c.b16 %v896, %v896
      %v913 = vpack.c.b16 %v897, %v897
      %v914 = vpack.c.b16 %v898, %v898
      %v915 = vpack.c.b16 %v899, %v899
      %v916 = vpack.c.b16 %v900, %v900
      %v917 = vpack.c.b16 %v901, %v901
      %vm934 = vcmask 60416
      %935 = vst.msk [vmem:[%s413] sm:$0xf] %vm934, %v902
      %936 = vst.msk [vmem:[%s413 + $0x4] sm:$0xf] %vm934, %v903
      %937 = vst.msk [vmem:[%s413 + $0x8] sm:$0xf] %vm934, %v904
      %938 = vst.msk [vmem:[%s413 + $0xc] sm:$0xf] %vm934, %v905
      %939 = vst.msk [vmem:[%s413 + $0x10] sm:$0xf] %vm934, %v906
      %940 = vst.msk [vmem:[%s413 + $0x14] sm:$0xf] %vm934, %v907
      %941 = vst.msk [vmem:[%s413 + $0x18] sm:$0xf] %vm934, %v908
      %942 = vst.msk [vmem:[%s413 + $0x1c] sm:$0xf] %vm934, %v909
      %943 = vst.msk [vmem:[%s413 + $0x20] sm:$0xf] %vm934, %v910
      %944 = vst.msk [vmem:[%s413 + $0x24] sm:$0xf] %vm934, %v911
      %945 = vst.msk [vmem:[%s413 + $0x28] sm:$0xf] %vm934, %v912
      %946 = vst.msk [vmem:[%s413 + $0x2c] sm:$0xf] %vm934, %v913
      %947 = vst.msk [vmem:[%s413 + $0x30] sm:$0xf] %vm934, %v914
      %948 = vst.msk [vmem:[%s413 + $0x34] sm:$0xf] %vm934, %v915
      %949 = vst.msk [vmem:[%s413 + $0x38] sm:$0xf] %vm934, %v916
      %950 = vst.msk [vmem:[%s413 + $0x3c] sm:$0xf] %vm934, %v917
      %s951 = smul.u32 %s24, 128
      %v952 = vlaneseq
      %v953 = vshrl.u32 %v952, 7
      %v954 = vadd.s32 %v953, 8
      %v955 = vadd.s32 %v953, 16
      %v956 = vadd.s32 %v953, 24
      %v957 = vadd.s32 %v953, 32
      %v958 = vadd.s32 %v953, 40
      %v959 = vadd.s32 %v953, 48
      %v960 = vadd.s32 %v953, 56
      %v961 = vadd.s32 %v953, 64
      %v962 = vadd.s32 %v953, 72
      %v963 = vadd.s32 %v953, 80
      %v964 = vadd.s32 %v953, 88
      %v965 = vadd.s32 %v953, 96
      %v966 = vadd.s32 %v953, 104
      %v967 = vadd.s32 %v953, 112
      %v968 = vadd.s32 %v953, 120
      %v969 = vstv %s951
      %v970 = vadd.s32 %v969, %v953
      %v971 = vadd.s32 %v969, %v954
      %v972 = vadd.s32 %v969, %v955
      %v973 = vadd.s32 %v969, %v956
      %v974 = vadd.s32 %v969, %v957
      %v975 = vadd.s32 %v969, %v958
      %v976 = vadd.s32 %v969, %v959
      %v977 = vadd.s32 %v969, %v960
      %v978 = vadd.s32 %v969, %v961
      %v979 = vadd.s32 %v969, %v962
      %v980 = vadd.s32 %v969, %v963
      %v981 = vadd.s32 %v969, %v964
      %v982 = vadd.s32 %v969, %v965
      %v983 = vadd.s32 %v969, %v966
      %v984 = vadd.s32 %v969, %v967
      %v985 = vadd.s32 %v969, %v968
      %vm986 = vcmp.lt.s32.totalorder %v970, 128
      %vm987 = vcmp.lt.s32.totalorder %v971, 128
      %vm988 = vcmp.lt.s32.totalorder %v972, 128
      %vm989 = vcmp.lt.s32.totalorder %v973, 128
      %vm990 = vcmp.lt.s32.totalorder %v974, 128
      %vm991 = vcmp.lt.s32.totalorder %v975, 128
      %vm992 = vcmp.lt.s32.totalorder %v976, 128
      %vm993 = vcmp.lt.s32.totalorder %v977, 128
      %vm994 = vcmp.lt.s32.totalorder %v978, 128
      %vm995 = vcmp.lt.s32.totalorder %v979, 128
      %vm996 = vcmp.lt.s32.totalorder %v980, 128
      %vm997 = vcmp.lt.s32.totalorder %v981, 128
      %vm998 = vcmp.lt.s32.totalorder %v982, 128
      %vm999 = vcmp.lt.s32.totalorder %v983, 128
      %vm1000 = vcmp.lt.s32.totalorder %v984, 128
      %vm1001 = vcmp.lt.s32.totalorder %v985, 128
      %v1002 = vsel %vm986, %v854, 0.0
      %v1003 = vsel %vm987, %v855, 0.0
      %v1004 = vsel %vm988, %v856, 0.0
      %v1005 = vsel %vm989, %v857, 0.0
      %v1006 = vsel %vm990, %v858, 0.0
      %v1007 = vsel %vm991, %v859, 0.0
      %v1008 = vsel %vm992, %v860, 0.0
      %v1009 = vsel %vm993, %v861, 0.0
      %v1010 = vsel %vm994, %v862, 0.0
      %v1011 = vsel %vm995, %v863, 0.0
      %v1012 = vsel %vm996, %v864, 0.0
      %v1013 = vsel %vm997, %v865, 0.0
      %v1014 = vsel %vm998, %v866, 0.0
      %v1015 = vsel %vm999, %v867, 0.0
      %v1016 = vsel %vm1000, %v868, 0.0
      %v1017 = vsel %vm1001, %v869, 0.0
      %vm1018 = vcmask 64512
      %v1019 = vsel %vm1018, %v1002, 0.0
      %v1020 = vsel %vm1018, %v1003, 0.0
      %v1021 = vadd.f32 %v1019, %v1020
      %v1022 = vsel %vm1018, %v1004, 0.0
      %v1023 = vadd.f32 %v1021, %v1022
      %v1024 = vsel %vm1018, %v1005, 0.0
      %v1025 = vadd.f32 %v1023, %v1024
      %v1026 = vsel %vm1018, %v1006, 0.0
      %v1027 = vadd.f32 %v1025, %v1026
      %v1028 = vsel %vm1018, %v1007, 0.0
      %v1029 = vadd.f32 %v1027, %v1028
      %v1030 = vsel %vm1018, %v1008, 0.0
      %v1031 = vadd.f32 %v1029, %v1030
      %v1032 = vsel %vm1018, %v1009, 0.0
      %v1033 = vadd.f32 %v1031, %v1032
      %v1034 = vsel %vm1018, %v1010, 0.0
      %v1035 = vadd.f32 %v1033, %v1034
      %v1036 = vsel %vm1018, %v1011, 0.0
      %v1037 = vadd.f32 %v1035, %v1036
      %v1038 = vsel %vm1018, %v1012, 0.0
      %v1039 = vadd.f32 %v1037, %v1038
      %v1040 = vsel %vm1018, %v1013, 0.0
      %v1041 = vadd.f32 %v1039, %v1040
      %v1042 = vsel %vm1018, %v1014, 0.0
      %v1043 = vadd.f32 %v1041, %v1042
      %v1044 = vsel %vm1018, %v1015, 0.0
      %v1045 = vadd.f32 %v1043, %v1044
      %v1046 = vsel %vm1018, %v1016, 0.0
      %v1047 = vadd.f32 %v1045, %v1046
      %v1048 = vsel %vm1018, %v1017, 0.0
      %v1049 = vadd.f32 %v1047, %v1048
      %v1050 = vrot.slane %v1049, 4
      %v1051 = vadd.f32 %v1049, %v1050
      %v1052 = vrot.slane %v1051, 2
      %v1053 = vadd.f32 %v1051, %v1052
      %v1054 = vrot.slane %v1053, 1
      %v1055 = vadd.f32 %v1053, %v1054
      %vm1056 = vcmask 57344
      %1057 = vst.msk [vmem:[%s420] sm:$0x1] %vm1056, %v1055
      %v1058 = vmul.f32 %v1002, %v1002
      %v1059 = vmul.f32 %v1003, %v1003
      %v1060 = vmul.f32 %v1004, %v1004
      %v1061 = vmul.f32 %v1005, %v1005
      %v1062 = vmul.f32 %v1006, %v1006
      %v1063 = vmul.f32 %v1007, %v1007
      %v1064 = vmul.f32 %v1008, %v1008
      %v1065 = vmul.f32 %v1009, %v1009
      %v1066 = vmul.f32 %v1010, %v1010
      %v1067 = vmul.f32 %v1011, %v1011
      %v1068 = vmul.f32 %v1012, %v1012
      %v1069 = vmul.f32 %v1013, %v1013
      %v1070 = vmul.f32 %v1014, %v1014
      %v1071 = vmul.f32 %v1015, %v1015
      %v1072 = vmul.f32 %v1016, %v1016
      %v1073 = vmul.f32 %v1017, %v1017
      %v1074 = vsel %vm1018, %v1058, 0.0
      %v1075 = vsel %vm1018, %v1059, 0.0
      %v1076 = vadd.f32 %v1074, %v1075
      %v1077 = vsel %vm1018, %v1060, 0.0
      %v1078 = vadd.f32 %v1076, %v1077
      %v1079 = vsel %vm1018, %v1061, 0.0
      %v1080 = vadd.f32 %v1078, %v1079
      %v1081 = vsel %vm1018, %v1062, 0.0
      %v1082 = vadd.f32 %v1080, %v1081
      %v1083 = vsel %vm1018, %v1063, 0.0
      %v1084 = vadd.f32 %v1082, %v1083
      %v1085 = vsel %vm1018, %v1064, 0.0
      %v1086 = vadd.f32 %v1084, %v1085
      %v1087 = vsel %vm1018, %v1065, 0.0
      %v1088 = vadd.f32 %v1086, %v1087
      %v1089 = vsel %vm1018, %v1066, 0.0
      %v1090 = vadd.f32 %v1088, %v1089
      %v1091 = vsel %vm1018, %v1067, 0.0
      %v1092 = vadd.f32 %v1090, %v1091
      %v1093 = vsel %vm1018, %v1068, 0.0
      %v1094 = vadd.f32 %v1092, %v1093
      %v1095 = vsel %vm1018, %v1069, 0.0
      %v1096 = vadd.f32 %v1094, %v1095
      %v1097 = vsel %vm1018, %v1070, 0.0
      %v1098 = vadd.f32 %v1096, %v1097
      %v1099 = vsel %vm1018, %v1071, 0.0
      %v1100 = vadd.f32 %v1098, %v1099
      %v1101 = vsel %vm1018, %v1072, 0.0
      %v1102 = vadd.f32 %v1100, %v1101
      %v1103 = vsel %vm1018, %v1073, 0.0
      %v1104 = vadd.f32 %v1102, %v1103
      %v1105 = vrot.slane %v1104, 4
      %v1106 = vadd.f32 %v1104, %v1105
      %v1107 = vrot.slane %v1106, 2
      %v1108 = vadd.f32 %v1106, %v1107
      %v1109 = vrot.slane %v1108, 1
      %v1110 = vadd.f32 %v1108, %v1109
      %1111 = vst.msk [vmem:[%s426] sm:$0x1] %vm1056, %v1110
      %s1112 = smul.u32 16, %s24
      %p1113 = scmp.lt.s32.totalorder %s23, 3
      %s1114 = scalar_select %p1113, %s23, 3
      %p1115 = scmp.lt.s32.totalorder %s1112, 15
      %s1116 = scalar_select %p1115, %s1112, 15
      %s1117 = smul.addr %s1114, 16
      %s1118 = sadd.s32 %s1116, %s1117
      %s1119 = smul.addr %s1118, 4
      %s1120 = scalar_lea.vmem %s5, %s1119
      %p1121 = scmp.lt.s32.totalorder %s23, 3
      %s1122 = scalar_select %p1121, %s23, 3
      %p1123 = scmp.lt.s32.totalorder %s24, 0
      %s1124 = scalar_select %p1123, %s24, 0
      %s1125 = sadd.s32 %s1124, %s1122
      %s1126 = scalar_lea.vmem %s6, %s1125
      %p1127 = scmp.lt.s32.totalorder %s23, 3
      %s1128 = scalar_select %p1127, %s23, 3
      %p1129 = scmp.lt.s32.totalorder %s24, 0
      %s1130 = scalar_select %p1129, %s24, 0
      %s1131 = sadd.s32 %s1130, %s1128
      %s1132 = scalar_lea.vmem %s7, %s1131
      // Predicated region
      $region41: #{_lambda_.31} parent=39 // pred_check
        %p1133 = pneg %p180
      $region42: #{_lambda_.31} parent=39 // pred_check_branch
        %1135 = sbr.rel (%p1133) target = $region44
      $region43: #{_lambda_.31} parent=39 // pred_region
        %s1136 = smul.u32 16, %s24
      $region44: #{_lambda_.31} parent=39 // pred_fallthru
        _
      // Predicated region
      $region45: #{_lambda_.31} parent=39 // pred_check
        %p1137 = pneg %p208
      $region46: #{_lambda_.31} parent=39 // pred_check_branch
        %1139 = sbr.rel (%p1137) target = $region48
      $region47: #{_lambda_.31} parent=39 // pred_region
        _
      $region48: #{_lambda_.31} parent=39 // pred_fallthru
        _
      // Predicated region
      $region49: #{_lambda_.31} parent=39 // pred_check
        %p1140 = pneg %p236
      $region50: #{_lambda_.31} parent=39 // pred_check_branch
        %1142 = sbr.rel (%p1140) target = $region52
      $region51: #{_lambda_.31} parent=39 // pred_region
        _
      $region52: #{_lambda_.31} parent=39 // pred_fallthru
        _
    $region40: #{_lambda_.31} parent=5 // pred_fallthru
      _
    %p1143 = scmp.le.s32.totalorder 2, %s14
    // Predicated region
    $region53: #{_lambda_.31} parent=5 // pred_check
      %p1144 = pneg %p1143
    $region54: #{_lambda_.31} parent=5 // pred_check_branch
      %1146 = sbr.rel (%p1144) target = $region56
    $region55: #{_lambda_.31} parent=5 // pred_region
      %s1147 = ssub.s32 %s14, 2
      // Predicated region
      $region57: #{_lambda_.31} parent=55 // pred_check
        %p1148 = pneg %p186
      $region58: #{_lambda_.31} parent=55 // pred_check_branch
        %1150 = sbr.rel (%p1148) target = $region60
      $region59: #{_lambda_.31} parent=55 // pred_region
        %s1151 = smul.u32 16, %s26
        %p1152 = scmp.lt.s32.totalorder %s25, 3
        %s1153 = scalar_select %p1152, %s25, 3
        %p1154 = scmp.lt.s32.totalorder %s1151, 15
        %s1155 = scalar_select %p1154, %s1151, 15
        %s1156 = smul.addr %s1153, 16
        %s1157 = sadd.s32 %s1155, %s1156
        %s1158 = smul.addr %s1157, 4
        %s1159 = scalar_lea.vmem %s5, %s1158
      $region60: #{_lambda_.31} parent=55 // pred_fallthru
        _
      // Predicated region
      $region61: #{_lambda_.31} parent=55 // pred_check
        %p1160 = pneg %p214
      $region62: #{_lambda_.31} parent=55 // pred_check_branch
        %1162 = sbr.rel (%p1160) target = $region64
      $region63: #{_lambda_.31} parent=55 // pred_region
        %p1163 = scmp.lt.s32.totalorder %s25, 3
        %s1164 = scalar_select %p1163, %s25, 3
        %p1165 = scmp.lt.s32.totalorder %s26, 0
        %s1166 = scalar_select %p1165, %s26, 0
        %s1167 = sadd.s32 %s1166, %s1164
        %s1168 = scalar_lea.vmem %s6, %s1167
      $region64: #{_lambda_.31} parent=55 // pred_fallthru
        _
      // Predicated region
      $region65: #{_lambda_.31} parent=55 // pred_check
        %p1169 = pneg %p242
      $region66: #{_lambda_.31} parent=55 // pred_check_branch
        %1171 = sbr.rel (%p1169) target = $region68
      $region67: #{_lambda_.31} parent=55 // pred_region
        %p1172 = scmp.lt.s32.totalorder %s25, 3
        %s1173 = scalar_select %p1172, %s25, 3
        %p1174 = scmp.lt.s32.totalorder %s26, 0
        %s1175 = scalar_select %p1174, %s26, 0
        %s1176 = sadd.s32 %s1175, %s1173
        %s1177 = scalar_lea.vmem %s7, %s1176
      $region68: #{_lambda_.31} parent=55 // pred_fallthru
        _
    $region56: #{_lambda_.31} parent=5 // pred_fallthru
      _
  $region6: #{_lambda_.31} parent=0 // loop_footer
    %s18 = sadd.s32 1, %s14
  $region7: #{_lambda_.31} parent=0 // loop_footer_branch
    %13 = sbr.rel target = $region3
  $region8: #{_lambda_.31} parent=0 // loop_exit
    _

// kernel: _lambda_.32
$region0: #{_lambda_.32}
  #allocation0 [shape = 'u32[]', space=smem, size = 0x4, offset = 0x4, fixed_abs, tag = 'smem constant byte address 0x4 - core index']
  #allocation1 [shape = 'u32[144,128]{1,0:T(1,128)}', space=vmem, size = 0x12000, scoped, tag = 'internal scratch']
  %s0 = inlined_call_operand.vmem [shape: bf16[512,8], index: 0, kind: input, shape index: {}]
  %s1 = inlined_call_operand.vmem [shape: f32[1,8], index: 1, kind: input, shape index: {}]
  %s2 = inlined_call_operand.vmem [shape: f32[1,8], index: 2, kind: input, shape index: {}]
  %s3 = inlined_call_operand.vmem [shape: bf16[512,8], index: 3, kind: output, shape index: {}]
  %s4 = sld [smem:[#allocation0]]
  $region22: #{_lambda_.32} parent=0
    _
  %s6 = ssub.s32 1, %s4
  %s7 = scalar_select 0, %s6, %s4
  // Predicated region
  $region2: #{_lambda_.32} parent=0 // pred_check
    _
  $region3: #{_lambda_.32} parent=0 // pred_check_branch
    %9 = sbr.rel (0) target = $region5
  $region4: #{_lambda_.32} parent=0 // pred_region
    _
  $region5: #{_lambda_.32} parent=0 // pred_fallthru
    _
  // Predicated region
  $region6: #{_lambda_.32} parent=0 // pred_check
    _
  $region7: #{_lambda_.32} parent=0 // pred_check_branch
    %11 = sbr.rel (0) target = $region9
  $region8: #{_lambda_.32} parent=0 // pred_region
    _
  $region9: #{_lambda_.32} parent=0 // pred_fallthru
    _
  // Predicated region
  $region10: #{_lambda_.32} parent=0 // pred_check
    _
  $region11: #{_lambda_.32} parent=0 // pred_check_branch
    %13 = sbr.rel (0) target = $region13
  $region12: #{_lambda_.32} parent=0 // pred_region
    _
  $region13: #{_lambda_.32} parent=0 // pred_fallthru
    _
  %v14 = vld [vmem:[%s0] sm:$0xf]
  %v15 = vld [vmem:[%s0 + $0x4] sm:$0xf]
  %v16 = vld [vmem:[%s0 + $0x8] sm:$0xf]
  %v17 = vld [vmem:[%s0 + $0xc] sm:$0xf]
  %v18 = vld [vmem:[%s0 + $0x10] sm:$0xf]
  %v19 = vld [vmem:[%s0 + $0x14] sm:$0xf]
  %v20 = vld [vmem:[%s0 + $0x18] sm:$0xf]
  %v21 = vld [vmem:[%s0 + $0x1c] sm:$0xf]
  %v22 = vld [vmem:[%s0 + $0x20] sm:$0xf]
  %v23 = vld [vmem:[%s0 + $0x24] sm:$0xf]
  %v24 = vld [vmem:[%s0 + $0x28] sm:$0xf]
  %v25 = vld [vmem:[%s0 + $0x2c] sm:$0xf]
  %v26 = vld [vmem:[%s0 + $0x30] sm:$0xf]
  %v27 = vld [vmem:[%s0 + $0x34] sm:$0xf]
  %v28 = vld [vmem:[%s0 + $0x38] sm:$0xf]
  %v29 = vld [vmem:[%s0 + $0x3c] sm:$0xf]
  %v30 = vld [vmem:[%s0 + $0x40] sm:$0xf]
  %v31 = vld [vmem:[%s0 + $0x44] sm:$0xf]
  %v32 = vld [vmem:[%s0 + $0x48] sm:$0xf]
  %v33 = vld [vmem:[%s0 + $0x4c] sm:$0xf]
  %v34 = vld [vmem:[%s0 + $0x50] sm:$0xf]
  %v35 = vld [vmem:[%s0 + $0x54] sm:$0xf]
  %v36 = vld [vmem:[%s0 + $0x58] sm:$0xf]
  %v37 = vld [vmem:[%s0 + $0x5c] sm:$0xf]
  %v38 = vld [vmem:[%s0 + $0x60] sm:$0xf]
  %v39 = vld [vmem:[%s0 + $0x64] sm:$0xf]
  %v40 = vld [vmem:[%s0 + $0x68] sm:$0xf]
  %v41 = vld [vmem:[%s0 + $0x6c] sm:$0xf]
  %v42 = vld [vmem:[%s0 + $0x70] sm:$0xf]
  %v43 = vld [vmem:[%s0 + $0x74] sm:$0xf]
  %v44 = vld [vmem:[%s0 + $0x78] sm:$0xf]
  %v45 = vld [vmem:[%s0 + $0x7c] sm:$0xf]
  %v46 = vld [vmem:[%s0 + $0x80] sm:$0xf]
  %v47 = vld [vmem:[%s0 + $0x84] sm:$0xf]
  %v48 = vld [vmem:[%s0 + $0x88] sm:$0xf]
  %v49 = vld [vmem:[%s0 + $0x8c] sm:$0xf]
  %v50 = vld [vmem:[%s0 + $0x90] sm:$0xf]
  %v51 = vld [vmem:[%s0 + $0x94] sm:$0xf]
  %v52 = vld [vmem:[%s0 + $0x98] sm:$0xf]
  %v53 = vld [vmem:[%s0 + $0x9c] sm:$0xf]
  %v54 = vld [vmem:[%s0 + $0xa0] sm:$0xf]
  %v55 = vld [vmem:[%s0 + $0xa4] sm:$0xf]
  %v56 = vld [vmem:[%s0 + $0xa8] sm:$0xf]
  %v57 = vld [vmem:[%s0 + $0xac] sm:$0xf]
  %v58 = vld [vmem:[%s0 + $0xb0] sm:$0xf]
  %v59 = vld [vmem:[%s0 + $0xb4] sm:$0xf]
  %v60 = vld [vmem:[%s0 + $0xb8] sm:$0xf]
  %v61 = vld [vmem:[%s0 + $0xbc] sm:$0xf]
  %v62 = vld [vmem:[%s0 + $0xc0] sm:$0xf]
  %v63 = vld [vmem:[%s0 + $0xc4] sm:$0xf]
  %v64 = vld [vmem:[%s0 + $0xc8] sm:$0xf]
  %v65 = vld [vmem:[%s0 + $0xcc] sm:$0xf]
  %v66 = vld [vmem:[%s0 + $0xd0] sm:$0xf]
  %v67 = vld [vmem:[%s0 + $0xd4] sm:$0xf]
  %v68 = vld [vmem:[%s0 + $0xd8] sm:$0xf]
  %v69 = vld [vmem:[%s0 + $0xdc] sm:$0xf]
  %v70 = vld [vmem:[%s0 + $0xe0] sm:$0xf]
  %v71 = vld [vmem:[%s0 + $0xe4] sm:$0xf]
  %v72 = vld [vmem:[%s0 + $0xe8] sm:$0xf]
  %v73 = vld [vmem:[%s0 + $0xec] sm:$0xf]
  %v74 = vld [vmem:[%s0 + $0xf0] sm:$0xf]
  %v75 = vld [vmem:[%s0 + $0xf4] sm:$0xf]
  %v76 = vld [vmem:[%s0 + $0xf8] sm:$0xf]
  %v77 = vld [vmem:[%s0 + $0xfc] sm:$0xf]
  %v78 = vunpack.c.l.bf16 %v14
  %v79 = vunpack.c.l.bf16 %v15
  %v80 = vunpack.c.l.bf16 %v16
  %v81 = vunpack.c.l.bf16 %v17
  %v82 = vunpack.c.l.bf16 %v18
  %v83 = vunpack.c.l.bf16 %v19
  %v84 = vunpack.c.l.bf16 %v20
  %v85 = vunpack.c.l.bf16 %v21
  %v86 = vunpack.c.l.bf16 %v22
  %v87 = vunpack.c.l.bf16 %v23
  %v88 = vunpack.c.l.bf16 %v24
  %v89 = vunpack.c.l.bf16 %v25
  %v90 = vunpack.c.l.bf16 %v26
  %v91 = vunpack.c.l.bf16 %v27
  %v92 = vunpack.c.l.bf16 %v28
  %v93 = vunpack.c.l.bf16 %v29
  %v94 = vunpack.c.l.bf16 %v30
  %v95 = vunpack.c.l.bf16 %v31
  %v96 = vunpack.c.l.bf16 %v32
  %v97 = vunpack.c.l.bf16 %v33
  %v98 = vunpack.c.l.bf16 %v34
  %v99 = vunpack.c.l.bf16 %v35
  %v100 = vunpack.c.l.bf16 %v36
  %v101 = vunpack.c.l.bf16 %v37
  %v102 = vunpack.c.l.bf16 %v38
  %v103 = vunpack.c.l.bf16 %v39
  %v104 = vunpack.c.l.bf16 %v40
  %v105 = vunpack.c.l.bf16 %v41
  %v106 = vunpack.c.l.bf16 %v42
  %v107 = vunpack.c.l.bf16 %v43
  %v108 = vunpack.c.l.bf16 %v44
  %v109 = vunpack.c.l.bf16 %v45
  %v110 = vunpack.c.l.bf16 %v46
  %v111 = vunpack.c.l.bf16 %v47
  %v112 = vunpack.c.l.bf16 %v48
  %v113 = vunpack.c.l.bf16 %v49
  %v114 = vunpack.c.l.bf16 %v50
  %v115 = vunpack.c.l.bf16 %v51
  %v116 = vunpack.c.l.bf16 %v52
  %v117 = vunpack.c.l.bf16 %v53
  %v118 = vunpack.c.l.bf16 %v54
  %v119 = vunpack.c.l.bf16 %v55
  %v120 = vunpack.c.l.bf16 %v56
  %v121 = vunpack.c.l.bf16 %v57
  %v122 = vunpack.c.l.bf16 %v58
  %v123 = vunpack.c.l.bf16 %v59
  %v124 = vunpack.c.l.bf16 %v60
  %v125 = vunpack.c.l.bf16 %v61
  %v126 = vunpack.c.l.bf16 %v62
  %v127 = vunpack.c.l.bf16 %v63
  %v128 = vunpack.c.l.bf16 %v64
  %v129 = vunpack.c.l.bf16 %v65
  %v130 = vunpack.c.l.bf16 %v66
  %v131 = vunpack.c.l.bf16 %v67
  %v132 = vunpack.c.l.bf16 %v68
  %v133 = vunpack.c.l.bf16 %v69
  %v134 = vunpack.c.l.bf16 %v70
  %v135 = vunpack.c.l.bf16 %v71
  %v136 = vunpack.c.l.bf16 %v72
  %v137 = vunpack.c.l.bf16 %v73
  %v138 = vunpack.c.l.bf16 %v74
  %v139 = vunpack.c.l.bf16 %v75
  %v140 = vunpack.c.l.bf16 %v76
  %v141 = vunpack.c.l.bf16 %v77
  %v142 = vld [vmem:[%s1] sm:$0x1]
  %v144 = vlaneseq
  %v145 = vshrl.u32 %v144, 7
  %v146 = vsub.s32 0, %v145
  %v147 = vrot.slane %v142, %v146
  %v149 = vmul.f32 %v78, %v147
  %v150 = vmul.f32 %v79, %v147
  %v151 = vmul.f32 %v80, %v147
  %v152 = vmul.f32 %v81, %v147
  %v153 = vmul.f32 %v82, %v147
  %v154 = vmul.f32 %v83, %v147
  %v155 = vmul.f32 %v84, %v147
  %v156 = vmul.f32 %v85, %v147
  %v157 = vmul.f32 %v86, %v147
  %v158 = vmul.f32 %v87, %v147
  %v159 = vmul.f32 %v88, %v147
  %v160 = vmul.f32 %v89, %v147
  %v161 = vmul.f32 %v90, %v147
  %v162 = vmul.f32 %v91, %v147
  %v163 = vmul.f32 %v92, %v147
  %v164 = vmul.f32 %v93, %v147
  %v165 = vmul.f32 %v94, %v147
  %v166 = vmul.f32 %v95, %v147
  %v167 = vmul.f32 %v96, %v147
  %v168 = vmul.f32 %v97, %v147
  %v169 = vmul.f32 %v98, %v147
  %v170 = vmul.f32 %v99, %v147
  %v171 = vmul.f32 %v100, %v147
  %v172 = vmul.f32 %v101, %v147
  %v173 = vmul.f32 %v102, %v147
  %v174 = vmul.f32 %v103, %v147
  %v175 = vmul.f32 %v104, %v147
  %v176 = vmul.f32 %v105, %v147
  %v177 = vmul.f32 %v106, %v147
  %v178 = vmul.f32 %v107, %v147
  %v179 = vmul.f32 %v108, %v147
  %v180 = vmul.f32 %v109, %v147
  %v181 = vmul.f32 %v110, %v147
  %v182 = vmul.f32 %v111, %v147
  %v183 = vmul.f32 %v112, %v147
  %v184 = vmul.f32 %v113, %v147
  %v185 = vmul.f32 %v114, %v147
  %v186 = vmul.f32 %v115, %v147
  %v187 = vmul.f32 %v116, %v147
  %v188 = vmul.f32 %v117, %v147
  %v189 = vmul.f32 %v118, %v147
  %v190 = vmul.f32 %v119, %v147
  %v191 = vmul.f32 %v120, %v147
  %v192 = vmul.f32 %v121, %v147
  %v193 = vmul.f32 %v122, %v147
  %v194 = vmul.f32 %v123, %v147
  %v195 = vmul.f32 %v124, %v147
  %v196 = vmul.f32 %v125, %v147
  %v197 = vmul.f32 %v126, %v147
  %v198 = vmul.f32 %v127, %v147
  %v199 = vmul.f32 %v128, %v147
  %v200 = vmul.f32 %v129, %v147
  %v201 = vmul.f32 %v130, %v147
  %v202 = vmul.f32 %v131, %v147
  %v203 = vmul.f32 %v132, %v147
  %v204 = vmul.f32 %v133, %v147
  %v205 = vmul.f32 %v134, %v147
  %v206 = vmul.f32 %v135, %v147
  %v207 = vmul.f32 %v136, %v147
  %v208 = vmul.f32 %v137, %v147
  %v209 = vmul.f32 %v138, %v147
  %v210 = vmul.f32 %v139, %v147
  %v211 = vmul.f32 %v140, %v147
  %v212 = vmul.f32 %v141, %v147
  %v213 = vld [vmem:[%s2] sm:$0x1]
  %v215 = vlaneseq
  %v216 = vshrl.u32 %v215, 7
  %v217 = vsub.s32 0, %v216
  %v218 = vrot.slane %v213, %v217
  %v220 = vadd.f32 %v149, %v218
  %v221 = vadd.f32 %v150, %v218
  %v222 = vadd.f32 %v151, %v218
  %v223 = vadd.f32 %v152, %v218
  %v224 = vadd.f32 %v153, %v218
  %v225 = vadd.f32 %v154, %v218
  %v226 = vadd.f32 %v155, %v218
  %v227 = vadd.f32 %v156, %v218
  %v228 = vadd.f32 %v157, %v218
  %v229 = vadd.f32 %v158, %v218
  %v230 = vadd.f32 %v159, %v218
  %v231 = vadd.f32 %v160, %v218
  %v232 = vadd.f32 %v161, %v218
  %v233 = vadd.f32 %v162, %v218
  %v234 = vadd.f32 %v163, %v218
  %v235 = vadd.f32 %v164, %v218
  %v236 = vadd.f32 %v165, %v218
  %v237 = vadd.f32 %v166, %v218
  %v238 = vadd.f32 %v167, %v218
  %v239 = vadd.f32 %v168, %v218
  %v240 = vadd.f32 %v169, %v218
  %v241 = vadd.f32 %v170, %v218
  %v242 = vadd.f32 %v171, %v218
  %v243 = vadd.f32 %v172, %v218
  %v244 = vadd.f32 %v173, %v218
  %v245 = vadd.f32 %v174, %v218
  %v246 = vadd.f32 %v175, %v218
  %v247 = vadd.f32 %v176, %v218
  %v248 = vadd.f32 %v177, %v218
  %v249 = vadd.f32 %v178, %v218
  %v250 = vadd.f32 %v179, %v218
  %v251 = vadd.f32 %v180, %v218
  %v252 = vadd.f32 %v181, %v218
  %v253 = vadd.f32 %v182, %v218
  %v254 = vadd.f32 %v183, %v218
  %v255 = vadd.f32 %v184, %v218
  %v256 = vadd.f32 %v185, %v218
  %v257 = vadd.f32 %v186, %v218
  %v258 = vadd.f32 %v187, %v218
  %v259 = vadd.f32 %v188, %v218
  %v260 = vadd.f32 %v189, %v218
  %v261 = vadd.f32 %v190, %v218
  %v262 = vadd.f32 %v191, %v218
  %v263 = vadd.f32 %v192, %v218
  %v264 = vadd.f32 %v193, %v218
  %v265 = vadd.f32 %v194, %v218
  %v266 = vadd.f32 %v195, %v218
  %v267 = vadd.f32 %v196, %v218
  %v268 = vadd.f32 %v197, %v218
  %v269 = vadd.f32 %v198, %v218
  %v270 = vadd.f32 %v199, %v218
  %v271 = vadd.f32 %v200, %v218
  %v272 = vadd.f32 %v201, %v218
  %v273 = vadd.f32 %v202, %v218
  %v274 = vadd.f32 %v203, %v218
  %v275 = vadd.f32 %v204, %v218
  %v276 = vadd.f32 %v205, %v218
  %v277 = vadd.f32 %v206, %v218
  %v278 = vadd.f32 %v207, %v218
  %v279 = vadd.f32 %v208, %v218
  %v280 = vadd.f32 %v209, %v218
  %v281 = vadd.f32 %v210, %v218
  %v282 = vadd.f32 %v211, %v218
  %v283 = vadd.f32 %v212, %v218
  %v284 = vmax.f32 %v220, 0.0
  %v285 = vmax.f32 %v221, 0.0
  %v286 = vmax.f32 %v222, 0.0
  %v287 = vmax.f32 %v223, 0.0
  %v288 = vmax.f32 %v224, 0.0
  %v289 = vmax.f32 %v225, 0.0
  %v290 = vmax.f32 %v226, 0.0
  %v291 = vmax.f32 %v227, 0.0
  %v292 = vmax.f32 %v228, 0.0
  %v293 = vmax.f32 %v229, 0.0
  %v294 = vmax.f32 %v230, 0.0
  %v295 = vmax.f32 %v231, 0.0
  %v296 = vmax.f32 %v232, 0.0
  %v297 = vmax.f32 %v233, 0.0
  %v298 = vmax.f32 %v234, 0.0
  %v299 = vmax.f32 %v235, 0.0
  %v300 = vmax.f32 %v236, 0.0
  %v301 = vmax.f32 %v237, 0.0
  %v302 = vmax.f32 %v238, 0.0
  %v303 = vmax.f32 %v239, 0.0
  %v304 = vmax.f32 %v240, 0.0
  %v305 = vmax.f32 %v241, 0.0
  %v306 = vmax.f32 %v242, 0.0
  %v307 = vmax.f32 %v243, 0.0
  %v308 = vmax.f32 %v244, 0.0
  %v309 = vmax.f32 %v245, 0.0
  %v310 = vmax.f32 %v246, 0.0
  %v311 = vmax.f32 %v247, 0.0
  %v312 = vmax.f32 %v248, 0.0
  %v313 = vmax.f32 %v249, 0.0
  %v314 = vmax.f32 %v250, 0.0
  %v315 = vmax.f32 %v251, 0.0
  %v316 = vmax.f32 %v252, 0.0
  %v317 = vmax.f32 %v253, 0.0
  %v318 = vmax.f32 %v254, 0.0
  %v319 = vmax.f32 %v255, 0.0
  %v320 = vmax.f32 %v256, 0.0
  %v321 = vmax.f32 %v257, 0.0
  %v322 = vmax.f32 %v258, 0.0
  %v323 = vmax.f32 %v259, 0.0
  %v324 = vmax.f32 %v260, 0.0
  %v325 = vmax.f32 %v261, 0.0
  %v326 = vmax.f32 %v262, 0.0
  %v327 = vmax.f32 %v263, 0.0
  %v328 = vmax.f32 %v264, 0.0
  %v329 = vmax.f32 %v265, 0.0
  %v330 = vmax.f32 %v266, 0.0
  %v331 = vmax.f32 %v267, 0.0
  %v332 = vmax.f32 %v268, 0.0
  %v333 = vmax.f32 %v269, 0.0
  %v334 = vmax.f32 %v270, 0.0
  %v335 = vmax.f32 %v271, 0.0
  %v336 = vmax.f32 %v272, 0.0
  %v337 = vmax.f32 %v273, 0.0
  %v338 = vmax.f32 %v274, 0.0
  %v339 = vmax.f32 %v275, 0.0
  %v340 = vmax.f32 %v276, 0.0
  %v341 = vmax.f32 %v277, 0.0
  %v342 = vmax.f32 %v278, 0.0
  %v343 = vmax.f32 %v279, 0.0
  %v344 = vmax.f32 %v280, 0.0
  %v345 = vmax.f32 %v281, 0.0
  %v346 = vmax.f32 %v282, 0.0
  %v347 = vmax.f32 %v283, 0.0
  %v348 = vpack.c.bf16 %v285, %v284
  %v349 = vpack.c.bf16 %v287, %v286
  %v350 = vpack.c.bf16 %v289, %v288
  %v351 = vpack.c.bf16 %v291, %v290
  %v352 = vpack.c.bf16 %v293, %v292
  %v353 = vpack.c.bf16 %v295, %v294
  %v354 = vpack.c.bf16 %v297, %v296
  %v355 = vpack.c.bf16 %v299, %v298
  %v356 = vpack.c.bf16 %v301, %v300
  %v357 = vpack.c.bf16 %v303, %v302
  %v358 = vpack.c.bf16 %v305, %v304
  %v359 = vpack.c.bf16 %v307, %v306
  %v360 = vpack.c.bf16 %v309, %v308
  %v361 = vpack.c.bf16 %v311, %v310
  %v362 = vpack.c.bf16 %v313, %v312
  %v363 = vpack.c.bf16 %v315, %v314
  %v364 = vpack.c.bf16 %v317, %v316
  %v365 = vpack.c.bf16 %v319, %v318
  %v366 = vpack.c.bf16 %v321, %v320
  %v367 = vpack.c.bf16 %v323, %v322
  %v368 = vpack.c.bf16 %v325, %v324
  %v369 = vpack.c.bf16 %v327, %v326
  %v370 = vpack.c.bf16 %v329, %v328
  %v371 = vpack.c.bf16 %v331, %v330
  %v372 = vpack.c.bf16 %v333, %v332
  %v373 = vpack.c.bf16 %v335, %v334
  %v374 = vpack.c.bf16 %v337, %v336
  %v375 = vpack.c.bf16 %v339, %v338
  %v376 = vpack.c.bf16 %v341, %v340
  %v377 = vpack.c.bf16 %v343, %v342
  %v378 = vpack.c.bf16 %v345, %v344
  %v379 = vpack.c.bf16 %v347, %v346
  %v412 = vunpack.c.l.b16 %v348
  %v413 = vunpack.c.h.b16 %v348
  %v414 = vunpack.c.l.b16 %v349
  %v415 = vunpack.c.h.b16 %v349
  %v416 = vunpack.c.l.b16 %v350
  %v417 = vunpack.c.h.b16 %v350
  %v418 = vunpack.c.l.b16 %v351
  %v419 = vunpack.c.h.b16 %v351
  %v420 = vunpack.c.l.b16 %v352
  %v421 = vunpack.c.h.b16 %v352
  %v422 = vunpack.c.l.b16 %v353
  %v423 = vunpack.c.h.b16 %v353
  %v424 = vunpack.c.l.b16 %v354
  %v425 = vunpack.c.h.b16 %v354
  %v426 = vunpack.c.l.b16 %v355
  %v427 = vunpack.c.h.b16 %v355
  %v428 = vunpack.c.l.b16 %v356
  %v429 = vunpack.c.h.b16 %v356
  %v430 = vunpack.c.l.b16 %v357
  %v431 = vunpack.c.h.b16 %v357
  %v432 = vunpack.c.l.b16 %v358
  %v433 = vunpack.c.h.b16 %v358
  %v434 = vunpack.c.l.b16 %v359
  %v435 = vunpack.c.h.b16 %v359
  %v436 = vunpack.c.l.b16 %v360
  %v437 = vunpack.c.h.b16 %v360
  %v438 = vunpack.c.l.b16 %v361
  %v439 = vunpack.c.h.b16 %v361
  %v440 = vunpack.c.l.b16 %v362
  %v441 = vunpack.c.h.b16 %v362
  %v442 = vunpack.c.l.b16 %v363
  %v443 = vunpack.c.h.b16 %v363
  %v444 = vunpack.c.l.b16 %v364
  %v445 = vunpack.c.h.b16 %v364
  %v446 = vunpack.c.l.b16 %v365
  %v447 = vunpack.c.h.b16 %v365
  %v448 = vunpack.c.l.b16 %v366
  %v449 = vunpack.c.h.b16 %v366
  %v450 = vunpack.c.l.b16 %v367
  %v451 = vunpack.c.h.b16 %v367
  %v452 = vunpack.c.l.b16 %v368
  %v453 = vunpack.c.h.b16 %v368
  %v454 = vunpack.c.l.b16 %v369
  %v455 = vunpack.c.h.b16 %v369
  %v456 = vunpack.c.l.b16 %v370
  %v457 = vunpack.c.h.b16 %v370
  %v458 = vunpack.c.l.b16 %v371
  %v459 = vunpack.c.h.b16 %v371
  %v460 = vunpack.c.l.b16 %v372
  %v461 = vunpack.c.h.b16 %v372
  %v462 = vunpack.c.l.b16 %v373
  %v463 = vunpack.c.h.b16 %v373
  %v464 = vunpack.c.l.b16 %v374
  %v465 = vunpack.c.h.b16 %v374
  %v466 = vunpack.c.l.b16 %v375
  %v467 = vunpack.c.h.b16 %v375
  %v468 = vunpack.c.l.b16 %v376
  %v469 = vunpack.c.h.b16 %v376
  %v470 = vunpack.c.l.b16 %v377
  %v471 = vunpack.c.h.b16 %v377
  %v472 = vunpack.c.l.b16 %v378
  %v473 = vunpack.c.h.b16 %v378
  %v474 = vunpack.c.l.b16 %v379
  %v475 = vunpack.c.h.b16 %v379
  %v476 = vpack.c.b16 %v412, %v412
  %v477 = vpack.c.b16 %v413, %v413
  %v478 = vpack.c.b16 %v414, %v414
  %v479 = vpack.c.b16 %v415, %v415
  %v480 = vpack.c.b16 %v416, %v416
  %v481 = vpack.c.b16 %v417, %v417
  %v482 = vpack.c.b16 %v418, %v418
  %v483 = vpack.c.b16 %v419, %v419
  %v484 = vpack.c.b16 %v420, %v420
  %v485 = vpack.c.b16 %v421, %v421
  %v486 = vpack.c.b16 %v422, %v422
  %v487 = vpack.c.b16 %v423, %v423
  %v488 = vpack.c.b16 %v424, %v424
  %v489 = vpack.c.b16 %v425, %v425
  %v490 = vpack.c.b16 %v426, %v426
  %v491 = vpack.c.b16 %v427, %v427
  %v492 = vpack.c.b16 %v428, %v428
  %v493 = vpack.c.b16 %v429, %v429
  %v494 = vpack.c.b16 %v430, %v430
  %v495 = vpack.c.b16 %v431, %v431
  %v496 = vpack.c.b16 %v432, %v432
  %v497 = vpack.c.b16 %v433, %v433
  %v498 = vpack.c.b16 %v434, %v434
  %v499 = vpack.c.b16 %v435, %v435
  %v500 = vpack.c.b16 %v436, %v436
  %v501 = vpack.c.b16 %v437, %v437
  %v502 = vpack.c.b16 %v438, %v438
  %v503 = vpack.c.b16 %v439, %v439
  %v504 = vpack.c.b16 %v440, %v440
  %v505 = vpack.c.b16 %v441, %v441
  %v506 = vpack.c.b16 %v442, %v442
  %v507 = vpack.c.b16 %v443, %v443
  %v508 = vpack.c.b16 %v444, %v444
  %v509 = vpack.c.b16 %v445, %v445
  %v510 = vpack.c.b16 %v446, %v446
  %v511 = vpack.c.b16 %v447, %v447
  %v512 = vpack.c.b16 %v448, %v448
  %v513 = vpack.c.b16 %v449, %v449
  %v514 = vpack.c.b16 %v450, %v450
  %v515 = vpack.c.b16 %v451, %v451
  %v516 = vpack.c.b16 %v452, %v452
  %v517 = vpack.c.b16 %v453, %v453
  %v518 = vpack.c.b16 %v454, %v454
  %v519 = vpack.c.b16 %v455, %v455
  %v520 = vpack.c.b16 %v456, %v456
  %v521 = vpack.c.b16 %v457, %v457
  %v522 = vpack.c.b16 %v458, %v458
  %v523 = vpack.c.b16 %v459, %v459
  %v524 = vpack.c.b16 %v460, %v460
  %v525 = vpack.c.b16 %v461, %v461
  %v526 = vpack.c.b16 %v462, %v462
  %v527 = vpack.c.b16 %v463, %v463
  %v528 = vpack.c.b16 %v464, %v464
  %v529 = vpack.c.b16 %v465, %v465
  %v530 = vpack.c.b16 %v466, %v466
  %v531 = vpack.c.b16 %v467, %v467
  %v532 = vpack.c.b16 %v468, %v468
  %v533 = vpack.c.b16 %v469, %v469
  %v534 = vpack.c.b16 %v470, %v470
  %v535 = vpack.c.b16 %v471, %v471
  %v536 = vpack.c.b16 %v472, %v472
  %v537 = vpack.c.b16 %v473, %v473
  %v538 = vpack.c.b16 %v474, %v474
  %v539 = vpack.c.b16 %v475, %v475
  %vm604 = vcmask 60416
  %605 = vst.msk [vmem:[%s3] sm:$0xf] %vm604, %v476
  %606 = vst.msk [vmem:[%s3 + $0x4] sm:$0xf] %vm604, %v477
  %607 = vst.msk [vmem:[%s3 + $0x8] sm:$0xf] %vm604, %v478
  %608 = vst.msk [vmem:[%s3 + $0xc] sm:$0xf] %vm604, %v479
  %609 = vst.msk [vmem:[%s3 + $0x10] sm:$0xf] %vm604, %v480
  %610 = vst.msk [vmem:[%s3 + $0x14] sm:$0xf] %vm604, %v481
  %611 = vst.msk [vmem:[%s3 + $0x18] sm:$0xf] %vm604, %v482
  %612 = vst.msk [vmem:[%s3 + $0x1c] sm:$0xf] %vm604, %v483
  %613 = vst.msk [vmem:[%s3 + $0x20] sm:$0xf] %vm604, %v484
  %614 = vst.msk [vmem:[%s3 + $0x24] sm:$0xf] %vm604, %v485
  %615 = vst.msk [vmem:[%s3 + $0x28] sm:$0xf] %vm604, %v486
  %616 = vst.msk [vmem:[%s3 + $0x2c] sm:$0xf] %vm604, %v487
  %617 = vst.msk [vmem:[%s3 + $0x30] sm:$0xf] %vm604, %v488
  %618 = vst.msk [vmem:[%s3 + $0x34] sm:$0xf] %vm604, %v489
  %619 = vst.msk [vmem:[%s3 + $0x38] sm:$0xf] %vm604, %v490
  %620 = vst.msk [vmem:[%s3 + $0x3c] sm:$0xf] %vm604, %v491
  %621 = vst.msk [vmem:[%s3 + $0x40] sm:$0xf] %vm604, %v492
  %622 = vst.msk [vmem:[%s3 + $0x44] sm:$0xf] %vm604, %v493
  %623 = vst.msk [vmem:[%s3 + $0x48] sm:$0xf] %vm604, %v494
  %624 = vst.msk [vmem:[%s3 + $0x4c] sm:$0xf] %vm604, %v495
  %625 = vst.msk [vmem:[%s3 + $0x50] sm:$0xf] %vm604, %v496
  %626 = vst.msk [vmem:[%s3 + $0x54] sm:$0xf] %vm604, %v497
  %627 = vst.msk [vmem:[%s3 + $0x58] sm:$0xf] %vm604, %v498
  %628 = vst.msk [vmem:[%s3 + $0x5c] sm:$0xf] %vm604, %v499
  %629 = vst.msk [vmem:[%s3 + $0x60] sm:$0xf] %vm604, %v500
  %630 = vst.msk [vmem:[%s3 + $0x64] sm:$0xf] %vm604, %v501
  %631 = vst.msk [vmem:[%s3 + $0x68] sm:$0xf] %vm604, %v502
  %632 = vst.msk [vmem:[%s3 + $0x6c] sm:$0xf] %vm604, %v503
  %633 = vst.msk [vmem:[%s3 + $0x70] sm:$0xf] %vm604, %v504
  %634 = vst.msk [vmem:[%s3 + $0x74] sm:$0xf] %vm604, %v505
  %635 = vst.msk [vmem:[%s3 + $0x78] sm:$0xf] %vm604, %v506
  %636 = vst.msk [vmem:[%s3 + $0x7c] sm:$0xf] %vm604, %v507
  %637 = vst.msk [vmem:[%s3 + $0x80] sm:$0xf] %vm604, %v508
  %638 = vst.msk [vmem:[%s3 + $0x84] sm:$0xf] %vm604, %v509
  %639 = vst.msk [vmem:[%s3 + $0x88] sm:$0xf] %vm604, %v510
  %640 = vst.msk [vmem:[%s3 + $0x8c] sm:$0xf] %vm604, %v511
  %641 = vst.msk [vmem:[%s3 + $0x90] sm:$0xf] %vm604, %v512
  %642 = vst.msk [vmem:[%s3 + $0x94] sm:$0xf] %vm604, %v513
  %643 = vst.msk [vmem:[%s3 + $0x98] sm:$0xf] %vm604, %v514
  %644 = vst.msk [vmem:[%s3 + $0x9c] sm:$0xf] %vm604, %v515
  %645 = vst.msk [vmem:[%s3 + $0xa0] sm:$0xf] %vm604, %v516
  %646 = vst.msk [vmem:[%s3 + $0xa4] sm:$0xf] %vm604, %v517
  %647 = vst.msk [vmem:[%s3 + $0xa8] sm:$0xf] %vm604, %v518
  %648 = vst.msk [vmem:[%s3 + $0xac] sm:$0xf] %vm604, %v519
  %649 = vst.msk [vmem:[%s3 + $0xb0] sm:$0xf] %vm604, %v520
  %650 = vst.msk [vmem:[%s3 + $0xb4] sm:$0xf] %vm604, %v521
  %651 = vst.msk [vmem:[%s3 + $0xb8] sm:$0xf] %vm604, %v522
  %652 = vst.msk [vmem:[%s3 + $0xbc] sm:$0xf] %vm604, %v523
  %653 = vst.msk [vmem:[%s3 + $0xc0] sm:$0xf] %vm604, %v524
  %654 = vst.msk [vmem:[%s3 + $0xc4] sm:$0xf] %vm604, %v525
  %655 = vst.msk [vmem:[%s3 + $0xc8] sm:$0xf] %vm604, %v526
  %656 = vst.msk [vmem:[%s3 + $0xcc] sm:$0xf] %vm604, %v527
  %657 = vst.msk [vmem:[%s3 + $0xd0] sm:$0xf] %vm604, %v528
  %658 = vst.msk [vmem:[%s3 + $0xd4] sm:$0xf] %vm604, %v529
  %659 = vst.msk [vmem:[%s3 + $0xd8] sm:$0xf] %vm604, %v530
  %660 = vst.msk [vmem:[%s3 + $0xdc] sm:$0xf] %vm604, %v531
  %661 = vst.msk [vmem:[%s3 + $0xe0] sm:$0xf] %vm604, %v532
  %662 = vst.msk [vmem:[%s3 + $0xe4] sm:$0xf] %vm604, %v533
  %663 = vst.msk [vmem:[%s3 + $0xe8] sm:$0xf] %vm604, %v534
  %664 = vst.msk [vmem:[%s3 + $0xec] sm:$0xf] %vm604, %v535
  %665 = vst.msk [vmem:[%s3 + $0xf0] sm:$0xf] %vm604, %v536
  %666 = vst.msk [vmem:[%s3 + $0xf4] sm:$0xf] %vm604, %v537
  %667 = vst.msk [vmem:[%s3 + $0xf8] sm:$0xf] %vm604, %v538
  %668 = vst.msk [vmem:[%s3 + $0xfc] sm:$0xf] %vm604, %v539
  // Predicated region
  $region14: #{_lambda_.32} parent=0 // pred_check
    _
  $region15: #{_lambda_.32} parent=0 // pred_check_branch
    %670 = sbr.rel (0) target = $region17
  $region16: #{_lambda_.32} parent=0 // pred_region
    _
  $region17: #{_lambda_.32} parent=0 // pred_fallthru
    _
  // Predicated region
  $region18: #{_lambda_.32} parent=0 // pred_check
    _
  $region19: #{_lambda_.32} parent=0 // pred_check_branch
    %672 = sbr.rel (0) target = $region21
  $region20: #{_lambda_.32} parent=0 // pred_region
    _
  $region21: #{_lambda_.32} parent=0 // pred_fallthru
    _

// kernel: _lambda_.33
$region0: #{_lambda_.33}
  #allocation0 [shape = 'u32[]', space=smem, size = 0x4, offset = 0x4, fixed_abs, tag = 'smem constant byte address 0x4 - core index']
  #allocation1 [shape = 'u32[144,128]{1,0:T(1,128)}', space=vmem, size = 0x12000, scoped, tag = 'internal scratch']
  %s0 = inlined_call_operand.vmem [shape: bf16[4,512,32], index: 0, kind: input, shape index: {}]
  %s1 = inlined_call_operand.vmem [shape: bf16[4,512,32], index: 1, kind: input, shape index: {}]
  %s2 = inlined_call_operand.vmem [shape: bf16[4,32,3], index: 2, kind: input, shape index: {}]
  %s3 = inlined_call_operand.vmem [shape: bf16[4,32,3], index: 3, kind: input, shape index: {}]
  %s4 = inlined_call_operand.vmem [shape: f32[1,1,3], index: 4, kind: input, shape index: {}]
  %s5 = inlined_call_operand.vmem [shape: f32[4,512,3], index: 5, kind: output, shape index: {}]
  %s6 = sld [smem:[#allocation0]]
  $region53: #{_lambda_.33} parent=0
    _
  %s8 = ssub.s32 1, %s6
  %s9 = scalar_select 0, %s8, %s6
  loop: start=0, step=1, limit=10
  $region2: #{_lambda_.33} parent=0 // loop_pre_header
    _
  $region3: #{_lambda_.33} parent=0 // loop_header
    %s11 = sphi 0, %s15
    %p12 = scmp.ge.s32.totalorder %s11, 10
    %s18 = sphi 0, %s30
    %s19 = sphi 0, %s26
    %s20 = sphi 0, %s18
    %s21 = sphi 0, %s19
    %s22 = sphi 0, %s20
    %s23 = sphi 0, %s21
    %s35 = sphi 0, %s37
    %s38 = sphi 0, %s35
    %s39 = sphi 0, %s38
    %s55 = sphi 0, %s39
    %s63 = sphi 0, %s65
    %s66 = sphi 0, %s63
    %s67 = sphi 0, %s66
    %s83 = sphi 0, %s67
    %s89 = sphi 0, %s91
    %s92 = sphi 0, %s89
    %s93 = sphi 0, %s92
    %s109 = sphi 0, %s93
    %s115 = sphi 0, %s117
    %s118 = sphi 0, %s115
    %s119 = sphi 0, %s118
    %s135 = sphi 0, %s119
    %s139 = sphi 0, %s139
    %s141 = sphi 0, %s139
    %s142 = sphi 0, %s141
    %s156 = sphi 0, %s142
    %s164 = sphi 0, %s166
    %s167 = sphi 0, %s164
    %s168 = sphi 0, %s167
    %s184 = sphi 0, %s168
  $region4: #{_lambda_.33} parent=0 // loop_header_branch
    %14 = sbr.rel (%p12) target = $region8
  $region5: #{_lambda_.33} parent=0 // loop_body
    %s16 = ssub.s32 %s11, 1
    %s17 = ssub.s32 %s11, 2
    %s24 = sadd.s32 1, %s19
    %p25 = scmp.ge.s32.totalorder %s24, 2
    %s26 = scalar_select %p25, 0, %s24
    %s27 = sadd.s32 1, %s18
    %s28 = scalar_select %p25, %s27, %s18
    %p29 = scmp.ge.s32.totalorder %s28, 4
    %s30 = scalar_select %p29, 0, %s28
    %s31 = ssub.s32 %s18, %s30
    %s32 = ssub.s32 %s19, %s26
    %s33 = sor.u32 %s31, %s32
    %p34 = scmp.eq.s32.totalorder %s33, 0
    %s36 = sadd.s32 %s35, 1
    %s37 = scalar_select %p34, %s35, %s36
    %p40 = pneg %p34
    %p41 = scmp.eq.s32.totalorder %s11, 7
    %p42 = por %p40, %p41
    %p43 = scmp.ne.s32.totalorder %s35, %s38
    %p44 = scmp.eq.s32.totalorder %s11, 0
    %p45 = por %p43, %p44
    %p46 = scmp.ne.s32.totalorder %s35, %s38
    %p47 = scmp.eq.s32.totalorder %s16, 7
    %p48 = por %p46, %p47
    %p49 = scmp.ne.s32.totalorder %s38, %s39
    %p50 = scmp.eq.s32.totalorder %s16, 0
    %p51 = por %p49, %p50
    %p52 = scmp.ne.s32.totalorder %s38, %s39
    %p53 = scmp.eq.s32.totalorder %s17, 7
    %p54 = por %p52, %p53
    %p56 = scmp.ne.s32.totalorder %s39, %s55
    %p57 = scmp.eq.s32.totalorder %s17, 0
    %p58 = por %p56, %p57
    %s59 = ssub.s32 %s18, %s30
    %s60 = ssub.s32 %s19, %s26
    %s61 = sor.u32 %s59, %s60
    %p62 = scmp.eq.s32.totalorder %s61, 0
    %s64 = sadd.s32 %s63, 1
    %s65 = scalar_select %p62, %s63, %s64
    %p68 = pneg %p62
    %p69 = scmp.eq.s32.totalorder %s11, 7
    %p70 = por %p68, %p69
    %p71 = scmp.ne.s32.totalorder %s63, %s66
    %p72 = scmp.eq.s32.totalorder %s11, 0
    %p73 = por %p71, %p72
    %p74 = scmp.ne.s32.totalorder %s63, %s66
    %p75 = scmp.eq.s32.totalorder %s16, 7
    %p76 = por %p74, %p75
    %p77 = scmp.ne.s32.totalorder %s66, %s67
    %p78 = scmp.eq.s32.totalorder %s16, 0
    %p79 = por %p77, %p78
    %p80 = scmp.ne.s32.totalorder %s66, %s67
    %p81 = scmp.eq.s32.totalorder %s17, 7
    %p82 = por %p80, %p81
    %p84 = scmp.ne.s32.totalorder %s67, %s83
    %p85 = scmp.eq.s32.totalorder %s17, 0
    %p86 = por %p84, %p85
    %s87 = ssub.s32 %s18, %s30
    %p88 = scmp.eq.s32.totalorder %s87, 0
    %s90 = sadd.s32 %s89, 1
    %s91 = scalar_select %p88, %s89, %s90
    %p94 = pneg %p88
    %p95 = scmp.eq.s32.totalorder %s11, 7
    %p96 = por %p94, %p95
    %p97 = scmp.ne.s32.totalorder %s89, %s92
    %p98 = scmp.eq.s32.totalorder %s11, 0
    %p99 = por %p97, %p98
    %p100 = scmp.ne.s32.totalorder %s89, %s92
    %p101 = scmp.eq.s32.totalorder %s16, 7
    %p102 = por %p100, %p101
    %p103 = scmp.ne.s32.totalorder %s92, %s93
    %p104 = scmp.eq.s32.totalorder %s16, 0
    %p105 = por %p103, %p104
    %p106 = scmp.ne.s32.totalorder %s92, %s93
    %p107 = scmp.eq.s32.totalorder %s17, 7
    %p108 = por %p106, %p107
    %p110 = scmp.ne.s32.totalorder %s93, %s109
    %p111 = scmp.eq.s32.totalorder %s17, 0
    %p112 = por %p110, %p111
    %s113 = ssub.s32 %s18, %s30
    %p114 = scmp.eq.s32.totalorder %s113, 0
    %s116 = sadd.s32 %s115, 1
    %s117 = scalar_select %p114, %s115, %s116
    %p120 = pneg %p114
    %p121 = scmp.eq.s32.totalorder %s11, 7
    %p122 = por %p120, %p121
    %p123 = scmp.ne.s32.totalorder %s115, %s118
    %p124 = scmp.eq.s32.totalorder %s11, 0
    %p125 = por %p123, %p124
    %p126 = scmp.ne.s32.totalorder %s115, %s118
    %p127 = scmp.eq.s32.totalorder %s16, 7
    %p128 = por %p126, %p127
    %p129 = scmp.ne.s32.totalorder %s118, %s119
    %p130 = scmp.eq.s32.totalorder %s16, 0
    %p131 = por %p129, %p130
    %p132 = scmp.ne.s32.totalorder %s118, %s119
    %p133 = scmp.eq.s32.totalorder %s17, 7
    %p134 = por %p132, %p133
    %p136 = scmp.ne.s32.totalorder %s119, %s135
    %p137 = scmp.eq.s32.totalorder %s17, 0
    %p138 = por %p136, %p137
    %s140 = sadd.s32 %s139, 1
    %p143 = scmp.eq.s32.totalorder %s11, 7
    %p144 = scmp.ne.s32.totalorder %s139, %s141
    %p145 = scmp.eq.s32.totalorder %s11, 0
    %p146 = por %p144, %p145
    %p147 = scmp.ne.s32.totalorder %s139, %s141
    %p148 = scmp.eq.s32.totalorder %s16, 7
    %p149 = por %p147, %p148
    %p150 = scmp.ne.s32.totalorder %s141, %s142
    %p151 = scmp.eq.s32.totalorder %s16, 0
    %p152 = por %p150, %p151
    %p153 = scmp.ne.s32.totalorder %s141, %s142
    %p154 = scmp.eq.s32.totalorder %s17, 7
    %p155 = por %p153, %p154
    %p157 = scmp.ne.s32.totalorder %s142, %s156
    %p158 = scmp.eq.s32.totalorder %s17, 0
    %p159 = por %p157, %p158
    %s160 = ssub.s32 %s18, %s30
    %s161 = ssub.s32 %s19, %s26
    %s162 = sor.u32 %s160, %s161
    %p163 = scmp.eq.s32.totalorder %s162, 0
    %s165 = sadd.s32 %s164, 1
    %s166 = scalar_select %p163, %s164, %s165
    %p169 = pneg %p163
    %p170 = scmp.eq.s32.totalorder %s11, 7
    %p171 = por %p169, %p170
    %p172 = scmp.ne.s32.totalorder %s164, %s167
    %p173 = scmp.eq.s32.totalorder %s11, 0
    %p174 = por %p172, %p173
    %p175 = scmp.ne.s32.totalorder %s164, %s167
    %p176 = scmp.eq.s32.totalorder %s16, 7
    %p177 = por %p175, %p176
    %p178 = scmp.ne.s32.totalorder %s167, %s168
    %p179 = scmp.eq.s32.totalorder %s16, 0
    %p180 = por %p178, %p179
    %p181 = scmp.ne.s32.totalorder %s167, %s168
    %p182 = scmp.eq.s32.totalorder %s17, 7
    %p183 = por %p181, %p182
    %p185 = scmp.ne.s32.totalorder %s168, %s184
    %p186 = scmp.eq.s32.totalorder %s17, 0
    %p187 = por %p185, %p186
    %p188 = scmp.le.s32.totalorder 1, %s11
    %p189 = scmp.lt.s32.totalorder %s11, 9
    %p190 = pnand %p188, %p189
    %p191 = pneg %p190
    // Predicated region
    $region9: #{_lambda_.33} parent=5 // pred_check
      _
    $region10: #{_lambda_.33} parent=5 // pred_check_branch
      %193 = sbr.rel (%p190) target = $region12
    $region11: #{_lambda_.33} parent=5 // pred_region
      %s194 = ssub.s32 %s11, 1
      // Predicated region
      $region13: #{_lambda_.33} parent=11 // pred_check
        %p195 = pneg %p152
      $region14: #{_lambda_.33} parent=11 // pred_check_branch
        %197 = sbr.rel (%p195) target = $region16
      $region15: #{_lambda_.33} parent=11 // pred_region
        _
      $region16: #{_lambda_.33} parent=11 // pred_fallthru
        _
    $region12: #{_lambda_.33} parent=5 // pred_fallthru
      _
    %p198 = scmp.lt.s32.totalorder %s11, 8
    // Predicated region
    $region17: #{_lambda_.33} parent=5 // pred_check
      %p199 = pneg %p198
    $region18: #{_lambda_.33} parent=5 // pred_check_branch
      %201 = sbr.rel (%p199) target = $region20
    $region19: #{_lambda_.33} parent=5 // pred_region
      // Predicated region
      $region21: #{_lambda_.33} parent=19 // pred_check
        %p202 = pneg %p45
      $region22: #{_lambda_.33} parent=19 // pred_check_branch
        %204 = sbr.rel (%p202) target = $region24
      $region23: #{_lambda_.33} parent=19 // pred_region
        %s205 = smul.u32 32, %s19
        %p206 = scmp.lt.s32.totalorder %s18, 3
        %s207 = scalar_select %p206, %s18, 3
        %p208 = scmp.lt.s32.totalorder %s205, 63
        %s209 = scalar_select %p208, %s205, 63
        %s210 = smul.addr %s207, 64
        %s211 = sadd.s32 %s209, %s210
        %s212 = smul.addr %s211, 4
        %s213 = scalar_lea.vmem %s0, %s212
        %s214 = smul.u32 32, %s19
      $region24: #{_lambda_.33} parent=19 // pred_fallthru
        _
      // Predicated region
      $region25: #{_lambda_.33} parent=19 // pred_check
        %p215 = pneg %p73
      $region26: #{_lambda_.33} parent=19 // pred_check_branch
        %217 = sbr.rel (%p215) target = $region28
      $region27: #{_lambda_.33} parent=19 // pred_region
        %s218 = smul.u32 32, %s19
        %p219 = scmp.lt.s32.totalorder %s18, 3
        %s220 = scalar_select %p219, %s18, 3
        %p221 = scmp.lt.s32.totalorder %s218, 63
        %s222 = scalar_select %p221, %s218, 63
        %s223 = smul.addr %s220, 64
        %s224 = sadd.s32 %s222, %s223
        %s225 = smul.addr %s224, 4
        %s226 = scalar_lea.vmem %s1, %s225
        %s227 = smul.u32 32, %s19
      $region28: #{_lambda_.33} parent=19 // pred_fallthru
        _
      // Predicated region
      $region29: #{_lambda_.33} parent=19 // pred_check
        %p228 = pneg %p99
      $region30: #{_lambda_.33} parent=19 // pred_check_branch
        %230 = sbr.rel (%p228) target = $region32
      $region31: #{_lambda_.33} parent=19 // pred_region
        %p231 = scmp.lt.s32.totalorder %s18, 3
        %s232 = scalar_select %p231, %s18, 3
        %s233 = smul.addr %s232, 4
        %s234 = smul.addr %s233, 4
        %s235 = scalar_lea.vmem %s2, %s234
      $region32: #{_lambda_.33} parent=19 // pred_fallthru
        _
      // Predicated region
      $region33: #{_lambda_.33} parent=19 // pred_check
        %p236 = pneg %p125
      $region34: #{_lambda_.33} parent=19 // pred_check_branch
        %238 = sbr.rel (%p236) target = $region36
      $region35: #{_lambda_.33} parent=19 // pred_region
        %p239 = scmp.lt.s32.totalorder %s18, 3
        %s240 = scalar_select %p239, %s18, 3
        %s241 = smul.addr %s240, 4
        %s242 = smul.addr %s241, 4
        %s243 = scalar_lea.vmem %s3, %s242
      $region36: #{_lambda_.33} parent=19 // pred_fallthru
        _
    $region20: #{_lambda_.33} parent=5 // pred_fallthru
      _
    %p244 = scmp.le.s32.totalorder 1, %s11
    %p245 = scmp.lt.s32.totalorder %s11, 9
    %p246 = pnand %p244, %p245
    %p247 = pneg %p246
    // Predicated region
    $region37: #{_lambda_.33} parent=5 // pred_check
      _
    $region38: #{_lambda_.33} parent=5 // pred_check_branch
      %249 = sbr.rel (%p246) target = $region40
    $region39: #{_lambda_.33} parent=5 // pred_region
      %s250 = ssub.s32 %s11, 1
      %s251 = smul.u32 32, %s21
      %p252 = scmp.lt.s32.totalorder %s20, 3
      %s253 = scalar_select %p252, %s20, 3
      %p254 = scmp.lt.s32.totalorder %s251, 63
      %s255 = scalar_select %p254, %s251, 63
      %s256 = smul.addr %s253, 64
      %s257 = sadd.s32 %s255, %s256
      %s258 = smul.addr %s257, 4
      %s259 = scalar_lea.vmem %s0, %s258
      %p260 = pneg %p51
      %p261 = pneg %p48
      %s262 = smul.u32 32, %s21
      %p263 = scmp.lt.s32.totalorder %s20, 3
      %s264 = scalar_select %p263, %s20, 3
      %p265 = scmp.lt.s32.totalorder %s262, 63
      %s266 = scalar_select %p265, %s262, 63
      %s267 = smul.addr %s264, 64
      %s268 = sadd.s32 %s266, %s267
      %s269 = smul.addr %s268, 4
      %s270 = scalar_lea.vmem %s1, %s269
      %p271 = pneg %p79
      %p272 = pneg %p76
      %p273 = scmp.lt.s32.totalorder %s20, 3
      %s274 = scalar_select %p273, %s20, 3
      %s275 = smul.addr %s274, 4
      %s276 = smul.addr %s275, 4
      %s277 = scalar_lea.vmem %s2, %s276
      %p278 = pneg %p105
      %p279 = pneg %p102
      %p280 = scmp.lt.s32.totalorder %s20, 3
      %s281 = scalar_select %p280, %s20, 3
      %s282 = smul.addr %s281, 4
      %s283 = smul.addr %s282, 4
      %s284 = scalar_lea.vmem %s3, %s283
      %p285 = pneg %p131
      %p286 = pneg %p128
      %p287 = pneg %p152
      %p288 = pneg %p149
      %p289 = pneg %p180
      %p290 = pneg %p177
      %s291 = smul.u32 32, %s21
      %p292 = scmp.lt.s32.totalorder %s20, 3
      %s293 = scalar_select %p292, %s20, 3
      %p294 = scmp.lt.s32.totalorder %s291, 63
      %s295 = scalar_select %p294, %s291, 63
      %s296 = smul.addr %s293, 64
      %s297 = sadd.s32 %s295, %s296
      %s298 = smul.addr %s297, 8
      %s299 = scalar_lea.vmem %s5, %s298
      %s300 = smul.u32 32, %s21
      %p301 = scmp.lt.s32.totalorder %s20, 3
      %s302 = scalar_select %p301, %s20, 3
      %p303 = scmp.lt.s32.totalorder %s300, 63
      %s304 = scalar_select %p303, %s300, 63
      %s305 = smul.addr %s302, 64
      %s306 = sadd.s32 %s304, %s305
      %s307 = smul.addr %s306, 4
      %s308 = scalar_lea.vmem %s0, %s307
      %s309 = smul.u32 32, %s21
      %s310 = smul.u32 32, %s21
      %p311 = scmp.lt.s32.totalorder %s20, 3
      %s312 = scalar_select %p311, %s20, 3
      %p313 = scmp.lt.s32.totalorder %s310, 63
      %s314 = scalar_select %p313, %s310, 63
      %s315 = smul.addr %s312, 64
      %s316 = sadd.s32 %s314, %s315
      %s317 = smul.addr %s316, 4
      %s318 = scalar_lea.vmem %s1, %s317
      %s319 = smul.u32 32, %s21
      %p320 = scmp.lt.s32.totalorder %s20, 3
      %s321 = scalar_select %p320, %s20, 3
      %s322 = smul.addr %s321, 4
      %s323 = smul.addr %s322, 4
      %s324 = scalar_lea.vmem %s2, %s323
      %p325 = scmp.lt.s32.totalorder %s20, 3
      %s326 = scalar_select %p325, %s20, 3
      %s327 = smul.addr %s326, 4
      %s328 = smul.addr %s327, 4
      %s329 = scalar_lea.vmem %s3, %s328
      %s330 = smul.u32 32, %s21
      %p331 = scmp.lt.s32.totalorder %s20, 3
      %s332 = scalar_select %p331, %s20, 3
      %p333 = scmp.lt.s32.totalorder %s330, 63
      %s334 = scalar_select %p333, %s330, 63
      %s335 = smul.addr %s332, 64
      %s336 = sadd.s32 %s334, %s335
      %s337 = smul.addr %s336, 8
      %s338 = scalar_lea.vmem %s5, %s337
      %s339 = smul.u32 32, %s21
      %v341 = vld [vmem:[%s308] sm:$0xf]
      %v342 = vld [vmem:[%s308 + $0x4] sm:$0xf]
      %v343 = vld [vmem:[%s308 + $0x8] sm:$0xf]
      %v344 = vld [vmem:[%s308 + $0xc] sm:$0xf]
      %v345 = vld [vmem:[%s308 + $0x10] sm:$0xf]
      %v346 = vld [vmem:[%s308 + $0x14] sm:$0xf]
      %v347 = vld [vmem:[%s308 + $0x18] sm:$0xf]
      %v348 = vld [vmem:[%s308 + $0x1c] sm:$0xf]
      %v349 = vld [vmem:[%s308 + $0x20] sm:$0xf]
      %v350 = vld [vmem:[%s308 + $0x24] sm:$0xf]
      %v351 = vld [vmem:[%s308 + $0x28] sm:$0xf]
      %v352 = vld [vmem:[%s308 + $0x2c] sm:$0xf]
      %v353 = vld [vmem:[%s308 + $0x30] sm:$0xf]
      %v354 = vld [vmem:[%s308 + $0x34] sm:$0xf]
      %v355 = vld [vmem:[%s308 + $0x38] sm:$0xf]
      %v356 = vld [vmem:[%s308 + $0x3c] sm:$0xf]
      %v357 = vld [vmem:[%s308 + $0x40] sm:$0xf]
      %v358 = vld [vmem:[%s308 + $0x44] sm:$0xf]
      %v359 = vld [vmem:[%s308 + $0x48] sm:$0xf]
      %v360 = vld [vmem:[%s308 + $0x4c] sm:$0xf]
      %v361 = vld [vmem:[%s308 + $0x50] sm:$0xf]
      %v362 = vld [vmem:[%s308 + $0x54] sm:$0xf]
      %v363 = vld [vmem:[%s308 + $0x58] sm:$0xf]
      %v364 = vld [vmem:[%s308 + $0x5c] sm:$0xf]
      %v365 = vld [vmem:[%s308 + $0x60] sm:$0xf]
      %v366 = vld [vmem:[%s308 + $0x64] sm:$0xf]
      %v367 = vld [vmem:[%s308 + $0x68] sm:$0xf]
      %v368 = vld [vmem:[%s308 + $0x6c] sm:$0xf]
      %v369 = vld [vmem:[%s308 + $0x70] sm:$0xf]
      %v370 = vld [vmem:[%s308 + $0x74] sm:$0xf]
      %v371 = vld [vmem:[%s308 + $0x78] sm:$0xf]
      %v372 = vld [vmem:[%s308 + $0x7c] sm:$0xf]
      %v373 = vld [vmem:[%s324] sm:$0xf]
      %v374 = vld [vmem:[%s324 + $0x4] sm:$0xf]
      %v375 = vld [vmem:[%s324 + $0x8] sm:$0xf]
      %v376 = vld [vmem:[%s324 + $0xc] sm:$0xf]
      %v377 = vld [vmem:[%s318] sm:$0xf]
      %v378 = vld [vmem:[%s318 + $0x4] sm:$0xf]
      %v379 = vld [vmem:[%s318 + $0x8] sm:$0xf]
      %v380 = vld [vmem:[%s318 + $0xc] sm:$0xf]
      %v381 = vld [vmem:[%s318 + $0x10] sm:$0xf]
      %v382 = vld [vmem:[%s318 + $0x14] sm:$0xf]
      %v383 = vld [vmem:[%s318 + $0x18] sm:$0xf]
      %v384 = vld [vmem:[%s318 + $0x1c] sm:$0xf]
      %v385 = vld [vmem:[%s318 + $0x20] sm:$0xf]
      %v386 = vld [vmem:[%s318 + $0x24] sm:$0xf]
      %v387 = vld [vmem:[%s318 + $0x28] sm:$0xf]
      %v388 = vld [vmem:[%s318 + $0x2c] sm:$0xf]
      %v389 = vld [vmem:[%s318 + $0x30] sm:$0xf]
      %v390 = vld [vmem:[%s318 + $0x34] sm:$0xf]
      %v391 = vld [vmem:[%s318 + $0x38] sm:$0xf]
      %v392 = vld [vmem:[%s318 + $0x3c] sm:$0xf]
      %v393 = vld [vmem:[%s318 + $0x40] sm:$0xf]
      %v394 = vld [vmem:[%s318 + $0x44] sm:$0xf]
      %v395 = vld [vmem:[%s318 + $0x48] sm:$0xf]
      %v396 = vld [vmem:[%s318 + $0x4c] sm:$0xf]
      %v397 = vld [vmem:[%s318 + $0x50] sm:$0xf]
      %v398 = vld [vmem:[%s318 + $0x54] sm:$0xf]
      %v399 = vld [vmem:[%s318 + $0x58] sm:$0xf]
      %v400 = vld [vmem:[%s318 + $0x5c] sm:$0xf]
      %v401 = vld [vmem:[%s318 + $0x60] sm:$0xf]
      %v402 = vld [vmem:[%s318 + $0x64] sm:$0xf]
      %v403 = vld [vmem:[%s318 + $0x68] sm:$0xf]
      %v404 = vld [vmem:[%s318 + $0x6c] sm:$0xf]
      %v405 = vld [vmem:[%s318 + $0x70] sm:$0xf]
      %v406 = vld [vmem:[%s318 + $0x74] sm:$0xf]
      %v407 = vld [vmem:[%s318 + $0x78] sm:$0xf]
      %v408 = vld [vmem:[%s318 + $0x7c] sm:$0xf]
      %v409 = vld [vmem:[%s329] sm:$0xf]
      %v410 = vld [vmem:[%s329 + $0x4] sm:$0xf]
      %v411 = vld [vmem:[%s329 + $0x8] sm:$0xf]
      %v412 = vld [vmem:[%s329 + $0xc] sm:$0xf]
      %v445 = vunpack.c.l.b16 %v377
      %v446 = vunpack.c.l.b16 %v378
      %v447 = vunpack.c.l.b16 %v379
      %v448 = vunpack.c.l.b16 %v380
      %v449 = vunpack.c.l.b16 %v381
      %v450 = vunpack.c.l.b16 %v382
      %v451 = vunpack.c.l.b16 %v383
      %v452 = vunpack.c.l.b16 %v384
      %v453 = vunpack.c.l.b16 %v385
      %v454 = vunpack.c.l.b16 %v386
      %v455 = vunpack.c.l.b16 %v387
      %v456 = vunpack.c.l.b16 %v388
      %v457 = vunpack.c.l.b16 %v389
      %v458 = vunpack.c.l.b16 %v390
      %v459 = vunpack.c.l.b16 %v391
      %v460 = vunpack.c.l.b16 %v392
      %v461 = vunpack.c.l.b16 %v393
      %v462 = vunpack.c.l.b16 %v394
      %v463 = vunpack.c.l.b16 %v395
      %v464 = vunpack.c.l.b16 %v396
      %v465 = vunpack.c.l.b16 %v397
      %v466 = vunpack.c.l.b16 %v398
      %v467 = vunpack.c.l.b16 %v399
      %v468 = vunpack.c.l.b16 %v400
      %v469 = vunpack.c.l.b16 %v401
      %v470 = vunpack.c.l.b16 %v402
      %v471 = vunpack.c.l.b16 %v403
      %v472 = vunpack.c.l.b16 %v404
      %v473 = vunpack.c.l.b16 %v405
      %v474 = vunpack.c.l.b16 %v406
      %v475 = vunpack.c.l.b16 %v407
      %v476 = vunpack.c.l.b16 %v408
      %v477 = vpack.c.b16 %v446, %v445
      %v478 = vpack.c.b16 %v448, %v447
      %v479 = vpack.c.b16 %v450, %v449
      %v480 = vpack.c.b16 %v452, %v451
      %v481 = vpack.c.b16 %v454, %v453
      %v482 = vpack.c.b16 %v456, %v455
      %v483 = vpack.c.b16 %v458, %v457
      %v484 = vpack.c.b16 %v460, %v459
      %v485 = vpack.c.b16 %v462, %v461
      %v486 = vpack.c.b16 %v464, %v463
      %v487 = vpack.c.b16 %v466, %v465
      %v488 = vpack.c.b16 %v468, %v467
      %v489 = vpack.c.b16 %v470, %v469
      %v490 = vpack.c.b16 %v472, %v471
      %v491 = vpack.c.b16 %v474, %v473
      %v492 = vpack.c.b16 %v476, %v475
      %v497 = vunpack.c.l.b16 %v409
      %v498 = vunpack.c.l.b16 %v410
      %v499 = vunpack.c.l.b16 %v411
      %v500 = vunpack.c.l.b16 %v412
      %v501 = vpack.c.b16 %v498, %v497
      %v502 = vpack.c.b16 %v500, %v499
      %vm505 = vcmask 261120
      %v507 = vsel %vm505, %v477, 0
      %v510 = vsel %vm505, %v478, 0
      %v513 = vsel %vm505, %v479, 0
      %v516 = vsel %vm505, %v480, 0
      %v519 = vsel %vm505, %v481, 0
      %v522 = vsel %vm505, %v482, 0
      %v525 = vsel %vm505, %v483, 0
      %v528 = vsel %vm505, %v484, 0
      %v531 = vsel %vm505, %v485, 0
      %v534 = vsel %vm505, %v486, 0
      %v537 = vsel %vm505, %v487, 0
      %v540 = vsel %vm505, %v488, 0
      %v543 = vsel %vm505, %v489, 0
      %v546 = vsel %vm505, %v490, 0
      %v549 = vsel %vm505, %v491, 0
      %v552 = vsel %vm505, %v492, 0
      %554 = vmatprep.subr.bf16.mxu0 0
      %555 = vmatpush1.bf16.msra.mxu0 %v501
      %556 = vmatprep.subr.bf16.mxu0 0
      %557 = vmatpush1.bf16.msra.mxu0 %v502
      %558 = vmatprep.subr.bf16.mxu0 0
      %559 = vmatpush1.bf16.msra.mxu0 0
      %560 = vmatprep.subr.bf16.mxu0 0
      %561 = vmatpush1.bf16.msra.mxu0 0
      %562 = vmatprep.subr.bf16.mxu0 0
      %563 = vmatpush1.bf16.msra.mxu0 0
      %564 = vmatprep.subr.bf16.mxu0 0
      %565 = vmatpush1.bf16.msra.mxu0 0
      %566 = vmatprep.subr.bf16.mxu0 0
      %567 = vmatpush1.bf16.msra.mxu0 0
      %568 = vmatprep.subr.bf16.mxu0 0
      %569 = vmatpush1.bf16.msra.mxu0 0
      %570 = vmatprep.subr.bf16.mxu0 0
      %571 = vmatpush1.bf16.msra.mxu0 0
      %572 = vmatprep.subr.bf16.mxu0 0
      %573 = vmatpush1.bf16.msra.mxu0 0
      %574 = vmatprep.subr.bf16.mxu0 0
      %575 = vmatpush1.bf16.msra.mxu0 0
      %576 = vmatprep.subr.bf16.mxu0 0
      %577 = vmatpush1.bf16.msra.mxu0 0
      %578 = vmatprep.subr.bf16.mxu0 0
      %579 = vmatpush1.bf16.msra.mxu0 0
      %580 = vmatprep.subr.bf16.mxu0 0
      %581 = vmatpush1.bf16.msra.mxu0 0
      %582 = vmatprep.subr.bf16.mxu0 0
      %583 = vmatpush1.bf16.msra.mxu0 0
      %584 = vmatprep.subr.bf16.mxu0 0
      %585 = vmatpush1.bf16.msra.mxu0 0
      %586 = vmatprep.mubr.bf16.mxu0 0
      %587 = vmatmul.mubr.bf16.gmra.mrb[0].mxu0 %v507
      %v588 = vpop.f32.mrb[0].mxu0
      %v589 = vadd.f32 0.0, %v588
      %v590 = vpop.f32.mrb[0].mxu0
      %v591 = vpop.f32.mrb[0].mxu0
      %v592 = vadd.f32 0.0, %v591
      %v593 = vpop.f32.mrb[0].mxu0
      %594 = vmatprep.mubr.bf16.mxu0 0
      %595 = vmatmul.mubr.bf16.gmra.mrb[0].mxu0 %v510
      %v596 = vpop.f32.mrb[0].mxu0
      %v597 = vadd.f32 0.0, %v596
      %v598 = vpop.f32.mrb[0].mxu0
      %v599 = vpop.f32.mrb[0].mxu0
      %v600 = vadd.f32 0.0, %v599
      %v601 = vpop.f32.mrb[0].mxu0
      %602 = vmatprep.mubr.bf16.mxu0 0
      %603 = vmatmul.mubr.bf16.gmra.mrb[0].mxu0 %v513
      %v604 = vpop.f32.mrb[0].mxu0
      %v605 = vadd.f32 0.0, %v604
      %v606 = vpop.f32.mrb[0].mxu0
      %v607 = vpop.f32.mrb[0].mxu0
      %v608 = vadd.f32 0.0, %v607
      %v609 = vpop.f32.mrb[0].mxu0
      %610 = vmatprep.mubr.bf16.mxu0 0
      %611 = vmatmul.mubr.bf16.gmra.mrb[0].mxu0 %v516
      %v612 = vpop.f32.mrb[0].mxu0
      %v613 = vadd.f32 0.0, %v612
      %v614 = vpop.f32.mrb[0].mxu0
      %v615 = vpop.f32.mrb[0].mxu0
      %v616 = vadd.f32 0.0, %v615
      %v617 = vpop.f32.mrb[0].mxu0
      %618 = vmatprep.mubr.bf16.mxu0 0
      %619 = vmatmul.mubr.bf16.gmra.mrb[0].mxu0 %v519
      %v620 = vpop.f32.mrb[0].mxu0
      %v621 = vadd.f32 0.0, %v620
      %v622 = vpop.f32.mrb[0].mxu0
      %v623 = vpop.f32.mrb[0].mxu0
      %v624 = vadd.f32 0.0, %v623
      %v625 = vpop.f32.mrb[0].mxu0
      %626 = vmatprep.mubr.bf16.mxu0 0
      %627 = vmatmul.mubr.bf16.gmra.mrb[0].mxu0 %v522
      %v628 = vpop.f32.mrb[0].mxu0
      %v629 = vadd.f32 0.0, %v628
      %v630 = vpop.f32.mrb[0].mxu0
      %v631 = vpop.f32.mrb[0].mxu0
      %v632 = vadd.f32 0.0, %v631
      %v633 = vpop.f32.mrb[0].mxu0
      %634 = vmatprep.mubr.bf16.mxu0 0
      %635 = vmatmul.mubr.bf16.gmra.mrb[0].mxu0 %v525
      %v636 = vpop.f32.mrb[0].mxu0
      %v637 = vadd.f32 0.0, %v636
      %v638 = vpop.f32.mrb[0].mxu0
      %v639 = vpop.f32.mrb[0].mxu0
      %v640 = vadd.f32 0.0, %v639
      %v641 = vpop.f32.mrb[0].mxu0
      %642 = vmatprep.mubr.bf16.mxu0 0
      %643 = vmatmul.mubr.bf16.gmra.mrb[0].mxu0 %v528
      %v644 = vpop.f32.mrb[0].mxu0
      %v645 = vadd.f32 0.0, %v644
      %v646 = vpop.f32.mrb[0].mxu0
      %v647 = vpop.f32.mrb[0].mxu0
      %v648 = vadd.f32 0.0, %v647
      %v649 = vpop.f32.mrb[0].mxu0
      %650 = vmatprep.mubr.bf16.mxu0 0
      %651 = vmatmul.mubr.bf16.gmra.mrb[0].mxu0 %v531
      %v652 = vpop.f32.mrb[0].mxu0
      %v653 = vadd.f32 0.0, %v652
      %v654 = vpop.f32.mrb[0].mxu0
      %v655 = vpop.f32.mrb[0].mxu0
      %v656 = vadd.f32 0.0, %v655
      %v657 = vpop.f32.mrb[0].mxu0
      %658 = vmatprep.mubr.bf16.mxu0 0
      %659 = vmatmul.mubr.bf16.gmra.mrb[0].mxu0 %v534
      %v660 = vpop.f32.mrb[0].mxu0
      %v661 = vadd.f32 0.0, %v660
      %v662 = vpop.f32.mrb[0].mxu0
      %v663 = vpop.f32.mrb[0].mxu0
      %v664 = vadd.f32 0.0, %v663
      %v665 = vpop.f32.mrb[0].mxu0
      %666 = vmatprep.mubr.bf16.mxu0 0
      %667 = vmatmul.mubr.bf16.gmra.mrb[0].mxu0 %v537
      %v668 = vpop.f32.mrb[0].mxu0
      %v669 = vadd.f32 0.0, %v668
      %v670 = vpop.f32.mrb[0].mxu0
      %v671 = vpop.f32.mrb[0].mxu0
      %v672 = vadd.f32 0.0, %v671
      %v673 = vpop.f32.mrb[0].mxu0
      %674 = vmatprep.mubr.bf16.mxu0 0
      %675 = vmatmul.mubr.bf16.gmra.mrb[0].mxu0 %v540
      %v676 = vpop.f32.mrb[0].mxu0
      %v677 = vadd.f32 0.0, %v676
      %v678 = vpop.f32.mrb[0].mxu0
      %v679 = vpop.f32.mrb[0].mxu0
      %v680 = vadd.f32 0.0, %v679
      %v681 = vpop.f32.mrb[0].mxu0
      %682 = vmatprep.mubr.bf16.mxu0 0
      %683 = vmatmul.mubr.bf16.gmra.mrb[0].mxu0 %v543
      %v684 = vpop.f32.mrb[0].mxu0
      %v685 = vadd.f32 0.0, %v684
      %v686 = vpop.f32.mrb[0].mxu0
      %v687 = vpop.f32.mrb[0].mxu0
      %v688 = vadd.f32 0.0, %v687
      %v689 = vpop.f32.mrb[0].mxu0
      %690 = vmatprep.mubr.bf16.mxu0 0
      %691 = vmatmul.mubr.bf16.gmra.mrb[0].mxu0 %v546
      %v692 = vpop.f32.mrb[0].mxu0
      %v693 = vadd.f32 0.0, %v692
      %v694 = vpop.f32.mrb[0].mxu0
      %v695 = vpop.f32.mrb[0].mxu0
      %v696 = vadd.f32 0.0, %v695
      %v697 = vpop.f32.mrb[0].mxu0
      %698 = vmatprep.mubr.bf16.mxu0 0
      %699 = vmatmul.mubr.bf16.gmra.mrb[0].mxu0 %v549
      %v700 = vpop.f32.mrb[0].mxu0
      %v701 = vadd.f32 0.0, %v700
      %v702 = vpop.f32.mrb[0].mxu0
      %v703 = vpop.f32.mrb[0].mxu0
      %v704 = vadd.f32 0.0, %v703
      %v705 = vpop.f32.mrb[0].mxu0
      %706 = vmatprep.mubr.bf16.mxu0 0
      %707 = vmatmul.mubr.bf16.gmra.mrb[0].mxu0 %v552
      %v708 = vpop.f32.mrb[0].mxu0
      %v709 = vadd.f32 0.0, %v708
      %v710 = vpop.f32.mrb[0].mxu0
      %v711 = vpop.f32.mrb[0].mxu0
      %v712 = vadd.f32 0.0, %v711
      %v713 = vpop.f32.mrb[0].mxu0
      %714 = vdwg.mxu0
      %v747 = vunpack.c.l.b16 %v341
      %v748 = vunpack.c.l.b16 %v342
      %v749 = vunpack.c.l.b16 %v343
      %v750 = vunpack.c.l.b16 %v344
      %v751 = vunpack.c.l.b16 %v345
      %v752 = vunpack.c.l.b16 %v346
      %v753 = vunpack.c.l.b16 %v347
      %v754 = vunpack.c.l.b16 %v348
      %v755 = vunpack.c.l.b16 %v349
      %v756 = vunpack.c.l.b16 %v350
      %v757 = vunpack.c.l.b16 %v351
      %v758 = vunpack.c.l.b16 %v352
      %v759 = vunpack.c.l.b16 %v353
      %v760 = vunpack.c.l.b16 %v354
      %v761 = vunpack.c.l.b16 %v355
      %v762 = vunpack.c.l.b16 %v356
      %v763 = vunpack.c.l.b16 %v357
      %v764 = vunpack.c.l.b16 %v358
      %v765 = vunpack.c.l.b16 %v359
      %v766 = vunpack.c.l.b16 %v360
      %v767 = vunpack.c.l.b16 %v361
      %v768 = vunpack.c.l.b16 %v362
      %v769 = vunpack.c.l.b16 %v363
      %v770 = vunpack.c.l.b16 %v364
      %v771 = vunpack.c.l.b16 %v365
      %v772 = vunpack.c.l.b16 %v366
      %v773 = vunpack.c.l.b16 %v367
      %v774 = vunpack.c.l.b16 %v368
      %v775 = vunpack.c.l.b16 %v369
      %v776 = vunpack.c.l.b16 %v370
      %v777 = vunpack.c.l.b16 %v371
      %v778 = vunpack.c.l.b16 %v372
      %v779 = vpack.c.b16 %v748, %v747
      %v780 = vpack.c.b16 %v750, %v749
      %v781 = vpack.c.b16 %v752, %v751
      %v782 = vpack.c.b16 %v754, %v753
      %v783 = vpack.c.b16 %v756, %v755
      %v784 = vpack.c.b16 %v758, %v757
      %v785 = vpack.c.b16 %v760, %v759
      %v786 = vpack.c.b16 %v762, %v761
      %v787 = vpack.c.b16 %v764, %v763
      %v788 = vpack.c.b16 %v766, %v765
      %v789 = vpack.c.b16 %v768, %v767
      %v790 = vpack.c.b16 %v770, %v769
      %v791 = vpack.c.b16 %v772, %v771
      %v792 = vpack.c.b16 %v774, %v773
      %v793 = vpack.c.b16 %v776, %v775
      %v794 = vpack.c.b16 %v778, %v777
      %v799 = vunpack.c.l.b16 %v373
      %v800 = vunpack.c.l.b16 %v374
      %v801 = vunpack.c.l.b16 %v375
      %v802 = vunpack.c.l.b16 %v376
      %v803 = vpack.c.b16 %v800, %v799
      %v804 = vpack.c.b16 %v802, %v801
      %v808 = vsel %vm505, %v779, 0
      %v811 = vsel %vm505, %v780, 0
      %v814 = vsel %vm505, %v781, 0
      %v817 = vsel %vm505, %v782, 0
      %v820 = vsel %vm505, %v783, 0
      %v823 = vsel %vm505, %v784, 0
      %v826 = vsel %vm505, %v785, 0
      %v829 = vsel %vm505, %v786, 0
      %v832 = vsel %vm505, %v787, 0
      %v835 = vsel %vm505, %v788, 0
      %v838 = vsel %vm505, %v789, 0
      %v841 = vsel %vm505, %v790, 0
      %v844 = vsel %vm505, %v791, 0
      %v847 = vsel %vm505, %v792, 0
      %v850 = vsel %vm505, %v793, 0
      %v853 = vsel %vm505, %v794, 0
      %855 = vmatprep.subr.bf16.mxu0 0
      %856 = vmatpush1.bf16.msra.mxu0 %v803
      %857 = vmatprep.subr.bf16.mxu0 0
      %858 = vmatpush1.bf16.msra.mxu0 %v804
      %859 = vmatprep.subr.bf16.mxu0 0
      %860 = vmatpush1.bf16.msra.mxu0 0
      %861 = vmatprep.subr.bf16.mxu0 0
      %862 = vmatpush1.bf16.msra.mxu0 0
      %863 = vmatprep.subr.bf16.mxu0 0
      %864 = vmatpush1.bf16.msra.mxu0 0
      %865 = vmatprep.subr.bf16.mxu0 0
      %866 = vmatpush1.bf16.msra.mxu0 0
      %867 = vmatprep.subr.bf16.mxu0 0
      %868 = vmatpush1.bf16.msra.mxu0 0
      %869 = vmatprep.subr.bf16.mxu0 0
      %870 = vmatpush1.bf16.msra.mxu0 0
      %871 = vmatprep.subr.bf16.mxu0 0
      %872 = vmatpush1.bf16.msra.mxu0 0
      %873 = vmatprep.subr.bf16.mxu0 0
      %874 = vmatpush1.bf16.msra.mxu0 0
      %875 = vmatprep.subr.bf16.mxu0 0
      %876 = vmatpush1.bf16.msra.mxu0 0
      %877 = vmatprep.subr.bf16.mxu0 0
      %878 = vmatpush1.bf16.msra.mxu0 0
      %879 = vmatprep.subr.bf16.mxu0 0
      %880 = vmatpush1.bf16.msra.mxu0 0
      %881 = vmatprep.subr.bf16.mxu0 0
      %882 = vmatpush1.bf16.msra.mxu0 0
      %883 = vmatprep.subr.bf16.mxu0 0
      %884 = vmatpush1.bf16.msra.mxu0 0
      %885 = vmatprep.subr.bf16.mxu0 0
      %886 = vmatpush1.bf16.msra.mxu0 0
      %887 = vmatprep.mubr.bf16.mxu0 0
      %888 = vmatmul.mubr.bf16.gmra.mrb[0].mxu0 %v808
      %v889 = vpop.f32.mrb[0].mxu0
      %v890 = vadd.f32 %v589, %v889
      %v891 = vpop.f32.mrb[0].mxu0
      %v892 = vpop.f32.mrb[0].mxu0
      %v893 = vadd.f32 %v592, %v892
      %v894 = vpop.f32.mrb[0].mxu0
      %895 = vmatprep.mubr.bf16.mxu0 0
      %896 = vmatmul.mubr.bf16.gmra.mrb[0].mxu0 %v811
      %v897 = vpop.f32.mrb[0].mxu0
      %v898 = vadd.f32 %v597, %v897
      %v899 = vpop.f32.mrb[0].mxu0
      %v900 = vpop.f32.mrb[0].mxu0
      %v901 = vadd.f32 %v600, %v900
      %v902 = vpop.f32.mrb[0].mxu0
      %903 = vmatprep.mubr.bf16.mxu0 0
      %904 = vmatmul.mubr.bf16.gmra.mrb[0].mxu0 %v814
      %v905 = vpop.f32.mrb[0].mxu0
      %v906 = vadd.f32 %v605, %v905
      %v907 = vpop.f32.mrb[0].mxu0
      %v908 = vpop.f32.mrb[0].mxu0
      %v909 = vadd.f32 %v608, %v908
      %v910 = vpop.f32.mrb[0].mxu0
      %911 = vmatprep.mubr.bf16.mxu0 0
      %912 = vmatmul.mubr.bf16.gmra.mrb[0].mxu0 %v817
      %v913 = vpop.f32.mrb[0].mxu0
      %v914 = vadd.f32 %v613, %v913
      %v915 = vpop.f32.mrb[0].mxu0
      %v916 = vpop.f32.mrb[0].mxu0
      %v917 = vadd.f32 %v616, %v916
      %v918 = vpop.f32.mrb[0].mxu0
      %919 = vmatprep.mubr.bf16.mxu0 0
      %920 = vmatmul.mubr.bf16.gmra.mrb[0].mxu0 %v820
      %v921 = vpop.f32.mrb[0].mxu0
      %v922 = vadd.f32 %v621, %v921
      %v923 = vpop.f32.mrb[0].mxu0
      %v924 = vpop.f32.mrb[0].mxu0
      %v925 = vadd.f32 %v624, %v924
      %v926 = vpop.f32.mrb[0].mxu0
      %927 = vmatprep.mubr.bf16.mxu0 0
      %928 = vmatmul.mubr.bf16.gmra.mrb[0].mxu0 %v823
      %v929 = vpop.f32.mrb[0].mxu0
      %v930 = vadd.f32 %v629, %v929
      %v931 = vpop.f32.mrb[0].mxu0
      %v932 = vpop.f32.mrb[0].mxu0
      %v933 = vadd.f32 %v632, %v932
      %v934 = vpop.f32.mrb[0].mxu0
      %935 = vmatprep.mubr.bf16.mxu0 0
      %936 = vmatmul.mubr.bf16.gmra.mrb[0].mxu0 %v826
      %v937 = vpop.f32.mrb[0].mxu0
      %v938 = vadd.f32 %v637, %v937
      %v939 = vpop.f32.mrb[0].mxu0
      %v940 = vpop.f32.mrb[0].mxu0
      %v941 = vadd.f32 %v640, %v940
      %v942 = vpop.f32.mrb[0].mxu0
      %943 = vmatprep.mubr.bf16.mxu0 0
      %944 = vmatmul.mubr.bf16.gmra.mrb[0].mxu0 %v829
      %v945 = vpop.f32.mrb[0].mxu0
      %v946 = vadd.f32 %v645, %v945
      %v947 = vpop.f32.mrb[0].mxu0
      %v948 = vpop.f32.mrb[0].mxu0
      %v949 = vadd.f32 %v648, %v948
      %v950 = vpop.f32.mrb[0].mxu0
      %951 = vmatprep.mubr.bf16.mxu0 0
      %952 = vmatmul.mubr.bf16.gmra.mrb[0].mxu0 %v832
      %v953 = vpop.f32.mrb[0].mxu0
      %v954 = vadd.f32 %v653, %v953
      %v955 = vpop.f32.mrb[0].mxu0
      %v956 = vpop.f32.mrb[0].mxu0
      %v957 = vadd.f32 %v656, %v956
      %v958 = vpop.f32.mrb[0].mxu0
      %959 = vmatprep.mubr.bf16.mxu0 0
      %960 = vmatmul.mubr.bf16.gmra.mrb[0].mxu0 %v835
      %v961 = vpop.f32.mrb[0].mxu0
      %v962 = vadd.f32 %v661, %v961
      %v963 = vpop.f32.mrb[0].mxu0
      %v964 = vpop.f32.mrb[0].mxu0
      %v965 = vadd.f32 %v664, %v964
      %v966 = vpop.f32.mrb[0].mxu0
      %967 = vmatprep.mubr.bf16.mxu0 0
      %968 = vmatmul.mubr.bf16.gmra.mrb[0].mxu0 %v838
      %v969 = vpop.f32.mrb[0].mxu0
      %v970 = vadd.f32 %v669, %v969
      %v971 = vpop.f32.mrb[0].mxu0
      %v972 = vpop.f32.mrb[0].mxu0
      %v973 = vadd.f32 %v672, %v972
      %v974 = vpop.f32.mrb[0].mxu0
      %975 = vmatprep.mubr.bf16.mxu0 0
      %976 = vmatmul.mubr.bf16.gmra.mrb[0].mxu0 %v841
      %v977 = vpop.f32.mrb[0].mxu0
      %v978 = vadd.f32 %v677, %v977
      %v979 = vpop.f32.mrb[0].mxu0
      %v980 = vpop.f32.mrb[0].mxu0
      %v981 = vadd.f32 %v680, %v980
      %v982 = vpop.f32.mrb[0].mxu0
      %983 = vmatprep.mubr.bf16.mxu0 0
      %984 = vmatmul.mubr.bf16.gmra.mrb[0].mxu0 %v844
      %v985 = vpop.f32.mrb[0].mxu0
      %v986 = vadd.f32 %v685, %v985
      %v987 = vpop.f32.mrb[0].mxu0
      %v988 = vpop.f32.mrb[0].mxu0
      %v989 = vadd.f32 %v688, %v988
      %v990 = vpop.f32.mrb[0].mxu0
      %991 = vmatprep.mubr.bf16.mxu0 0
      %992 = vmatmul.mubr.bf16.gmra.mrb[0].mxu0 %v847
      %v993 = vpop.f32.mrb[0].mxu0
      %v994 = vadd.f32 %v693, %v993
      %v995 = vpop.f32.mrb[0].mxu0
      %v996 = vpop.f32.mrb[0].mxu0
      %v997 = vadd.f32 %v696, %v996
      %v998 = vpop.f32.mrb[0].mxu0
      %999 = vmatprep.mubr.bf16.mxu0 0
      %1000 = vmatmul.mubr.bf16.gmra.mrb[0].mxu0 %v850
      %v1001 = vpop.f32.mrb[0].mxu0
      %v1002 = vadd.f32 %v701, %v1001
      %v1003 = vpop.f32.mrb[0].mxu0
      %v1004 = vpop.f32.mrb[0].mxu0
      %v1005 = vadd.f32 %v704, %v1004
      %v1006 = vpop.f32.mrb[0].mxu0
      %1007 = vmatprep.mubr.bf16.mxu0 0
      %1008 = vmatmul.mubr.bf16.gmra.mrb[0].mxu0 %v853
      %v1009 = vpop.f32.mrb[0].mxu0
      %v1010 = vadd.f32 %v709, %v1009
      %v1011 = vpop.f32.mrb[0].mxu0
      %v1012 = vpop.f32.mrb[0].mxu0
      %v1013 = vadd.f32 %v712, %v1012
      %v1014 = vpop.f32.mrb[0].mxu0
      %1015 = vdwg.mxu0
      %v1016 = vld [vmem:[%s4] sm:$0x1]
      %v1018 = vlaneseq
      %v1019 = vshrl.u32 %v1018, 7
      %v1020 = vsub.s32 0, %v1019
      %v1021 = vrot.slane %v1016, %v1020
      %v1023 = vadd.f32 %v890, %v1021
      %v1024 = vadd.f32 %v893, %v1021
      %v1025 = vadd.f32 %v898, %v1021
      %v1026 = vadd.f32 %v901, %v1021
      %v1027 = vadd.f32 %v906, %v1021
      %v1028 = vadd.f32 %v909, %v1021
      %v1029 = vadd.f32 %v914, %v1021
      %v1030 = vadd.f32 %v917, %v1021
      %v1031 = vadd.f32 %v922, %v1021
      %v1032 = vadd.f32 %v925, %v1021
      %v1033 = vadd.f32 %v930, %v1021
      %v1034 = vadd.f32 %v933, %v1021
      %v1035 = vadd.f32 %v938, %v1021
      %v1036 = vadd.f32 %v941, %v1021
      %v1037 = vadd.f32 %v946, %v1021
      %v1038 = vadd.f32 %v949, %v1021
      %v1039 = vadd.f32 %v954, %v1021
      %v1040 = vadd.f32 %v957, %v1021
      %v1041 = vadd.f32 %v962, %v1021
      %v1042 = vadd.f32 %v965, %v1021
      %v1043 = vadd.f32 %v970, %v1021
      %v1044 = vadd.f32 %v973, %v1021
      %v1045 = vadd.f32 %v978, %v1021
      %v1046 = vadd.f32 %v981, %v1021
      %v1047 = vadd.f32 %v986, %v1021
      %v1048 = vadd.f32 %v989, %v1021
      %v1049 = vadd.f32 %v994, %v1021
      %v1050 = vadd.f32 %v997, %v1021
      %v1051 = vadd.f32 %v1002, %v1021
      %v1052 = vadd.f32 %v1005, %v1021
      %v1053 = vadd.f32 %v1010, %v1021
      %v1054 = vadd.f32 %v1013, %v1021
      %v1055 = vtanh.pop %v1023
      %v1056 = vtanh.pop %v1024
      %v1057 = vtanh.pop %v1025
      %v1058 = vtanh.pop %v1026
      %v1059 = vtanh.pop %v1027
      %v1060 = vtanh.pop %v1028
      %v1061 = vtanh.pop %v1029
      %v1062 = vtanh.pop %v1030
      %v1063 = vtanh.pop %v1031
      %v1064 = vtanh.pop %v1032
      %v1065 = vtanh.pop %v1033
      %v1066 = vtanh.pop %v1034
      %v1067 = vtanh.pop %v1035
      %v1068 = vtanh.pop %v1036
      %v1069 = vtanh.pop %v1037
      %v1070 = vtanh.pop %v1038
      %v1071 = vtanh.pop %v1039
      %v1072 = vtanh.pop %v1040
      %v1073 = vtanh.pop %v1041
      %v1074 = vtanh.pop %v1042
      %v1075 = vtanh.pop %v1043
      %v1076 = vtanh.pop %v1044
      %v1077 = vtanh.pop %v1045
      %v1078 = vtanh.pop %v1046
      %v1079 = vtanh.pop %v1047
      %v1080 = vtanh.pop %v1048
      %v1081 = vtanh.pop %v1049
      %v1082 = vtanh.pop %v1050
      %v1083 = vtanh.pop %v1051
      %v1084 = vtanh.pop %v1052
      %v1085 = vtanh.pop %v1053
      %v1086 = vtanh.pop %v1054
      %vm1087 = vcmask 23552
      %1088 = vst.msk [vmem:[%s338] sm:$0xff] %vm1087, %v1055
      %1089 = vst.msk [vmem:[%s338 + $0x8] sm:$0xff] %vm1087, %v1056
      %1090 = vst.msk [vmem:[%s338 + $0x10] sm:$0xff] %vm1087, %v1057
      %1091 = vst.msk [vmem:[%s338 + $0x18] sm:$0xff] %vm1087, %v1058
      %1092 = vst.msk [vmem:[%s338 + $0x20] sm:$0xff] %vm1087, %v1059
      %1093 = vst.msk [vmem:[%s338 + $0x28] sm:$0xff] %vm1087, %v1060
      %1094 = vst.msk [vmem:[%s338 + $0x30] sm:$0xff] %vm1087, %v1061
      %1095 = vst.msk [vmem:[%s338 + $0x38] sm:$0xff] %vm1087, %v1062
      %1096 = vst.msk [vmem:[%s338 + $0x40] sm:$0xff] %vm1087, %v1063
      %1097 = vst.msk [vmem:[%s338 + $0x48] sm:$0xff] %vm1087, %v1064
      %1098 = vst.msk [vmem:[%s338 + $0x50] sm:$0xff] %vm1087, %v1065
      %1099 = vst.msk [vmem:[%s338 + $0x58] sm:$0xff] %vm1087, %v1066
      %1100 = vst.msk [vmem:[%s338 + $0x60] sm:$0xff] %vm1087, %v1067
      %1101 = vst.msk [vmem:[%s338 + $0x68] sm:$0xff] %vm1087, %v1068
      %1102 = vst.msk [vmem:[%s338 + $0x70] sm:$0xff] %vm1087, %v1069
      %1103 = vst.msk [vmem:[%s338 + $0x78] sm:$0xff] %vm1087, %v1070
      %1104 = vst.msk [vmem:[%s338 + $0x80] sm:$0xff] %vm1087, %v1071
      %1105 = vst.msk [vmem:[%s338 + $0x88] sm:$0xff] %vm1087, %v1072
      %1106 = vst.msk [vmem:[%s338 + $0x90] sm:$0xff] %vm1087, %v1073
      %1107 = vst.msk [vmem:[%s338 + $0x98] sm:$0xff] %vm1087, %v1074
      %1108 = vst.msk [vmem:[%s338 + $0xa0] sm:$0xff] %vm1087, %v1075
      %1109 = vst.msk [vmem:[%s338 + $0xa8] sm:$0xff] %vm1087, %v1076
      %1110 = vst.msk [vmem:[%s338 + $0xb0] sm:$0xff] %vm1087, %v1077
      %1111 = vst.msk [vmem:[%s338 + $0xb8] sm:$0xff] %vm1087, %v1078
      %1112 = vst.msk [vmem:[%s338 + $0xc0] sm:$0xff] %vm1087, %v1079
      %1113 = vst.msk [vmem:[%s338 + $0xc8] sm:$0xff] %vm1087, %v1080
      %1114 = vst.msk [vmem:[%s338 + $0xd0] sm:$0xff] %vm1087, %v1081
      %1115 = vst.msk [vmem:[%s338 + $0xd8] sm:$0xff] %vm1087, %v1082
      %1116 = vst.msk [vmem:[%s338 + $0xe0] sm:$0xff] %vm1087, %v1083
      %1117 = vst.msk [vmem:[%s338 + $0xe8] sm:$0xff] %vm1087, %v1084
      %1118 = vst.msk [vmem:[%s338 + $0xf0] sm:$0xff] %vm1087, %v1085
      %1119 = vst.msk [vmem:[%s338 + $0xf8] sm:$0xff] %vm1087, %v1086
      %s1120 = smul.u32 32, %s21
      %p1121 = scmp.lt.s32.totalorder %s20, 3
      %s1122 = scalar_select %p1121, %s20, 3
      %p1123 = scmp.lt.s32.totalorder %s1120, 63
      %s1124 = scalar_select %p1123, %s1120, 63
      %s1125 = smul.addr %s1122, 64
      %s1126 = sadd.s32 %s1124, %s1125
      %s1127 = smul.addr %s1126, 8
      %s1128 = scalar_lea.vmem %s5, %s1127
      // Predicated region
      $region41: #{_lambda_.33} parent=39 // pred_check
        %p1129 = pneg %p177
      $region42: #{_lambda_.33} parent=39 // pred_check_branch
        %1131 = sbr.rel (%p1129) target = $region44
      $region43: #{_lambda_.33} parent=39 // pred_region
        %s1132 = smul.u32 32, %s21
      $region44: #{_lambda_.33} parent=39 // pred_fallthru
        _
    $region40: #{_lambda_.33} parent=5 // pred_fallthru
      _
    %p1133 = scmp.le.s32.totalorder 2, %s11
    // Predicated region
    $region45: #{_lambda_.33} parent=5 // pred_check
      %p1134 = pneg %p1133
    $region46: #{_lambda_.33} parent=5 // pred_check_branch
      %1136 = sbr.rel (%p1134) target = $region48
    $region47: #{_lambda_.33} parent=5 // pred_region
      %s1137 = ssub.s32 %s11, 2
      // Predicated region
      $region49: #{_lambda_.33} parent=47 // pred_check
        %p1138 = pneg %p183
      $region50: #{_lambda_.33} parent=47 // pred_check_branch
        %1140 = sbr.rel (%p1138) target = $region52
      $region51: #{_lambda_.33} parent=47 // pred_region
        %s1141 = smul.u32 32, %s23
        %p1142 = scmp.lt.s32.totalorder %s22, 3
        %s1143 = scalar_select %p1142, %s22, 3
        %p1144 = scmp.lt.s32.totalorder %s1141, 63
        %s1145 = scalar_select %p1144, %s1141, 63
        %s1146 = smul.addr %s1143, 64
        %s1147 = sadd.s32 %s1145, %s1146
        %s1148 = smul.addr %s1147, 8
        %s1149 = scalar_lea.vmem %s5, %s1148
      $region52: #{_lambda_.33} parent=47 // pred_fallthru
        _
    $region48: #{_lambda_.33} parent=5 // pred_fallthru
      _
  $region6: #{_lambda_.33} parent=0 // loop_footer
    %s15 = sadd.s32 1, %s11
  $region7: #{_lambda_.33} parent=0 // loop_footer_branch
    %10 = sbr.rel target = $region3
  $region8: #{_lambda_.33} parent=0 // loop_exit
    _

</llo_original>
